<compile_context>
chip_gen: v6e
topology: v6e:2x2x1
jax: 0.10.0
libtpu: 0.0.40
codegen_flags: <defaults>
</compile_context>

<pallas_src>
import jax
import jax.numpy as jnp
from jax import lax
from jax.experimental import pallas as pl
from jax.experimental.pallas import tpu as pltpu


def _round_up(x, m):
    return (x + m - 1) // m * m


# ----------------------------- fused Pallas kernel ---------------------------

def _make_flow_kernel(H, W, C, FS):
    Ca = C // 2
    Np = W + 2                          # padded row width
    Rout = H * Np                       # conv-output rows on the padded-width grid
    Rpad = (H + 2) * Np                 # rows of the (H+2, W+2) padded image
    Rpa = _round_up(max(Rpad, 2 * Np + 2 + Rout), 8)   # xp/y/ap rows (+ margin)

    # h2p (bf16) layout: interior starts at a multiple of 16 sublanes.
    IOFF = _round_up(Np + 1, 16)        # sublane-aligned interior start
    BASE = IOFF - (Np + 1)              # flat row of padded position (0, 0)
    Rh = _round_up(BASE + 2 * Np + 2 + Rout, 16)        # h2p / zall rows

    def kernel(xp_ref, mint_ref, mval_ref, wc_ref, bc_ref, w1_ref, b1_ref,
               w2_ref, b2_ref, w3_ref, b3_ref, esc_ref,
               o_ref,
               y_ref, ap_ref, h2p_ref, zall_ref):
        f32 = jnp.float32
        bf16 = jnp.bfloat16

        # --- ActNorm folded into the 1x1 invertible conv: y = x @ Wc + bc --------
        xp = xp_ref[0]                                               # (Rpa, C)
        y = jnp.dot(xp, wc_ref[...], preferred_element_type=f32) + bc_ref[...]
        y_ref[...] = y
        # zero-padded in_a on the padded-flat grid (pad & margin rows -> 0)
        ap_ref[...] = y[:, :Ca] * mint_ref[...]

        # --- coupling net[0]: Conv2d(Ca, FS, 3, padding=1) + ReLU ----------------
        # 9 row-shifted windows of the tiny (Rpa, Ca) buffer -> one K=9*Ca matmul.
        cols = jnp.concatenate(
            [ap_ref[pl.ds(kh * Np + kw, Rout), :]
             for kh in range(3) for kw in range(3)], axis=-1)        # (Rout, 9*Ca)
        h1 = jnp.dot(cols.astype(bf16), w1_ref[...],
                     preferred_element_type=f32) + b1_ref[...]
        h1 = jnp.maximum(h1, 0.0)

        # --- coupling net[2]: Conv2d(FS, FS, 1) + ReLU (bf16 MXU, f32 acc) -------
        h2 = jnp.dot(h1.astype(bf16), w2_ref[...],
                     preferred_element_type=f32) + b2_ref[...]
        h2 = jnp.maximum(h2, 0.0)                                    # (Rout, FS) f32

        # --- ZeroConv2d: 3x3 conv over value-1 padded h2 (bf16 image) ------------
        # Ones-fill ONLY the border/margin rows; the interior is a single aligned
        # bf16 store (IOFF and Rout are multiples of 16 here).  Junk columns inside
        # the interior rows are forced to 1.0 via mval.
        h2p_ref[pl.ds(0, IOFF), :] = jnp.ones((IOFF, FS), bf16)
        h2p_ref[pl.ds(IOFF + Rout, Rh - IOFF - Rout), :] = jnp.ones(
            (Rh - IOFF - Rout, FS), bf16)
        h2p_ref[pl.ds(IOFF, Rout), :] = jnp.where(
            mval_ref[...] > 0.5, h2, 1.0).astype(bf16)
        # One (Rh, FS) x (FS, 9*C) matmul against all 9 taps, then 9 cheap shifted
        # adds of the small (rows, 9*C) result -- the 512-channel image is read once.
        zall_ref[...] = jnp.dot(h2p_ref[...], w3_ref[...],
                                preferred_element_type=f32)          # (Rh, 9*C)
        z = zall_ref[pl.ds(BASE, Rout), :][:, :C]
        for tap in range(1, 9):
            off = BASE + (tap // 3) * Np + (tap % 3)
            zt = zall_ref[pl.ds(off, Rout), :]
            z = z + zt[:, tap * C:(tap + 1) * C]
        z = (z + b3_ref[...]) * esc_ref[...]                         # (Rout, C)

        # --- affine coupling; pack lane-dense (C, Rout) output -------------------
        yv = y_ref[pl.ds(Np + 1, Rout), :]                           # (Rout, C)
        in_a = yv[:, :Ca]
        in_b = yv[:, Ca:]
        s = jax.nn.sigmoid(z[:, :Ca] + 2.0)
        t = z[:, Ca:]
        out = jnp.concatenate([in_a, (in_b + t) * s], axis=-1)       # (Rout, C)
        o_ref[0] = jnp.transpose(out)                                # (C, Rout)

    return kernel, Np, Rout, Rpa, Rh


# ------------------------------------ wrapper --------------------------------

@jax.jit
def flow_forward(x_nchw, params):
    B, C, H, W = x_nchw.shape
    Ca = C // 2
    FS = params["w2"].shape[0]
    f32 = jnp.float32
    bf16 = jnp.bfloat16

    kernel, Np, Rout, Rpa, Rh = _make_flow_kernel(H, W, C, FS)
    Rpad = (H + 2) * Np

    # padded-flat input: rows = row-major (H+2, W+2) grid (+ zero margin rows)
    x_nhwc = jnp.transpose(x_nchw, (0, 2, 3, 1)).astype(f32)
    xp = jnp.pad(x_nhwc, ((0, 0), (1, 1), (1, 1), (0, 0))).reshape(B, Rpad, C)
    xp = jnp.pad(xp, ((0, 0), (0, Rpa - Rpad), (0, 0)))

    # masks: interior of the padded grid / valid columns of the output grid
    r = jnp.arange(Rpa, dtype=jnp.int32)
    hp, wp = r // Np, r % Np
    mint = (((r < Rpad) & (hp >= 1) & (hp <= H) & (wp >= 1) & (wp <= W))
            .astype(f32)[:, None])                                   # (Rpa, 1)
    q = jnp.arange(Rout, dtype=jnp.int32)
    mval = ((q % Np) < W).astype(f32)[:, None]                       # (Rout, 1)

    # ActNorm folded into the invertible 1x1 conv
    wc = params["scale"].reshape(C, 1) * params["winvT"]             # (Cin, Cout)
    bc = (params["scale"] * params["loc"]) @ params["winvT"]         # (1, C)
    # conv weights in tap-major matmul layouts (bf16 MXU operands)
    w1c = params["w1"].reshape(9 * Ca, FS).astype(bf16)              # (9*Ca, FS)
    w3c = jnp.transpose(params["w3"], (2, 0, 1, 3)).reshape(FS, 9 * C).astype(bf16)
    esc = jnp.exp(params["zscale"] * 3.0)                            # (1, C)

    def full2(shape):
        return pl.BlockSpec(shape, lambda b: (0, 0))

    out_cr = pl.pallas_call(
        kernel,
        out_shape=jax.ShapeDtypeStruct((B, C, Rout), f32),
        grid=(B,),
        in_specs=[
            pl.BlockSpec((1, Rpa, C), lambda b: (b, 0, 0)),          # xp
            full2((Rpa, 1)), full2((Rout, 1)),                       # masks
            full2((C, C)), full2((1, C)),                            # wc, bc
            full2((9 * Ca, FS)), full2((1, FS)),                     # w1c, b1
            full2((FS, FS)), full2((1, FS)),                         # w2, b2
            full2((FS, 9 * C)), full2((1, C)), full2((1, C)),        # w3c, b3, esc
        ],
        out_specs=pl.BlockSpec((1, C, Rout), lambda b: (b, 0, 0)),   # lane-dense
        scratch_shapes=[
            pltpu.VMEM((Rpa, C), f32),          # y (actnorm+invconv output)
            pltpu.VMEM((Rpa, Ca), f32),         # zero-padded in_a
            pltpu.VMEM((Rh, FS), bf16),         # value-1 padded h2 (bf16)
            pltpu.VMEM((Rh, 9 * C), f32),       # zeroconv per-tap partials
        ],
        compiler_params=pltpu.CompilerParams(
            dimension_semantics=("parallel",),
            vmem_limit_bytes=16 * 1024 * 1024),
    )(xp, mint, mval, wc, bc, w1c, params["b1"],
      params["w2"].astype(bf16), params["b2"],
      w3c, params["b3"], esc)

    # (B, C, H*Np) on the padded-width grid -> drop junk columns; already NCHW.
    return out_cr.reshape(B, C, H, Np)[:, :, :, :W]


# --------------------------- parameter construction --------------------------

def init_flow_params(key, C, filter_size=512):
    ks = jax.random.split(key, 8)
    Ca = C // 2
    f32 = jnp.float32
    # ActNorm params.
    # TODO(synk): ActNorm's data-dependent first-call initialization (stateful
    # buffer) is replaced by deterministic synthetic params.
    loc = 0.1 * jax.random.normal(ks[0], (1, C), f32)
    scale = 1.0 + 0.1 * jax.random.normal(ks[1], (1, C), f32)
    # InvConv2dLU: W = P @ (L*l_mask + I) @ (U*u_mask + diag(sign(s)*exp(log|s|)))
    q, _ = jnp.linalg.qr(jax.random.normal(ks[2], (C, C), f32))
    p_m, l_m, u_m = jax.scipy.linalg.lu(q)
    w_s = jnp.diag(u_m)
    u_mask = jnp.triu(jnp.ones((C, C), f32), 1)
    l_mask = u_mask.T
    w = p_m @ (l_m * l_mask + jnp.eye(C, dtype=f32)) @ (
        u_m * u_mask + jnp.diag(jnp.sign(w_s) * jnp.exp(jnp.log(jnp.abs(w_s)))))
    winvT = w.T                 # torch conv weight is (Cout, Cin); kernel uses rows @ W.T
    # AffineCoupling net (weights kept in HWIO; == transpose of torch OIHW weight)
    w1 = 0.05 * jax.random.normal(ks[3], (3, 3, Ca, filter_size), f32)
    b1 = jnp.zeros((1, filter_size), f32)
    w2 = 0.05 * jax.random.normal(ks[4], (filter_size, filter_size), f32)
    b2 = jnp.zeros((1, filter_size), f32)
    # ZeroConv2d is zero-initialized in the reference; use small deterministic
    # values here so the kernel path is numerically exercised.
    w3 = 0.02 * jax.random.normal(ks[5], (3, 3, filter_size, C), f32)
    b3 = 0.01 * jax.random.normal(ks[6], (1, C), f32)
    zscale = 0.01 * jax.random.normal(ks[7], (1, C), f32)
    return dict(loc=loc, scale=scale, winvT=winvT, w1=w1, b1=b1, w2=w2, b2=b2,
                w3=w3, b3=b3, zscale=zscale)


# ------------------------------ pure-JAX reference ---------------------------

def flow_reference(x, p):
    """NCHW reference mirroring the PyTorch forward (for correctness check)."""
    C = x.shape[1]
    Ca = C // 2
    hi = lax.Precision.HIGHEST
    dn = ("NCHW", "OIHW", "NCHW")
    y = p["scale"].reshape(1, C, 1, 1) * (x + p["loc"].reshape(1, C, 1, 1))
    w = p["winvT"].T[:, :, None, None]
    y = lax.conv_general_dilated(y, w, (1, 1), "VALID", dimension_numbers=dn, precision=hi)
    in_a, in_b = y[:, :Ca], y[:, Ca:]
    w1 = jnp.transpose(p["w1"], (3, 2, 0, 1))
    h = lax.conv_general_dilated(in_a, w1, (1, 1), ((1, 1), (1, 1)),
                                 dimension_numbers=dn, precision=hi)
    h = jnp.maximum(h + p["b1"].reshape(1, -1, 1, 1), 0.0)
    w2 = p["w2"].T[:, :, None, None]
    h = lax.conv_general_dilated(h, w2, (1, 1), "VALID", dimension_numbers=dn, precision=hi)
    h = jnp.maximum(h + p["b2"].reshape(1, -1, 1, 1), 0.0)
    hp = jnp.pad(h, ((0, 0), (0, 0), (1, 1), (1, 1)), constant_values=1.0)
    w3 = jnp.transpose(p["w3"], (3, 2, 0, 1))
    z = lax.conv_general_dilated(hp, w3, (1, 1), "VALID", dimension_numbers=dn, precision=hi)
    z = (z + p["b3"].reshape(1, -1, 1, 1)) * jnp.exp(p["zscale"].reshape(1, -1, 1, 1) * 3.0)
    log_s, t = z[:, :Ca], z[:, Ca:]
    out_b = (in_b + t) * jax.nn.sigmoid(log_s + 2.0)
    return jnp.concatenate([in_a, out_b], axis=1)


# -------------------------------------- main ---------------------------------

if __name__ == "__main__":
    key = jax.random.PRNGKey(0)
    k_x, k_p = jax.random.split(key)
    B, C, H, W = 2, 4, 16, 16                       # NCHW input, like the torch module
    x = jax.random.normal(k_x, (B, C, H, W), jnp.float32)
    params = init_flow_params(k_p, C, filter_size=512)

    out = jax.block_until_ready(flow_forward(x, params))
    ref = flow_reference(x, params)

    assert out.shape == (B, C, H, W)
    # bf16 MXU operands (with f32 accumulation) in all conv matmuls introduce
    # ~1e-3-level rounding; 1e-2 tolerance cleanly separates that from real bugs.
    max_err = float(jnp.max(jnp.abs(out - ref)))
    assert bool(jnp.allclose(out, ref, rtol=1e-2, atol=1e-2)), max_err
    print("KERNEL_OK")
</pallas_src>

<mosaic_0001>
module attributes {stable_mosaic.version = 11 : i64} {
  func.func @kernel(%arg0: i32, %arg1: memref<1x328x4xf32, #tpu.memory_space<vmem>>, %arg2: memref<328x1xf32, #tpu.memory_space<vmem>>, %arg3: memref<288x1xf32, #tpu.memory_space<vmem>>, %arg4: memref<4x4xf32, #tpu.memory_space<vmem>>, %arg5: memref<1x4xf32, #tpu.memory_space<vmem>>, %arg6: memref<18x512xbf16, #tpu.memory_space<vmem>>, %arg7: memref<1x512xf32, #tpu.memory_space<vmem>>, %arg8: memref<512x512xbf16, #tpu.memory_space<vmem>>, %arg9: memref<1x512xf32, #tpu.memory_space<vmem>>, %arg10: memref<512x36xbf16, #tpu.memory_space<vmem>>, %arg11: memref<1x4xf32, #tpu.memory_space<vmem>>, %arg12: memref<1x4xf32, #tpu.memory_space<vmem>>, %arg13: memref<1x4x288xf32, #tpu.memory_space<vmem>>, %arg14: memref<328x4xf32, #tpu.memory_space<vmem>>, %arg15: memref<328x2xf32, #tpu.memory_space<vmem>>, %arg16: memref<352x512xbf16, #tpu.memory_space<vmem>>, %arg17: memref<352x36xf32, #tpu.memory_space<vmem>>) attributes {dimension_semantics = [#tpu.dimension_semantics<parallel>], iteration_bounds = array<i64: 2>, scalar_prefetch = 0 : i64, scratch_operands = 4 : i64, tpu.core_type = #tpu.core_type<tc>, window_params = [{transform_indices = @transform_0, window_bounds = array<i64: 1, 328, 4>}, {pipeline_mode = #tpu.pipeline_mode<synchronous>, transform_indices = @transform_1, window_bounds = array<i64: 328, 1>}, {pipeline_mode = #tpu.pipeline_mode<synchronous>, transform_indices = @transform_2, window_bounds = array<i64: 288, 1>}, {pipeline_mode = #tpu.pipeline_mode<synchronous>, transform_indices = @transform_3, window_bounds = array<i64: 4, 4>}, {pipeline_mode = #tpu.pipeline_mode<synchronous>, transform_indices = @transform_4, window_bounds = array<i64: 1, 4>}, {pipeline_mode = #tpu.pipeline_mode<synchronous>, transform_indices = @transform_5, window_bounds = array<i64: 18, 512>}, {pipeline_mode = #tpu.pipeline_mode<synchronous>, transform_indices = @transform_6, window_bounds = array<i64: 1, 512>}, {pipeline_mode = #tpu.pipeline_mode<synchronous>, transform_indices = @transform_7, window_bounds = array<i64: 512, 512>}, {pipeline_mode = #tpu.pipeline_mode<synchronous>, transform_indices = @transform_8, window_bounds = array<i64: 1, 512>}, {pipeline_mode = #tpu.pipeline_mode<synchronous>, transform_indices = @transform_9, window_bounds = array<i64: 512, 36>}, {pipeline_mode = #tpu.pipeline_mode<synchronous>, transform_indices = @transform_10, window_bounds = array<i64: 1, 4>}, {pipeline_mode = #tpu.pipeline_mode<synchronous>, transform_indices = @transform_11, window_bounds = array<i64: 1, 4>}, {transform_indices = @transform_12, window_bounds = array<i64: 1, 4, 288>}]} {
    %c0 = arith.constant 0 : index
    %c0_0 = arith.constant 0 : index
    %c0_1 = arith.constant 0 : index
    %0 = vector.load %arg1[%c0, %c0_0, %c0_1] : memref<1x328x4xf32, #tpu.memory_space<vmem>>, vector<1x328x4xf32>
    %1 = vector.shape_cast %0 : vector<1x328x4xf32> to vector<328x4xf32>
    %c0_2 = arith.constant 0 : index
    %c0_3 = arith.constant 0 : index
    %2 = vector.load %arg4[%c0_2, %c0_3] : memref<4x4xf32, #tpu.memory_space<vmem>>, vector<4x4xf32>
    %cst = arith.constant dense<0.000000e+00> : vector<328x4xf32>
    %3 = tpu.matmul %1, %2, %cst {dimension_numbers = #tpu.dot_dimension_numbers<[1], [0], [0], [1], [0, 0, 1, 1], [], []>} : vector<328x4xf32>, vector<4x4xf32>, vector<328x4xf32> -> vector<328x4xf32>
    %c0_4 = arith.constant 0 : index
    %c0_5 = arith.constant 0 : index
    %4 = vector.load %arg5[%c0_4, %c0_5] : memref<1x4xf32, #tpu.memory_space<vmem>>, vector<1x4xf32>
    %5 = vector.broadcast %4 : vector<1x4xf32> to vector<328x4xf32>
    %6 = arith.addf %3, %5 : vector<328x4xf32>
    %c0_6 = arith.constant 0 : index
    %c0_7 = arith.constant 0 : index
    %7 = vector.load %arg14[%c0_6, %c0_7] : memref<328x4xf32, #tpu.memory_space<vmem>>, vector<328x4xf32>
    tpu.vector_store %arg14[%c0_6, %c0_7], %6 {strides = array<i32>} : memref<328x4xf32, #tpu.memory_space<vmem>>, vector<328x4xf32>,
    %8 = vector.extract_strided_slice %6 {offsets = [0, 0], sizes = [328, 2], strides = [1, 1]} : vector<328x4xf32> to vector<328x2xf32>
    %c0_8 = arith.constant 0 : index
    %c0_9 = arith.constant 0 : index
    %9 = vector.load %arg2[%c0_8, %c0_9] : memref<328x1xf32, #tpu.memory_space<vmem>>, vector<328x1xf32>
    %10 = vector.broadcast %9 : vector<328x1xf32> to vector<328x2xf32>
    %11 = arith.mulf %8, %10 : vector<328x2xf32>
    %c0_10 = arith.constant 0 : index
    %c0_11 = arith.constant 0 : index
    %12 = vector.load %arg15[%c0_10, %c0_11] : memref<328x2xf32, #tpu.memory_space<vmem>>, vector<328x2xf32>
    tpu.vector_store %arg15[%c0_10, %c0_11], %11 {strides = array<i32>} : memref<328x2xf32, #tpu.memory_space<vmem>>, vector<328x2xf32>,
    %c0_12 = arith.constant 0 : index
    %c0_13 = arith.constant 0 : index
    %13 = vector.load %arg15[%c0_12, %c0_13] : memref<328x2xf32, #tpu.memory_space<vmem>>, vector<288x2xf32>
    %c1 = arith.constant 1 : index
    %c0_14 = arith.constant 0 : index
    %14 = vector.load %arg15[%c1, %c0_14] : memref<328x2xf32, #tpu.memory_space<vmem>>, vector<288x2xf32>
    %c2 = arith.constant 2 : index
    %c0_15 = arith.constant 0 : index
    %15 = vector.load %arg15[%c2, %c0_15] : memref<328x2xf32, #tpu.memory_space<vmem>>, vector<288x2xf32>
    %c18 = arith.constant 18 : index
    %c0_16 = arith.constant 0 : index
    %16 = vector.load %arg15[%c18, %c0_16] : memref<328x2xf32, #tpu.memory_space<vmem>>, vector<288x2xf32>
    %c19 = arith.constant 19 : index
    %c0_17 = arith.constant 0 : index
    %17 = vector.load %arg15[%c19, %c0_17] : memref<328x2xf32, #tpu.memory_space<vmem>>, vector<288x2xf32>
    %c20 = arith.constant 20 : index
    %c0_18 = arith.constant 0 : index
    %18 = vector.load %arg15[%c20, %c0_18] : memref<328x2xf32, #tpu.memory_space<vmem>>, vector<288x2xf32>
    %c36 = arith.constant 36 : index
    %c0_19 = arith.constant 0 : index
    %19 = vector.load %arg15[%c36, %c0_19] : memref<328x2xf32, #tpu.memory_space<vmem>>, vector<288x2xf32>
    %c37 = arith.constant 37 : index
    %c0_20 = arith.constant 0 : index
    %20 = vector.load %arg15[%c37, %c0_20] : memref<328x2xf32, #tpu.memory_space<vmem>>, vector<288x2xf32>
    %c38 = arith.constant 38 : index
    %c0_21 = arith.constant 0 : index
    %21 = vector.load %arg15[%c38, %c0_21] : memref<328x2xf32, #tpu.memory_space<vmem>>, vector<288x2xf32>
    %22 = tpu.concatenate %13, %14, %15, %16, %17, %18, %19, %20, %21 in 1 : vector<288x2xf32>, vector<288x2xf32>, vector<288x2xf32>, vector<288x2xf32>, vector<288x2xf32>, vector<288x2xf32>, vector<288x2xf32>, vector<288x2xf32>, vector<288x2xf32> -> vector<288x18xf32>
    %23 = arith.truncf %22 : vector<288x18xf32> to vector<288x18xbf16>
    %c0_22 = arith.constant 0 : index
    %c0_23 = arith.constant 0 : index
    %24 = vector.load %arg6[%c0_22, %c0_23] : memref<18x512xbf16, #tpu.memory_space<vmem>>, vector<18x512xbf16>
    %cst_24 = arith.constant dense<0.000000e+00> : vector<288x512xf32>
    %25 = tpu.matmul %23, %24, %cst_24 {dimension_numbers = #tpu.dot_dimension_numbers<[1], [0], [0], [1], [0, 0, 1, 1], [], []>} : vector<288x18xbf16>, vector<18x512xbf16>, vector<288x512xf32> -> vector<288x512xf32>
    %c0_25 = arith.constant 0 : index
    %c0_26 = arith.constant 0 : index
    %26 = vector.load %arg7[%c0_25, %c0_26] : memref<1x512xf32, #tpu.memory_space<vmem>>, vector<1x512xf32>
    %27 = vector.broadcast %26 : vector<1x512xf32> to vector<288x512xf32>
    %28 = arith.addf %25, %27 : vector<288x512xf32>
    %cst_27 = arith.constant 0.000000e+00 : f32
    %29 = vector.broadcast %cst_27 : f32 to vector<288x512xf32>
    %30 = arith.maximumf %28, %29 : vector<288x512xf32>
    %31 = arith.truncf %30 : vector<288x512xf32> to vector<288x512xbf16>
    %c0_28 = arith.constant 0 : index
    %c0_29 = arith.constant 0 : index
    %32 = vector.load %arg8[%c0_28, %c0_29] : memref<512x512xbf16, #tpu.memory_space<vmem>>, vector<512x512xbf16>
    %cst_30 = arith.constant dense<0.000000e+00> : vector<288x512xf32>
    %33 = tpu.matmul %31, %32, %cst_30 {dimension_numbers = #tpu.dot_dimension_numbers<[1], [0], [0], [1], [0, 0, 1, 1], [], []>} : vector<288x512xbf16>, vector<512x512xbf16>, vector<288x512xf32> -> vector<288x512xf32>
    %c0_31 = arith.constant 0 : index
    %c0_32 = arith.constant 0 : index
    %34 = vector.load %arg9[%c0_31, %c0_32] : memref<1x512xf32, #tpu.memory_space<vmem>>, vector<1x512xf32>
    %35 = vector.broadcast %34 : vector<1x512xf32> to vector<288x512xf32>
    %36 = arith.addf %33, %35 : vector<288x512xf32>
    %cst_33 = arith.constant 0.000000e+00 : f32
    %37 = vector.broadcast %cst_33 : f32 to vector<288x512xf32>
    %38 = arith.maximumf %36, %37 : vector<288x512xf32>
    %cst_34 = arith.constant 1.000000e+00 : bf16
    %39 = vector.broadcast %cst_34 : bf16 to vector<32x512xbf16>
    %c0_35 = arith.constant 0 : index
    %c0_36 = arith.constant 0 : index
    %40 = vector.load %arg16[%c0_35, %c0_36] : memref<352x512xbf16, #tpu.memory_space<vmem>>, vector<32x512xbf16>
    tpu.vector_store %arg16[%c0_35, %c0_36], %39 {strides = array<i32>} : memref<352x512xbf16, #tpu.memory_space<vmem>>, vector<32x512xbf16>,
    %cst_37 = arith.constant 1.000000e+00 : bf16
    %41 = vector.broadcast %cst_37 : bf16 to vector<32x512xbf16>
    %c320 = arith.constant 320 : index
    %c0_38 = arith.constant 0 : index
    %42 = vector.load %arg16[%c320, %c0_38] : memref<352x512xbf16, #tpu.memory_space<vmem>>, vector<32x512xbf16>
    tpu.vector_store %arg16[%c320, %c0_38], %41 {strides = array<i32>} : memref<352x512xbf16, #tpu.memory_space<vmem>>, vector<32x512xbf16>,
    %c0_39 = arith.constant 0 : index
    %c0_40 = arith.constant 0 : index
    %43 = vector.load %arg3[%c0_39, %c0_40] : memref<288x1xf32, #tpu.memory_space<vmem>>, vector<288x1xf32>
    %cst_41 = arith.constant 5.000000e-01 : f32
    %44 = vector.broadcast %cst_41 : f32 to vector<288x1xf32>
    %45 = arith.cmpf ogt, %43, %44 : vector<288x1xf32>
    %cst_42 = arith.constant 1.000000e+00 : f32
    %46 = vector.shape_cast %45 : vector<288x1xi1> to vector<288x1xi1>
    %47 = vector.broadcast %46 : vector<288x1xi1> to vector<288x512xi1>
    %48 = vector.broadcast %cst_42 : f32 to vector<288x512xf32>
    %49 = arith.select %47, %38, %48 : vector<288x512xi1>, vector<288x512xf32>
    %50 = arith.truncf %49 : vector<288x512xf32> to vector<288x512xbf16>
    %c32 = arith.constant 32 : index
    %c0_43 = arith.constant 0 : index
    %51 = vector.load %arg16[%c32, %c0_43] : memref<352x512xbf16, #tpu.memory_space<vmem>>, vector<288x512xbf16>
    tpu.vector_store %arg16[%c32, %c0_43], %50 {strides = array<i32>} : memref<352x512xbf16, #tpu.memory_space<vmem>>, vector<288x512xbf16>,
    %c0_44 = arith.constant 0 : index
    %c0_45 = arith.constant 0 : index
    %52 = vector.load %arg16[%c0_44, %c0_45] : memref<352x512xbf16, #tpu.memory_space<vmem>>, vector<352x512xbf16>
    %c0_46 = arith.constant 0 : index
    %c0_47 = arith.constant 0 : index
    %53 = vector.load %arg10[%c0_46, %c0_47] : memref<512x36xbf16, #tpu.memory_space<vmem>>, vector<512x36xbf16>
    %cst_48 = arith.constant dense<0.000000e+00> : vector<352x36xf32>
    %54 = tpu.matmul %52, %53, %cst_48 {dimension_numbers = #tpu.dot_dimension_numbers<[1], [0], [0], [1], [0, 0, 1, 1], [], []>} : vector<352x512xbf16>, vector<512x36xbf16>, vector<352x36xf32> -> vector<352x36xf32>
    %c0_49 = arith.constant 0 : index
    %c0_50 = arith.constant 0 : index
    %55 = vector.load %arg17[%c0_49, %c0_50] : memref<352x36xf32, #tpu.memory_space<vmem>>, vector<352x36xf32>
    tpu.vector_store %arg17[%c0_49, %c0_50], %54 {strides = array<i32>} : memref<352x36xf32, #tpu.memory_space<vmem>>, vector<352x36xf32>,
    %c13 = arith.constant 13 : index
    %c0_51 = arith.constant 0 : index
    %56 = vector.load %arg17[%c13, %c0_51] : memref<352x36xf32, #tpu.memory_space<vmem>>, vector<288x36xf32>
    %57 = vector.extract_strided_slice %56 {offsets = [0, 0], sizes = [288, 4], strides = [1, 1]} : vector<288x36xf32> to vector<288x4xf32>
    %c14 = arith.constant 14 : index
    %c0_52 = arith.constant 0 : index
    %58 = vector.load %arg17[%c14, %c0_52] : memref<352x36xf32, #tpu.memory_space<vmem>>, vector<288x36xf32>
    %59 = vector.extract_strided_slice %58 {offsets = [0, 4], sizes = [288, 4], strides = [1, 1]} : vector<288x36xf32> to vector<288x4xf32>
    %60 = arith.addf %57, %59 : vector<288x4xf32>
    %c15 = arith.constant 15 : index
    %c0_53 = arith.constant 0 : index
    %61 = vector.load %arg17[%c15, %c0_53] : memref<352x36xf32, #tpu.memory_space<vmem>>, vector<288x36xf32>
    %62 = vector.extract_strided_slice %61 {offsets = [0, 8], sizes = [288, 4], strides = [1, 1]} : vector<288x36xf32> to vector<288x4xf32>
    %63 = arith.addf %60, %62 : vector<288x4xf32>
    %c31 = arith.constant 31 : index
    %c0_54 = arith.constant 0 : index
    %64 = vector.load %arg17[%c31, %c0_54] : memref<352x36xf32, #tpu.memory_space<vmem>>, vector<288x36xf32>
    %65 = vector.extract_strided_slice %64 {offsets = [0, 12], sizes = [288, 4], strides = [1, 1]} : vector<288x36xf32> to vector<288x4xf32>
    %66 = arith.addf %63, %65 : vector<288x4xf32>
    %c32_55 = arith.constant 32 : index
    %c0_56 = arith.constant 0 : index
    %67 = vector.load %arg17[%c32_55, %c0_56] : memref<352x36xf32, #tpu.memory_space<vmem>>, vector<288x36xf32>
    %68 = vector.extract_strided_slice %67 {offsets = [0, 16], sizes = [288, 4], strides = [1, 1]} : vector<288x36xf32> to vector<288x4xf32>
    %69 = arith.addf %66, %68 : vector<288x4xf32>
    %c33 = arith.constant 33 : index
    %c0_57 = arith.constant 0 : index
    %70 = vector.load %arg17[%c33, %c0_57] : memref<352x36xf32, #tpu.memory_space<vmem>>, vector<288x36xf32>
    %71 = vector.extract_strided_slice %70 {offsets = [0, 20], sizes = [288, 4], strides = [1, 1]} : vector<288x36xf32> to vector<288x4xf32>
    %72 = arith.addf %69, %71 : vector<288x4xf32>
    %c49 = arith.constant 49 : index
    %c0_58 = arith.constant 0 : index
    %73 = vector.load %arg17[%c49, %c0_58] : memref<352x36xf32, #tpu.memory_space<vmem>>, vector<288x36xf32>
    %74 = vector.extract_strided_slice %73 {offsets = [0, 24], sizes = [288, 4], strides = [1, 1]} : vector<288x36xf32> to vector<288x4xf32>
    %75 = arith.addf %72, %74 : vector<288x4xf32>
    %c50 = arith.constant 50 : index
    %c0_59 = arith.constant 0 : index
    %76 = vector.load %arg17[%c50, %c0_59] : memref<352x36xf32, #tpu.memory_space<vmem>>, vector<288x36xf32>
    %77 = vector.extract_strided_slice %76 {offsets = [0, 28], sizes = [288, 4], strides = [1, 1]} : vector<288x36xf32> to vector<288x4xf32>
    %78 = arith.addf %75, %77 : vector<288x4xf32>
    %c51 = arith.constant 51 : index
    %c0_60 = arith.constant 0 : index
    %79 = vector.load %arg17[%c51, %c0_60] : memref<352x36xf32, #tpu.memory_space<vmem>>, vector<288x36xf32>
    %80 = vector.extract_strided_slice %79 {offsets = [0, 32], sizes = [288, 4], strides = [1, 1]} : vector<288x36xf32> to vector<288x4xf32>
    %81 = arith.addf %78, %80 : vector<288x4xf32>
    %c0_61 = arith.constant 0 : index
    %c0_62 = arith.constant 0 : index
    %82 = vector.load %arg11[%c0_61, %c0_62] : memref<1x4xf32, #tpu.memory_space<vmem>>, vector<1x4xf32>
    %83 = vector.broadcast %82 : vector<1x4xf32> to vector<288x4xf32>
    %84 = arith.addf %81, %83 : vector<288x4xf32>
    %c0_63 = arith.constant 0 : index
    %c0_64 = arith.constant 0 : index
    %85 = vector.load %arg12[%c0_63, %c0_64] : memref<1x4xf32, #tpu.memory_space<vmem>>, vector<1x4xf32>
    %86 = vector.broadcast %85 : vector<1x4xf32> to vector<288x4xf32>
    %87 = arith.mulf %84, %86 : vector<288x4xf32>
    %c19_65 = arith.constant 19 : index
    %c0_66 = arith.constant 0 : index
    %88 = vector.load %arg14[%c19_65, %c0_66] : memref<328x4xf32, #tpu.memory_space<vmem>>, vector<288x4xf32>
    %89 = vector.extract_strided_slice %88 {offsets = [0, 0], sizes = [288, 2], strides = [1, 1]} : vector<288x4xf32> to vector<288x2xf32>
    %90 = vector.extract_strided_slice %88 {offsets = [0, 2], sizes = [288, 2], strides = [1, 1]} : vector<288x4xf32> to vector<288x2xf32>
    %91 = vector.extract_strided_slice %87 {offsets = [0, 0], sizes = [288, 2], strides = [1, 1]} : vector<288x4xf32> to vector<288x2xf32>
    %cst_67 = arith.constant 2.000000e+00 : f32
    %92 = vector.broadcast %cst_67 : f32 to vector<288x2xf32>
    %93 = arith.addf %91, %92 : vector<288x2xf32>
    %94 = arith.negf %93 : vector<288x2xf32>
    %95 = math.exp %94 : vector<288x2xf32>
    %cst_68 = arith.constant 1.000000e+00 : f32
    %96 = vector.broadcast %cst_68 : f32 to vector<288x2xf32>
    %97 = arith.addf %96, %95 : vector<288x2xf32>
    %98 = arith.divf %96, %97 : vector<288x2xf32>
    %99 = vector.extract_strided_slice %87 {offsets = [0, 2], sizes = [288, 2], strides = [1, 1]} : vector<288x4xf32> to vector<288x2xf32>
    %100 = arith.addf %90, %99 : vector<288x2xf32>
    %101 = arith.mulf %100, %98 : vector<288x2xf32>
    %102 = tpu.concatenate %89, %101 in 1 : vector<288x2xf32>, vector<288x2xf32> -> vector<288x4xf32>
    %103 = tpu.transpose %102, [1, 0] : vector<288x4xf32> -> vector<4x288xf32>
    %c0_69 = arith.constant 0 : index
    %c0_70 = arith.constant 0 : index
    %c0_71 = arith.constant 0 : index
    %104 = vector.load %arg13[%c0_69, %c0_70, %c0_71] : memref<1x4x288xf32, #tpu.memory_space<vmem>>, vector<1x4x288xf32>
    %105 = vector.shape_cast %104 : vector<1x4x288xf32> to vector<4x288xf32>
    %106 = vector.shape_cast %103 : vector<4x288xf32> to vector<1x4x288xf32>
    tpu.vector_store %arg13[%c0_69, %c0_70, %c0_71], %106 {strides = array<i32>} : memref<1x4x288xf32, #tpu.memory_space<vmem>>, vector<1x4x288xf32>,
    return
  }
  func.func @transform_0(%arg0: i32) -> (i32, i32, i32) {
    %c0_i32 = arith.constant 0 : i32
    %c0_i32_0 = arith.constant 0 : i32
    %c0_i32_1 = arith.constant 0 : i32
    return %arg0, %c0_i32, %c0_i32_0 : i32, i32, i32
  }
  func.func @transform_1(%arg0: i32) -> (i32, i32) {
    %c0_i32 = arith.constant 0 : i32
    %c0_i32_0 = arith.constant 0 : i32
    %c0_i32_1 = arith.constant 0 : i32
    return %c0_i32, %c0_i32_0 : i32, i32
  }
  func.func @transform_2(%arg0: i32) -> (i32, i32) {
    %c0_i32 = arith.constant 0 : i32
    %c0_i32_0 = arith.constant 0 : i32
    %c0_i32_1 = arith.constant 0 : i32
    return %c0_i32, %c0_i32_0 : i32, i32
  }
  func.func @transform_3(%arg0: i32) -> (i32, i32) {
    %c0_i32 = arith.constant 0 : i32
    %c0_i32_0 = arith.constant 0 : i32
    %c0_i32_1 = arith.constant 0 : i32
    return %c0_i32, %c0_i32_0 : i32, i32
  }
  func.func @transform_4(%arg0: i32) -> (i32, i32) {
    %c0_i32 = arith.constant 0 : i32
    %c0_i32_0 = arith.constant 0 : i32
    %c0_i32_1 = arith.constant 0 : i32
    return %c0_i32, %c0_i32_0 : i32, i32
  }
  func.func @transform_5(%arg0: i32) -> (i32, i32) {
    %c0_i32 = arith.constant 0 : i32
    %c0_i32_0 = arith.constant 0 : i32
    %c0_i32_1 = arith.constant 0 : i32
    return %c0_i32, %c0_i32_0 : i32, i32
  }
  func.func @transform_6(%arg0: i32) -> (i32, i32) {
    %c0_i32 = arith.constant 0 : i32
    %c0_i32_0 = arith.constant 0 : i32
    %c0_i32_1 = arith.constant 0 : i32
    return %c0_i32, %c0_i32_0 : i32, i32
  }
  func.func @transform_7(%arg0: i32) -> (i32, i32) {
    %c0_i32 = arith.constant 0 : i32
    %c0_i32_0 = arith.constant 0 : i32
    %c0_i32_1 = arith.constant 0 : i32
    return %c0_i32, %c0_i32_0 : i32, i32
  }
  func.func @transform_8(%arg0: i32) -> (i32, i32) {
    %c0_i32 = arith.constant 0 : i32
    %c0_i32_0 = arith.constant 0 : i32
    %c0_i32_1 = arith.constant 0 : i32
    return %c0_i32, %c0_i32_0 : i32, i32
  }
  func.func @transform_9(%arg0: i32) -> (i32, i32) {
    %c0_i32 = arith.constant 0 : i32
    %c0_i32_0 = arith.constant 0 : i32
    %c0_i32_1 = arith.constant 0 : i32
    return %c0_i32, %c0_i32_0 : i32, i32
  }
  func.func @transform_10(%arg0: i32) -> (i32, i32) {
    %c0_i32 = arith.constant 0 : i32
    %c0_i32_0 = arith.constant 0 : i32
    %c0_i32_1 = arith.constant 0 : i32
    return %c0_i32, %c0_i32_0 : i32, i32
  }
  func.func @transform_11(%arg0: i32) -> (i32, i32) {
    %c0_i32 = arith.constant 0 : i32
    %c0_i32_0 = arith.constant 0 : i32
    %c0_i32_1 = arith.constant 0 : i32
    return %c0_i32, %c0_i32_0 : i32, i32
  }
  func.func @transform_12(%arg0: i32) -> (i32, i32, i32) {
    %c0_i32 = arith.constant 0 : i32
    %c0_i32_0 = arith.constant 0 : i32
    %c0_i32_1 = arith.constant 0 : i32
    return %arg0, %c0_i32, %c0_i32_0 : i32, i32, i32
  }
}

</mosaic_0001>

<llo_original>
// kernel: flow_forward.1
$region0: #{flow_forward.1}
  #allocation0 [shape = 'u32[]', space=smem, size = 0x4, offset = 0x4, fixed_abs, tag = 'smem constant byte address 0x4 - core index']
  #allocation1 [shape = 'u32[144,128]{1,0:T(1,128)}', space=vmem, size = 0x12000, scoped, tag = 'internal scratch']
  #allocation2 [shape = 'f32[328,4]{1,0:T(8,128)}', space=vmem, size = 0x29000, scoped, tag = 'scratch operand']
  #allocation3 [shape = 'f32[328,2]{1,0:T(8,128)}', space=vmem, size = 0x29000, scoped, tag = 'scratch operand']
  #allocation4 [shape = 'bf16[352,512]{1,0:T(8,128)(2,1)}', space=vmem, size = 0x58000, scoped, tag = 'scratch operand']
  #allocation5 [shape = 'f32[352,36]{1,0:T(8,128)}', space=vmem, size = 0x2c000, scoped, tag = 'scratch operand']
  %s0 = inlined_call_operand.vmem [shape: f32[2,328,4], index: 0, kind: input, shape index: {}]
  %s1 = inlined_call_operand.vmem [shape: f32[328,1], index: 1, kind: input, shape index: {}]
  %s2 = inlined_call_operand.vmem [shape: f32[288,1], index: 2, kind: input, shape index: {}]
  %s3 = inlined_call_operand.vmem [shape: f32[4,4], index: 3, kind: input, shape index: {}]
  %s4 = inlined_call_operand.vmem [shape: f32[1,4], index: 4, kind: input, shape index: {}]
  %s5 = inlined_call_operand.vmem [shape: bf16[18,512], index: 5, kind: input, shape index: {}]
  %s6 = inlined_call_operand.vmem [shape: f32[1,512], index: 6, kind: input, shape index: {}]
  %s7 = inlined_call_operand.vmem [shape: bf16[512,512], index: 7, kind: input, shape index: {}]
  %s8 = inlined_call_operand.vmem [shape: f32[1,512], index: 8, kind: input, shape index: {}]
  %s9 = inlined_call_operand.vmem [shape: bf16[512,36], index: 9, kind: input, shape index: {}]
  %s10 = inlined_call_operand.vmem [shape: f32[1,4], index: 10, kind: input, shape index: {}]
  %s11 = inlined_call_operand.vmem [shape: f32[1,4], index: 11, kind: input, shape index: {}]
  %s12 = inlined_call_operand.vmem [shape: f32[2,4,288], index: 12, kind: output, shape index: {}]
  %s13 = sld [smem:[#allocation0]]
  $region81: #{flow_forward.1} parent=0
    _
  %s15 = ssub.s32 1, %s13
  %s16 = scalar_select 0, %s15, %s13
  loop: start=0, step=1, limit=4
  $region2: #{flow_forward.1} parent=0 // loop_pre_header
    _
  $region3: #{flow_forward.1} parent=0 // loop_header
    %s18 = sphi 0, %s22
    %p19 = scmp.ge.s32.totalorder %s18, 4
    %s28 = sphi 0, %s30
    %s31 = sphi 0, %s28
    %s32 = sphi 0, %s31
    %s48 = sphi 0, %s32
    %s52 = sphi 0, %s52
    %s54 = sphi 0, %s52
    %s55 = sphi 0, %s54
    %s69 = sphi 0, %s55
    %s73 = sphi 0, %s73
    %s75 = sphi 0, %s73
    %s76 = sphi 0, %s75
    %s90 = sphi 0, %s76
    %s94 = sphi 0, %s94
    %s96 = sphi 0, %s94
    %s97 = sphi 0, %s96
    %s111 = sphi 0, %s97
    %s115 = sphi 0, %s115
    %s117 = sphi 0, %s115
    %s118 = sphi 0, %s117
    %s132 = sphi 0, %s118
    %s136 = sphi 0, %s136
    %s138 = sphi 0, %s136
    %s139 = sphi 0, %s138
    %s153 = sphi 0, %s139
    %s157 = sphi 0, %s157
    %s159 = sphi 0, %s157
    %s160 = sphi 0, %s159
    %s174 = sphi 0, %s160
    %s178 = sphi 0, %s178
    %s180 = sphi 0, %s178
    %s181 = sphi 0, %s180
    %s195 = sphi 0, %s181
    %s199 = sphi 0, %s199
    %s201 = sphi 0, %s199
    %s202 = sphi 0, %s201
    %s216 = sphi 0, %s202
    %s220 = sphi 0, %s220
    %s222 = sphi 0, %s220
    %s223 = sphi 0, %s222
    %s237 = sphi 0, %s223
    %s241 = sphi 0, %s241
    %s243 = sphi 0, %s241
    %s244 = sphi 0, %s243
    %s258 = sphi 0, %s244
    %s262 = sphi 0, %s262
    %s264 = sphi 0, %s262
    %s265 = sphi 0, %s264
    %s279 = sphi 0, %s265
    %s285 = sphi 0, %s287
    %s288 = sphi 0, %s285
    %s289 = sphi 0, %s288
    %s305 = sphi 0, %s289
  $region4: #{flow_forward.1} parent=0 // loop_header_branch
    %21 = sbr.rel (%p19) target = $region8
  $region5: #{flow_forward.1} parent=0 // loop_body
    %s23 = ssub.s32 %s18, 1
    %s24 = ssub.s32 %s18, 2
    %s25 = sadd.s32 %s18, 1
    %s26 = ssub.s32 %s18, %s25
    %p27 = scmp.eq.s32.totalorder %s26, 0
    %s29 = sadd.s32 %s28, 1
    %s30 = scalar_select %p27, %s28, %s29
    %p33 = pneg %p27
    %p34 = scmp.eq.s32.totalorder %s18, 1
    %p35 = por %p33, %p34
    %p36 = scmp.ne.s32.totalorder %s28, %s31
    %p37 = scmp.eq.s32.totalorder %s18, 0
    %p38 = por %p36, %p37
    %p39 = scmp.ne.s32.totalorder %s28, %s31
    %p40 = scmp.eq.s32.totalorder %s23, 1
    %p41 = por %p39, %p40
    %p42 = scmp.ne.s32.totalorder %s31, %s32
    %p43 = scmp.eq.s32.totalorder %s23, 0
    %p44 = por %p42, %p43
    %p45 = scmp.ne.s32.totalorder %s31, %s32
    %p46 = scmp.eq.s32.totalorder %s24, 1
    %p47 = por %p45, %p46
    %p49 = scmp.ne.s32.totalorder %s32, %s48
    %p50 = scmp.eq.s32.totalorder %s24, 0
    %p51 = por %p49, %p50
    %s53 = sadd.s32 %s52, 1
    %p56 = scmp.eq.s32.totalorder %s18, 1
    %p57 = scmp.ne.s32.totalorder %s52, %s54
    %p58 = scmp.eq.s32.totalorder %s18, 0
    %p59 = por %p57, %p58
    %p60 = scmp.ne.s32.totalorder %s52, %s54
    %p61 = scmp.eq.s32.totalorder %s23, 1
    %p62 = por %p60, %p61
    %p63 = scmp.ne.s32.totalorder %s54, %s55
    %p64 = scmp.eq.s32.totalorder %s23, 0
    %p65 = por %p63, %p64
    %p66 = scmp.ne.s32.totalorder %s54, %s55
    %p67 = scmp.eq.s32.totalorder %s24, 1
    %p68 = por %p66, %p67
    %p70 = scmp.ne.s32.totalorder %s55, %s69
    %p71 = scmp.eq.s32.totalorder %s24, 0
    %p72 = por %p70, %p71
    %s74 = sadd.s32 %s73, 1
    %p77 = scmp.eq.s32.totalorder %s18, 1
    %p78 = scmp.ne.s32.totalorder %s73, %s75
    %p79 = scmp.eq.s32.totalorder %s18, 0
    %p80 = por %p78, %p79
    %p81 = scmp.ne.s32.totalorder %s73, %s75
    %p82 = scmp.eq.s32.totalorder %s23, 1
    %p83 = por %p81, %p82
    %p84 = scmp.ne.s32.totalorder %s75, %s76
    %p85 = scmp.eq.s32.totalorder %s23, 0
    %p86 = por %p84, %p85
    %p87 = scmp.ne.s32.totalorder %s75, %s76
    %p88 = scmp.eq.s32.totalorder %s24, 1
    %p89 = por %p87, %p88
    %p91 = scmp.ne.s32.totalorder %s76, %s90
    %p92 = scmp.eq.s32.totalorder %s24, 0
    %p93 = por %p91, %p92
    %s95 = sadd.s32 %s94, 1
    %p98 = scmp.eq.s32.totalorder %s18, 1
    %p99 = scmp.ne.s32.totalorder %s94, %s96
    %p100 = scmp.eq.s32.totalorder %s18, 0
    %p101 = por %p99, %p100
    %p102 = scmp.ne.s32.totalorder %s94, %s96
    %p103 = scmp.eq.s32.totalorder %s23, 1
    %p104 = por %p102, %p103
    %p105 = scmp.ne.s32.totalorder %s96, %s97
    %p106 = scmp.eq.s32.totalorder %s23, 0
    %p107 = por %p105, %p106
    %p108 = scmp.ne.s32.totalorder %s96, %s97
    %p109 = scmp.eq.s32.totalorder %s24, 1
    %p110 = por %p108, %p109
    %p112 = scmp.ne.s32.totalorder %s97, %s111
    %p113 = scmp.eq.s32.totalorder %s24, 0
    %p114 = por %p112, %p113
    %s116 = sadd.s32 %s115, 1
    %p119 = scmp.eq.s32.totalorder %s18, 1
    %p120 = scmp.ne.s32.totalorder %s115, %s117
    %p121 = scmp.eq.s32.totalorder %s18, 0
    %p122 = por %p120, %p121
    %p123 = scmp.ne.s32.totalorder %s115, %s117
    %p124 = scmp.eq.s32.totalorder %s23, 1
    %p125 = por %p123, %p124
    %p126 = scmp.ne.s32.totalorder %s117, %s118
    %p127 = scmp.eq.s32.totalorder %s23, 0
    %p128 = por %p126, %p127
    %p129 = scmp.ne.s32.totalorder %s117, %s118
    %p130 = scmp.eq.s32.totalorder %s24, 1
    %p131 = por %p129, %p130
    %p133 = scmp.ne.s32.totalorder %s118, %s132
    %p134 = scmp.eq.s32.totalorder %s24, 0
    %p135 = por %p133, %p134
    %s137 = sadd.s32 %s136, 1
    %p140 = scmp.eq.s32.totalorder %s18, 1
    %p141 = scmp.ne.s32.totalorder %s136, %s138
    %p142 = scmp.eq.s32.totalorder %s18, 0
    %p143 = por %p141, %p142
    %p144 = scmp.ne.s32.totalorder %s136, %s138
    %p145 = scmp.eq.s32.totalorder %s23, 1
    %p146 = por %p144, %p145
    %p147 = scmp.ne.s32.totalorder %s138, %s139
    %p148 = scmp.eq.s32.totalorder %s23, 0
    %p149 = por %p147, %p148
    %p150 = scmp.ne.s32.totalorder %s138, %s139
    %p151 = scmp.eq.s32.totalorder %s24, 1
    %p152 = por %p150, %p151
    %p154 = scmp.ne.s32.totalorder %s139, %s153
    %p155 = scmp.eq.s32.totalorder %s24, 0
    %p156 = por %p154, %p155
    %s158 = sadd.s32 %s157, 1
    %p161 = scmp.eq.s32.totalorder %s18, 1
    %p162 = scmp.ne.s32.totalorder %s157, %s159
    %p163 = scmp.eq.s32.totalorder %s18, 0
    %p164 = por %p162, %p163
    %p165 = scmp.ne.s32.totalorder %s157, %s159
    %p166 = scmp.eq.s32.totalorder %s23, 1
    %p167 = por %p165, %p166
    %p168 = scmp.ne.s32.totalorder %s159, %s160
    %p169 = scmp.eq.s32.totalorder %s23, 0
    %p170 = por %p168, %p169
    %p171 = scmp.ne.s32.totalorder %s159, %s160
    %p172 = scmp.eq.s32.totalorder %s24, 1
    %p173 = por %p171, %p172
    %p175 = scmp.ne.s32.totalorder %s160, %s174
    %p176 = scmp.eq.s32.totalorder %s24, 0
    %p177 = por %p175, %p176
    %s179 = sadd.s32 %s178, 1
    %p182 = scmp.eq.s32.totalorder %s18, 1
    %p183 = scmp.ne.s32.totalorder %s178, %s180
    %p184 = scmp.eq.s32.totalorder %s18, 0
    %p185 = por %p183, %p184
    %p186 = scmp.ne.s32.totalorder %s178, %s180
    %p187 = scmp.eq.s32.totalorder %s23, 1
    %p188 = por %p186, %p187
    %p189 = scmp.ne.s32.totalorder %s180, %s181
    %p190 = scmp.eq.s32.totalorder %s23, 0
    %p191 = por %p189, %p190
    %p192 = scmp.ne.s32.totalorder %s180, %s181
    %p193 = scmp.eq.s32.totalorder %s24, 1
    %p194 = por %p192, %p193
    %p196 = scmp.ne.s32.totalorder %s181, %s195
    %p197 = scmp.eq.s32.totalorder %s24, 0
    %p198 = por %p196, %p197
    %s200 = sadd.s32 %s199, 1
    %p203 = scmp.eq.s32.totalorder %s18, 1
    %p204 = scmp.ne.s32.totalorder %s199, %s201
    %p205 = scmp.eq.s32.totalorder %s18, 0
    %p206 = por %p204, %p205
    %p207 = scmp.ne.s32.totalorder %s199, %s201
    %p208 = scmp.eq.s32.totalorder %s23, 1
    %p209 = por %p207, %p208
    %p210 = scmp.ne.s32.totalorder %s201, %s202
    %p211 = scmp.eq.s32.totalorder %s23, 0
    %p212 = por %p210, %p211
    %p213 = scmp.ne.s32.totalorder %s201, %s202
    %p214 = scmp.eq.s32.totalorder %s24, 1
    %p215 = por %p213, %p214
    %p217 = scmp.ne.s32.totalorder %s202, %s216
    %p218 = scmp.eq.s32.totalorder %s24, 0
    %p219 = por %p217, %p218
    %s221 = sadd.s32 %s220, 1
    %p224 = scmp.eq.s32.totalorder %s18, 1
    %p225 = scmp.ne.s32.totalorder %s220, %s222
    %p226 = scmp.eq.s32.totalorder %s18, 0
    %p227 = por %p225, %p226
    %p228 = scmp.ne.s32.totalorder %s220, %s222
    %p229 = scmp.eq.s32.totalorder %s23, 1
    %p230 = por %p228, %p229
    %p231 = scmp.ne.s32.totalorder %s222, %s223
    %p232 = scmp.eq.s32.totalorder %s23, 0
    %p233 = por %p231, %p232
    %p234 = scmp.ne.s32.totalorder %s222, %s223
    %p235 = scmp.eq.s32.totalorder %s24, 1
    %p236 = por %p234, %p235
    %p238 = scmp.ne.s32.totalorder %s223, %s237
    %p239 = scmp.eq.s32.totalorder %s24, 0
    %p240 = por %p238, %p239
    %s242 = sadd.s32 %s241, 1
    %p245 = scmp.eq.s32.totalorder %s18, 1
    %p246 = scmp.ne.s32.totalorder %s241, %s243
    %p247 = scmp.eq.s32.totalorder %s18, 0
    %p248 = por %p246, %p247
    %p249 = scmp.ne.s32.totalorder %s241, %s243
    %p250 = scmp.eq.s32.totalorder %s23, 1
    %p251 = por %p249, %p250
    %p252 = scmp.ne.s32.totalorder %s243, %s244
    %p253 = scmp.eq.s32.totalorder %s23, 0
    %p254 = por %p252, %p253
    %p255 = scmp.ne.s32.totalorder %s243, %s244
    %p256 = scmp.eq.s32.totalorder %s24, 1
    %p257 = por %p255, %p256
    %p259 = scmp.ne.s32.totalorder %s244, %s258
    %p260 = scmp.eq.s32.totalorder %s24, 0
    %p261 = por %p259, %p260
    %s263 = sadd.s32 %s262, 1
    %p266 = scmp.eq.s32.totalorder %s18, 1
    %p267 = scmp.ne.s32.totalorder %s262, %s264
    %p268 = scmp.eq.s32.totalorder %s18, 0
    %p269 = por %p267, %p268
    %p270 = scmp.ne.s32.totalorder %s262, %s264
    %p271 = scmp.eq.s32.totalorder %s23, 1
    %p272 = por %p270, %p271
    %p273 = scmp.ne.s32.totalorder %s264, %s265
    %p274 = scmp.eq.s32.totalorder %s23, 0
    %p275 = por %p273, %p274
    %p276 = scmp.ne.s32.totalorder %s264, %s265
    %p277 = scmp.eq.s32.totalorder %s24, 1
    %p278 = por %p276, %p277
    %p280 = scmp.ne.s32.totalorder %s265, %s279
    %p281 = scmp.eq.s32.totalorder %s24, 0
    %p282 = por %p280, %p281
    %s283 = ssub.s32 %s18, %s25
    %p284 = scmp.eq.s32.totalorder %s283, 0
    %s286 = sadd.s32 %s285, 1
    %s287 = scalar_select %p284, %s285, %s286
    %p290 = pneg %p284
    %p291 = scmp.eq.s32.totalorder %s18, 1
    %p292 = por %p290, %p291
    %p293 = scmp.ne.s32.totalorder %s285, %s288
    %p294 = scmp.eq.s32.totalorder %s18, 0
    %p295 = por %p293, %p294
    %p296 = scmp.ne.s32.totalorder %s285, %s288
    %p297 = scmp.eq.s32.totalorder %s23, 1
    %p298 = por %p296, %p297
    %p299 = scmp.ne.s32.totalorder %s288, %s289
    %p300 = scmp.eq.s32.totalorder %s23, 0
    %p301 = por %p299, %p300
    %p302 = scmp.ne.s32.totalorder %s288, %s289
    %p303 = scmp.eq.s32.totalorder %s24, 1
    %p304 = por %p302, %p303
    %p306 = scmp.ne.s32.totalorder %s289, %s305
    %p307 = scmp.eq.s32.totalorder %s24, 0
    %p308 = por %p306, %p307
    %p309 = scmp.le.s32.totalorder 1, %s18
    %p310 = scmp.lt.s32.totalorder %s18, 3
    %p311 = pnand %p309, %p310
    %p312 = pneg %p311
    // Predicated region
    $region9: #{flow_forward.1} parent=5 // pred_check
      _
    $region10: #{flow_forward.1} parent=5 // pred_check_branch
      %314 = sbr.rel (%p311) target = $region12
    $region11: #{flow_forward.1} parent=5 // pred_region
      %s315 = ssub.s32 %s18, 1
      // Predicated region
      $region13: #{flow_forward.1} parent=11 // pred_check
        %p316 = pneg %p65
      $region14: #{flow_forward.1} parent=11 // pred_check_branch
        %318 = sbr.rel (%p316) target = $region16
      $region15: #{flow_forward.1} parent=11 // pred_region
        _
      $region16: #{flow_forward.1} parent=11 // pred_fallthru
        _
      // Predicated region
      $region17: #{flow_forward.1} parent=11 // pred_check
        %p319 = pneg %p86
      $region18: #{flow_forward.1} parent=11 // pred_check_branch
        %321 = sbr.rel (%p319) target = $region20
      $region19: #{flow_forward.1} parent=11 // pred_region
        _
      $region20: #{flow_forward.1} parent=11 // pred_fallthru
        _
      // Predicated region
      $region21: #{flow_forward.1} parent=11 // pred_check
        %p322 = pneg %p107
      $region22: #{flow_forward.1} parent=11 // pred_check_branch
        %324 = sbr.rel (%p322) target = $region24
      $region23: #{flow_forward.1} parent=11 // pred_region
        _
      $region24: #{flow_forward.1} parent=11 // pred_fallthru
        _
      // Predicated region
      $region25: #{flow_forward.1} parent=11 // pred_check
        %p325 = pneg %p128
      $region26: #{flow_forward.1} parent=11 // pred_check_branch
        %327 = sbr.rel (%p325) target = $region28
      $region27: #{flow_forward.1} parent=11 // pred_region
        _
      $region28: #{flow_forward.1} parent=11 // pred_fallthru
        _
      // Predicated region
      $region29: #{flow_forward.1} parent=11 // pred_check
        %p328 = pneg %p149
      $region30: #{flow_forward.1} parent=11 // pred_check_branch
        %330 = sbr.rel (%p328) target = $region32
      $region31: #{flow_forward.1} parent=11 // pred_region
        _
      $region32: #{flow_forward.1} parent=11 // pred_fallthru
        _
      // Predicated region
      $region33: #{flow_forward.1} parent=11 // pred_check
        %p331 = pneg %p170
      $region34: #{flow_forward.1} parent=11 // pred_check_branch
        %333 = sbr.rel (%p331) target = $region36
      $region35: #{flow_forward.1} parent=11 // pred_region
        _
      $region36: #{flow_forward.1} parent=11 // pred_fallthru
        _
      // Predicated region
      $region37: #{flow_forward.1} parent=11 // pred_check
        %p334 = pneg %p191
      $region38: #{flow_forward.1} parent=11 // pred_check_branch
        %336 = sbr.rel (%p334) target = $region40
      $region39: #{flow_forward.1} parent=11 // pred_region
        _
      $region40: #{flow_forward.1} parent=11 // pred_fallthru
        _
      // Predicated region
      $region41: #{flow_forward.1} parent=11 // pred_check
        %p337 = pneg %p212
      $region42: #{flow_forward.1} parent=11 // pred_check_branch
        %339 = sbr.rel (%p337) target = $region44
      $region43: #{flow_forward.1} parent=11 // pred_region
        _
      $region44: #{flow_forward.1} parent=11 // pred_fallthru
        _
      // Predicated region
      $region45: #{flow_forward.1} parent=11 // pred_check
        %p340 = pneg %p233
      $region46: #{flow_forward.1} parent=11 // pred_check_branch
        %342 = sbr.rel (%p340) target = $region48
      $region47: #{flow_forward.1} parent=11 // pred_region
        _
      $region48: #{flow_forward.1} parent=11 // pred_fallthru
        _
      // Predicated region
      $region49: #{flow_forward.1} parent=11 // pred_check
        %p343 = pneg %p254
      $region50: #{flow_forward.1} parent=11 // pred_check_branch
        %345 = sbr.rel (%p343) target = $region52
      $region51: #{flow_forward.1} parent=11 // pred_region
        _
      $region52: #{flow_forward.1} parent=11 // pred_fallthru
        _
      // Predicated region
      $region53: #{flow_forward.1} parent=11 // pred_check
        %p346 = pneg %p275
      $region54: #{flow_forward.1} parent=11 // pred_check_branch
        %348 = sbr.rel (%p346) target = $region56
      $region55: #{flow_forward.1} parent=11 // pred_region
        _
      $region56: #{flow_forward.1} parent=11 // pred_fallthru
        _
    $region12: #{flow_forward.1} parent=5 // pred_fallthru
      _
    %p349 = scmp.lt.s32.totalorder %s18, 2
    // Predicated region
    $region57: #{flow_forward.1} parent=5 // pred_check
      %p350 = pneg %p349
    $region58: #{flow_forward.1} parent=5 // pred_check_branch
      %352 = sbr.rel (%p350) target = $region60
    $region59: #{flow_forward.1} parent=5 // pred_region
      // Predicated region
      $region61: #{flow_forward.1} parent=59 // pred_check
        %p353 = pneg %p38
      $region62: #{flow_forward.1} parent=59 // pred_check_branch
        %355 = sbr.rel (%p353) target = $region64
      $region63: #{flow_forward.1} parent=59 // pred_region
        %p356 = scmp.lt.s32.totalorder %s18, 1
        %s357 = scalar_select %p356, %s18, 1
        %s358 = smul.addr %s357, 41
        %s359 = smul.addr %s358, 8
        %s360 = scalar_lea.vmem %s0, %s359
      $region64: #{flow_forward.1} parent=59 // pred_fallthru
        _
    $region60: #{flow_forward.1} parent=5 // pred_fallthru
      _
    %p361 = scmp.le.s32.totalorder 1, %s18
    %p362 = scmp.lt.s32.totalorder %s18, 3
    %p363 = pnand %p361, %p362
    %p364 = pneg %p363
    // Predicated region
    $region65: #{flow_forward.1} parent=5 // pred_check
      _
    $region66: #{flow_forward.1} parent=5 // pred_check_branch
      %366 = sbr.rel (%p363) target = $region68
    $region67: #{flow_forward.1} parent=5 // pred_region
      %s367 = ssub.s32 %s18, 1
      %p368 = scmp.lt.s32.totalorder %s23, 1
      %s369 = scalar_select %p368, %s23, 1
      %s370 = smul.addr %s369, 41
      %s371 = smul.addr %s370, 8
      %s372 = scalar_lea.vmem %s0, %s371
      %p373 = pneg %p44
      %p374 = pneg %p41
      %p375 = pneg %p65
      %p376 = pneg %p62
      %p377 = pneg %p86
      %p378 = pneg %p83
      %p379 = pneg %p107
      %p380 = pneg %p104
      %p381 = pneg %p128
      %p382 = pneg %p125
      %p383 = pneg %p149
      %p384 = pneg %p146
      %p385 = pneg %p170
      %p386 = pneg %p167
      %p387 = pneg %p191
      %p388 = pneg %p188
      %p389 = pneg %p212
      %p390 = pneg %p209
      %p391 = pneg %p233
      %p392 = pneg %p230
      %p393 = pneg %p254
      %p394 = pneg %p251
      %p395 = pneg %p275
      %p396 = pneg %p272
      %p397 = pneg %p301
      %p398 = pneg %p298
      %p399 = scmp.lt.s32.totalorder %s23, 1
      %s400 = scalar_select %p399, %s23, 1
      %s401 = smul.addr %s400, 3
      %s402 = smul.addr %s401, 4
      %s403 = scalar_lea.vmem %s12, %s402
      %p404 = scmp.lt.s32.totalorder %s23, 1
      %s405 = scalar_select %p404, %s23, 1
      %s406 = smul.addr %s405, 41
      %s407 = smul.addr %s406, 8
      %s408 = scalar_lea.vmem %s0, %s407
      %p409 = scmp.lt.s32.totalorder %s23, 1
      %s410 = scalar_select %p409, %s23, 1
      %s411 = smul.addr %s410, 3
      %s412 = smul.addr %s411, 4
      %s413 = scalar_lea.vmem %s12, %s412
      %v416 = vld [vmem:[%s408] sm:$0xff]
      %v417 = vld [vmem:[%s408 + $0x8] sm:$0xff]
      %v418 = vld [vmem:[%s408 + $0x10] sm:$0xff]
      %v419 = vld [vmem:[%s408 + $0x18] sm:$0xff]
      %v420 = vld [vmem:[%s408 + $0x20] sm:$0xff]
      %v421 = vld [vmem:[%s408 + $0x28] sm:$0xff]
      %v422 = vld [vmem:[%s408 + $0x30] sm:$0xff]
      %v423 = vld [vmem:[%s408 + $0x38] sm:$0xff]
      %v424 = vld [vmem:[%s408 + $0x40] sm:$0xff]
      %v425 = vld [vmem:[%s408 + $0x48] sm:$0xff]
      %v426 = vld [vmem:[%s408 + $0x50] sm:$0xff]
      %v427 = vld [vmem:[%s408 + $0x58] sm:$0xff]
      %v428 = vld [vmem:[%s408 + $0x60] sm:$0xff]
      %v429 = vld [vmem:[%s408 + $0x68] sm:$0xff]
      %v430 = vld [vmem:[%s408 + $0x70] sm:$0xff]
      %v431 = vld [vmem:[%s408 + $0x78] sm:$0xff]
      %v432 = vld [vmem:[%s408 + $0x80] sm:$0xff]
      %v433 = vld [vmem:[%s408 + $0x88] sm:$0xff]
      %v434 = vld [vmem:[%s408 + $0x90] sm:$0xff]
      %v435 = vld [vmem:[%s408 + $0x98] sm:$0xff]
      %v436 = vld [vmem:[%s408 + $0xa0] sm:$0xff]
      %v437 = vld [vmem:[%s408 + $0xa8] sm:$0xff]
      %v438 = vld [vmem:[%s408 + $0xb0] sm:$0xff]
      %v439 = vld [vmem:[%s408 + $0xb8] sm:$0xff]
      %v440 = vld [vmem:[%s408 + $0xc0] sm:$0xff]
      %v441 = vld [vmem:[%s408 + $0xc8] sm:$0xff]
      %v442 = vld [vmem:[%s408 + $0xd0] sm:$0xff]
      %v443 = vld [vmem:[%s408 + $0xd8] sm:$0xff]
      %v444 = vld [vmem:[%s408 + $0xe0] sm:$0xff]
      %v445 = vld [vmem:[%s408 + $0xe8] sm:$0xff]
      %v446 = vld [vmem:[%s408 + $0xf0] sm:$0xff]
      %v447 = vld [vmem:[%s408 + $0xf8] sm:$0xff]
      %v448 = vld [vmem:[%s408 + $0x100] sm:$0xff]
      %v449 = vld [vmem:[%s408 + $0x108] sm:$0xff]
      %v450 = vld [vmem:[%s408 + $0x110] sm:$0xff]
      %v451 = vld [vmem:[%s408 + $0x118] sm:$0xff]
      %v452 = vld [vmem:[%s408 + $0x120] sm:$0xff]
      %v453 = vld [vmem:[%s408 + $0x128] sm:$0xff]
      %v454 = vld [vmem:[%s408 + $0x130] sm:$0xff]
      %v455 = vld [vmem:[%s408 + $0x138] sm:$0xff]
      %v456 = vld [vmem:[%s408 + $0x140] sm:$0xff]
      %v457 = vld [vmem:[%s3] sm:$0xf]
      %v458 = vld [vmem:[%s4] sm:$0x1]
      %v460 = vlaneseq
      %v461 = vshrl.u32 %v460, 7
      %v462 = vsub.s32 0, %v461
      %v463 = vrot.slane %v458, %v462
      %vm465 = vcmask 31744
      %v467 = vsel %vm465, %v416, 0
      %v470 = vsel %vm465, %v417, 0
      %v473 = vsel %vm465, %v418, 0
      %v476 = vsel %vm465, %v419, 0
      %v479 = vsel %vm465, %v420, 0
      %v482 = vsel %vm465, %v421, 0
      %v485 = vsel %vm465, %v422, 0
      %v488 = vsel %vm465, %v423, 0
      %v491 = vsel %vm465, %v424, 0
      %v494 = vsel %vm465, %v425, 0
      %v497 = vsel %vm465, %v426, 0
      %v500 = vsel %vm465, %v427, 0
      %v503 = vsel %vm465, %v428, 0
      %v506 = vsel %vm465, %v429, 0
      %v509 = vsel %vm465, %v430, 0
      %v512 = vsel %vm465, %v431, 0
      %v515 = vsel %vm465, %v432, 0
      %v518 = vsel %vm465, %v433, 0
      %v521 = vsel %vm465, %v434, 0
      %v524 = vsel %vm465, %v435, 0
      %v527 = vsel %vm465, %v436, 0
      %v530 = vsel %vm465, %v437, 0
      %v533 = vsel %vm465, %v438, 0
      %v536 = vsel %vm465, %v439, 0
      %v539 = vsel %vm465, %v440, 0
      %v542 = vsel %vm465, %v441, 0
      %v545 = vsel %vm465, %v442, 0
      %v548 = vsel %vm465, %v443, 0
      %v551 = vsel %vm465, %v444, 0
      %v554 = vsel %vm465, %v445, 0
      %v557 = vsel %vm465, %v446, 0
      %v560 = vsel %vm465, %v447, 0
      %v563 = vsel %vm465, %v448, 0
      %v566 = vsel %vm465, %v449, 0
      %v569 = vsel %vm465, %v450, 0
      %v572 = vsel %vm465, %v451, 0
      %v575 = vsel %vm465, %v452, 0
      %v578 = vsel %vm465, %v453, 0
      %v581 = vsel %vm465, %v454, 0
      %v584 = vsel %vm465, %v455, 0
      %v587 = vsel %vm465, %v456, 0
      %vm589 = vcmask 1043456
      %v591 = vsel %vm589, %v457, 0
      %593 = vmatprep.subr.mxu0 0.0
      %594 = vmatpush1.msra.mxu0 0.0
      %595 = vmatprep.subr.mxu0 0.0
      %596 = vmatpush1.msra.mxu0 0.0
      %597 = vmatprep.subr.mxu0 0.0
      %598 = vmatpush1.msra.mxu0 0.0
      %599 = vmatprep.subr.mxu0 0.0
      %600 = vmatpush1.msra.mxu0 0.0
      %601 = vmatprep.subr.mxu0 0.0
      %602 = vmatpush1.msra.mxu0 0.0
      %603 = vmatprep.subr.mxu0 0.0
      %604 = vmatpush1.msra.mxu0 0.0
      %605 = vmatprep.subr.mxu0 0.0
      %606 = vmatpush1.msra.mxu0 0.0
      %607 = vmatprep.subr.mxu0 0.0
      %608 = vmatpush1.msra.mxu0 0.0
      %609 = vmatprep.subr.mxu0 0.0
      %610 = vmatpush1.msra.mxu0 0.0
      %611 = vmatprep.subr.mxu0 0.0
      %612 = vmatpush1.msra.mxu0 0.0
      %613 = vmatprep.subr.mxu0 0.0
      %614 = vmatpush1.msra.mxu0 0.0
      %615 = vmatprep.subr.mxu0 0.0
      %616 = vmatpush1.msra.mxu0 0.0
      %617 = vmatprep.subr.mxu0 0.0
      %618 = vmatpush1.msra.mxu0 0.0
      %619 = vmatprep.subr.mxu0 0.0
      %620 = vmatpush1.msra.mxu0 0.0
      %621 = vmatprep.subr.mxu0 0.0
      %622 = vmatpush1.msra.mxu0 0.0
      %623 = vmatprep.subr.mxu0 0.0
      %624 = vmatpush1.msra.mxu0 %v591
      %625 = vmatprep.subr.mxu0 0.0
      %626 = vmatpush2.msra.mxu0 0.0
      %627 = vmatprep.subr.mxu0 0.0
      %628 = vmatpush2.msra.mxu0 0.0
      %629 = vmatprep.subr.mxu0 0.0
      %630 = vmatpush2.msra.mxu0 0.0
      %631 = vmatprep.subr.mxu0 0.0
      %632 = vmatpush2.msra.mxu0 0.0
      %633 = vmatprep.subr.mxu0 0.0
      %634 = vmatpush2.msra.mxu0 0.0
      %635 = vmatprep.subr.mxu0 0.0
      %636 = vmatpush2.msra.mxu0 0.0
      %637 = vmatprep.subr.mxu0 0.0
      %638 = vmatpush2.msra.mxu0 0.0
      %639 = vmatprep.subr.mxu0 0.0
      %640 = vmatpush2.msra.mxu0 0.0
      %641 = vmatprep.subr.mxu0 0.0
      %642 = vmatpush2.msra.mxu0 0.0
      %643 = vmatprep.subr.mxu0 0.0
      %644 = vmatpush2.msra.mxu0 0.0
      %645 = vmatprep.subr.mxu0 0.0
      %646 = vmatpush2.msra.mxu0 0.0
      %647 = vmatprep.subr.mxu0 0.0
      %648 = vmatpush2.msra.mxu0 0.0
      %649 = vmatprep.subr.mxu0 0.0
      %650 = vmatpush2.msra.mxu0 0.0
      %651 = vmatprep.subr.mxu0 0.0
      %652 = vmatpush2.msra.mxu0 0.0
      %653 = vmatprep.subr.mxu0 0.0
      %654 = vmatpush2.msra.mxu0 0.0
      %655 = vmatprep.subr.mxu0 0.0
      %656 = vmatpush2.msra.mxu0 0.0
      %657 = vmatprep.mubr.f32.mxu0 0.0
      %658 = vmatmul.mubr.f32.gmra.mxu0 %v467
      %v659 = vpop.f32.mrf.mxu0
      %v660 = vadd.f32 %v463, %v659
      %v661 = vpop.f32.mrf.mxu0
      %662 = vmatprep.mubr.f32.mxu0 0.0
      %663 = vmatmul.mubr.f32.gmra.mxu0 %v470
      %v664 = vpop.f32.mrf.mxu0
      %v665 = vadd.f32 %v463, %v664
      %v666 = vpop.f32.mrf.mxu0
      %667 = vmatprep.mubr.f32.mxu0 0.0
      %668 = vmatmul.mubr.f32.gmra.mxu0 %v473
      %v669 = vpop.f32.mrf.mxu0
      %v670 = vadd.f32 %v463, %v669
      %v671 = vpop.f32.mrf.mxu0
      %672 = vmatprep.mubr.f32.mxu0 0.0
      %673 = vmatmul.mubr.f32.gmra.mxu0 %v476
      %v674 = vpop.f32.mrf.mxu0
      %v675 = vadd.f32 %v463, %v674
      %v676 = vpop.f32.mrf.mxu0
      %677 = vmatprep.mubr.f32.mxu0 0.0
      %678 = vmatmul.mubr.f32.gmra.mxu0 %v479
      %v679 = vpop.f32.mrf.mxu0
      %v680 = vadd.f32 %v463, %v679
      %v681 = vpop.f32.mrf.mxu0
      %682 = vmatprep.mubr.f32.mxu0 0.0
      %683 = vmatmul.mubr.f32.gmra.mxu0 %v482
      %v684 = vpop.f32.mrf.mxu0
      %v685 = vadd.f32 %v463, %v684
      %v686 = vpop.f32.mrf.mxu0
      %687 = vmatprep.mubr.f32.mxu0 0.0
      %688 = vmatmul.mubr.f32.gmra.mxu0 %v485
      %v689 = vpop.f32.mrf.mxu0
      %v690 = vadd.f32 %v463, %v689
      %v691 = vpop.f32.mrf.mxu0
      %692 = vmatprep.mubr.f32.mxu0 0.0
      %693 = vmatmul.mubr.f32.gmra.mxu0 %v488
      %v694 = vpop.f32.mrf.mxu0
      %v695 = vadd.f32 %v463, %v694
      %v696 = vpop.f32.mrf.mxu0
      %697 = vmatprep.mubr.f32.mxu0 0.0
      %698 = vmatmul.mubr.f32.gmra.mxu0 %v491
      %v699 = vpop.f32.mrf.mxu0
      %v700 = vadd.f32 %v463, %v699
      %v701 = vpop.f32.mrf.mxu0
      %702 = vmatprep.mubr.f32.mxu0 0.0
      %703 = vmatmul.mubr.f32.gmra.mxu0 %v494
      %v704 = vpop.f32.mrf.mxu0
      %v705 = vadd.f32 %v463, %v704
      %v706 = vpop.f32.mrf.mxu0
      %707 = vmatprep.mubr.f32.mxu0 0.0
      %708 = vmatmul.mubr.f32.gmra.mxu0 %v497
      %v709 = vpop.f32.mrf.mxu0
      %v710 = vadd.f32 %v463, %v709
      %v711 = vpop.f32.mrf.mxu0
      %712 = vmatprep.mubr.f32.mxu0 0.0
      %713 = vmatmul.mubr.f32.gmra.mxu0 %v500
      %v714 = vpop.f32.mrf.mxu0
      %v715 = vadd.f32 %v463, %v714
      %v716 = vpop.f32.mrf.mxu0
      %717 = vmatprep.mubr.f32.mxu0 0.0
      %718 = vmatmul.mubr.f32.gmra.mxu0 %v503
      %v719 = vpop.f32.mrf.mxu0
      %v720 = vadd.f32 %v463, %v719
      %v721 = vpop.f32.mrf.mxu0
      %722 = vmatprep.mubr.f32.mxu0 0.0
      %723 = vmatmul.mubr.f32.gmra.mxu0 %v506
      %v724 = vpop.f32.mrf.mxu0
      %v725 = vadd.f32 %v463, %v724
      %v726 = vpop.f32.mrf.mxu0
      %727 = vmatprep.mubr.f32.mxu0 0.0
      %728 = vmatmul.mubr.f32.gmra.mxu0 %v509
      %v729 = vpop.f32.mrf.mxu0
      %v730 = vadd.f32 %v463, %v729
      %v731 = vpop.f32.mrf.mxu0
      %732 = vmatprep.mubr.f32.mxu0 0.0
      %733 = vmatmul.mubr.f32.gmra.mxu0 %v512
      %v734 = vpop.f32.mrf.mxu0
      %v735 = vadd.f32 %v463, %v734
      %v736 = vpop.f32.mrf.mxu0
      %737 = vmatprep.mubr.f32.mxu0 0.0
      %738 = vmatmul.mubr.f32.gmra.mxu0 %v515
      %v739 = vpop.f32.mrf.mxu0
      %v740 = vadd.f32 %v463, %v739
      %v741 = vpop.f32.mrf.mxu0
      %742 = vmatprep.mubr.f32.mxu0 0.0
      %743 = vmatmul.mubr.f32.gmra.mxu0 %v518
      %v744 = vpop.f32.mrf.mxu0
      %v745 = vadd.f32 %v463, %v744
      %v746 = vpop.f32.mrf.mxu0
      %747 = vmatprep.mubr.f32.mxu0 0.0
      %748 = vmatmul.mubr.f32.gmra.mxu0 %v521
      %v749 = vpop.f32.mrf.mxu0
      %v750 = vadd.f32 %v463, %v749
      %v751 = vpop.f32.mrf.mxu0
      %752 = vmatprep.mubr.f32.mxu0 0.0
      %753 = vmatmul.mubr.f32.gmra.mxu0 %v524
      %v754 = vpop.f32.mrf.mxu0
      %v755 = vadd.f32 %v463, %v754
      %v756 = vpop.f32.mrf.mxu0
      %757 = vmatprep.mubr.f32.mxu0 0.0
      %758 = vmatmul.mubr.f32.gmra.mxu0 %v527
      %v759 = vpop.f32.mrf.mxu0
      %v760 = vadd.f32 %v463, %v759
      %v761 = vpop.f32.mrf.mxu0
      %762 = vmatprep.mubr.f32.mxu0 0.0
      %763 = vmatmul.mubr.f32.gmra.mxu0 %v530
      %v764 = vpop.f32.mrf.mxu0
      %v765 = vadd.f32 %v463, %v764
      %v766 = vpop.f32.mrf.mxu0
      %767 = vmatprep.mubr.f32.mxu0 0.0
      %768 = vmatmul.mubr.f32.gmra.mxu0 %v533
      %v769 = vpop.f32.mrf.mxu0
      %v770 = vadd.f32 %v463, %v769
      %v771 = vpop.f32.mrf.mxu0
      %772 = vmatprep.mubr.f32.mxu0 0.0
      %773 = vmatmul.mubr.f32.gmra.mxu0 %v536
      %v774 = vpop.f32.mrf.mxu0
      %v775 = vadd.f32 %v463, %v774
      %v776 = vpop.f32.mrf.mxu0
      %777 = vmatprep.mubr.f32.mxu0 0.0
      %778 = vmatmul.mubr.f32.gmra.mxu0 %v539
      %v779 = vpop.f32.mrf.mxu0
      %v780 = vadd.f32 %v463, %v779
      %v781 = vpop.f32.mrf.mxu0
      %782 = vmatprep.mubr.f32.mxu0 0.0
      %783 = vmatmul.mubr.f32.gmra.mxu0 %v542
      %v784 = vpop.f32.mrf.mxu0
      %v785 = vadd.f32 %v463, %v784
      %v786 = vpop.f32.mrf.mxu0
      %787 = vmatprep.mubr.f32.mxu0 0.0
      %788 = vmatmul.mubr.f32.gmra.mxu0 %v545
      %v789 = vpop.f32.mrf.mxu0
      %v790 = vadd.f32 %v463, %v789
      %v791 = vpop.f32.mrf.mxu0
      %792 = vmatprep.mubr.f32.mxu0 0.0
      %793 = vmatmul.mubr.f32.gmra.mxu0 %v548
      %v794 = vpop.f32.mrf.mxu0
      %v795 = vadd.f32 %v463, %v794
      %v796 = vpop.f32.mrf.mxu0
      %797 = vmatprep.mubr.f32.mxu0 0.0
      %798 = vmatmul.mubr.f32.gmra.mxu0 %v551
      %v799 = vpop.f32.mrf.mxu0
      %v800 = vadd.f32 %v463, %v799
      %v801 = vpop.f32.mrf.mxu0
      %802 = vmatprep.mubr.f32.mxu0 0.0
      %803 = vmatmul.mubr.f32.gmra.mxu0 %v554
      %v804 = vpop.f32.mrf.mxu0
      %v805 = vadd.f32 %v463, %v804
      %v806 = vpop.f32.mrf.mxu0
      %807 = vmatprep.mubr.f32.mxu0 0.0
      %808 = vmatmul.mubr.f32.gmra.mxu0 %v557
      %v809 = vpop.f32.mrf.mxu0
      %v810 = vadd.f32 %v463, %v809
      %v811 = vpop.f32.mrf.mxu0
      %812 = vmatprep.mubr.f32.mxu0 0.0
      %813 = vmatmul.mubr.f32.gmra.mxu0 %v560
      %v814 = vpop.f32.mrf.mxu0
      %v815 = vadd.f32 %v463, %v814
      %v816 = vpop.f32.mrf.mxu0
      %817 = vmatprep.mubr.f32.mxu0 0.0
      %818 = vmatmul.mubr.f32.gmra.mxu0 %v563
      %v819 = vpop.f32.mrf.mxu0
      %v820 = vadd.f32 %v463, %v819
      %v821 = vpop.f32.mrf.mxu0
      %822 = vmatprep.mubr.f32.mxu0 0.0
      %823 = vmatmul.mubr.f32.gmra.mxu0 %v566
      %v824 = vpop.f32.mrf.mxu0
      %v825 = vadd.f32 %v463, %v824
      %v826 = vpop.f32.mrf.mxu0
      %827 = vmatprep.mubr.f32.mxu0 0.0
      %828 = vmatmul.mubr.f32.gmra.mxu0 %v569
      %v829 = vpop.f32.mrf.mxu0
      %v830 = vadd.f32 %v463, %v829
      %v831 = vpop.f32.mrf.mxu0
      %832 = vmatprep.mubr.f32.mxu0 0.0
      %833 = vmatmul.mubr.f32.gmra.mxu0 %v572
      %v834 = vpop.f32.mrf.mxu0
      %v835 = vadd.f32 %v463, %v834
      %v836 = vpop.f32.mrf.mxu0
      %837 = vmatprep.mubr.f32.mxu0 0.0
      %838 = vmatmul.mubr.f32.gmra.mxu0 %v575
      %v839 = vpop.f32.mrf.mxu0
      %v840 = vadd.f32 %v463, %v839
      %v841 = vpop.f32.mrf.mxu0
      %842 = vmatprep.mubr.f32.mxu0 0.0
      %843 = vmatmul.mubr.f32.gmra.mxu0 %v578
      %v844 = vpop.f32.mrf.mxu0
      %v845 = vadd.f32 %v463, %v844
      %v846 = vpop.f32.mrf.mxu0
      %847 = vmatprep.mubr.f32.mxu0 0.0
      %848 = vmatmul.mubr.f32.gmra.mxu0 %v581
      %v849 = vpop.f32.mrf.mxu0
      %v850 = vadd.f32 %v463, %v849
      %v851 = vpop.f32.mrf.mxu0
      %852 = vmatprep.mubr.f32.mxu0 0.0
      %853 = vmatmul.mubr.f32.gmra.mxu0 %v584
      %v854 = vpop.f32.mrf.mxu0
      %v855 = vadd.f32 %v463, %v854
      %v856 = vpop.f32.mrf.mxu0
      %857 = vmatprep.mubr.f32.mxu0 0.0
      %858 = vmatmul.mubr.f32.gmra.mxu0 %v587
      %v859 = vpop.f32.mrf.mxu0
      %v860 = vadd.f32 %v463, %v859
      %v861 = vpop.f32.mrf.mxu0
      %862 = vdwg.mxu0
      %863 = vst.msk [vmem:[#allocation2] sm:$0xff] %vm465, %v660
      %864 = vst.msk [vmem:[#allocation2 + $0x8] sm:$0xff] %vm465, %v665
      %865 = vst.msk [vmem:[#allocation2 + $0x10] sm:$0xff] %vm465, %v670
      %866 = vst.msk [vmem:[#allocation2 + $0x18] sm:$0xff] %vm465, %v675
      %867 = vst.msk [vmem:[#allocation2 + $0x20] sm:$0xff] %vm465, %v680
      %868 = vst.msk [vmem:[#allocation2 + $0x28] sm:$0xff] %vm465, %v685
      %869 = vst.msk [vmem:[#allocation2 + $0x30] sm:$0xff] %vm465, %v690
      %870 = vst.msk [vmem:[#allocation2 + $0x38] sm:$0xff] %vm465, %v695
      %871 = vst.msk [vmem:[#allocation2 + $0x40] sm:$0xff] %vm465, %v700
      %872 = vst.msk [vmem:[#allocation2 + $0x48] sm:$0xff] %vm465, %v705
      %873 = vst.msk [vmem:[#allocation2 + $0x50] sm:$0xff] %vm465, %v710
      %874 = vst.msk [vmem:[#allocation2 + $0x58] sm:$0xff] %vm465, %v715
      %875 = vst.msk [vmem:[#allocation2 + $0x60] sm:$0xff] %vm465, %v720
      %876 = vst.msk [vmem:[#allocation2 + $0x68] sm:$0xff] %vm465, %v725
      %877 = vst.msk [vmem:[#allocation2 + $0x70] sm:$0xff] %vm465, %v730
      %878 = vst.msk [vmem:[#allocation2 + $0x78] sm:$0xff] %vm465, %v735
      %879 = vst.msk [vmem:[#allocation2 + $0x80] sm:$0xff] %vm465, %v740
      %880 = vst.msk [vmem:[#allocation2 + $0x88] sm:$0xff] %vm465, %v745
      %881 = vst.msk [vmem:[#allocation2 + $0x90] sm:$0xff] %vm465, %v750
      %882 = vst.msk [vmem:[#allocation2 + $0x98] sm:$0xff] %vm465, %v755
      %883 = vst.msk [vmem:[#allocation2 + $0xa0] sm:$0xff] %vm465, %v760
      %884 = vst.msk [vmem:[#allocation2 + $0xa8] sm:$0xff] %vm465, %v765
      %885 = vst.msk [vmem:[#allocation2 + $0xb0] sm:$0xff] %vm465, %v770
      %886 = vst.msk [vmem:[#allocation2 + $0xb8] sm:$0xff] %vm465, %v775
      %887 = vst.msk [vmem:[#allocation2 + $0xc0] sm:$0xff] %vm465, %v780
      %888 = vst.msk [vmem:[#allocation2 + $0xc8] sm:$0xff] %vm465, %v785
      %889 = vst.msk [vmem:[#allocation2 + $0xd0] sm:$0xff] %vm465, %v790
      %890 = vst.msk [vmem:[#allocation2 + $0xd8] sm:$0xff] %vm465, %v795
      %891 = vst.msk [vmem:[#allocation2 + $0xe0] sm:$0xff] %vm465, %v800
      %892 = vst.msk [vmem:[#allocation2 + $0xe8] sm:$0xff] %vm465, %v805
      %893 = vst.msk [vmem:[#allocation2 + $0xf0] sm:$0xff] %vm465, %v810
      %894 = vst.msk [vmem:[#allocation2 + $0xf8] sm:$0xff] %vm465, %v815
      %895 = vst.msk [vmem:[#allocation2 + $0x100] sm:$0xff] %vm465, %v820
      %896 = vst.msk [vmem:[#allocation2 + $0x108] sm:$0xff] %vm465, %v825
      %897 = vst.msk [vmem:[#allocation2 + $0x110] sm:$0xff] %vm465, %v830
      %898 = vst.msk [vmem:[#allocation2 + $0x118] sm:$0xff] %vm465, %v835
      %899 = vst.msk [vmem:[#allocation2 + $0x120] sm:$0xff] %vm465, %v840
      %900 = vst.msk [vmem:[#allocation2 + $0x128] sm:$0xff] %vm465, %v845
      %901 = vst.msk [vmem:[#allocation2 + $0x130] sm:$0xff] %vm465, %v850
      %902 = vst.msk [vmem:[#allocation2 + $0x138] sm:$0xff] %vm465, %v855
      %903 = vst.msk [vmem:[#allocation2 + $0x140] sm:$0xff] %vm465, %v860
      %v904 = vld [vmem:[%s1] sm:$0xff]
      %v905 = vld [vmem:[%s1 + $0x8] sm:$0xff]
      %v906 = vld [vmem:[%s1 + $0x10] sm:$0xff]
      %v907 = vld [vmem:[%s1 + $0x18] sm:$0xff]
      %v908 = vld [vmem:[%s1 + $0x20] sm:$0xff]
      %v909 = vld [vmem:[%s1 + $0x28] sm:$0xff]
      %v910 = vld [vmem:[%s1 + $0x30] sm:$0xff]
      %v911 = vld [vmem:[%s1 + $0x38] sm:$0xff]
      %v912 = vld [vmem:[%s1 + $0x40] sm:$0xff]
      %v913 = vld [vmem:[%s1 + $0x48] sm:$0xff]
      %v914 = vld [vmem:[%s1 + $0x50] sm:$0xff]
      %v915 = vld [vmem:[%s1 + $0x58] sm:$0xff]
      %v916 = vld [vmem:[%s1 + $0x60] sm:$0xff]
      %v917 = vld [vmem:[%s1 + $0x68] sm:$0xff]
      %v918 = vld [vmem:[%s1 + $0x70] sm:$0xff]
      %v919 = vld [vmem:[%s1 + $0x78] sm:$0xff]
      %v920 = vld [vmem:[%s1 + $0x80] sm:$0xff]
      %v921 = vld [vmem:[%s1 + $0x88] sm:$0xff]
      %v922 = vld [vmem:[%s1 + $0x90] sm:$0xff]
      %v923 = vld [vmem:[%s1 + $0x98] sm:$0xff]
      %v924 = vld [vmem:[%s1 + $0xa0] sm:$0xff]
      %v925 = vld [vmem:[%s1 + $0xa8] sm:$0xff]
      %v926 = vld [vmem:[%s1 + $0xb0] sm:$0xff]
      %v927 = vld [vmem:[%s1 + $0xb8] sm:$0xff]
      %v928 = vld [vmem:[%s1 + $0xc0] sm:$0xff]
      %v929 = vld [vmem:[%s1 + $0xc8] sm:$0xff]
      %v930 = vld [vmem:[%s1 + $0xd0] sm:$0xff]
      %v931 = vld [vmem:[%s1 + $0xd8] sm:$0xff]
      %v932 = vld [vmem:[%s1 + $0xe0] sm:$0xff]
      %v933 = vld [vmem:[%s1 + $0xe8] sm:$0xff]
      %v934 = vld [vmem:[%s1 + $0xf0] sm:$0xff]
      %v935 = vld [vmem:[%s1 + $0xf8] sm:$0xff]
      %v936 = vld [vmem:[%s1 + $0x100] sm:$0xff]
      %v937 = vld [vmem:[%s1 + $0x108] sm:$0xff]
      %v938 = vld [vmem:[%s1 + $0x110] sm:$0xff]
      %v939 = vld [vmem:[%s1 + $0x118] sm:$0xff]
      %v940 = vld [vmem:[%s1 + $0x120] sm:$0xff]
      %v941 = vld [vmem:[%s1 + $0x128] sm:$0xff]
      %v942 = vld [vmem:[%s1 + $0x130] sm:$0xff]
      %v943 = vld [vmem:[%s1 + $0x138] sm:$0xff]
      %v944 = vld [vmem:[%s1 + $0x140] sm:$0xff]
      %946 = vset.pattern.permute.xlu0 0
      %947 = vperm.xlu0 %946, %v904
      %v948 = vpop.permute.xlu0 %947
      %951 = vset.pattern.permute.xlu0 0
      %952 = vperm.xlu0 %951, %v905
      %v953 = vpop.permute.xlu0 %952
      %956 = vset.pattern.permute.xlu0 0
      %957 = vperm.xlu0 %956, %v906
      %v958 = vpop.permute.xlu0 %957
      %961 = vset.pattern.permute.xlu0 0
      %962 = vperm.xlu0 %961, %v907
      %v963 = vpop.permute.xlu0 %962
      %966 = vset.pattern.permute.xlu0 0
      %967 = vperm.xlu0 %966, %v908
      %v968 = vpop.permute.xlu0 %967
      %971 = vset.pattern.permute.xlu0 0
      %972 = vperm.xlu0 %971, %v909
      %v973 = vpop.permute.xlu0 %972
      %976 = vset.pattern.permute.xlu0 0
      %977 = vperm.xlu0 %976, %v910
      %v978 = vpop.permute.xlu0 %977
      %981 = vset.pattern.permute.xlu0 0
      %982 = vperm.xlu0 %981, %v911
      %v983 = vpop.permute.xlu0 %982
      %986 = vset.pattern.permute.xlu0 0
      %987 = vperm.xlu0 %986, %v912
      %v988 = vpop.permute.xlu0 %987
      %991 = vset.pattern.permute.xlu0 0
      %992 = vperm.xlu0 %991, %v913
      %v993 = vpop.permute.xlu0 %992
      %996 = vset.pattern.permute.xlu0 0
      %997 = vperm.xlu0 %996, %v914
      %v998 = vpop.permute.xlu0 %997
      %1001 = vset.pattern.permute.xlu0 0
      %1002 = vperm.xlu0 %1001, %v915
      %v1003 = vpop.permute.xlu0 %1002
      %1006 = vset.pattern.permute.xlu0 0
      %1007 = vperm.xlu0 %1006, %v916
      %v1008 = vpop.permute.xlu0 %1007
      %1011 = vset.pattern.permute.xlu0 0
      %1012 = vperm.xlu0 %1011, %v917
      %v1013 = vpop.permute.xlu0 %1012
      %1016 = vset.pattern.permute.xlu0 0
      %1017 = vperm.xlu0 %1016, %v918
      %v1018 = vpop.permute.xlu0 %1017
      %1021 = vset.pattern.permute.xlu0 0
      %1022 = vperm.xlu0 %1021, %v919
      %v1023 = vpop.permute.xlu0 %1022
      %1026 = vset.pattern.permute.xlu0 0
      %1027 = vperm.xlu0 %1026, %v920
      %v1028 = vpop.permute.xlu0 %1027
      %1031 = vset.pattern.permute.xlu0 0
      %1032 = vperm.xlu0 %1031, %v921
      %v1033 = vpop.permute.xlu0 %1032
      %1036 = vset.pattern.permute.xlu0 0
      %1037 = vperm.xlu0 %1036, %v922
      %v1038 = vpop.permute.xlu0 %1037
      %1041 = vset.pattern.permute.xlu0 0
      %1042 = vperm.xlu0 %1041, %v923
      %v1043 = vpop.permute.xlu0 %1042
      %1046 = vset.pattern.permute.xlu0 0
      %1047 = vperm.xlu0 %1046, %v924
      %v1048 = vpop.permute.xlu0 %1047
      %1051 = vset.pattern.permute.xlu0 0
      %1052 = vperm.xlu0 %1051, %v925
      %v1053 = vpop.permute.xlu0 %1052
      %1056 = vset.pattern.permute.xlu0 0
      %1057 = vperm.xlu0 %1056, %v926
      %v1058 = vpop.permute.xlu0 %1057
      %1061 = vset.pattern.permute.xlu0 0
      %1062 = vperm.xlu0 %1061, %v927
      %v1063 = vpop.permute.xlu0 %1062
      %1066 = vset.pattern.permute.xlu0 0
      %1067 = vperm.xlu0 %1066, %v928
      %v1068 = vpop.permute.xlu0 %1067
      %1071 = vset.pattern.permute.xlu0 0
      %1072 = vperm.xlu0 %1071, %v929
      %v1073 = vpop.permute.xlu0 %1072
      %1076 = vset.pattern.permute.xlu0 0
      %1077 = vperm.xlu0 %1076, %v930
      %v1078 = vpop.permute.xlu0 %1077
      %1081 = vset.pattern.permute.xlu0 0
      %1082 = vperm.xlu0 %1081, %v931
      %v1083 = vpop.permute.xlu0 %1082
      %1086 = vset.pattern.permute.xlu0 0
      %1087 = vperm.xlu0 %1086, %v932
      %v1088 = vpop.permute.xlu0 %1087
      %1091 = vset.pattern.permute.xlu0 0
      %1092 = vperm.xlu0 %1091, %v933
      %v1093 = vpop.permute.xlu0 %1092
      %1096 = vset.pattern.permute.xlu0 0
      %1097 = vperm.xlu0 %1096, %v934
      %v1098 = vpop.permute.xlu0 %1097
      %1101 = vset.pattern.permute.xlu0 0
      %1102 = vperm.xlu0 %1101, %v935
      %v1103 = vpop.permute.xlu0 %1102
      %1106 = vset.pattern.permute.xlu0 0
      %1107 = vperm.xlu0 %1106, %v936
      %v1108 = vpop.permute.xlu0 %1107
      %1111 = vset.pattern.permute.xlu0 0
      %1112 = vperm.xlu0 %1111, %v937
      %v1113 = vpop.permute.xlu0 %1112
      %1116 = vset.pattern.permute.xlu0 0
      %1117 = vperm.xlu0 %1116, %v938
      %v1118 = vpop.permute.xlu0 %1117
      %1121 = vset.pattern.permute.xlu0 0
      %1122 = vperm.xlu0 %1121, %v939
      %v1123 = vpop.permute.xlu0 %1122
      %1126 = vset.pattern.permute.xlu0 0
      %1127 = vperm.xlu0 %1126, %v940
      %v1128 = vpop.permute.xlu0 %1127
      %1131 = vset.pattern.permute.xlu0 0
      %1132 = vperm.xlu0 %1131, %v941
      %v1133 = vpop.permute.xlu0 %1132
      %1136 = vset.pattern.permute.xlu0 0
      %1137 = vperm.xlu0 %1136, %v942
      %v1138 = vpop.permute.xlu0 %1137
      %1141 = vset.pattern.permute.xlu0 0
      %1142 = vperm.xlu0 %1141, %v943
      %v1143 = vpop.permute.xlu0 %1142
      %1146 = vset.pattern.permute.xlu0 0
      %1147 = vperm.xlu0 %1146, %v944
      %v1148 = vpop.permute.xlu0 %1147
      %v1150 = vmul.f32 %v660, %v948
      %v1151 = vmul.f32 %v665, %v953
      %v1152 = vmul.f32 %v670, %v958
      %v1153 = vmul.f32 %v675, %v963
      %v1154 = vmul.f32 %v680, %v968
      %v1155 = vmul.f32 %v685, %v973
      %v1156 = vmul.f32 %v690, %v978
      %v1157 = vmul.f32 %v695, %v983
      %v1158 = vmul.f32 %v700, %v988
      %v1159 = vmul.f32 %v705, %v993
      %v1160 = vmul.f32 %v710, %v998
      %v1161 = vmul.f32 %v715, %v1003
      %v1162 = vmul.f32 %v720, %v1008
      %v1163 = vmul.f32 %v725, %v1013
      %v1164 = vmul.f32 %v730, %v1018
      %v1165 = vmul.f32 %v735, %v1023
      %v1166 = vmul.f32 %v740, %v1028
      %v1167 = vmul.f32 %v745, %v1033
      %v1168 = vmul.f32 %v750, %v1038
      %v1169 = vmul.f32 %v755, %v1043
      %v1170 = vmul.f32 %v760, %v1048
      %v1171 = vmul.f32 %v765, %v1053
      %v1172 = vmul.f32 %v770, %v1058
      %v1173 = vmul.f32 %v775, %v1063
      %v1174 = vmul.f32 %v780, %v1068
      %v1175 = vmul.f32 %v785, %v1073
      %v1176 = vmul.f32 %v790, %v1078
      %v1177 = vmul.f32 %v795, %v1083
      %v1178 = vmul.f32 %v800, %v1088
      %v1179 = vmul.f32 %v805, %v1093
      %v1180 = vmul.f32 %v810, %v1098
      %v1181 = vmul.f32 %v815, %v1103
      %v1182 = vmul.f32 %v820, %v1108
      %v1183 = vmul.f32 %v825, %v1113
      %v1184 = vmul.f32 %v830, %v1118
      %v1185 = vmul.f32 %v835, %v1123
      %v1186 = vmul.f32 %v840, %v1128
      %v1187 = vmul.f32 %v845, %v1133
      %v1188 = vmul.f32 %v850, %v1138
      %v1189 = vmul.f32 %v855, %v1143
      %v1190 = vmul.f32 %v860, %v1148
      %vm1191 = vcmask 15360
      %1192 = vst.msk [vmem:[#allocation3] sm:$0xff] %vm1191, %v1150
      %1193 = vst.msk [vmem:[#allocation3 + $0x8] sm:$0xff] %vm1191, %v1151
      %1194 = vst.msk [vmem:[#allocation3 + $0x10] sm:$0xff] %vm1191, %v1152
      %1195 = vst.msk [vmem:[#allocation3 + $0x18] sm:$0xff] %vm1191, %v1153
      %1196 = vst.msk [vmem:[#allocation3 + $0x20] sm:$0xff] %vm1191, %v1154
      %1197 = vst.msk [vmem:[#allocation3 + $0x28] sm:$0xff] %vm1191, %v1155
      %1198 = vst.msk [vmem:[#allocation3 + $0x30] sm:$0xff] %vm1191, %v1156
      %1199 = vst.msk [vmem:[#allocation3 + $0x38] sm:$0xff] %vm1191, %v1157
      %1200 = vst.msk [vmem:[#allocation3 + $0x40] sm:$0xff] %vm1191, %v1158
      %1201 = vst.msk [vmem:[#allocation3 + $0x48] sm:$0xff] %vm1191, %v1159
      %1202 = vst.msk [vmem:[#allocation3 + $0x50] sm:$0xff] %vm1191, %v1160
      %1203 = vst.msk [vmem:[#allocation3 + $0x58] sm:$0xff] %vm1191, %v1161
      %1204 = vst.msk [vmem:[#allocation3 + $0x60] sm:$0xff] %vm1191, %v1162
      %1205 = vst.msk [vmem:[#allocation3 + $0x68] sm:$0xff] %vm1191, %v1163
      %1206 = vst.msk [vmem:[#allocation3 + $0x70] sm:$0xff] %vm1191, %v1164
      %1207 = vst.msk [vmem:[#allocation3 + $0x78] sm:$0xff] %vm1191, %v1165
      %1208 = vst.msk [vmem:[#allocation3 + $0x80] sm:$0xff] %vm1191, %v1166
      %1209 = vst.msk [vmem:[#allocation3 + $0x88] sm:$0xff] %vm1191, %v1167
      %1210 = vst.msk [vmem:[#allocation3 + $0x90] sm:$0xff] %vm1191, %v1168
      %1211 = vst.msk [vmem:[#allocation3 + $0x98] sm:$0xff] %vm1191, %v1169
      %1212 = vst.msk [vmem:[#allocation3 + $0xa0] sm:$0xff] %vm1191, %v1170
      %1213 = vst.msk [vmem:[#allocation3 + $0xa8] sm:$0xff] %vm1191, %v1171
      %1214 = vst.msk [vmem:[#allocation3 + $0xb0] sm:$0xff] %vm1191, %v1172
      %1215 = vst.msk [vmem:[#allocation3 + $0xb8] sm:$0xff] %vm1191, %v1173
      %1216 = vst.msk [vmem:[#allocation3 + $0xc0] sm:$0xff] %vm1191, %v1174
      %1217 = vst.msk [vmem:[#allocation3 + $0xc8] sm:$0xff] %vm1191, %v1175
      %1218 = vst.msk [vmem:[#allocation3 + $0xd0] sm:$0xff] %vm1191, %v1176
      %1219 = vst.msk [vmem:[#allocation3 + $0xd8] sm:$0xff] %vm1191, %v1177
      %1220 = vst.msk [vmem:[#allocation3 + $0xe0] sm:$0xff] %vm1191, %v1178
      %1221 = vst.msk [vmem:[#allocation3 + $0xe8] sm:$0xff] %vm1191, %v1179
      %1222 = vst.msk [vmem:[#allocation3 + $0xf0] sm:$0xff] %vm1191, %v1180
      %1223 = vst.msk [vmem:[#allocation3 + $0xf8] sm:$0xff] %vm1191, %v1181
      %1224 = vst.msk [vmem:[#allocation3 + $0x100] sm:$0xff] %vm1191, %v1182
      %1225 = vst.msk [vmem:[#allocation3 + $0x108] sm:$0xff] %vm1191, %v1183
      %1226 = vst.msk [vmem:[#allocation3 + $0x110] sm:$0xff] %vm1191, %v1184
      %1227 = vst.msk [vmem:[#allocation3 + $0x118] sm:$0xff] %vm1191, %v1185
      %1228 = vst.msk [vmem:[#allocation3 + $0x120] sm:$0xff] %vm1191, %v1186
      %1229 = vst.msk [vmem:[#allocation3 + $0x128] sm:$0xff] %vm1191, %v1187
      %1230 = vst.msk [vmem:[#allocation3 + $0x130] sm:$0xff] %vm1191, %v1188
      %1231 = vst.msk [vmem:[#allocation3 + $0x138] sm:$0xff] %vm1191, %v1189
      %1232 = vst.msk [vmem:[#allocation3 + $0x140] sm:$0xff] %vm1191, %v1190
      %v1233 = vld [vmem:[#allocation3] sm:$0xff]
      %v1234 = vld [vmem:[#allocation3 + $0x8] sm:$0xff]
      %v1235 = vld [vmem:[#allocation3 + $0x10] sm:$0xff]
      %v1236 = vld [vmem:[#allocation3 + $0x18] sm:$0xff]
      %v1237 = vld [vmem:[#allocation3 + $0x20] sm:$0xff]
      %v1238 = vld [vmem:[#allocation3 + $0x28] sm:$0xff]
      %v1239 = vld [vmem:[#allocation3 + $0x30] sm:$0xff]
      %v1240 = vld [vmem:[#allocation3 + $0x38] sm:$0xff]
      %v1241 = vld [vmem:[#allocation3 + $0x40] sm:$0xff]
      %v1242 = vld [vmem:[#allocation3 + $0x48] sm:$0xff]
      %v1243 = vld [vmem:[#allocation3 + $0x50] sm:$0xff]
      %v1244 = vld [vmem:[#allocation3 + $0x58] sm:$0xff]
      %v1245 = vld [vmem:[#allocation3 + $0x60] sm:$0xff]
      %v1246 = vld [vmem:[#allocation3 + $0x68] sm:$0xff]
      %v1247 = vld [vmem:[#allocation3 + $0x70] sm:$0xff]
      %v1248 = vld [vmem:[#allocation3 + $0x78] sm:$0xff]
      %v1249 = vld [vmem:[#allocation3 + $0x80] sm:$0xff]
      %v1250 = vld [vmem:[#allocation3 + $0x88] sm:$0xff]
      %v1251 = vld [vmem:[#allocation3 + $0x90] sm:$0xff]
      %v1252 = vld [vmem:[#allocation3 + $0x98] sm:$0xff]
      %v1253 = vld [vmem:[#allocation3 + $0xa0] sm:$0xff]
      %v1254 = vld [vmem:[#allocation3 + $0xa8] sm:$0xff]
      %v1255 = vld [vmem:[#allocation3 + $0xb0] sm:$0xff]
      %v1256 = vld [vmem:[#allocation3 + $0xb8] sm:$0xff]
      %v1257 = vld [vmem:[#allocation3 + $0xc0] sm:$0xff]
      %v1258 = vld [vmem:[#allocation3 + $0xc8] sm:$0xff]
      %v1259 = vld [vmem:[#allocation3 + $0xd0] sm:$0xff]
      %v1260 = vld [vmem:[#allocation3 + $0xd8] sm:$0xff]
      %v1261 = vld [vmem:[#allocation3 + $0xe0] sm:$0xff]
      %v1262 = vld [vmem:[#allocation3 + $0xe8] sm:$0xff]
      %v1263 = vld [vmem:[#allocation3 + $0xf0] sm:$0xff]
      %v1264 = vld [vmem:[#allocation3 + $0xf8] sm:$0xff]
      %v1265 = vld [vmem:[#allocation3 + $0x100] sm:$0xff]
      %v1266 = vld [vmem:[#allocation3 + $0x108] sm:$0xff]
      %v1267 = vld [vmem:[#allocation3 + $0x110] sm:$0xff]
      %v1268 = vld [vmem:[#allocation3 + $0x118] sm:$0xff]
      %v1269 = vld [vmem:[#allocation3 + $0x1] sm:$0xff]
      %v1270 = vld [vmem:[#allocation3 + $0x9] sm:$0xff]
      %v1271 = vld [vmem:[#allocation3 + $0x11] sm:$0xff]
      %v1272 = vld [vmem:[#allocation3 + $0x19] sm:$0xff]
      %v1273 = vld [vmem:[#allocation3 + $0x21] sm:$0xff]
      %v1274 = vld [vmem:[#allocation3 + $0x29] sm:$0xff]
      %v1275 = vld [vmem:[#allocation3 + $0x31] sm:$0xff]
      %v1276 = vld [vmem:[#allocation3 + $0x39] sm:$0xff]
      %v1277 = vld [vmem:[#allocation3 + $0x41] sm:$0xff]
      %v1278 = vld [vmem:[#allocation3 + $0x49] sm:$0xff]
      %v1279 = vld [vmem:[#allocation3 + $0x51] sm:$0xff]
      %v1280 = vld [vmem:[#allocation3 + $0x59] sm:$0xff]
      %v1281 = vld [vmem:[#allocation3 + $0x61] sm:$0xff]
      %v1282 = vld [vmem:[#allocation3 + $0x69] sm:$0xff]
      %v1283 = vld [vmem:[#allocation3 + $0x71] sm:$0xff]
      %v1284 = vld [vmem:[#allocation3 + $0x79] sm:$0xff]
      %v1285 = vld [vmem:[#allocation3 + $0x81] sm:$0xff]
      %v1286 = vld [vmem:[#allocation3 + $0x89] sm:$0xff]
      %v1287 = vld [vmem:[#allocation3 + $0x91] sm:$0xff]
      %v1288 = vld [vmem:[#allocation3 + $0x99] sm:$0xff]
      %v1289 = vld [vmem:[#allocation3 + $0xa1] sm:$0xff]
      %v1290 = vld [vmem:[#allocation3 + $0xa9] sm:$0xff]
      %v1291 = vld [vmem:[#allocation3 + $0xb1] sm:$0xff]
      %v1292 = vld [vmem:[#allocation3 + $0xb9] sm:$0xff]
      %v1293 = vld [vmem:[#allocation3 + $0xc1] sm:$0xff]
      %v1294 = vld [vmem:[#allocation3 + $0xc9] sm:$0xff]
      %v1295 = vld [vmem:[#allocation3 + $0xd1] sm:$0xff]
      %v1296 = vld [vmem:[#allocation3 + $0xd9] sm:$0xff]
      %v1297 = vld [vmem:[#allocation3 + $0xe1] sm:$0xff]
      %v1298 = vld [vmem:[#allocation3 + $0xe9] sm:$0xff]
      %v1299 = vld [vmem:[#allocation3 + $0xf1] sm:$0xff]
      %v1300 = vld [vmem:[#allocation3 + $0xf9] sm:$0xff]
      %v1301 = vld [vmem:[#allocation3 + $0x101] sm:$0xff]
      %v1302 = vld [vmem:[#allocation3 + $0x109] sm:$0xff]
      %v1303 = vld [vmem:[#allocation3 + $0x111] sm:$0xff]
      %v1304 = vld [vmem:[#allocation3 + $0x119] sm:$0xff]
      %v1305 = vld [vmem:[#allocation3 + $0x2] sm:$0xff]
      %v1306 = vld [vmem:[#allocation3 + $0xa] sm:$0xff]
      %v1307 = vld [vmem:[#allocation3 + $0x12] sm:$0xff]
      %v1308 = vld [vmem:[#allocation3 + $0x1a] sm:$0xff]
      %v1309 = vld [vmem:[#allocation3 + $0x22] sm:$0xff]
      %v1310 = vld [vmem:[#allocation3 + $0x2a] sm:$0xff]
      %v1311 = vld [vmem:[#allocation3 + $0x32] sm:$0xff]
      %v1312 = vld [vmem:[#allocation3 + $0x3a] sm:$0xff]
      %v1313 = vld [vmem:[#allocation3 + $0x42] sm:$0xff]
      %v1314 = vld [vmem:[#allocation3 + $0x4a] sm:$0xff]
      %v1315 = vld [vmem:[#allocation3 + $0x52] sm:$0xff]
      %v1316 = vld [vmem:[#allocation3 + $0x5a] sm:$0xff]
      %v1317 = vld [vmem:[#allocation3 + $0x62] sm:$0xff]
      %v1318 = vld [vmem:[#allocation3 + $0x6a] sm:$0xff]
      %v1319 = vld [vmem:[#allocation3 + $0x72] sm:$0xff]
      %v1320 = vld [vmem:[#allocation3 + $0x7a] sm:$0xff]
      %v1321 = vld [vmem:[#allocation3 + $0x82] sm:$0xff]
      %v1322 = vld [vmem:[#allocation3 + $0x8a] sm:$0xff]
      %v1323 = vld [vmem:[#allocation3 + $0x92] sm:$0xff]
      %v1324 = vld [vmem:[#allocation3 + $0x9a] sm:$0xff]
      %v1325 = vld [vmem:[#allocation3 + $0xa2] sm:$0xff]
      %v1326 = vld [vmem:[#allocation3 + $0xaa] sm:$0xff]
      %v1327 = vld [vmem:[#allocation3 + $0xb2] sm:$0xff]
      %v1328 = vld [vmem:[#allocation3 + $0xba] sm:$0xff]
      %v1329 = vld [vmem:[#allocation3 + $0xc2] sm:$0xff]
      %v1330 = vld [vmem:[#allocation3 + $0xca] sm:$0xff]
      %v1331 = vld [vmem:[#allocation3 + $0xd2] sm:$0xff]
      %v1332 = vld [vmem:[#allocation3 + $0xda] sm:$0xff]
      %v1333 = vld [vmem:[#allocation3 + $0xe2] sm:$0xff]
      %v1334 = vld [vmem:[#allocation3 + $0xea] sm:$0xff]
      %v1335 = vld [vmem:[#allocation3 + $0xf2] sm:$0xff]
      %v1336 = vld [vmem:[#allocation3 + $0xfa] sm:$0xff]
      %v1337 = vld [vmem:[#allocation3 + $0x102] sm:$0xff]
      %v1338 = vld [vmem:[#allocation3 + $0x10a] sm:$0xff]
      %v1339 = vld [vmem:[#allocation3 + $0x112] sm:$0xff]
      %v1340 = vld [vmem:[#allocation3 + $0x11a] sm:$0xff]
      %v1341 = vld [vmem:[#allocation3 + $0x122] sm:$0xff]
      %v1342 = vld [vmem:[#allocation3 + $0x12a] sm:$0xff]
      %v1343 = vld [vmem:[#allocation3 + $0x13] sm:$0xff]
      %v1344 = vld [vmem:[#allocation3 + $0x1b] sm:$0xff]
      %v1345 = vld [vmem:[#allocation3 + $0x23] sm:$0xff]
      %v1346 = vld [vmem:[#allocation3 + $0x2b] sm:$0xff]
      %v1347 = vld [vmem:[#allocation3 + $0x33] sm:$0xff]
      %v1348 = vld [vmem:[#allocation3 + $0x3b] sm:$0xff]
      %v1349 = vld [vmem:[#allocation3 + $0x43] sm:$0xff]
      %v1350 = vld [vmem:[#allocation3 + $0x4b] sm:$0xff]
      %v1351 = vld [vmem:[#allocation3 + $0x53] sm:$0xff]
      %v1352 = vld [vmem:[#allocation3 + $0x5b] sm:$0xff]
      %v1353 = vld [vmem:[#allocation3 + $0x63] sm:$0xff]
      %v1354 = vld [vmem:[#allocation3 + $0x6b] sm:$0xff]
      %v1355 = vld [vmem:[#allocation3 + $0x73] sm:$0xff]
      %v1356 = vld [vmem:[#allocation3 + $0x7b] sm:$0xff]
      %v1357 = vld [vmem:[#allocation3 + $0x83] sm:$0xff]
      %v1358 = vld [vmem:[#allocation3 + $0x8b] sm:$0xff]
      %v1359 = vld [vmem:[#allocation3 + $0x93] sm:$0xff]
      %v1360 = vld [vmem:[#allocation3 + $0x9b] sm:$0xff]
      %v1361 = vld [vmem:[#allocation3 + $0xa3] sm:$0xff]
      %v1362 = vld [vmem:[#allocation3 + $0xab] sm:$0xff]
      %v1363 = vld [vmem:[#allocation3 + $0xb3] sm:$0xff]
      %v1364 = vld [vmem:[#allocation3 + $0xbb] sm:$0xff]
      %v1365 = vld [vmem:[#allocation3 + $0xc3] sm:$0xff]
      %v1366 = vld [vmem:[#allocation3 + $0xcb] sm:$0xff]
      %v1367 = vld [vmem:[#allocation3 + $0xd3] sm:$0xff]
      %v1368 = vld [vmem:[#allocation3 + $0xdb] sm:$0xff]
      %v1369 = vld [vmem:[#allocation3 + $0xe3] sm:$0xff]
      %v1370 = vld [vmem:[#allocation3 + $0xeb] sm:$0xff]
      %v1371 = vld [vmem:[#allocation3 + $0xf3] sm:$0xff]
      %v1372 = vld [vmem:[#allocation3 + $0xfb] sm:$0xff]
      %v1373 = vld [vmem:[#allocation3 + $0x103] sm:$0xff]
      %v1374 = vld [vmem:[#allocation3 + $0x10b] sm:$0xff]
      %v1375 = vld [vmem:[#allocation3 + $0x113] sm:$0xff]
      %v1376 = vld [vmem:[#allocation3 + $0x11b] sm:$0xff]
      %v1377 = vld [vmem:[#allocation3 + $0x123] sm:$0xff]
      %v1378 = vld [vmem:[#allocation3 + $0x12b] sm:$0xff]
      %v1379 = vld [vmem:[#allocation3 + $0x14] sm:$0xff]
      %v1380 = vld [vmem:[#allocation3 + $0x1c] sm:$0xff]
      %v1381 = vld [vmem:[#allocation3 + $0x24] sm:$0xff]
      %v1382 = vld [vmem:[#allocation3 + $0x2c] sm:$0xff]
      %v1383 = vld [vmem:[#allocation3 + $0x34] sm:$0xff]
      %v1384 = vld [vmem:[#allocation3 + $0x3c] sm:$0xff]
      %v1385 = vld [vmem:[#allocation3 + $0x44] sm:$0xff]
      %v1386 = vld [vmem:[#allocation3 + $0x4c] sm:$0xff]
      %v1387 = vld [vmem:[#allocation3 + $0x54] sm:$0xff]
      %v1388 = vld [vmem:[#allocation3 + $0x5c] sm:$0xff]
      %v1389 = vld [vmem:[#allocation3 + $0x64] sm:$0xff]
      %v1390 = vld [vmem:[#allocation3 + $0x6c] sm:$0xff]
      %v1391 = vld [vmem:[#allocation3 + $0x74] sm:$0xff]
      %v1392 = vld [vmem:[#allocation3 + $0x7c] sm:$0xff]
      %v1393 = vld [vmem:[#allocation3 + $0x84] sm:$0xff]
      %v1394 = vld [vmem:[#allocation3 + $0x8c] sm:$0xff]
      %v1395 = vld [vmem:[#allocation3 + $0x94] sm:$0xff]
      %v1396 = vld [vmem:[#allocation3 + $0x9c] sm:$0xff]
      %v1397 = vld [vmem:[#allocation3 + $0xa4] sm:$0xff]
      %v1398 = vld [vmem:[#allocation3 + $0xac] sm:$0xff]
      %v1399 = vld [vmem:[#allocation3 + $0xb4] sm:$0xff]
      %v1400 = vld [vmem:[#allocation3 + $0xbc] sm:$0xff]
      %v1401 = vld [vmem:[#allocation3 + $0xc4] sm:$0xff]
      %v1402 = vld [vmem:[#allocation3 + $0xcc] sm:$0xff]
      %v1403 = vld [vmem:[#allocation3 + $0xd4] sm:$0xff]
      %v1404 = vld [vmem:[#allocation3 + $0xdc] sm:$0xff]
      %v1405 = vld [vmem:[#allocation3 + $0xe4] sm:$0xff]
      %v1406 = vld [vmem:[#allocation3 + $0xec] sm:$0xff]
      %v1407 = vld [vmem:[#allocation3 + $0xf4] sm:$0xff]
      %v1408 = vld [vmem:[#allocation3 + $0xfc] sm:$0xff]
      %v1409 = vld [vmem:[#allocation3 + $0x104] sm:$0xff]
      %v1410 = vld [vmem:[#allocation3 + $0x10c] sm:$0xff]
      %v1411 = vld [vmem:[#allocation3 + $0x114] sm:$0xff]
      %v1412 = vld [vmem:[#allocation3 + $0x11c] sm:$0xff]
      %v1413 = vld [vmem:[#allocation3 + $0x124] sm:$0xff]
      %v1414 = vld [vmem:[#allocation3 + $0x12c] sm:$0xff]
      %v1415 = vld [vmem:[#allocation3 + $0x134] sm:$0xff]
      %v1416 = vld [vmem:[#allocation3 + $0x13c] sm:$0xff]
      %v1417 = vld [vmem:[#allocation3 + $0x25] sm:$0xff]
      %v1418 = vld [vmem:[#allocation3 + $0x2d] sm:$0xff]
      %v1419 = vld [vmem:[#allocation3 + $0x35] sm:$0xff]
      %v1420 = vld [vmem:[#allocation3 + $0x3d] sm:$0xff]
      %v1421 = vld [vmem:[#allocation3 + $0x45] sm:$0xff]
      %v1422 = vld [vmem:[#allocation3 + $0x4d] sm:$0xff]
      %v1423 = vld [vmem:[#allocation3 + $0x55] sm:$0xff]
      %v1424 = vld [vmem:[#allocation3 + $0x5d] sm:$0xff]
      %v1425 = vld [vmem:[#allocation3 + $0x65] sm:$0xff]
      %v1426 = vld [vmem:[#allocation3 + $0x6d] sm:$0xff]
      %v1427 = vld [vmem:[#allocation3 + $0x75] sm:$0xff]
      %v1428 = vld [vmem:[#allocation3 + $0x7d] sm:$0xff]
      %v1429 = vld [vmem:[#allocation3 + $0x85] sm:$0xff]
      %v1430 = vld [vmem:[#allocation3 + $0x8d] sm:$0xff]
      %v1431 = vld [vmem:[#allocation3 + $0x95] sm:$0xff]
      %v1432 = vld [vmem:[#allocation3 + $0x9d] sm:$0xff]
      %v1433 = vld [vmem:[#allocation3 + $0xa5] sm:$0xff]
      %v1434 = vld [vmem:[#allocation3 + $0xad] sm:$0xff]
      %v1435 = vld [vmem:[#allocation3 + $0xb5] sm:$0xff]
      %v1436 = vld [vmem:[#allocation3 + $0xbd] sm:$0xff]
      %v1437 = vld [vmem:[#allocation3 + $0xc5] sm:$0xff]
      %v1438 = vld [vmem:[#allocation3 + $0xcd] sm:$0xff]
      %v1439 = vld [vmem:[#allocation3 + $0xd5] sm:$0xff]
      %v1440 = vld [vmem:[#allocation3 + $0xdd] sm:$0xff]
      %v1441 = vld [vmem:[#allocation3 + $0xe5] sm:$0xff]
      %v1442 = vld [vmem:[#allocation3 + $0xed] sm:$0xff]
      %v1443 = vld [vmem:[#allocation3 + $0xf5] sm:$0xff]
      %v1444 = vld [vmem:[#allocation3 + $0xfd] sm:$0xff]
      %v1445 = vld [vmem:[#allocation3 + $0x105] sm:$0xff]
      %v1446 = vld [vmem:[#allocation3 + $0x10d] sm:$0xff]
      %v1447 = vld [vmem:[#allocation3 + $0x115] sm:$0xff]
      %v1448 = vld [vmem:[#allocation3 + $0x11d] sm:$0xff]
      %v1449 = vld [vmem:[#allocation3 + $0x125] sm:$0xff]
      %v1450 = vld [vmem:[#allocation3 + $0x12d] sm:$0xff]
      %v1451 = vld [vmem:[#allocation3 + $0x135] sm:$0xff]
      %v1452 = vld [vmem:[#allocation3 + $0x13d] sm:$0xff]
      %v1453 = vld [vmem:[#allocation3 + $0x26] sm:$0xff]
      %v1454 = vld [vmem:[#allocation3 + $0x2e] sm:$0xff]
      %v1455 = vld [vmem:[#allocation3 + $0x36] sm:$0xff]
      %v1456 = vld [vmem:[#allocation3 + $0x3e] sm:$0xff]
      %v1457 = vld [vmem:[#allocation3 + $0x46] sm:$0xff]
      %v1458 = vld [vmem:[#allocation3 + $0x4e] sm:$0xff]
      %v1459 = vld [vmem:[#allocation3 + $0x56] sm:$0xff]
      %v1460 = vld [vmem:[#allocation3 + $0x5e] sm:$0xff]
      %v1461 = vld [vmem:[#allocation3 + $0x66] sm:$0xff]
      %v1462 = vld [vmem:[#allocation3 + $0x6e] sm:$0xff]
      %v1463 = vld [vmem:[#allocation3 + $0x76] sm:$0xff]
      %v1464 = vld [vmem:[#allocation3 + $0x7e] sm:$0xff]
      %v1465 = vld [vmem:[#allocation3 + $0x86] sm:$0xff]
      %v1466 = vld [vmem:[#allocation3 + $0x8e] sm:$0xff]
      %v1467 = vld [vmem:[#allocation3 + $0x96] sm:$0xff]
      %v1468 = vld [vmem:[#allocation3 + $0x9e] sm:$0xff]
      %v1469 = vld [vmem:[#allocation3 + $0xa6] sm:$0xff]
      %v1470 = vld [vmem:[#allocation3 + $0xae] sm:$0xff]
      %v1471 = vld [vmem:[#allocation3 + $0xb6] sm:$0xff]
      %v1472 = vld [vmem:[#allocation3 + $0xbe] sm:$0xff]
      %v1473 = vld [vmem:[#allocation3 + $0xc6] sm:$0xff]
      %v1474 = vld [vmem:[#allocation3 + $0xce] sm:$0xff]
      %v1475 = vld [vmem:[#allocation3 + $0xd6] sm:$0xff]
      %v1476 = vld [vmem:[#allocation3 + $0xde] sm:$0xff]
      %v1477 = vld [vmem:[#allocation3 + $0xe6] sm:$0xff]
      %v1478 = vld [vmem:[#allocation3 + $0xee] sm:$0xff]
      %v1479 = vld [vmem:[#allocation3 + $0xf6] sm:$0xff]
      %v1480 = vld [vmem:[#allocation3 + $0xfe] sm:$0xff]
      %v1481 = vld [vmem:[#allocation3 + $0x106] sm:$0xff]
      %v1482 = vld [vmem:[#allocation3 + $0x10e] sm:$0xff]
      %v1483 = vld [vmem:[#allocation3 + $0x116] sm:$0xff]
      %v1484 = vld [vmem:[#allocation3 + $0x11e] sm:$0xff]
      %v1485 = vld [vmem:[#allocation3 + $0x126] sm:$0xff]
      %v1486 = vld [vmem:[#allocation3 + $0x12e] sm:$0xff]
      %v1487 = vld [vmem:[#allocation3 + $0x136] sm:$0xff]
      %v1488 = vld [vmem:[#allocation3 + $0x13e] sm:$0xff]
      %1525 = vrot.lane.b32.xlu0 %v1269, 2
      %v1526 = vpop.permute.xlu0 %1525
      %1527 = vrot.lane.b32.xlu0 %v1270, 2
      %v1528 = vpop.permute.xlu0 %1527
      %1529 = vrot.lane.b32.xlu0 %v1271, 2
      %v1530 = vpop.permute.xlu0 %1529
      %1531 = vrot.lane.b32.xlu0 %v1272, 2
      %v1532 = vpop.permute.xlu0 %1531
      %1533 = vrot.lane.b32.xlu0 %v1273, 2
      %v1534 = vpop.permute.xlu0 %1533
      %1535 = vrot.lane.b32.xlu0 %v1274, 2
      %v1536 = vpop.permute.xlu0 %1535
      %1537 = vrot.lane.b32.xlu0 %v1275, 2
      %v1538 = vpop.permute.xlu0 %1537
      %1539 = vrot.lane.b32.xlu0 %v1276, 2
      %v1540 = vpop.permute.xlu0 %1539
      %1541 = vrot.lane.b32.xlu0 %v1277, 2
      %v1542 = vpop.permute.xlu0 %1541
      %1543 = vrot.lane.b32.xlu0 %v1278, 2
      %v1544 = vpop.permute.xlu0 %1543
      %1545 = vrot.lane.b32.xlu0 %v1279, 2
      %v1546 = vpop.permute.xlu0 %1545
      %1547 = vrot.lane.b32.xlu0 %v1280, 2
      %v1548 = vpop.permute.xlu0 %1547
      %1549 = vrot.lane.b32.xlu0 %v1281, 2
      %v1550 = vpop.permute.xlu0 %1549
      %1551 = vrot.lane.b32.xlu0 %v1282, 2
      %v1552 = vpop.permute.xlu0 %1551
      %1553 = vrot.lane.b32.xlu0 %v1283, 2
      %v1554 = vpop.permute.xlu0 %1553
      %1555 = vrot.lane.b32.xlu0 %v1284, 2
      %v1556 = vpop.permute.xlu0 %1555
      %1557 = vrot.lane.b32.xlu0 %v1285, 2
      %v1558 = vpop.permute.xlu0 %1557
      %1559 = vrot.lane.b32.xlu0 %v1286, 2
      %v1560 = vpop.permute.xlu0 %1559
      %1561 = vrot.lane.b32.xlu0 %v1287, 2
      %v1562 = vpop.permute.xlu0 %1561
      %1563 = vrot.lane.b32.xlu0 %v1288, 2
      %v1564 = vpop.permute.xlu0 %1563
      %1565 = vrot.lane.b32.xlu0 %v1289, 2
      %v1566 = vpop.permute.xlu0 %1565
      %1567 = vrot.lane.b32.xlu0 %v1290, 2
      %v1568 = vpop.permute.xlu0 %1567
      %1569 = vrot.lane.b32.xlu0 %v1291, 2
      %v1570 = vpop.permute.xlu0 %1569
      %1571 = vrot.lane.b32.xlu0 %v1292, 2
      %v1572 = vpop.permute.xlu0 %1571
      %1573 = vrot.lane.b32.xlu0 %v1293, 2
      %v1574 = vpop.permute.xlu0 %1573
      %1575 = vrot.lane.b32.xlu0 %v1294, 2
      %v1576 = vpop.permute.xlu0 %1575
      %1577 = vrot.lane.b32.xlu0 %v1295, 2
      %v1578 = vpop.permute.xlu0 %1577
      %1579 = vrot.lane.b32.xlu0 %v1296, 2
      %v1580 = vpop.permute.xlu0 %1579
      %1581 = vrot.lane.b32.xlu0 %v1297, 2
      %v1582 = vpop.permute.xlu0 %1581
      %1583 = vrot.lane.b32.xlu0 %v1298, 2
      %v1584 = vpop.permute.xlu0 %1583
      %1585 = vrot.lane.b32.xlu0 %v1299, 2
      %v1586 = vpop.permute.xlu0 %1585
      %1587 = vrot.lane.b32.xlu0 %v1300, 2
      %v1588 = vpop.permute.xlu0 %1587
      %1589 = vrot.lane.b32.xlu0 %v1301, 2
      %v1590 = vpop.permute.xlu0 %1589
      %1591 = vrot.lane.b32.xlu0 %v1302, 2
      %v1592 = vpop.permute.xlu0 %1591
      %1593 = vrot.lane.b32.xlu0 %v1303, 2
      %v1594 = vpop.permute.xlu0 %1593
      %1595 = vrot.lane.b32.xlu0 %v1304, 2
      %v1596 = vpop.permute.xlu0 %1595
      %1669 = vrot.lane.b32.xlu0 %v1305, 4
      %v1670 = vpop.permute.xlu0 %1669
      %1671 = vrot.lane.b32.xlu0 %v1306, 4
      %v1672 = vpop.permute.xlu0 %1671
      %1673 = vrot.lane.b32.xlu0 %v1307, 4
      %v1674 = vpop.permute.xlu0 %1673
      %1675 = vrot.lane.b32.xlu0 %v1308, 4
      %v1676 = vpop.permute.xlu0 %1675
      %1677 = vrot.lane.b32.xlu0 %v1309, 4
      %v1678 = vpop.permute.xlu0 %1677
      %1679 = vrot.lane.b32.xlu0 %v1310, 4
      %v1680 = vpop.permute.xlu0 %1679
      %1681 = vrot.lane.b32.xlu0 %v1311, 4
      %v1682 = vpop.permute.xlu0 %1681
      %1683 = vrot.lane.b32.xlu0 %v1312, 4
      %v1684 = vpop.permute.xlu0 %1683
      %1685 = vrot.lane.b32.xlu0 %v1313, 4
      %v1686 = vpop.permute.xlu0 %1685
      %1687 = vrot.lane.b32.xlu0 %v1314, 4
      %v1688 = vpop.permute.xlu0 %1687
      %1689 = vrot.lane.b32.xlu0 %v1315, 4
      %v1690 = vpop.permute.xlu0 %1689
      %1691 = vrot.lane.b32.xlu0 %v1316, 4
      %v1692 = vpop.permute.xlu0 %1691
      %1693 = vrot.lane.b32.xlu0 %v1317, 4
      %v1694 = vpop.permute.xlu0 %1693
      %1695 = vrot.lane.b32.xlu0 %v1318, 4
      %v1696 = vpop.permute.xlu0 %1695
      %1697 = vrot.lane.b32.xlu0 %v1319, 4
      %v1698 = vpop.permute.xlu0 %1697
      %1699 = vrot.lane.b32.xlu0 %v1320, 4
      %v1700 = vpop.permute.xlu0 %1699
      %1701 = vrot.lane.b32.xlu0 %v1321, 4
      %v1702 = vpop.permute.xlu0 %1701
      %1703 = vrot.lane.b32.xlu0 %v1322, 4
      %v1704 = vpop.permute.xlu0 %1703
      %1705 = vrot.lane.b32.xlu0 %v1323, 4
      %v1706 = vpop.permute.xlu0 %1705
      %1707 = vrot.lane.b32.xlu0 %v1324, 4
      %v1708 = vpop.permute.xlu0 %1707
      %1709 = vrot.lane.b32.xlu0 %v1325, 4
      %v1710 = vpop.permute.xlu0 %1709
      %1711 = vrot.lane.b32.xlu0 %v1326, 4
      %v1712 = vpop.permute.xlu0 %1711
      %1713 = vrot.lane.b32.xlu0 %v1327, 4
      %v1714 = vpop.permute.xlu0 %1713
      %1715 = vrot.lane.b32.xlu0 %v1328, 4
      %v1716 = vpop.permute.xlu0 %1715
      %1717 = vrot.lane.b32.xlu0 %v1329, 4
      %v1718 = vpop.permute.xlu0 %1717
      %1719 = vrot.lane.b32.xlu0 %v1330, 4
      %v1720 = vpop.permute.xlu0 %1719
      %1721 = vrot.lane.b32.xlu0 %v1331, 4
      %v1722 = vpop.permute.xlu0 %1721
      %1723 = vrot.lane.b32.xlu0 %v1332, 4
      %v1724 = vpop.permute.xlu0 %1723
      %1725 = vrot.lane.b32.xlu0 %v1333, 4
      %v1726 = vpop.permute.xlu0 %1725
      %1727 = vrot.lane.b32.xlu0 %v1334, 4
      %v1728 = vpop.permute.xlu0 %1727
      %1729 = vrot.lane.b32.xlu0 %v1335, 4
      %v1730 = vpop.permute.xlu0 %1729
      %1731 = vrot.lane.b32.xlu0 %v1336, 4
      %v1732 = vpop.permute.xlu0 %1731
      %1733 = vrot.lane.b32.xlu0 %v1337, 4
      %v1734 = vpop.permute.xlu0 %1733
      %1735 = vrot.lane.b32.xlu0 %v1338, 4
      %v1736 = vpop.permute.xlu0 %1735
      %1737 = vrot.lane.b32.xlu0 %v1339, 4
      %v1738 = vpop.permute.xlu0 %1737
      %1739 = vrot.lane.b32.xlu0 %v1340, 4
      %v1740 = vpop.permute.xlu0 %1739
      %1779 = vrot.lane.b32.xlu0 %v1307, 6
      %v1780 = vpop.permute.xlu0 %1779
      %1781 = vrot.lane.b32.xlu0 %v1308, 6
      %v1782 = vpop.permute.xlu0 %1781
      %1783 = vrot.lane.b32.xlu0 %v1309, 6
      %v1784 = vpop.permute.xlu0 %1783
      %1785 = vrot.lane.b32.xlu0 %v1310, 6
      %v1786 = vpop.permute.xlu0 %1785
      %1787 = vrot.lane.b32.xlu0 %v1311, 6
      %v1788 = vpop.permute.xlu0 %1787
      %1789 = vrot.lane.b32.xlu0 %v1312, 6
      %v1790 = vpop.permute.xlu0 %1789
      %1791 = vrot.lane.b32.xlu0 %v1313, 6
      %v1792 = vpop.permute.xlu0 %1791
      %1793 = vrot.lane.b32.xlu0 %v1314, 6
      %v1794 = vpop.permute.xlu0 %1793
      %1795 = vrot.lane.b32.xlu0 %v1315, 6
      %v1796 = vpop.permute.xlu0 %1795
      %1797 = vrot.lane.b32.xlu0 %v1316, 6
      %v1798 = vpop.permute.xlu0 %1797
      %1799 = vrot.lane.b32.xlu0 %v1317, 6
      %v1800 = vpop.permute.xlu0 %1799
      %1801 = vrot.lane.b32.xlu0 %v1318, 6
      %v1802 = vpop.permute.xlu0 %1801
      %1803 = vrot.lane.b32.xlu0 %v1319, 6
      %v1804 = vpop.permute.xlu0 %1803
      %1805 = vrot.lane.b32.xlu0 %v1320, 6
      %v1806 = vpop.permute.xlu0 %1805
      %1807 = vrot.lane.b32.xlu0 %v1321, 6
      %v1808 = vpop.permute.xlu0 %1807
      %1809 = vrot.lane.b32.xlu0 %v1322, 6
      %v1810 = vpop.permute.xlu0 %1809
      %1811 = vrot.lane.b32.xlu0 %v1323, 6
      %v1812 = vpop.permute.xlu0 %1811
      %1813 = vrot.lane.b32.xlu0 %v1324, 6
      %v1814 = vpop.permute.xlu0 %1813
      %1815 = vrot.lane.b32.xlu0 %v1325, 6
      %v1816 = vpop.permute.xlu0 %1815
      %1817 = vrot.lane.b32.xlu0 %v1326, 6
      %v1818 = vpop.permute.xlu0 %1817
      %1819 = vrot.lane.b32.xlu0 %v1327, 6
      %v1820 = vpop.permute.xlu0 %1819
      %1821 = vrot.lane.b32.xlu0 %v1328, 6
      %v1822 = vpop.permute.xlu0 %1821
      %1823 = vrot.lane.b32.xlu0 %v1329, 6
      %v1824 = vpop.permute.xlu0 %1823
      %1825 = vrot.lane.b32.xlu0 %v1330, 6
      %v1826 = vpop.permute.xlu0 %1825
      %1827 = vrot.lane.b32.xlu0 %v1331, 6
      %v1828 = vpop.permute.xlu0 %1827
      %1829 = vrot.lane.b32.xlu0 %v1332, 6
      %v1830 = vpop.permute.xlu0 %1829
      %1831 = vrot.lane.b32.xlu0 %v1333, 6
      %v1832 = vpop.permute.xlu0 %1831
      %1833 = vrot.lane.b32.xlu0 %v1334, 6
      %v1834 = vpop.permute.xlu0 %1833
      %1835 = vrot.lane.b32.xlu0 %v1335, 6
      %v1836 = vpop.permute.xlu0 %1835
      %1837 = vrot.lane.b32.xlu0 %v1336, 6
      %v1838 = vpop.permute.xlu0 %1837
      %1839 = vrot.lane.b32.xlu0 %v1337, 6
      %v1840 = vpop.permute.xlu0 %1839
      %1841 = vrot.lane.b32.xlu0 %v1338, 6
      %v1842 = vpop.permute.xlu0 %1841
      %1843 = vrot.lane.b32.xlu0 %v1339, 6
      %v1844 = vpop.permute.xlu0 %1843
      %1845 = vrot.lane.b32.xlu0 %v1340, 6
      %v1846 = vpop.permute.xlu0 %1845
      %1847 = vrot.lane.b32.xlu0 %v1341, 6
      %v1848 = vpop.permute.xlu0 %1847
      %1849 = vrot.lane.b32.xlu0 %v1342, 6
      %v1850 = vpop.permute.xlu0 %1849
      %1923 = vrot.lane.b32.xlu0 %v1343, 8
      %v1924 = vpop.permute.xlu0 %1923
      %1925 = vrot.lane.b32.xlu0 %v1344, 8
      %v1926 = vpop.permute.xlu0 %1925
      %1927 = vrot.lane.b32.xlu0 %v1345, 8
      %v1928 = vpop.permute.xlu0 %1927
      %1929 = vrot.lane.b32.xlu0 %v1346, 8
      %v1930 = vpop.permute.xlu0 %1929
      %1931 = vrot.lane.b32.xlu0 %v1347, 8
      %v1932 = vpop.permute.xlu0 %1931
      %1933 = vrot.lane.b32.xlu0 %v1348, 8
      %v1934 = vpop.permute.xlu0 %1933
      %1935 = vrot.lane.b32.xlu0 %v1349, 8
      %v1936 = vpop.permute.xlu0 %1935
      %1937 = vrot.lane.b32.xlu0 %v1350, 8
      %v1938 = vpop.permute.xlu0 %1937
      %1939 = vrot.lane.b32.xlu0 %v1351, 8
      %v1940 = vpop.permute.xlu0 %1939
      %1941 = vrot.lane.b32.xlu0 %v1352, 8
      %v1942 = vpop.permute.xlu0 %1941
      %1943 = vrot.lane.b32.xlu0 %v1353, 8
      %v1944 = vpop.permute.xlu0 %1943
      %1945 = vrot.lane.b32.xlu0 %v1354, 8
      %v1946 = vpop.permute.xlu0 %1945
      %1947 = vrot.lane.b32.xlu0 %v1355, 8
      %v1948 = vpop.permute.xlu0 %1947
      %1949 = vrot.lane.b32.xlu0 %v1356, 8
      %v1950 = vpop.permute.xlu0 %1949
      %1951 = vrot.lane.b32.xlu0 %v1357, 8
      %v1952 = vpop.permute.xlu0 %1951
      %1953 = vrot.lane.b32.xlu0 %v1358, 8
      %v1954 = vpop.permute.xlu0 %1953
      %1955 = vrot.lane.b32.xlu0 %v1359, 8
      %v1956 = vpop.permute.xlu0 %1955
      %1957 = vrot.lane.b32.xlu0 %v1360, 8
      %v1958 = vpop.permute.xlu0 %1957
      %1959 = vrot.lane.b32.xlu0 %v1361, 8
      %v1960 = vpop.permute.xlu0 %1959
      %1961 = vrot.lane.b32.xlu0 %v1362, 8
      %v1962 = vpop.permute.xlu0 %1961
      %1963 = vrot.lane.b32.xlu0 %v1363, 8
      %v1964 = vpop.permute.xlu0 %1963
      %1965 = vrot.lane.b32.xlu0 %v1364, 8
      %v1966 = vpop.permute.xlu0 %1965
      %1967 = vrot.lane.b32.xlu0 %v1365, 8
      %v1968 = vpop.permute.xlu0 %1967
      %1969 = vrot.lane.b32.xlu0 %v1366, 8
      %v1970 = vpop.permute.xlu0 %1969
      %1971 = vrot.lane.b32.xlu0 %v1367, 8
      %v1972 = vpop.permute.xlu0 %1971
      %1973 = vrot.lane.b32.xlu0 %v1368, 8
      %v1974 = vpop.permute.xlu0 %1973
      %1975 = vrot.lane.b32.xlu0 %v1369, 8
      %v1976 = vpop.permute.xlu0 %1975
      %1977 = vrot.lane.b32.xlu0 %v1370, 8
      %v1978 = vpop.permute.xlu0 %1977
      %1979 = vrot.lane.b32.xlu0 %v1371, 8
      %v1980 = vpop.permute.xlu0 %1979
      %1981 = vrot.lane.b32.xlu0 %v1372, 8
      %v1982 = vpop.permute.xlu0 %1981
      %1983 = vrot.lane.b32.xlu0 %v1373, 8
      %v1984 = vpop.permute.xlu0 %1983
      %1985 = vrot.lane.b32.xlu0 %v1374, 8
      %v1986 = vpop.permute.xlu0 %1985
      %1987 = vrot.lane.b32.xlu0 %v1375, 8
      %v1988 = vpop.permute.xlu0 %1987
      %1989 = vrot.lane.b32.xlu0 %v1376, 8
      %v1990 = vpop.permute.xlu0 %1989
      %1991 = vrot.lane.b32.xlu0 %v1377, 8
      %v1992 = vpop.permute.xlu0 %1991
      %1993 = vrot.lane.b32.xlu0 %v1378, 8
      %v1994 = vpop.permute.xlu0 %1993
      %2067 = vrot.lane.b32.xlu0 %v1379, 10
      %v2068 = vpop.permute.xlu0 %2067
      %2069 = vrot.lane.b32.xlu0 %v1380, 10
      %v2070 = vpop.permute.xlu0 %2069
      %2071 = vrot.lane.b32.xlu0 %v1381, 10
      %v2072 = vpop.permute.xlu0 %2071
      %2073 = vrot.lane.b32.xlu0 %v1382, 10
      %v2074 = vpop.permute.xlu0 %2073
      %2075 = vrot.lane.b32.xlu0 %v1383, 10
      %v2076 = vpop.permute.xlu0 %2075
      %2077 = vrot.lane.b32.xlu0 %v1384, 10
      %v2078 = vpop.permute.xlu0 %2077
      %2079 = vrot.lane.b32.xlu0 %v1385, 10
      %v2080 = vpop.permute.xlu0 %2079
      %2081 = vrot.lane.b32.xlu0 %v1386, 10
      %v2082 = vpop.permute.xlu0 %2081
      %2083 = vrot.lane.b32.xlu0 %v1387, 10
      %v2084 = vpop.permute.xlu0 %2083
      %2085 = vrot.lane.b32.xlu0 %v1388, 10
      %v2086 = vpop.permute.xlu0 %2085
      %2087 = vrot.lane.b32.xlu0 %v1389, 10
      %v2088 = vpop.permute.xlu0 %2087
      %2089 = vrot.lane.b32.xlu0 %v1390, 10
      %v2090 = vpop.permute.xlu0 %2089
      %2091 = vrot.lane.b32.xlu0 %v1391, 10
      %v2092 = vpop.permute.xlu0 %2091
      %2093 = vrot.lane.b32.xlu0 %v1392, 10
      %v2094 = vpop.permute.xlu0 %2093
      %2095 = vrot.lane.b32.xlu0 %v1393, 10
      %v2096 = vpop.permute.xlu0 %2095
      %2097 = vrot.lane.b32.xlu0 %v1394, 10
      %v2098 = vpop.permute.xlu0 %2097
      %2099 = vrot.lane.b32.xlu0 %v1395, 10
      %v2100 = vpop.permute.xlu0 %2099
      %2101 = vrot.lane.b32.xlu0 %v1396, 10
      %v2102 = vpop.permute.xlu0 %2101
      %2103 = vrot.lane.b32.xlu0 %v1397, 10
      %v2104 = vpop.permute.xlu0 %2103
      %2105 = vrot.lane.b32.xlu0 %v1398, 10
      %v2106 = vpop.permute.xlu0 %2105
      %2107 = vrot.lane.b32.xlu0 %v1399, 10
      %v2108 = vpop.permute.xlu0 %2107
      %2109 = vrot.lane.b32.xlu0 %v1400, 10
      %v2110 = vpop.permute.xlu0 %2109
      %2111 = vrot.lane.b32.xlu0 %v1401, 10
      %v2112 = vpop.permute.xlu0 %2111
      %2113 = vrot.lane.b32.xlu0 %v1402, 10
      %v2114 = vpop.permute.xlu0 %2113
      %2115 = vrot.lane.b32.xlu0 %v1403, 10
      %v2116 = vpop.permute.xlu0 %2115
      %2117 = vrot.lane.b32.xlu0 %v1404, 10
      %v2118 = vpop.permute.xlu0 %2117
      %2119 = vrot.lane.b32.xlu0 %v1405, 10
      %v2120 = vpop.permute.xlu0 %2119
      %2121 = vrot.lane.b32.xlu0 %v1406, 10
      %v2122 = vpop.permute.xlu0 %2121
      %2123 = vrot.lane.b32.xlu0 %v1407, 10
      %v2124 = vpop.permute.xlu0 %2123
      %2125 = vrot.lane.b32.xlu0 %v1408, 10
      %v2126 = vpop.permute.xlu0 %2125
      %2127 = vrot.lane.b32.xlu0 %v1409, 10
      %v2128 = vpop.permute.xlu0 %2127
      %2129 = vrot.lane.b32.xlu0 %v1410, 10
      %v2130 = vpop.permute.xlu0 %2129
      %2131 = vrot.lane.b32.xlu0 %v1411, 10
      %v2132 = vpop.permute.xlu0 %2131
      %2133 = vrot.lane.b32.xlu0 %v1412, 10
      %v2134 = vpop.permute.xlu0 %2133
      %2135 = vrot.lane.b32.xlu0 %v1413, 10
      %v2136 = vpop.permute.xlu0 %2135
      %2137 = vrot.lane.b32.xlu0 %v1414, 10
      %v2138 = vpop.permute.xlu0 %2137
      %2177 = vrot.lane.b32.xlu0 %v1381, 12
      %v2178 = vpop.permute.xlu0 %2177
      %2179 = vrot.lane.b32.xlu0 %v1382, 12
      %v2180 = vpop.permute.xlu0 %2179
      %2181 = vrot.lane.b32.xlu0 %v1383, 12
      %v2182 = vpop.permute.xlu0 %2181
      %2183 = vrot.lane.b32.xlu0 %v1384, 12
      %v2184 = vpop.permute.xlu0 %2183
      %2185 = vrot.lane.b32.xlu0 %v1385, 12
      %v2186 = vpop.permute.xlu0 %2185
      %2187 = vrot.lane.b32.xlu0 %v1386, 12
      %v2188 = vpop.permute.xlu0 %2187
      %2189 = vrot.lane.b32.xlu0 %v1387, 12
      %v2190 = vpop.permute.xlu0 %2189
      %2191 = vrot.lane.b32.xlu0 %v1388, 12
      %v2192 = vpop.permute.xlu0 %2191
      %2193 = vrot.lane.b32.xlu0 %v1389, 12
      %v2194 = vpop.permute.xlu0 %2193
      %2195 = vrot.lane.b32.xlu0 %v1390, 12
      %v2196 = vpop.permute.xlu0 %2195
      %2197 = vrot.lane.b32.xlu0 %v1391, 12
      %v2198 = vpop.permute.xlu0 %2197
      %2199 = vrot.lane.b32.xlu0 %v1392, 12
      %v2200 = vpop.permute.xlu0 %2199
      %2201 = vrot.lane.b32.xlu0 %v1393, 12
      %v2202 = vpop.permute.xlu0 %2201
      %2203 = vrot.lane.b32.xlu0 %v1394, 12
      %v2204 = vpop.permute.xlu0 %2203
      %2205 = vrot.lane.b32.xlu0 %v1395, 12
      %v2206 = vpop.permute.xlu0 %2205
      %2207 = vrot.lane.b32.xlu0 %v1396, 12
      %v2208 = vpop.permute.xlu0 %2207
      %2209 = vrot.lane.b32.xlu0 %v1397, 12
      %v2210 = vpop.permute.xlu0 %2209
      %2211 = vrot.lane.b32.xlu0 %v1398, 12
      %v2212 = vpop.permute.xlu0 %2211
      %2213 = vrot.lane.b32.xlu0 %v1399, 12
      %v2214 = vpop.permute.xlu0 %2213
      %2215 = vrot.lane.b32.xlu0 %v1400, 12
      %v2216 = vpop.permute.xlu0 %2215
      %2217 = vrot.lane.b32.xlu0 %v1401, 12
      %v2218 = vpop.permute.xlu0 %2217
      %2219 = vrot.lane.b32.xlu0 %v1402, 12
      %v2220 = vpop.permute.xlu0 %2219
      %2221 = vrot.lane.b32.xlu0 %v1403, 12
      %v2222 = vpop.permute.xlu0 %2221
      %2223 = vrot.lane.b32.xlu0 %v1404, 12
      %v2224 = vpop.permute.xlu0 %2223
      %2225 = vrot.lane.b32.xlu0 %v1405, 12
      %v2226 = vpop.permute.xlu0 %2225
      %2227 = vrot.lane.b32.xlu0 %v1406, 12
      %v2228 = vpop.permute.xlu0 %2227
      %2229 = vrot.lane.b32.xlu0 %v1407, 12
      %v2230 = vpop.permute.xlu0 %2229
      %2231 = vrot.lane.b32.xlu0 %v1408, 12
      %v2232 = vpop.permute.xlu0 %2231
      %2233 = vrot.lane.b32.xlu0 %v1409, 12
      %v2234 = vpop.permute.xlu0 %2233
      %2235 = vrot.lane.b32.xlu0 %v1410, 12
      %v2236 = vpop.permute.xlu0 %2235
      %2237 = vrot.lane.b32.xlu0 %v1411, 12
      %v2238 = vpop.permute.xlu0 %2237
      %2239 = vrot.lane.b32.xlu0 %v1412, 12
      %v2240 = vpop.permute.xlu0 %2239
      %2241 = vrot.lane.b32.xlu0 %v1413, 12
      %v2242 = vpop.permute.xlu0 %2241
      %2243 = vrot.lane.b32.xlu0 %v1414, 12
      %v2244 = vpop.permute.xlu0 %2243
      %2245 = vrot.lane.b32.xlu0 %v1415, 12
      %v2246 = vpop.permute.xlu0 %2245
      %2247 = vrot.lane.b32.xlu0 %v1416, 12
      %v2248 = vpop.permute.xlu0 %2247
      %2321 = vrot.lane.b32.xlu0 %v1417, 14
      %v2322 = vpop.permute.xlu0 %2321
      %2323 = vrot.lane.b32.xlu0 %v1418, 14
      %v2324 = vpop.permute.xlu0 %2323
      %2325 = vrot.lane.b32.xlu0 %v1419, 14
      %v2326 = vpop.permute.xlu0 %2325
      %2327 = vrot.lane.b32.xlu0 %v1420, 14
      %v2328 = vpop.permute.xlu0 %2327
      %2329 = vrot.lane.b32.xlu0 %v1421, 14
      %v2330 = vpop.permute.xlu0 %2329
      %2331 = vrot.lane.b32.xlu0 %v1422, 14
      %v2332 = vpop.permute.xlu0 %2331
      %2333 = vrot.lane.b32.xlu0 %v1423, 14
      %v2334 = vpop.permute.xlu0 %2333
      %2335 = vrot.lane.b32.xlu0 %v1424, 14
      %v2336 = vpop.permute.xlu0 %2335
      %2337 = vrot.lane.b32.xlu0 %v1425, 14
      %v2338 = vpop.permute.xlu0 %2337
      %2339 = vrot.lane.b32.xlu0 %v1426, 14
      %v2340 = vpop.permute.xlu0 %2339
      %2341 = vrot.lane.b32.xlu0 %v1427, 14
      %v2342 = vpop.permute.xlu0 %2341
      %2343 = vrot.lane.b32.xlu0 %v1428, 14
      %v2344 = vpop.permute.xlu0 %2343
      %2345 = vrot.lane.b32.xlu0 %v1429, 14
      %v2346 = vpop.permute.xlu0 %2345
      %2347 = vrot.lane.b32.xlu0 %v1430, 14
      %v2348 = vpop.permute.xlu0 %2347
      %2349 = vrot.lane.b32.xlu0 %v1431, 14
      %v2350 = vpop.permute.xlu0 %2349
      %2351 = vrot.lane.b32.xlu0 %v1432, 14
      %v2352 = vpop.permute.xlu0 %2351
      %2353 = vrot.lane.b32.xlu0 %v1433, 14
      %v2354 = vpop.permute.xlu0 %2353
      %2355 = vrot.lane.b32.xlu0 %v1434, 14
      %v2356 = vpop.permute.xlu0 %2355
      %2357 = vrot.lane.b32.xlu0 %v1435, 14
      %v2358 = vpop.permute.xlu0 %2357
      %2359 = vrot.lane.b32.xlu0 %v1436, 14
      %v2360 = vpop.permute.xlu0 %2359
      %2361 = vrot.lane.b32.xlu0 %v1437, 14
      %v2362 = vpop.permute.xlu0 %2361
      %2363 = vrot.lane.b32.xlu0 %v1438, 14
      %v2364 = vpop.permute.xlu0 %2363
      %2365 = vrot.lane.b32.xlu0 %v1439, 14
      %v2366 = vpop.permute.xlu0 %2365
      %2367 = vrot.lane.b32.xlu0 %v1440, 14
      %v2368 = vpop.permute.xlu0 %2367
      %2369 = vrot.lane.b32.xlu0 %v1441, 14
      %v2370 = vpop.permute.xlu0 %2369
      %2371 = vrot.lane.b32.xlu0 %v1442, 14
      %v2372 = vpop.permute.xlu0 %2371
      %2373 = vrot.lane.b32.xlu0 %v1443, 14
      %v2374 = vpop.permute.xlu0 %2373
      %2375 = vrot.lane.b32.xlu0 %v1444, 14
      %v2376 = vpop.permute.xlu0 %2375
      %2377 = vrot.lane.b32.xlu0 %v1445, 14
      %v2378 = vpop.permute.xlu0 %2377
      %2379 = vrot.lane.b32.xlu0 %v1446, 14
      %v2380 = vpop.permute.xlu0 %2379
      %2381 = vrot.lane.b32.xlu0 %v1447, 14
      %v2382 = vpop.permute.xlu0 %2381
      %2383 = vrot.lane.b32.xlu0 %v1448, 14
      %v2384 = vpop.permute.xlu0 %2383
      %2385 = vrot.lane.b32.xlu0 %v1449, 14
      %v2386 = vpop.permute.xlu0 %2385
      %2387 = vrot.lane.b32.xlu0 %v1450, 14
      %v2388 = vpop.permute.xlu0 %2387
      %2389 = vrot.lane.b32.xlu0 %v1451, 14
      %v2390 = vpop.permute.xlu0 %2389
      %2391 = vrot.lane.b32.xlu0 %v1452, 14
      %v2392 = vpop.permute.xlu0 %2391
      %2465 = vrot.lane.b32.xlu0 %v1453, 16
      %v2466 = vpop.permute.xlu0 %2465
      %2467 = vrot.lane.b32.xlu0 %v1454, 16
      %v2468 = vpop.permute.xlu0 %2467
      %2469 = vrot.lane.b32.xlu0 %v1455, 16
      %v2470 = vpop.permute.xlu0 %2469
      %2471 = vrot.lane.b32.xlu0 %v1456, 16
      %v2472 = vpop.permute.xlu0 %2471
      %2473 = vrot.lane.b32.xlu0 %v1457, 16
      %v2474 = vpop.permute.xlu0 %2473
      %2475 = vrot.lane.b32.xlu0 %v1458, 16
      %v2476 = vpop.permute.xlu0 %2475
      %2477 = vrot.lane.b32.xlu0 %v1459, 16
      %v2478 = vpop.permute.xlu0 %2477
      %2479 = vrot.lane.b32.xlu0 %v1460, 16
      %v2480 = vpop.permute.xlu0 %2479
      %2481 = vrot.lane.b32.xlu0 %v1461, 16
      %v2482 = vpop.permute.xlu0 %2481
      %2483 = vrot.lane.b32.xlu0 %v1462, 16
      %v2484 = vpop.permute.xlu0 %2483
      %2485 = vrot.lane.b32.xlu0 %v1463, 16
      %v2486 = vpop.permute.xlu0 %2485
      %2487 = vrot.lane.b32.xlu0 %v1464, 16
      %v2488 = vpop.permute.xlu0 %2487
      %2489 = vrot.lane.b32.xlu0 %v1465, 16
      %v2490 = vpop.permute.xlu0 %2489
      %2491 = vrot.lane.b32.xlu0 %v1466, 16
      %v2492 = vpop.permute.xlu0 %2491
      %2493 = vrot.lane.b32.xlu0 %v1467, 16
      %v2494 = vpop.permute.xlu0 %2493
      %2495 = vrot.lane.b32.xlu0 %v1468, 16
      %v2496 = vpop.permute.xlu0 %2495
      %2497 = vrot.lane.b32.xlu0 %v1469, 16
      %v2498 = vpop.permute.xlu0 %2497
      %2499 = vrot.lane.b32.xlu0 %v1470, 16
      %v2500 = vpop.permute.xlu0 %2499
      %2501 = vrot.lane.b32.xlu0 %v1471, 16
      %v2502 = vpop.permute.xlu0 %2501
      %2503 = vrot.lane.b32.xlu0 %v1472, 16
      %v2504 = vpop.permute.xlu0 %2503
      %2505 = vrot.lane.b32.xlu0 %v1473, 16
      %v2506 = vpop.permute.xlu0 %2505
      %2507 = vrot.lane.b32.xlu0 %v1474, 16
      %v2508 = vpop.permute.xlu0 %2507
      %2509 = vrot.lane.b32.xlu0 %v1475, 16
      %v2510 = vpop.permute.xlu0 %2509
      %2511 = vrot.lane.b32.xlu0 %v1476, 16
      %v2512 = vpop.permute.xlu0 %2511
      %2513 = vrot.lane.b32.xlu0 %v1477, 16
      %v2514 = vpop.permute.xlu0 %2513
      %2515 = vrot.lane.b32.xlu0 %v1478, 16
      %v2516 = vpop.permute.xlu0 %2515
      %2517 = vrot.lane.b32.xlu0 %v1479, 16
      %v2518 = vpop.permute.xlu0 %2517
      %2519 = vrot.lane.b32.xlu0 %v1480, 16
      %v2520 = vpop.permute.xlu0 %2519
      %2521 = vrot.lane.b32.xlu0 %v1481, 16
      %v2522 = vpop.permute.xlu0 %2521
      %2523 = vrot.lane.b32.xlu0 %v1482, 16
      %v2524 = vpop.permute.xlu0 %2523
      %2525 = vrot.lane.b32.xlu0 %v1483, 16
      %v2526 = vpop.permute.xlu0 %2525
      %2527 = vrot.lane.b32.xlu0 %v1484, 16
      %v2528 = vpop.permute.xlu0 %2527
      %2529 = vrot.lane.b32.xlu0 %v1485, 16
      %v2530 = vpop.permute.xlu0 %2529
      %2531 = vrot.lane.b32.xlu0 %v1486, 16
      %v2532 = vpop.permute.xlu0 %2531
      %2533 = vrot.lane.b32.xlu0 %v1487, 16
      %v2534 = vpop.permute.xlu0 %2533
      %2535 = vrot.lane.b32.xlu0 %v1488, 16
      %v2536 = vpop.permute.xlu0 %2535
      %v2573 = vsel %vm1191, %v1233, %v1526
      %v2574 = vsel %vm1191, %v1234, %v1528
      %v2575 = vsel %vm1191, %v1235, %v1530
      %v2576 = vsel %vm1191, %v1236, %v1532
      %v2577 = vsel %vm1191, %v1237, %v1534
      %v2578 = vsel %vm1191, %v1238, %v1536
      %v2579 = vsel %vm1191, %v1239, %v1538
      %v2580 = vsel %vm1191, %v1240, %v1540
      %v2581 = vsel %vm1191, %v1241, %v1542
      %v2582 = vsel %vm1191, %v1242, %v1544
      %v2583 = vsel %vm1191, %v1243, %v1546
      %v2584 = vsel %vm1191, %v1244, %v1548
      %v2585 = vsel %vm1191, %v1245, %v1550
      %v2586 = vsel %vm1191, %v1246, %v1552
      %v2587 = vsel %vm1191, %v1247, %v1554
      %v2588 = vsel %vm1191, %v1248, %v1556
      %v2589 = vsel %vm1191, %v1249, %v1558
      %v2590 = vsel %vm1191, %v1250, %v1560
      %v2591 = vsel %vm1191, %v1251, %v1562
      %v2592 = vsel %vm1191, %v1252, %v1564
      %v2593 = vsel %vm1191, %v1253, %v1566
      %v2594 = vsel %vm1191, %v1254, %v1568
      %v2595 = vsel %vm1191, %v1255, %v1570
      %v2596 = vsel %vm1191, %v1256, %v1572
      %v2597 = vsel %vm1191, %v1257, %v1574
      %v2598 = vsel %vm1191, %v1258, %v1576
      %v2599 = vsel %vm1191, %v1259, %v1578
      %v2600 = vsel %vm1191, %v1260, %v1580
      %v2601 = vsel %vm1191, %v1261, %v1582
      %v2602 = vsel %vm1191, %v1262, %v1584
      %v2603 = vsel %vm1191, %v1263, %v1586
      %v2604 = vsel %vm1191, %v1264, %v1588
      %v2605 = vsel %vm1191, %v1265, %v1590
      %v2606 = vsel %vm1191, %v1266, %v1592
      %v2607 = vsel %vm1191, %v1267, %v1594
      %v2608 = vsel %vm1191, %v1268, %v1596
      %v2609 = vsel %vm465, %v2573, %v1670
      %v2610 = vsel %vm465, %v2574, %v1672
      %v2611 = vsel %vm465, %v2575, %v1674
      %v2612 = vsel %vm465, %v2576, %v1676
      %v2613 = vsel %vm465, %v2577, %v1678
      %v2614 = vsel %vm465, %v2578, %v1680
      %v2615 = vsel %vm465, %v2579, %v1682
      %v2616 = vsel %vm465, %v2580, %v1684
      %v2617 = vsel %vm465, %v2581, %v1686
      %v2618 = vsel %vm465, %v2582, %v1688
      %v2619 = vsel %vm465, %v2583, %v1690
      %v2620 = vsel %vm465, %v2584, %v1692
      %v2621 = vsel %vm465, %v2585, %v1694
      %v2622 = vsel %vm465, %v2586, %v1696
      %v2623 = vsel %vm465, %v2587, %v1698
      %v2624 = vsel %vm465, %v2588, %v1700
      %v2625 = vsel %vm465, %v2589, %v1702
      %v2626 = vsel %vm465, %v2590, %v1704
      %v2627 = vsel %vm465, %v2591, %v1706
      %v2628 = vsel %vm465, %v2592, %v1708
      %v2629 = vsel %vm465, %v2593, %v1710
      %v2630 = vsel %vm465, %v2594, %v1712
      %v2631 = vsel %vm465, %v2595, %v1714
      %v2632 = vsel %vm465, %v2596, %v1716
      %v2633 = vsel %vm465, %v2597, %v1718
      %v2634 = vsel %vm465, %v2598, %v1720
      %v2635 = vsel %vm465, %v2599, %v1722
      %v2636 = vsel %vm465, %v2600, %v1724
      %v2637 = vsel %vm465, %v2601, %v1726
      %v2638 = vsel %vm465, %v2602, %v1728
      %v2639 = vsel %vm465, %v2603, %v1730
      %v2640 = vsel %vm465, %v2604, %v1732
      %v2641 = vsel %vm465, %v2605, %v1734
      %v2642 = vsel %vm465, %v2606, %v1736
      %v2643 = vsel %vm465, %v2607, %v1738
      %v2644 = vsel %vm465, %v2608, %v1740
      %vm2645 = vcmask 48128
      %v2646 = vsel %vm2645, %v2609, %v1780
      %v2647 = vsel %vm2645, %v2610, %v1782
      %v2648 = vsel %vm2645, %v2611, %v1784
      %v2649 = vsel %vm2645, %v2612, %v1786
      %v2650 = vsel %vm2645, %v2613, %v1788
      %v2651 = vsel %vm2645, %v2614, %v1790
      %v2652 = vsel %vm2645, %v2615, %v1792
      %v2653 = vsel %vm2645, %v2616, %v1794
      %v2654 = vsel %vm2645, %v2617, %v1796
      %v2655 = vsel %vm2645, %v2618, %v1798
      %v2656 = vsel %vm2645, %v2619, %v1800
      %v2657 = vsel %vm2645, %v2620, %v1802
      %v2658 = vsel %vm2645, %v2621, %v1804
      %v2659 = vsel %vm2645, %v2622, %v1806
      %v2660 = vsel %vm2645, %v2623, %v1808
      %v2661 = vsel %vm2645, %v2624, %v1810
      %v2662 = vsel %vm2645, %v2625, %v1812
      %v2663 = vsel %vm2645, %v2626, %v1814
      %v2664 = vsel %vm2645, %v2627, %v1816
      %v2665 = vsel %vm2645, %v2628, %v1818
      %v2666 = vsel %vm2645, %v2629, %v1820
      %v2667 = vsel %vm2645, %v2630, %v1822
      %v2668 = vsel %vm2645, %v2631, %v1824
      %v2669 = vsel %vm2645, %v2632, %v1826
      %v2670 = vsel %vm2645, %v2633, %v1828
      %v2671 = vsel %vm2645, %v2634, %v1830
      %v2672 = vsel %vm2645, %v2635, %v1832
      %v2673 = vsel %vm2645, %v2636, %v1834
      %v2674 = vsel %vm2645, %v2637, %v1836
      %v2675 = vsel %vm2645, %v2638, %v1838
      %v2676 = vsel %vm2645, %v2639, %v1840
      %v2677 = vsel %vm2645, %v2640, %v1842
      %v2678 = vsel %vm2645, %v2641, %v1844
      %v2679 = vsel %vm2645, %v2642, %v1846
      %v2680 = vsel %vm2645, %v2643, %v1848
      %v2681 = vsel %vm2645, %v2644, %v1850
      %vm2682 = vcmask 64512
      %v2683 = vsel %vm2682, %v2646, %v1924
      %v2684 = vsel %vm2682, %v2647, %v1926
      %v2685 = vsel %vm2682, %v2648, %v1928
      %v2686 = vsel %vm2682, %v2649, %v1930
      %v2687 = vsel %vm2682, %v2650, %v1932
      %v2688 = vsel %vm2682, %v2651, %v1934
      %v2689 = vsel %vm2682, %v2652, %v1936
      %v2690 = vsel %vm2682, %v2653, %v1938
      %v2691 = vsel %vm2682, %v2654, %v1940
      %v2692 = vsel %vm2682, %v2655, %v1942
      %v2693 = vsel %vm2682, %v2656, %v1944
      %v2694 = vsel %vm2682, %v2657, %v1946
      %v2695 = vsel %vm2682, %v2658, %v1948
      %v2696 = vsel %vm2682, %v2659, %v1950
      %v2697 = vsel %vm2682, %v2660, %v1952
      %v2698 = vsel %vm2682, %v2661, %v1954
      %v2699 = vsel %vm2682, %v2662, %v1956
      %v2700 = vsel %vm2682, %v2663, %v1958
      %v2701 = vsel %vm2682, %v2664, %v1960
      %v2702 = vsel %vm2682, %v2665, %v1962
      %v2703 = vsel %vm2682, %v2666, %v1964
      %v2704 = vsel %vm2682, %v2667, %v1966
      %v2705 = vsel %vm2682, %v2668, %v1968
      %v2706 = vsel %vm2682, %v2669, %v1970
      %v2707 = vsel %vm2682, %v2670, %v1972
      %v2708 = vsel %vm2682, %v2671, %v1974
      %v2709 = vsel %vm2682, %v2672, %v1976
      %v2710 = vsel %vm2682, %v2673, %v1978
      %v2711 = vsel %vm2682, %v2674, %v1980
      %v2712 = vsel %vm2682, %v2675, %v1982
      %v2713 = vsel %vm2682, %v2676, %v1984
      %v2714 = vsel %vm2682, %v2677, %v1986
      %v2715 = vsel %vm2682, %v2678, %v1988
      %v2716 = vsel %vm2682, %v2679, %v1990
      %v2717 = vsel %vm2682, %v2680, %v1992
      %v2718 = vsel %vm2682, %v2681, %v1994
      %vm2719 = vcmask 80896
      %v2720 = vsel %vm2719, %v2683, %v2068
      %v2721 = vsel %vm2719, %v2684, %v2070
      %v2722 = vsel %vm2719, %v2685, %v2072
      %v2723 = vsel %vm2719, %v2686, %v2074
      %v2724 = vsel %vm2719, %v2687, %v2076
      %v2725 = vsel %vm2719, %v2688, %v2078
      %v2726 = vsel %vm2719, %v2689, %v2080
      %v2727 = vsel %vm2719, %v2690, %v2082
      %v2728 = vsel %vm2719, %v2691, %v2084
      %v2729 = vsel %vm2719, %v2692, %v2086
      %v2730 = vsel %vm2719, %v2693, %v2088
      %v2731 = vsel %vm2719, %v2694, %v2090
      %v2732 = vsel %vm2719, %v2695, %v2092
      %v2733 = vsel %vm2719, %v2696, %v2094
      %v2734 = vsel %vm2719, %v2697, %v2096
      %v2735 = vsel %vm2719, %v2698, %v2098
      %v2736 = vsel %vm2719, %v2699, %v2100
      %v2737 = vsel %vm2719, %v2700, %v2102
      %v2738 = vsel %vm2719, %v2701, %v2104
      %v2739 = vsel %vm2719, %v2702, %v2106
      %v2740 = vsel %vm2719, %v2703, %v2108
      %v2741 = vsel %vm2719, %v2704, %v2110
      %v2742 = vsel %vm2719, %v2705, %v2112
      %v2743 = vsel %vm2719, %v2706, %v2114
      %v2744 = vsel %vm2719, %v2707, %v2116
      %v2745 = vsel %vm2719, %v2708, %v2118
      %v2746 = vsel %vm2719, %v2709, %v2120
      %v2747 = vsel %vm2719, %v2710, %v2122
      %v2748 = vsel %vm2719, %v2711, %v2124
      %v2749 = vsel %vm2719, %v2712, %v2126
      %v2750 = vsel %vm2719, %v2713, %v2128
      %v2751 = vsel %vm2719, %v2714, %v2130
      %v2752 = vsel %vm2719, %v2715, %v2132
      %v2753 = vsel %vm2719, %v2716, %v2134
      %v2754 = vsel %vm2719, %v2717, %v2136
      %v2755 = vsel %vm2719, %v2718, %v2138
      %vm2756 = vcmask 97280
      %v2757 = vsel %vm2756, %v2720, %v2178
      %v2758 = vsel %vm2756, %v2721, %v2180
      %v2759 = vsel %vm2756, %v2722, %v2182
      %v2760 = vsel %vm2756, %v2723, %v2184
      %v2761 = vsel %vm2756, %v2724, %v2186
      %v2762 = vsel %vm2756, %v2725, %v2188
      %v2763 = vsel %vm2756, %v2726, %v2190
      %v2764 = vsel %vm2756, %v2727, %v2192
      %v2765 = vsel %vm2756, %v2728, %v2194
      %v2766 = vsel %vm2756, %v2729, %v2196
      %v2767 = vsel %vm2756, %v2730, %v2198
      %v2768 = vsel %vm2756, %v2731, %v2200
      %v2769 = vsel %vm2756, %v2732, %v2202
      %v2770 = vsel %vm2756, %v2733, %v2204
      %v2771 = vsel %vm2756, %v2734, %v2206
      %v2772 = vsel %vm2756, %v2735, %v2208
      %v2773 = vsel %vm2756, %v2736, %v2210
      %v2774 = vsel %vm2756, %v2737, %v2212
      %v2775 = vsel %vm2756, %v2738, %v2214
      %v2776 = vsel %vm2756, %v2739, %v2216
      %v2777 = vsel %vm2756, %v2740, %v2218
      %v2778 = vsel %vm2756, %v2741, %v2220
      %v2779 = vsel %vm2756, %v2742, %v2222
      %v2780 = vsel %vm2756, %v2743, %v2224
      %v2781 = vsel %vm2756, %v2744, %v2226
      %v2782 = vsel %vm2756, %v2745, %v2228
      %v2783 = vsel %vm2756, %v2746, %v2230
      %v2784 = vsel %vm2756, %v2747, %v2232
      %v2785 = vsel %vm2756, %v2748, %v2234
      %v2786 = vsel %vm2756, %v2749, %v2236
      %v2787 = vsel %vm2756, %v2750, %v2238
      %v2788 = vsel %vm2756, %v2751, %v2240
      %v2789 = vsel %vm2756, %v2752, %v2242
      %v2790 = vsel %vm2756, %v2753, %v2244
      %v2791 = vsel %vm2756, %v2754, %v2246
      %v2792 = vsel %vm2756, %v2755, %v2248
      %vm2793 = vcmask 113664
      %v2794 = vsel %vm2793, %v2757, %v2322
      %v2795 = vsel %vm2793, %v2758, %v2324
      %v2796 = vsel %vm2793, %v2759, %v2326
      %v2797 = vsel %vm2793, %v2760, %v2328
      %v2798 = vsel %vm2793, %v2761, %v2330
      %v2799 = vsel %vm2793, %v2762, %v2332
      %v2800 = vsel %vm2793, %v2763, %v2334
      %v2801 = vsel %vm2793, %v2764, %v2336
      %v2802 = vsel %vm2793, %v2765, %v2338
      %v2803 = vsel %vm2793, %v2766, %v2340
      %v2804 = vsel %vm2793, %v2767, %v2342
      %v2805 = vsel %vm2793, %v2768, %v2344
      %v2806 = vsel %vm2793, %v2769, %v2346
      %v2807 = vsel %vm2793, %v2770, %v2348
      %v2808 = vsel %vm2793, %v2771, %v2350
      %v2809 = vsel %vm2793, %v2772, %v2352
      %v2810 = vsel %vm2793, %v2773, %v2354
      %v2811 = vsel %vm2793, %v2774, %v2356
      %v2812 = vsel %vm2793, %v2775, %v2358
      %v2813 = vsel %vm2793, %v2776, %v2360
      %v2814 = vsel %vm2793, %v2777, %v2362
      %v2815 = vsel %vm2793, %v2778, %v2364
      %v2816 = vsel %vm2793, %v2779, %v2366
      %v2817 = vsel %vm2793, %v2780, %v2368
      %v2818 = vsel %vm2793, %v2781, %v2370
      %v2819 = vsel %vm2793, %v2782, %v2372
      %v2820 = vsel %vm2793, %v2783, %v2374
      %v2821 = vsel %vm2793, %v2784, %v2376
      %v2822 = vsel %vm2793, %v2785, %v2378
      %v2823 = vsel %vm2793, %v2786, %v2380
      %v2824 = vsel %vm2793, %v2787, %v2382
      %v2825 = vsel %vm2793, %v2788, %v2384
      %v2826 = vsel %vm2793, %v2789, %v2386
      %v2827 = vsel %vm2793, %v2790, %v2388
      %v2828 = vsel %vm2793, %v2791, %v2390
      %v2829 = vsel %vm2793, %v2792, %v2392
      %vm2830 = vcmask 130048
      %v2831 = vsel %vm2830, %v2794, %v2466
      %v2832 = vsel %vm2830, %v2795, %v2468
      %v2833 = vsel %vm2830, %v2796, %v2470
      %v2834 = vsel %vm2830, %v2797, %v2472
      %v2835 = vsel %vm2830, %v2798, %v2474
      %v2836 = vsel %vm2830, %v2799, %v2476
      %v2837 = vsel %vm2830, %v2800, %v2478
      %v2838 = vsel %vm2830, %v2801, %v2480
      %v2839 = vsel %vm2830, %v2802, %v2482
      %v2840 = vsel %vm2830, %v2803, %v2484
      %v2841 = vsel %vm2830, %v2804, %v2486
      %v2842 = vsel %vm2830, %v2805, %v2488
      %v2843 = vsel %vm2830, %v2806, %v2490
      %v2844 = vsel %vm2830, %v2807, %v2492
      %v2845 = vsel %vm2830, %v2808, %v2494
      %v2846 = vsel %vm2830, %v2809, %v2496
      %v2847 = vsel %vm2830, %v2810, %v2498
      %v2848 = vsel %vm2830, %v2811, %v2500
      %v2849 = vsel %vm2830, %v2812, %v2502
      %v2850 = vsel %vm2830, %v2813, %v2504
      %v2851 = vsel %vm2830, %v2814, %v2506
      %v2852 = vsel %vm2830, %v2815, %v2508
      %v2853 = vsel %vm2830, %v2816, %v2510
      %v2854 = vsel %vm2830, %v2817, %v2512
      %v2855 = vsel %vm2830, %v2818, %v2514
      %v2856 = vsel %vm2830, %v2819, %v2516
      %v2857 = vsel %vm2830, %v2820, %v2518
      %v2858 = vsel %vm2830, %v2821, %v2520
      %v2859 = vsel %vm2830, %v2822, %v2522
      %v2860 = vsel %vm2830, %v2823, %v2524
      %v2861 = vsel %vm2830, %v2824, %v2526
      %v2862 = vsel %vm2830, %v2825, %v2528
      %v2863 = vsel %vm2830, %v2826, %v2530
      %v2864 = vsel %vm2830, %v2827, %v2532
      %v2865 = vsel %vm2830, %v2828, %v2534
      %v2866 = vsel %vm2830, %v2829, %v2536
      %v2867 = vpack.c.bf16 %v2832, %v2831
      %v2868 = vpack.c.bf16 %v2834, %v2833
      %v2869 = vpack.c.bf16 %v2836, %v2835
      %v2870 = vpack.c.bf16 %v2838, %v2837
      %v2871 = vpack.c.bf16 %v2840, %v2839
      %v2872 = vpack.c.bf16 %v2842, %v2841
      %v2873 = vpack.c.bf16 %v2844, %v2843
      %v2874 = vpack.c.bf16 %v2846, %v2845
      %v2875 = vpack.c.bf16 %v2848, %v2847
      %v2876 = vpack.c.bf16 %v2850, %v2849
      %v2877 = vpack.c.bf16 %v2852, %v2851
      %v2878 = vpack.c.bf16 %v2854, %v2853
      %v2879 = vpack.c.bf16 %v2856, %v2855
      %v2880 = vpack.c.bf16 %v2858, %v2857
      %v2881 = vpack.c.bf16 %v2860, %v2859
      %v2882 = vpack.c.bf16 %v2862, %v2861
      %v2883 = vpack.c.bf16 %v2864, %v2863
      %v2884 = vpack.c.bf16 %v2866, %v2865
      %v2885 = vld [vmem:[%s5] sm:$0xff]
      %v2886 = vld [vmem:[%s5 + $0x8] sm:$0xff]
      %v2887 = vld [vmem:[%s5 + $0x10] sm:$0xff]
      %v2888 = vld [vmem:[%s5 + $0x18] sm:$0xff]
      %v2889 = vld [vmem:[%s5 + $0x20] sm:$0x11]
      %v2890 = vld [vmem:[%s5 + $0x28] sm:$0x11]
      %v2891 = vld [vmem:[%s6] sm:$0xf]
      %v2893 = vlaneseq
      %v2894 = vshrl.u32 %v2893, 7
      %v2895 = vsub.s32 0, %v2894
      %v2896 = vrot.slane %v2891, %v2895
      %v2897 = vlaneseq
      %v2898 = vshrl.u32 %v2897, 7
      %v2899 = vsub.s32 1, %v2898
      %v2900 = vrot.slane %v2891, %v2899
      %v2901 = vlaneseq
      %v2902 = vshrl.u32 %v2901, 7
      %v2903 = vsub.s32 2, %v2902
      %v2904 = vrot.slane %v2891, %v2903
      %v2905 = vlaneseq
      %v2906 = vshrl.u32 %v2905, 7
      %v2907 = vsub.s32 3, %v2906
      %v2908 = vrot.slane %v2891, %v2907
      %v2919 = vunpack.c.l.b16 %v2885
      %v2920 = vunpack.c.h.b16 %v2885
      %v2921 = vunpack.c.l.b16 %v2886
      %v2922 = vunpack.c.h.b16 %v2886
      %v2923 = vunpack.c.l.b16 %v2887
      %v2924 = vunpack.c.h.b16 %v2887
      %v2925 = vunpack.c.l.b16 %v2888
      %v2926 = vunpack.c.h.b16 %v2888
      %v2927 = vunpack.c.l.b16 %v2889
      %v2928 = vunpack.c.h.b16 %v2889
      %v2929 = vunpack.c.l.b16 %v2890
      %v2930 = vunpack.c.h.b16 %v2890
      %v2931 = vpack.c.b16 %v2923, %v2919
      %v2932 = vpack.c.b16 %v2924, %v2920
      %v2933 = vpack.c.b16 %v2925, %v2921
      %v2934 = vpack.c.b16 %v2926, %v2922
      %v2935 = vpack.c.b16 %v2927, %v2927
      %v2936 = vpack.c.b16 %v2928, %v2928
      %v2937 = vpack.c.b16 %v2929, %v2929
      %v2938 = vpack.c.b16 %v2930, %v2930
      %vm2943 = vcmask 146432
      %v2945 = vsel %vm2943, %v2867, 0
      %v2948 = vsel %vm2943, %v2868, 0
      %v2951 = vsel %vm2943, %v2869, 0
      %v2954 = vsel %vm2943, %v2870, 0
      %v2957 = vsel %vm2943, %v2871, 0
      %v2960 = vsel %vm2943, %v2872, 0
      %v2963 = vsel %vm2943, %v2873, 0
      %v2966 = vsel %vm2943, %v2874, 0
      %v2969 = vsel %vm2943, %v2875, 0
      %v2972 = vsel %vm2943, %v2876, 0
      %v2975 = vsel %vm2943, %v2877, 0
      %v2978 = vsel %vm2943, %v2878, 0
      %v2981 = vsel %vm2943, %v2879, 0
      %v2984 = vsel %vm2943, %v2880, 0
      %v2987 = vsel %vm2943, %v2881, 0
      %v2990 = vsel %vm2943, %v2882, 0
      %v2993 = vsel %vm2943, %v2883, 0
      %v2996 = vsel %vm2943, %v2884, 0
      %vm2998 = vcmask 1040384
      %v3000 = vsel %vm2998, %v2935, 0
      %v3003 = vsel %vm2998, %v2936, 0
      %v3006 = vsel %vm2998, %v2937, 0
      %v3009 = vsel %vm2998, %v2938, 0
      %3011 = vmatprep.subr.bf16.mxu0 0
      %3012 = vmatpush1.bf16.msra.mxu0 0
      %3013 = vmatprep.subr.bf16.mxu0 0
      %3014 = vmatpush1.bf16.msra.mxu0 0
      %3015 = vmatprep.subr.bf16.mxu0 0
      %3016 = vmatpush1.bf16.msra.mxu0 0
      %3017 = vmatprep.subr.bf16.mxu0 0
      %3018 = vmatpush1.bf16.msra.mxu0 0
      %3019 = vmatprep.subr.bf16.mxu0 0
      %3020 = vmatpush1.bf16.msra.mxu0 0
      %3021 = vmatprep.subr.bf16.mxu0 0
      %3022 = vmatpush1.bf16.msra.mxu0 0
      %3023 = vmatprep.subr.bf16.mxu0 %v3003
      %3024 = vmatpush1.bf16.msra.mxu0 %v3000
      %3025 = vmatprep.subr.bf16.mxu0 %v2932
      %3026 = vmatpush1.bf16.msra.mxu0 %v2931
      %3027 = vmatprep.subr.bf16.mxu0 0
      %3028 = vmatpush2.bf16.msra.mxu0 0
      %3029 = vmatprep.subr.bf16.mxu0 0
      %3030 = vmatpush2.bf16.msra.mxu0 0
      %3031 = vmatprep.subr.bf16.mxu0 0
      %3032 = vmatpush2.bf16.msra.mxu0 0
      %3033 = vmatprep.subr.bf16.mxu0 0
      %3034 = vmatpush2.bf16.msra.mxu0 0
      %3035 = vmatprep.subr.bf16.mxu0 0
      %3036 = vmatpush2.bf16.msra.mxu0 0
      %3037 = vmatprep.subr.bf16.mxu0 0
      %3038 = vmatpush2.bf16.msra.mxu0 0
      %3039 = vmatprep.subr.bf16.mxu0 0
      %3040 = vmatpush2.bf16.msra.mxu0 0
      %3041 = vmatprep.subr.bf16.mxu0 0
      %3042 = vmatpush2.bf16.msra.mxu0 0
      %3043 = vmatprep.mubr.bf16.mxu0 0
      %3044 = vmatmul.mubr.bf16.gmra.mxu0 %v2945
      %v3045 = vpop.f32.mrf.mxu0
      %v3046 = vadd.f32 %v2896, %v3045
      %v3047 = vpop.f32.mrf.mxu0
      %v3048 = vadd.f32 %v2900, %v3047
      %v3049 = vpop.f32.mrf.mxu0
      %v3050 = vadd.f32 %v2896, %v3049
      %v3051 = vpop.f32.mrf.mxu0
      %v3052 = vadd.f32 %v2900, %v3051
      %3053 = vmatprep.mubr.bf16.mxu0 0
      %3054 = vmatmul.mubr.bf16.gmra.mxu0 %v2948
      %v3055 = vpop.f32.mrf.mxu0
      %v3056 = vadd.f32 %v2896, %v3055
      %v3057 = vpop.f32.mrf.mxu0
      %v3058 = vadd.f32 %v2900, %v3057
      %v3059 = vpop.f32.mrf.mxu0
      %v3060 = vadd.f32 %v2896, %v3059
      %v3061 = vpop.f32.mrf.mxu0
      %v3062 = vadd.f32 %v2900, %v3061
      %3063 = vmatprep.mubr.bf16.mxu0 0
      %3064 = vmatmul.mubr.bf16.gmra.mxu0 %v2951
      %v3065 = vpop.f32.mrf.mxu0
      %v3066 = vadd.f32 %v2896, %v3065
      %v3067 = vpop.f32.mrf.mxu0
      %v3068 = vadd.f32 %v2900, %v3067
      %v3069 = vpop.f32.mrf.mxu0
      %v3070 = vadd.f32 %v2896, %v3069
      %v3071 = vpop.f32.mrf.mxu0
      %v3072 = vadd.f32 %v2900, %v3071
      %3073 = vmatprep.mubr.bf16.mxu0 0
      %3074 = vmatmul.mubr.bf16.gmra.mxu0 %v2954
      %v3075 = vpop.f32.mrf.mxu0
      %v3076 = vadd.f32 %v2896, %v3075
      %v3077 = vpop.f32.mrf.mxu0
      %v3078 = vadd.f32 %v2900, %v3077
      %v3079 = vpop.f32.mrf.mxu0
      %v3080 = vadd.f32 %v2896, %v3079
      %v3081 = vpop.f32.mrf.mxu0
      %v3082 = vadd.f32 %v2900, %v3081
      %3083 = vmatprep.mubr.bf16.mxu0 0
      %3084 = vmatmul.mubr.bf16.gmra.mxu0 %v2957
      %v3085 = vpop.f32.mrf.mxu0
      %v3086 = vadd.f32 %v2896, %v3085
      %v3087 = vpop.f32.mrf.mxu0
      %v3088 = vadd.f32 %v2900, %v3087
      %v3089 = vpop.f32.mrf.mxu0
      %v3090 = vadd.f32 %v2896, %v3089
      %v3091 = vpop.f32.mrf.mxu0
      %v3092 = vadd.f32 %v2900, %v3091
      %3093 = vmatprep.mubr.bf16.mxu0 0
      %3094 = vmatmul.mubr.bf16.gmra.mxu0 %v2960
      %v3095 = vpop.f32.mrf.mxu0
      %v3096 = vadd.f32 %v2896, %v3095
      %v3097 = vpop.f32.mrf.mxu0
      %v3098 = vadd.f32 %v2900, %v3097
      %v3099 = vpop.f32.mrf.mxu0
      %v3100 = vadd.f32 %v2896, %v3099
      %v3101 = vpop.f32.mrf.mxu0
      %v3102 = vadd.f32 %v2900, %v3101
      %3103 = vmatprep.mubr.bf16.mxu0 0
      %3104 = vmatmul.mubr.bf16.gmra.mxu0 %v2963
      %v3105 = vpop.f32.mrf.mxu0
      %v3106 = vadd.f32 %v2896, %v3105
      %v3107 = vpop.f32.mrf.mxu0
      %v3108 = vadd.f32 %v2900, %v3107
      %v3109 = vpop.f32.mrf.mxu0
      %v3110 = vadd.f32 %v2896, %v3109
      %v3111 = vpop.f32.mrf.mxu0
      %v3112 = vadd.f32 %v2900, %v3111
      %3113 = vmatprep.mubr.bf16.mxu0 0
      %3114 = vmatmul.mubr.bf16.gmra.mxu0 %v2966
      %v3115 = vpop.f32.mrf.mxu0
      %v3116 = vadd.f32 %v2896, %v3115
      %v3117 = vpop.f32.mrf.mxu0
      %v3118 = vadd.f32 %v2900, %v3117
      %v3119 = vpop.f32.mrf.mxu0
      %v3120 = vadd.f32 %v2896, %v3119
      %v3121 = vpop.f32.mrf.mxu0
      %v3122 = vadd.f32 %v2900, %v3121
      %3123 = vmatprep.mubr.bf16.mxu0 0
      %3124 = vmatmul.mubr.bf16.gmra.mxu0 %v2969
      %v3125 = vpop.f32.mrf.mxu0
      %v3126 = vadd.f32 %v2896, %v3125
      %v3127 = vpop.f32.mrf.mxu0
      %v3128 = vadd.f32 %v2900, %v3127
      %v3129 = vpop.f32.mrf.mxu0
      %v3130 = vadd.f32 %v2896, %v3129
      %v3131 = vpop.f32.mrf.mxu0
      %v3132 = vadd.f32 %v2900, %v3131
      %3133 = vmatprep.mubr.bf16.mxu0 0
      %3134 = vmatmul.mubr.bf16.gmra.mxu0 %v2972
      %v3135 = vpop.f32.mrf.mxu0
      %v3136 = vadd.f32 %v2896, %v3135
      %v3137 = vpop.f32.mrf.mxu0
      %v3138 = vadd.f32 %v2900, %v3137
      %v3139 = vpop.f32.mrf.mxu0
      %v3140 = vadd.f32 %v2896, %v3139
      %v3141 = vpop.f32.mrf.mxu0
      %v3142 = vadd.f32 %v2900, %v3141
      %3143 = vmatprep.mubr.bf16.mxu0 0
      %3144 = vmatmul.mubr.bf16.gmra.mxu0 %v2975
      %v3145 = vpop.f32.mrf.mxu0
      %v3146 = vadd.f32 %v2896, %v3145
      %v3147 = vpop.f32.mrf.mxu0
      %v3148 = vadd.f32 %v2900, %v3147
      %v3149 = vpop.f32.mrf.mxu0
      %v3150 = vadd.f32 %v2896, %v3149
      %v3151 = vpop.f32.mrf.mxu0
      %v3152 = vadd.f32 %v2900, %v3151
      %3153 = vmatprep.mubr.bf16.mxu0 0
      %3154 = vmatmul.mubr.bf16.gmra.mxu0 %v2978
      %v3155 = vpop.f32.mrf.mxu0
      %v3156 = vadd.f32 %v2896, %v3155
      %v3157 = vpop.f32.mrf.mxu0
      %v3158 = vadd.f32 %v2900, %v3157
      %v3159 = vpop.f32.mrf.mxu0
      %v3160 = vadd.f32 %v2896, %v3159
      %v3161 = vpop.f32.mrf.mxu0
      %v3162 = vadd.f32 %v2900, %v3161
      %3163 = vmatprep.mubr.bf16.mxu0 0
      %3164 = vmatmul.mubr.bf16.gmra.mxu0 %v2981
      %v3165 = vpop.f32.mrf.mxu0
      %v3166 = vadd.f32 %v2896, %v3165
      %v3167 = vpop.f32.mrf.mxu0
      %v3168 = vadd.f32 %v2900, %v3167
      %v3169 = vpop.f32.mrf.mxu0
      %v3170 = vadd.f32 %v2896, %v3169
      %v3171 = vpop.f32.mrf.mxu0
      %v3172 = vadd.f32 %v2900, %v3171
      %3173 = vmatprep.mubr.bf16.mxu0 0
      %3174 = vmatmul.mubr.bf16.gmra.mxu0 %v2984
      %v3175 = vpop.f32.mrf.mxu0
      %v3176 = vadd.f32 %v2896, %v3175
      %v3177 = vpop.f32.mrf.mxu0
      %v3178 = vadd.f32 %v2900, %v3177
      %v3179 = vpop.f32.mrf.mxu0
      %v3180 = vadd.f32 %v2896, %v3179
      %v3181 = vpop.f32.mrf.mxu0
      %v3182 = vadd.f32 %v2900, %v3181
      %3183 = vmatprep.mubr.bf16.mxu0 0
      %3184 = vmatmul.mubr.bf16.gmra.mxu0 %v2987
      %v3185 = vpop.f32.mrf.mxu0
      %v3186 = vadd.f32 %v2896, %v3185
      %v3187 = vpop.f32.mrf.mxu0
      %v3188 = vadd.f32 %v2900, %v3187
      %v3189 = vpop.f32.mrf.mxu0
      %v3190 = vadd.f32 %v2896, %v3189
      %v3191 = vpop.f32.mrf.mxu0
      %v3192 = vadd.f32 %v2900, %v3191
      %3193 = vmatprep.mubr.bf16.mxu0 0
      %3194 = vmatmul.mubr.bf16.gmra.mxu0 %v2990
      %v3195 = vpop.f32.mrf.mxu0
      %v3196 = vadd.f32 %v2896, %v3195
      %v3197 = vpop.f32.mrf.mxu0
      %v3198 = vadd.f32 %v2900, %v3197
      %v3199 = vpop.f32.mrf.mxu0
      %v3200 = vadd.f32 %v2896, %v3199
      %v3201 = vpop.f32.mrf.mxu0
      %v3202 = vadd.f32 %v2900, %v3201
      %3203 = vmatprep.mubr.bf16.mxu0 0
      %3204 = vmatmul.mubr.bf16.gmra.mxu0 %v2993
      %v3205 = vpop.f32.mrf.mxu0
      %v3206 = vadd.f32 %v2896, %v3205
      %v3207 = vpop.f32.mrf.mxu0
      %v3208 = vadd.f32 %v2900, %v3207
      %v3209 = vpop.f32.mrf.mxu0
      %v3210 = vadd.f32 %v2896, %v3209
      %v3211 = vpop.f32.mrf.mxu0
      %v3212 = vadd.f32 %v2900, %v3211
      %3213 = vmatprep.mubr.bf16.mxu0 0
      %3214 = vmatmul.mubr.bf16.gmra.mxu0 %v2996
      %v3215 = vpop.f32.mrf.mxu0
      %v3216 = vadd.f32 %v2896, %v3215
      %v3217 = vpop.f32.mrf.mxu0
      %v3218 = vadd.f32 %v2900, %v3217
      %v3219 = vpop.f32.mrf.mxu0
      %v3220 = vadd.f32 %v2896, %v3219
      %v3221 = vpop.f32.mrf.mxu0
      %v3222 = vadd.f32 %v2900, %v3221
      %3223 = vdwg.mxu0
      %3224 = vmatprep.subr.bf16.mxu0 0
      %3225 = vmatpush1.bf16.msra.mxu0 0
      %3226 = vmatprep.subr.bf16.mxu0 0
      %3227 = vmatpush1.bf16.msra.mxu0 0
      %3228 = vmatprep.subr.bf16.mxu0 0
      %3229 = vmatpush1.bf16.msra.mxu0 0
      %3230 = vmatprep.subr.bf16.mxu0 0
      %3231 = vmatpush1.bf16.msra.mxu0 0
      %3232 = vmatprep.subr.bf16.mxu0 0
      %3233 = vmatpush1.bf16.msra.mxu0 0
      %3234 = vmatprep.subr.bf16.mxu0 0
      %3235 = vmatpush1.bf16.msra.mxu0 0
      %3236 = vmatprep.subr.bf16.mxu0 %v3009
      %3237 = vmatpush1.bf16.msra.mxu0 %v3006
      %3238 = vmatprep.subr.bf16.mxu0 %v2934
      %3239 = vmatpush1.bf16.msra.mxu0 %v2933
      %3240 = vmatprep.subr.bf16.mxu0 0
      %3241 = vmatpush2.bf16.msra.mxu0 0
      %3242 = vmatprep.subr.bf16.mxu0 0
      %3243 = vmatpush2.bf16.msra.mxu0 0
      %3244 = vmatprep.subr.bf16.mxu0 0
      %3245 = vmatpush2.bf16.msra.mxu0 0
      %3246 = vmatprep.subr.bf16.mxu0 0
      %3247 = vmatpush2.bf16.msra.mxu0 0
      %3248 = vmatprep.subr.bf16.mxu0 0
      %3249 = vmatpush2.bf16.msra.mxu0 0
      %3250 = vmatprep.subr.bf16.mxu0 0
      %3251 = vmatpush2.bf16.msra.mxu0 0
      %3252 = vmatprep.subr.bf16.mxu0 0
      %3253 = vmatpush2.bf16.msra.mxu0 0
      %3254 = vmatprep.subr.bf16.mxu0 0
      %3255 = vmatpush2.bf16.msra.mxu0 0
      %3256 = vmatprep.mubr.bf16.mxu0 0
      %3257 = vmatmul.mubr.bf16.gmra.mxu0 %v2945
      %v3258 = vpop.f32.mrf.mxu0
      %v3259 = vadd.f32 %v2904, %v3258
      %v3260 = vpop.f32.mrf.mxu0
      %v3261 = vadd.f32 %v2908, %v3260
      %v3262 = vpop.f32.mrf.mxu0
      %v3263 = vadd.f32 %v2904, %v3262
      %v3264 = vpop.f32.mrf.mxu0
      %v3265 = vadd.f32 %v2908, %v3264
      %3266 = vmatprep.mubr.bf16.mxu0 0
      %3267 = vmatmul.mubr.bf16.gmra.mxu0 %v2948
      %v3268 = vpop.f32.mrf.mxu0
      %v3269 = vadd.f32 %v2904, %v3268
      %v3270 = vpop.f32.mrf.mxu0
      %v3271 = vadd.f32 %v2908, %v3270
      %v3272 = vpop.f32.mrf.mxu0
      %v3273 = vadd.f32 %v2904, %v3272
      %v3274 = vpop.f32.mrf.mxu0
      %v3275 = vadd.f32 %v2908, %v3274
      %3276 = vmatprep.mubr.bf16.mxu0 0
      %3277 = vmatmul.mubr.bf16.gmra.mxu0 %v2951
      %v3278 = vpop.f32.mrf.mxu0
      %v3279 = vadd.f32 %v2904, %v3278
      %v3280 = vpop.f32.mrf.mxu0
      %v3281 = vadd.f32 %v2908, %v3280
      %v3282 = vpop.f32.mrf.mxu0
      %v3283 = vadd.f32 %v2904, %v3282
      %v3284 = vpop.f32.mrf.mxu0
      %v3285 = vadd.f32 %v2908, %v3284
      %3286 = vmatprep.mubr.bf16.mxu0 0
      %3287 = vmatmul.mubr.bf16.gmra.mxu0 %v2954
      %v3288 = vpop.f32.mrf.mxu0
      %v3289 = vadd.f32 %v2904, %v3288
      %v3290 = vpop.f32.mrf.mxu0
      %v3291 = vadd.f32 %v2908, %v3290
      %v3292 = vpop.f32.mrf.mxu0
      %v3293 = vadd.f32 %v2904, %v3292
      %v3294 = vpop.f32.mrf.mxu0
      %v3295 = vadd.f32 %v2908, %v3294
      %3296 = vmatprep.mubr.bf16.mxu0 0
      %3297 = vmatmul.mubr.bf16.gmra.mxu0 %v2957
      %v3298 = vpop.f32.mrf.mxu0
      %v3299 = vadd.f32 %v2904, %v3298
      %v3300 = vpop.f32.mrf.mxu0
      %v3301 = vadd.f32 %v2908, %v3300
      %v3302 = vpop.f32.mrf.mxu0
      %v3303 = vadd.f32 %v2904, %v3302
      %v3304 = vpop.f32.mrf.mxu0
      %v3305 = vadd.f32 %v2908, %v3304
      %3306 = vmatprep.mubr.bf16.mxu0 0
      %3307 = vmatmul.mubr.bf16.gmra.mxu0 %v2960
      %v3308 = vpop.f32.mrf.mxu0
      %v3309 = vadd.f32 %v2904, %v3308
      %v3310 = vpop.f32.mrf.mxu0
      %v3311 = vadd.f32 %v2908, %v3310
      %v3312 = vpop.f32.mrf.mxu0
      %v3313 = vadd.f32 %v2904, %v3312
      %v3314 = vpop.f32.mrf.mxu0
      %v3315 = vadd.f32 %v2908, %v3314
      %3316 = vmatprep.mubr.bf16.mxu0 0
      %3317 = vmatmul.mubr.bf16.gmra.mxu0 %v2963
      %v3318 = vpop.f32.mrf.mxu0
      %v3319 = vadd.f32 %v2904, %v3318
      %v3320 = vpop.f32.mrf.mxu0
      %v3321 = vadd.f32 %v2908, %v3320
      %v3322 = vpop.f32.mrf.mxu0
      %v3323 = vadd.f32 %v2904, %v3322
      %v3324 = vpop.f32.mrf.mxu0
      %v3325 = vadd.f32 %v2908, %v3324
      %3326 = vmatprep.mubr.bf16.mxu0 0
      %3327 = vmatmul.mubr.bf16.gmra.mxu0 %v2966
      %v3328 = vpop.f32.mrf.mxu0
      %v3329 = vadd.f32 %v2904, %v3328
      %v3330 = vpop.f32.mrf.mxu0
      %v3331 = vadd.f32 %v2908, %v3330
      %v3332 = vpop.f32.mrf.mxu0
      %v3333 = vadd.f32 %v2904, %v3332
      %v3334 = vpop.f32.mrf.mxu0
      %v3335 = vadd.f32 %v2908, %v3334
      %3336 = vmatprep.mubr.bf16.mxu0 0
      %3337 = vmatmul.mubr.bf16.gmra.mxu0 %v2969
      %v3338 = vpop.f32.mrf.mxu0
      %v3339 = vadd.f32 %v2904, %v3338
      %v3340 = vpop.f32.mrf.mxu0
      %v3341 = vadd.f32 %v2908, %v3340
      %v3342 = vpop.f32.mrf.mxu0
      %v3343 = vadd.f32 %v2904, %v3342
      %v3344 = vpop.f32.mrf.mxu0
      %v3345 = vadd.f32 %v2908, %v3344
      %3346 = vmatprep.mubr.bf16.mxu0 0
      %3347 = vmatmul.mubr.bf16.gmra.mxu0 %v2972
      %v3348 = vpop.f32.mrf.mxu0
      %v3349 = vadd.f32 %v2904, %v3348
      %v3350 = vpop.f32.mrf.mxu0
      %v3351 = vadd.f32 %v2908, %v3350
      %v3352 = vpop.f32.mrf.mxu0
      %v3353 = vadd.f32 %v2904, %v3352
      %v3354 = vpop.f32.mrf.mxu0
      %v3355 = vadd.f32 %v2908, %v3354
      %3356 = vmatprep.mubr.bf16.mxu0 0
      %3357 = vmatmul.mubr.bf16.gmra.mxu0 %v2975
      %v3358 = vpop.f32.mrf.mxu0
      %v3359 = vadd.f32 %v2904, %v3358
      %v3360 = vpop.f32.mrf.mxu0
      %v3361 = vadd.f32 %v2908, %v3360
      %v3362 = vpop.f32.mrf.mxu0
      %v3363 = vadd.f32 %v2904, %v3362
      %v3364 = vpop.f32.mrf.mxu0
      %v3365 = vadd.f32 %v2908, %v3364
      %3366 = vmatprep.mubr.bf16.mxu0 0
      %3367 = vmatmul.mubr.bf16.gmra.mxu0 %v2978
      %v3368 = vpop.f32.mrf.mxu0
      %v3369 = vadd.f32 %v2904, %v3368
      %v3370 = vpop.f32.mrf.mxu0
      %v3371 = vadd.f32 %v2908, %v3370
      %v3372 = vpop.f32.mrf.mxu0
      %v3373 = vadd.f32 %v2904, %v3372
      %v3374 = vpop.f32.mrf.mxu0
      %v3375 = vadd.f32 %v2908, %v3374
      %3376 = vmatprep.mubr.bf16.mxu0 0
      %3377 = vmatmul.mubr.bf16.gmra.mxu0 %v2981
      %v3378 = vpop.f32.mrf.mxu0
      %v3379 = vadd.f32 %v2904, %v3378
      %v3380 = vpop.f32.mrf.mxu0
      %v3381 = vadd.f32 %v2908, %v3380
      %v3382 = vpop.f32.mrf.mxu0
      %v3383 = vadd.f32 %v2904, %v3382
      %v3384 = vpop.f32.mrf.mxu0
      %v3385 = vadd.f32 %v2908, %v3384
      %3386 = vmatprep.mubr.bf16.mxu0 0
      %3387 = vmatmul.mubr.bf16.gmra.mxu0 %v2984
      %v3388 = vpop.f32.mrf.mxu0
      %v3389 = vadd.f32 %v2904, %v3388
      %v3390 = vpop.f32.mrf.mxu0
      %v3391 = vadd.f32 %v2908, %v3390
      %v3392 = vpop.f32.mrf.mxu0
      %v3393 = vadd.f32 %v2904, %v3392
      %v3394 = vpop.f32.mrf.mxu0
      %v3395 = vadd.f32 %v2908, %v3394
      %3396 = vmatprep.mubr.bf16.mxu0 0
      %3397 = vmatmul.mubr.bf16.gmra.mxu0 %v2987
      %v3398 = vpop.f32.mrf.mxu0
      %v3399 = vadd.f32 %v2904, %v3398
      %v3400 = vpop.f32.mrf.mxu0
      %v3401 = vadd.f32 %v2908, %v3400
      %v3402 = vpop.f32.mrf.mxu0
      %v3403 = vadd.f32 %v2904, %v3402
      %v3404 = vpop.f32.mrf.mxu0
      %v3405 = vadd.f32 %v2908, %v3404
      %3406 = vmatprep.mubr.bf16.mxu0 0
      %3407 = vmatmul.mubr.bf16.gmra.mxu0 %v2990
      %v3408 = vpop.f32.mrf.mxu0
      %v3409 = vadd.f32 %v2904, %v3408
      %v3410 = vpop.f32.mrf.mxu0
      %v3411 = vadd.f32 %v2908, %v3410
      %v3412 = vpop.f32.mrf.mxu0
      %v3413 = vadd.f32 %v2904, %v3412
      %v3414 = vpop.f32.mrf.mxu0
      %v3415 = vadd.f32 %v2908, %v3414
      %3416 = vmatprep.mubr.bf16.mxu0 0
      %3417 = vmatmul.mubr.bf16.gmra.mxu0 %v2993
      %v3418 = vpop.f32.mrf.mxu0
      %v3419 = vadd.f32 %v2904, %v3418
      %v3420 = vpop.f32.mrf.mxu0
      %v3421 = vadd.f32 %v2908, %v3420
      %v3422 = vpop.f32.mrf.mxu0
      %v3423 = vadd.f32 %v2904, %v3422
      %v3424 = vpop.f32.mrf.mxu0
      %v3425 = vadd.f32 %v2908, %v3424
      %3426 = vmatprep.mubr.bf16.mxu0 0
      %3427 = vmatmul.mubr.bf16.gmra.mxu0 %v2996
      %v3428 = vpop.f32.mrf.mxu0
      %v3429 = vadd.f32 %v2904, %v3428
      %v3430 = vpop.f32.mrf.mxu0
      %v3431 = vadd.f32 %v2908, %v3430
      %v3432 = vpop.f32.mrf.mxu0
      %v3433 = vadd.f32 %v2904, %v3432
      %v3434 = vpop.f32.mrf.mxu0
      %v3435 = vadd.f32 %v2908, %v3434
      %3436 = vdwg.mxu0
      %v3437 = vmax.f32 %v3046, 0.0
      %v3438 = vmax.f32 %v3048, 0.0
      %v3439 = vmax.f32 %v3259, 0.0
      %v3440 = vmax.f32 %v3261, 0.0
      %v3441 = vmax.f32 %v3050, 0.0
      %v3442 = vmax.f32 %v3052, 0.0
      %v3443 = vmax.f32 %v3263, 0.0
      %v3444 = vmax.f32 %v3265, 0.0
      %v3445 = vmax.f32 %v3056, 0.0
      %v3446 = vmax.f32 %v3058, 0.0
      %v3447 = vmax.f32 %v3269, 0.0
      %v3448 = vmax.f32 %v3271, 0.0
      %v3449 = vmax.f32 %v3060, 0.0
      %v3450 = vmax.f32 %v3062, 0.0
      %v3451 = vmax.f32 %v3273, 0.0
      %v3452 = vmax.f32 %v3275, 0.0
      %v3453 = vmax.f32 %v3066, 0.0
      %v3454 = vmax.f32 %v3068, 0.0
      %v3455 = vmax.f32 %v3279, 0.0
      %v3456 = vmax.f32 %v3281, 0.0
      %v3457 = vmax.f32 %v3070, 0.0
      %v3458 = vmax.f32 %v3072, 0.0
      %v3459 = vmax.f32 %v3283, 0.0
      %v3460 = vmax.f32 %v3285, 0.0
      %v3461 = vmax.f32 %v3076, 0.0
      %v3462 = vmax.f32 %v3078, 0.0
      %v3463 = vmax.f32 %v3289, 0.0
      %v3464 = vmax.f32 %v3291, 0.0
      %v3465 = vmax.f32 %v3080, 0.0
      %v3466 = vmax.f32 %v3082, 0.0
      %v3467 = vmax.f32 %v3293, 0.0
      %v3468 = vmax.f32 %v3295, 0.0
      %v3469 = vmax.f32 %v3086, 0.0
      %v3470 = vmax.f32 %v3088, 0.0
      %v3471 = vmax.f32 %v3299, 0.0
      %v3472 = vmax.f32 %v3301, 0.0
      %v3473 = vmax.f32 %v3090, 0.0
      %v3474 = vmax.f32 %v3092, 0.0
      %v3475 = vmax.f32 %v3303, 0.0
      %v3476 = vmax.f32 %v3305, 0.0
      %v3477 = vmax.f32 %v3096, 0.0
      %v3478 = vmax.f32 %v3098, 0.0
      %v3479 = vmax.f32 %v3309, 0.0
      %v3480 = vmax.f32 %v3311, 0.0
      %v3481 = vmax.f32 %v3100, 0.0
      %v3482 = vmax.f32 %v3102, 0.0
      %v3483 = vmax.f32 %v3313, 0.0
      %v3484 = vmax.f32 %v3315, 0.0
      %v3485 = vmax.f32 %v3106, 0.0
      %v3486 = vmax.f32 %v3108, 0.0
      %v3487 = vmax.f32 %v3319, 0.0
      %v3488 = vmax.f32 %v3321, 0.0
      %v3489 = vmax.f32 %v3110, 0.0
      %v3490 = vmax.f32 %v3112, 0.0
      %v3491 = vmax.f32 %v3323, 0.0
      %v3492 = vmax.f32 %v3325, 0.0
      %v3493 = vmax.f32 %v3116, 0.0
      %v3494 = vmax.f32 %v3118, 0.0
      %v3495 = vmax.f32 %v3329, 0.0
      %v3496 = vmax.f32 %v3331, 0.0
      %v3497 = vmax.f32 %v3120, 0.0
      %v3498 = vmax.f32 %v3122, 0.0
      %v3499 = vmax.f32 %v3333, 0.0
      %v3500 = vmax.f32 %v3335, 0.0
      %v3501 = vmax.f32 %v3126, 0.0
      %v3502 = vmax.f32 %v3128, 0.0
      %v3503 = vmax.f32 %v3339, 0.0
      %v3504 = vmax.f32 %v3341, 0.0
      %v3505 = vmax.f32 %v3130, 0.0
      %v3506 = vmax.f32 %v3132, 0.0
      %v3507 = vmax.f32 %v3343, 0.0
      %v3508 = vmax.f32 %v3345, 0.0
      %v3509 = vmax.f32 %v3136, 0.0
      %v3510 = vmax.f32 %v3138, 0.0
      %v3511 = vmax.f32 %v3349, 0.0
      %v3512 = vmax.f32 %v3351, 0.0
      %v3513 = vmax.f32 %v3140, 0.0
      %v3514 = vmax.f32 %v3142, 0.0
      %v3515 = vmax.f32 %v3353, 0.0
      %v3516 = vmax.f32 %v3355, 0.0
      %v3517 = vmax.f32 %v3146, 0.0
      %v3518 = vmax.f32 %v3148, 0.0
      %v3519 = vmax.f32 %v3359, 0.0
      %v3520 = vmax.f32 %v3361, 0.0
      %v3521 = vmax.f32 %v3150, 0.0
      %v3522 = vmax.f32 %v3152, 0.0
      %v3523 = vmax.f32 %v3363, 0.0
      %v3524 = vmax.f32 %v3365, 0.0
      %v3525 = vmax.f32 %v3156, 0.0
      %v3526 = vmax.f32 %v3158, 0.0
      %v3527 = vmax.f32 %v3369, 0.0
      %v3528 = vmax.f32 %v3371, 0.0
      %v3529 = vmax.f32 %v3160, 0.0
      %v3530 = vmax.f32 %v3162, 0.0
      %v3531 = vmax.f32 %v3373, 0.0
      %v3532 = vmax.f32 %v3375, 0.0
      %v3533 = vmax.f32 %v3166, 0.0
      %v3534 = vmax.f32 %v3168, 0.0
      %v3535 = vmax.f32 %v3379, 0.0
      %v3536 = vmax.f32 %v3381, 0.0
      %v3537 = vmax.f32 %v3170, 0.0
      %v3538 = vmax.f32 %v3172, 0.0
      %v3539 = vmax.f32 %v3383, 0.0
      %v3540 = vmax.f32 %v3385, 0.0
      %v3541 = vmax.f32 %v3176, 0.0
      %v3542 = vmax.f32 %v3178, 0.0
      %v3543 = vmax.f32 %v3389, 0.0
      %v3544 = vmax.f32 %v3391, 0.0
      %v3545 = vmax.f32 %v3180, 0.0
      %v3546 = vmax.f32 %v3182, 0.0
      %v3547 = vmax.f32 %v3393, 0.0
      %v3548 = vmax.f32 %v3395, 0.0
      %v3549 = vmax.f32 %v3186, 0.0
      %v3550 = vmax.f32 %v3188, 0.0
      %v3551 = vmax.f32 %v3399, 0.0
      %v3552 = vmax.f32 %v3401, 0.0
      %v3553 = vmax.f32 %v3190, 0.0
      %v3554 = vmax.f32 %v3192, 0.0
      %v3555 = vmax.f32 %v3403, 0.0
      %v3556 = vmax.f32 %v3405, 0.0
      %v3557 = vmax.f32 %v3196, 0.0
      %v3558 = vmax.f32 %v3198, 0.0
      %v3559 = vmax.f32 %v3409, 0.0
      %v3560 = vmax.f32 %v3411, 0.0
      %v3561 = vmax.f32 %v3200, 0.0
      %v3562 = vmax.f32 %v3202, 0.0
      %v3563 = vmax.f32 %v3413, 0.0
      %v3564 = vmax.f32 %v3415, 0.0
      %v3565 = vmax.f32 %v3206, 0.0
      %v3566 = vmax.f32 %v3208, 0.0
      %v3567 = vmax.f32 %v3419, 0.0
      %v3568 = vmax.f32 %v3421, 0.0
      %v3569 = vmax.f32 %v3210, 0.0
      %v3570 = vmax.f32 %v3212, 0.0
      %v3571 = vmax.f32 %v3423, 0.0
      %v3572 = vmax.f32 %v3425, 0.0
      %v3573 = vmax.f32 %v3216, 0.0
      %v3574 = vmax.f32 %v3218, 0.0
      %v3575 = vmax.f32 %v3429, 0.0
      %v3576 = vmax.f32 %v3431, 0.0
      %v3577 = vmax.f32 %v3220, 0.0
      %v3578 = vmax.f32 %v3222, 0.0
      %v3579 = vmax.f32 %v3433, 0.0
      %v3580 = vmax.f32 %v3435, 0.0
      %v3581 = vpack.c.bf16 %v3441, %v3437
      %v3582 = vpack.c.bf16 %v3442, %v3438
      %v3583 = vpack.c.bf16 %v3443, %v3439
      %v3584 = vpack.c.bf16 %v3444, %v3440
      %v3585 = vpack.c.bf16 %v3449, %v3445
      %v3586 = vpack.c.bf16 %v3450, %v3446
      %v3587 = vpack.c.bf16 %v3451, %v3447
      %v3588 = vpack.c.bf16 %v3452, %v3448
      %v3589 = vpack.c.bf16 %v3457, %v3453
      %v3590 = vpack.c.bf16 %v3458, %v3454
      %v3591 = vpack.c.bf16 %v3459, %v3455
      %v3592 = vpack.c.bf16 %v3460, %v3456
      %v3593 = vpack.c.bf16 %v3465, %v3461
      %v3594 = vpack.c.bf16 %v3466, %v3462
      %v3595 = vpack.c.bf16 %v3467, %v3463
      %v3596 = vpack.c.bf16 %v3468, %v3464
      %v3597 = vpack.c.bf16 %v3473, %v3469
      %v3598 = vpack.c.bf16 %v3474, %v3470
      %v3599 = vpack.c.bf16 %v3475, %v3471
      %v3600 = vpack.c.bf16 %v3476, %v3472
      %v3601 = vpack.c.bf16 %v3481, %v3477
      %v3602 = vpack.c.bf16 %v3482, %v3478
      %v3603 = vpack.c.bf16 %v3483, %v3479
      %v3604 = vpack.c.bf16 %v3484, %v3480
      %v3605 = vpack.c.bf16 %v3489, %v3485
      %v3606 = vpack.c.bf16 %v3490, %v3486
      %v3607 = vpack.c.bf16 %v3491, %v3487
      %v3608 = vpack.c.bf16 %v3492, %v3488
      %v3609 = vpack.c.bf16 %v3497, %v3493
      %v3610 = vpack.c.bf16 %v3498, %v3494
      %v3611 = vpack.c.bf16 %v3499, %v3495
      %v3612 = vpack.c.bf16 %v3500, %v3496
      %v3613 = vpack.c.bf16 %v3505, %v3501
      %v3614 = vpack.c.bf16 %v3506, %v3502
      %v3615 = vpack.c.bf16 %v3507, %v3503
      %v3616 = vpack.c.bf16 %v3508, %v3504
      %v3617 = vpack.c.bf16 %v3513, %v3509
      %v3618 = vpack.c.bf16 %v3514, %v3510
      %v3619 = vpack.c.bf16 %v3515, %v3511
      %v3620 = vpack.c.bf16 %v3516, %v3512
      %v3621 = vpack.c.bf16 %v3521, %v3517
      %v3622 = vpack.c.bf16 %v3522, %v3518
      %v3623 = vpack.c.bf16 %v3523, %v3519
      %v3624 = vpack.c.bf16 %v3524, %v3520
      %v3625 = vpack.c.bf16 %v3529, %v3525
      %v3626 = vpack.c.bf16 %v3530, %v3526
      %v3627 = vpack.c.bf16 %v3531, %v3527
      %v3628 = vpack.c.bf16 %v3532, %v3528
      %v3629 = vpack.c.bf16 %v3537, %v3533
      %v3630 = vpack.c.bf16 %v3538, %v3534
      %v3631 = vpack.c.bf16 %v3539, %v3535
      %v3632 = vpack.c.bf16 %v3540, %v3536
      %v3633 = vpack.c.bf16 %v3545, %v3541
      %v3634 = vpack.c.bf16 %v3546, %v3542
      %v3635 = vpack.c.bf16 %v3547, %v3543
      %v3636 = vpack.c.bf16 %v3548, %v3544
      %v3637 = vpack.c.bf16 %v3553, %v3549
      %v3638 = vpack.c.bf16 %v3554, %v3550
      %v3639 = vpack.c.bf16 %v3555, %v3551
      %v3640 = vpack.c.bf16 %v3556, %v3552
      %v3641 = vpack.c.bf16 %v3561, %v3557
      %v3642 = vpack.c.bf16 %v3562, %v3558
      %v3643 = vpack.c.bf16 %v3563, %v3559
      %v3644 = vpack.c.bf16 %v3564, %v3560
      %v3645 = vpack.c.bf16 %v3569, %v3565
      %v3646 = vpack.c.bf16 %v3570, %v3566
      %v3647 = vpack.c.bf16 %v3571, %v3567
      %v3648 = vpack.c.bf16 %v3572, %v3568
      %v3649 = vpack.c.bf16 %v3577, %v3573
      %v3650 = vpack.c.bf16 %v3578, %v3574
      %v3651 = vpack.c.bf16 %v3579, %v3575
      %v3652 = vpack.c.bf16 %v3580, %v3576
      %v3653 = vld [vmem:[%s7] sm:$0xff]
      %v3654 = vld [vmem:[%s7 + $0x8] sm:$0xff]
      %v3655 = vld [vmem:[%s7 + $0x10] sm:$0xff]
      %v3656 = vld [vmem:[%s7 + $0x18] sm:$0xff]
      %v3657 = vld [vmem:[%s7 + $0x20] sm:$0xff]
      %v3658 = vld [vmem:[%s7 + $0x28] sm:$0xff]
      %v3659 = vld [vmem:[%s7 + $0x30] sm:$0xff]
      %v3660 = vld [vmem:[%s7 + $0x38] sm:$0xff]
      %v3661 = vld [vmem:[%s7 + $0x40] sm:$0xff]
      %v3662 = vld [vmem:[%s7 + $0x48] sm:$0xff]
      %v3663 = vld [vmem:[%s7 + $0x50] sm:$0xff]
      %v3664 = vld [vmem:[%s7 + $0x58] sm:$0xff]
      %v3665 = vld [vmem:[%s7 + $0x60] sm:$0xff]
      %v3666 = vld [vmem:[%s7 + $0x68] sm:$0xff]
      %v3667 = vld [vmem:[%s7 + $0x70] sm:$0xff]
      %v3668 = vld [vmem:[%s7 + $0x78] sm:$0xff]
      %v3669 = vld [vmem:[%s7 + $0x80] sm:$0xff]
      %v3670 = vld [vmem:[%s7 + $0x88] sm:$0xff]
      %v3671 = vld [vmem:[%s7 + $0x90] sm:$0xff]
      %v3672 = vld [vmem:[%s7 + $0x98] sm:$0xff]
      %v3673 = vld [vmem:[%s7 + $0xa0] sm:$0xff]
      %v3674 = vld [vmem:[%s7 + $0xa8] sm:$0xff]
      %v3675 = vld [vmem:[%s7 + $0xb0] sm:$0xff]
      %v3676 = vld [vmem:[%s7 + $0xb8] sm:$0xff]
      %v3677 = vld [vmem:[%s7 + $0xc0] sm:$0xff]
      %v3678 = vld [vmem:[%s7 + $0xc8] sm:$0xff]
      %v3679 = vld [vmem:[%s7 + $0xd0] sm:$0xff]
      %v3680 = vld [vmem:[%s7 + $0xd8] sm:$0xff]
      %v3681 = vld [vmem:[%s7 + $0xe0] sm:$0xff]
      %v3682 = vld [vmem:[%s7 + $0xe8] sm:$0xff]
      %v3683 = vld [vmem:[%s7 + $0xf0] sm:$0xff]
      %v3684 = vld [vmem:[%s7 + $0xf8] sm:$0xff]
      %v3685 = vld [vmem:[%s7 + $0x100] sm:$0xff]
      %v3686 = vld [vmem:[%s7 + $0x108] sm:$0xff]
      %v3687 = vld [vmem:[%s7 + $0x110] sm:$0xff]
      %v3688 = vld [vmem:[%s7 + $0x118] sm:$0xff]
      %v3689 = vld [vmem:[%s7 + $0x120] sm:$0xff]
      %v3690 = vld [vmem:[%s7 + $0x128] sm:$0xff]
      %v3691 = vld [vmem:[%s7 + $0x130] sm:$0xff]
      %v3692 = vld [vmem:[%s7 + $0x138] sm:$0xff]
      %v3693 = vld [vmem:[%s7 + $0x140] sm:$0xff]
      %v3694 = vld [vmem:[%s7 + $0x148] sm:$0xff]
      %v3695 = vld [vmem:[%s7 + $0x150] sm:$0xff]
      %v3696 = vld [vmem:[%s7 + $0x158] sm:$0xff]
      %v3697 = vld [vmem:[%s7 + $0x160] sm:$0xff]
      %v3698 = vld [vmem:[%s7 + $0x168] sm:$0xff]
      %v3699 = vld [vmem:[%s7 + $0x170] sm:$0xff]
      %v3700 = vld [vmem:[%s7 + $0x178] sm:$0xff]
      %v3701 = vld [vmem:[%s7 + $0x180] sm:$0xff]
      %v3702 = vld [vmem:[%s7 + $0x188] sm:$0xff]
      %v3703 = vld [vmem:[%s7 + $0x190] sm:$0xff]
      %v3704 = vld [vmem:[%s7 + $0x198] sm:$0xff]
      %v3705 = vld [vmem:[%s7 + $0x1a0] sm:$0xff]
      %v3706 = vld [vmem:[%s7 + $0x1a8] sm:$0xff]
      %v3707 = vld [vmem:[%s7 + $0x1b0] sm:$0xff]
      %v3708 = vld [vmem:[%s7 + $0x1b8] sm:$0xff]
      %v3709 = vld [vmem:[%s7 + $0x1c0] sm:$0xff]
      %v3710 = vld [vmem:[%s7 + $0x1c8] sm:$0xff]
      %v3711 = vld [vmem:[%s7 + $0x1d0] sm:$0xff]
      %v3712 = vld [vmem:[%s7 + $0x1d8] sm:$0xff]
      %v3713 = vld [vmem:[%s7 + $0x1e0] sm:$0xff]
      %v3714 = vld [vmem:[%s7 + $0x1e8] sm:$0xff]
      %v3715 = vld [vmem:[%s7 + $0x1f0] sm:$0xff]
      %v3716 = vld [vmem:[%s7 + $0x1f8] sm:$0xff]
      %v3717 = vld [vmem:[%s7 + $0x200] sm:$0xff]
      %v3718 = vld [vmem:[%s7 + $0x208] sm:$0xff]
      %v3719 = vld [vmem:[%s7 + $0x210] sm:$0xff]
      %v3720 = vld [vmem:[%s7 + $0x218] sm:$0xff]
      %v3721 = vld [vmem:[%s7 + $0x220] sm:$0xff]
      %v3722 = vld [vmem:[%s7 + $0x228] sm:$0xff]
      %v3723 = vld [vmem:[%s7 + $0x230] sm:$0xff]
      %v3724 = vld [vmem:[%s7 + $0x238] sm:$0xff]
      %v3725 = vld [vmem:[%s7 + $0x240] sm:$0xff]
      %v3726 = vld [vmem:[%s7 + $0x248] sm:$0xff]
      %v3727 = vld [vmem:[%s7 + $0x250] sm:$0xff]
      %v3728 = vld [vmem:[%s7 + $0x258] sm:$0xff]
      %v3729 = vld [vmem:[%s7 + $0x260] sm:$0xff]
      %v3730 = vld [vmem:[%s7 + $0x268] sm:$0xff]
      %v3731 = vld [vmem:[%s7 + $0x270] sm:$0xff]
      %v3732 = vld [vmem:[%s7 + $0x278] sm:$0xff]
      %v3733 = vld [vmem:[%s7 + $0x280] sm:$0xff]
      %v3734 = vld [vmem:[%s7 + $0x288] sm:$0xff]
      %v3735 = vld [vmem:[%s7 + $0x290] sm:$0xff]
      %v3736 = vld [vmem:[%s7 + $0x298] sm:$0xff]
      %v3737 = vld [vmem:[%s7 + $0x2a0] sm:$0xff]
      %v3738 = vld [vmem:[%s7 + $0x2a8] sm:$0xff]
      %v3739 = vld [vmem:[%s7 + $0x2b0] sm:$0xff]
      %v3740 = vld [vmem:[%s7 + $0x2b8] sm:$0xff]
      %v3741 = vld [vmem:[%s7 + $0x2c0] sm:$0xff]
      %v3742 = vld [vmem:[%s7 + $0x2c8] sm:$0xff]
      %v3743 = vld [vmem:[%s7 + $0x2d0] sm:$0xff]
      %v3744 = vld [vmem:[%s7 + $0x2d8] sm:$0xff]
      %v3745 = vld [vmem:[%s7 + $0x2e0] sm:$0xff]
      %v3746 = vld [vmem:[%s7 + $0x2e8] sm:$0xff]
      %v3747 = vld [vmem:[%s7 + $0x2f0] sm:$0xff]
      %v3748 = vld [vmem:[%s7 + $0x2f8] sm:$0xff]
      %v3749 = vld [vmem:[%s7 + $0x300] sm:$0xff]
      %v3750 = vld [vmem:[%s7 + $0x308] sm:$0xff]
      %v3751 = vld [vmem:[%s7 + $0x310] sm:$0xff]
      %v3752 = vld [vmem:[%s7 + $0x318] sm:$0xff]
      %v3753 = vld [vmem:[%s7 + $0x320] sm:$0xff]
      %v3754 = vld [vmem:[%s7 + $0x328] sm:$0xff]
      %v3755 = vld [vmem:[%s7 + $0x330] sm:$0xff]
      %v3756 = vld [vmem:[%s7 + $0x338] sm:$0xff]
      %v3757 = vld [vmem:[%s7 + $0x340] sm:$0xff]
      %v3758 = vld [vmem:[%s7 + $0x348] sm:$0xff]
      %v3759 = vld [vmem:[%s7 + $0x350] sm:$0xff]
      %v3760 = vld [vmem:[%s7 + $0x358] sm:$0xff]
      %v3761 = vld [vmem:[%s7 + $0x360] sm:$0xff]
      %v3762 = vld [vmem:[%s7 + $0x368] sm:$0xff]
      %v3763 = vld [vmem:[%s7 + $0x370] sm:$0xff]
      %v3764 = vld [vmem:[%s7 + $0x378] sm:$0xff]
      %v3765 = vld [vmem:[%s7 + $0x380] sm:$0xff]
      %v3766 = vld [vmem:[%s7 + $0x388] sm:$0xff]
      %v3767 = vld [vmem:[%s7 + $0x390] sm:$0xff]
      %v3768 = vld [vmem:[%s7 + $0x398] sm:$0xff]
      %v3769 = vld [vmem:[%s7 + $0x3a0] sm:$0xff]
      %v3770 = vld [vmem:[%s7 + $0x3a8] sm:$0xff]
      %v3771 = vld [vmem:[%s7 + $0x3b0] sm:$0xff]
      %v3772 = vld [vmem:[%s7 + $0x3b8] sm:$0xff]
      %v3773 = vld [vmem:[%s7 + $0x3c0] sm:$0xff]
      %v3774 = vld [vmem:[%s7 + $0x3c8] sm:$0xff]
      %v3775 = vld [vmem:[%s7 + $0x3d0] sm:$0xff]
      %v3776 = vld [vmem:[%s7 + $0x3d8] sm:$0xff]
      %v3777 = vld [vmem:[%s7 + $0x3e0] sm:$0xff]
      %v3778 = vld [vmem:[%s7 + $0x3e8] sm:$0xff]
      %v3779 = vld [vmem:[%s7 + $0x3f0] sm:$0xff]
      %v3780 = vld [vmem:[%s7 + $0x3f8] sm:$0xff]
      %v3781 = vld [vmem:[%s8] sm:$0xf]
      %v3783 = vlaneseq
      %v3784 = vshrl.u32 %v3783, 7
      %v3785 = vsub.s32 0, %v3784
      %v3786 = vrot.slane %v3781, %v3785
      %v3787 = vlaneseq
      %v3788 = vshrl.u32 %v3787, 7
      %v3789 = vsub.s32 1, %v3788
      %v3790 = vrot.slane %v3781, %v3789
      %v3791 = vlaneseq
      %v3792 = vshrl.u32 %v3791, 7
      %v3793 = vsub.s32 2, %v3792
      %v3794 = vrot.slane %v3781, %v3793
      %v3795 = vlaneseq
      %v3796 = vshrl.u32 %v3795, 7
      %v3797 = vsub.s32 3, %v3796
      %v3798 = vrot.slane %v3781, %v3797
      %v3931 = vunpack.c.l.b16 %v3653
      %v3932 = vunpack.c.h.b16 %v3653
      %v3933 = vunpack.c.l.b16 %v3654
      %v3934 = vunpack.c.h.b16 %v3654
      %v3935 = vunpack.c.l.b16 %v3655
      %v3936 = vunpack.c.h.b16 %v3655
      %v3937 = vunpack.c.l.b16 %v3656
      %v3938 = vunpack.c.h.b16 %v3656
      %v3939 = vunpack.c.l.b16 %v3657
      %v3940 = vunpack.c.h.b16 %v3657
      %v3941 = vunpack.c.l.b16 %v3658
      %v3942 = vunpack.c.h.b16 %v3658
      %v3943 = vunpack.c.l.b16 %v3659
      %v3944 = vunpack.c.h.b16 %v3659
      %v3945 = vunpack.c.l.b16 %v3660
      %v3946 = vunpack.c.h.b16 %v3660
      %v3947 = vunpack.c.l.b16 %v3661
      %v3948 = vunpack.c.h.b16 %v3661
      %v3949 = vunpack.c.l.b16 %v3662
      %v3950 = vunpack.c.h.b16 %v3662
      %v3951 = vunpack.c.l.b16 %v3663
      %v3952 = vunpack.c.h.b16 %v3663
      %v3953 = vunpack.c.l.b16 %v3664
      %v3954 = vunpack.c.h.b16 %v3664
      %v3955 = vunpack.c.l.b16 %v3665
      %v3956 = vunpack.c.h.b16 %v3665
      %v3957 = vunpack.c.l.b16 %v3666
      %v3958 = vunpack.c.h.b16 %v3666
      %v3959 = vunpack.c.l.b16 %v3667
      %v3960 = vunpack.c.h.b16 %v3667
      %v3961 = vunpack.c.l.b16 %v3668
      %v3962 = vunpack.c.h.b16 %v3668
      %v3963 = vunpack.c.l.b16 %v3669
      %v3964 = vunpack.c.h.b16 %v3669
      %v3965 = vunpack.c.l.b16 %v3670
      %v3966 = vunpack.c.h.b16 %v3670
      %v3967 = vunpack.c.l.b16 %v3671
      %v3968 = vunpack.c.h.b16 %v3671
      %v3969 = vunpack.c.l.b16 %v3672
      %v3970 = vunpack.c.h.b16 %v3672
      %v3971 = vunpack.c.l.b16 %v3673
      %v3972 = vunpack.c.h.b16 %v3673
      %v3973 = vunpack.c.l.b16 %v3674
      %v3974 = vunpack.c.h.b16 %v3674
      %v3975 = vunpack.c.l.b16 %v3675
      %v3976 = vunpack.c.h.b16 %v3675
      %v3977 = vunpack.c.l.b16 %v3676
      %v3978 = vunpack.c.h.b16 %v3676
      %v3979 = vunpack.c.l.b16 %v3677
      %v3980 = vunpack.c.h.b16 %v3677
      %v3981 = vunpack.c.l.b16 %v3678
      %v3982 = vunpack.c.h.b16 %v3678
      %v3983 = vunpack.c.l.b16 %v3679
      %v3984 = vunpack.c.h.b16 %v3679
      %v3985 = vunpack.c.l.b16 %v3680
      %v3986 = vunpack.c.h.b16 %v3680
      %v3987 = vunpack.c.l.b16 %v3681
      %v3988 = vunpack.c.h.b16 %v3681
      %v3989 = vunpack.c.l.b16 %v3682
      %v3990 = vunpack.c.h.b16 %v3682
      %v3991 = vunpack.c.l.b16 %v3683
      %v3992 = vunpack.c.h.b16 %v3683
      %v3993 = vunpack.c.l.b16 %v3684
      %v3994 = vunpack.c.h.b16 %v3684
      %v3995 = vunpack.c.l.b16 %v3685
      %v3996 = vunpack.c.h.b16 %v3685
      %v3997 = vunpack.c.l.b16 %v3686
      %v3998 = vunpack.c.h.b16 %v3686
      %v3999 = vunpack.c.l.b16 %v3687
      %v4000 = vunpack.c.h.b16 %v3687
      %v4001 = vunpack.c.l.b16 %v3688
      %v4002 = vunpack.c.h.b16 %v3688
      %v4003 = vunpack.c.l.b16 %v3689
      %v4004 = vunpack.c.h.b16 %v3689
      %v4005 = vunpack.c.l.b16 %v3690
      %v4006 = vunpack.c.h.b16 %v3690
      %v4007 = vunpack.c.l.b16 %v3691
      %v4008 = vunpack.c.h.b16 %v3691
      %v4009 = vunpack.c.l.b16 %v3692
      %v4010 = vunpack.c.h.b16 %v3692
      %v4011 = vunpack.c.l.b16 %v3693
      %v4012 = vunpack.c.h.b16 %v3693
      %v4013 = vunpack.c.l.b16 %v3694
      %v4014 = vunpack.c.h.b16 %v3694
      %v4015 = vunpack.c.l.b16 %v3695
      %v4016 = vunpack.c.h.b16 %v3695
      %v4017 = vunpack.c.l.b16 %v3696
      %v4018 = vunpack.c.h.b16 %v3696
      %v4019 = vunpack.c.l.b16 %v3697
      %v4020 = vunpack.c.h.b16 %v3697
      %v4021 = vunpack.c.l.b16 %v3698
      %v4022 = vunpack.c.h.b16 %v3698
      %v4023 = vunpack.c.l.b16 %v3699
      %v4024 = vunpack.c.h.b16 %v3699
      %v4025 = vunpack.c.l.b16 %v3700
      %v4026 = vunpack.c.h.b16 %v3700
      %v4027 = vunpack.c.l.b16 %v3701
      %v4028 = vunpack.c.h.b16 %v3701
      %v4029 = vunpack.c.l.b16 %v3702
      %v4030 = vunpack.c.h.b16 %v3702
      %v4031 = vunpack.c.l.b16 %v3703
      %v4032 = vunpack.c.h.b16 %v3703
      %v4033 = vunpack.c.l.b16 %v3704
      %v4034 = vunpack.c.h.b16 %v3704
      %v4035 = vunpack.c.l.b16 %v3705
      %v4036 = vunpack.c.h.b16 %v3705
      %v4037 = vunpack.c.l.b16 %v3706
      %v4038 = vunpack.c.h.b16 %v3706
      %v4039 = vunpack.c.l.b16 %v3707
      %v4040 = vunpack.c.h.b16 %v3707
      %v4041 = vunpack.c.l.b16 %v3708
      %v4042 = vunpack.c.h.b16 %v3708
      %v4043 = vunpack.c.l.b16 %v3709
      %v4044 = vunpack.c.h.b16 %v3709
      %v4045 = vunpack.c.l.b16 %v3710
      %v4046 = vunpack.c.h.b16 %v3710
      %v4047 = vunpack.c.l.b16 %v3711
      %v4048 = vunpack.c.h.b16 %v3711
      %v4049 = vunpack.c.l.b16 %v3712
      %v4050 = vunpack.c.h.b16 %v3712
      %v4051 = vunpack.c.l.b16 %v3713
      %v4052 = vunpack.c.h.b16 %v3713
      %v4053 = vunpack.c.l.b16 %v3714
      %v4054 = vunpack.c.h.b16 %v3714
      %v4055 = vunpack.c.l.b16 %v3715
      %v4056 = vunpack.c.h.b16 %v3715
      %v4057 = vunpack.c.l.b16 %v3716
      %v4058 = vunpack.c.h.b16 %v3716
      %v4059 = vunpack.c.l.b16 %v3717
      %v4060 = vunpack.c.h.b16 %v3717
      %v4061 = vunpack.c.l.b16 %v3718
      %v4062 = vunpack.c.h.b16 %v3718
      %v4063 = vunpack.c.l.b16 %v3719
      %v4064 = vunpack.c.h.b16 %v3719
      %v4065 = vunpack.c.l.b16 %v3720
      %v4066 = vunpack.c.h.b16 %v3720
      %v4067 = vunpack.c.l.b16 %v3721
      %v4068 = vunpack.c.h.b16 %v3721
      %v4069 = vunpack.c.l.b16 %v3722
      %v4070 = vunpack.c.h.b16 %v3722
      %v4071 = vunpack.c.l.b16 %v3723
      %v4072 = vunpack.c.h.b16 %v3723
      %v4073 = vunpack.c.l.b16 %v3724
      %v4074 = vunpack.c.h.b16 %v3724
      %v4075 = vunpack.c.l.b16 %v3725
      %v4076 = vunpack.c.h.b16 %v3725
      %v4077 = vunpack.c.l.b16 %v3726
      %v4078 = vunpack.c.h.b16 %v3726
      %v4079 = vunpack.c.l.b16 %v3727
      %v4080 = vunpack.c.h.b16 %v3727
      %v4081 = vunpack.c.l.b16 %v3728
      %v4082 = vunpack.c.h.b16 %v3728
      %v4083 = vunpack.c.l.b16 %v3729
      %v4084 = vunpack.c.h.b16 %v3729
      %v4085 = vunpack.c.l.b16 %v3730
      %v4086 = vunpack.c.h.b16 %v3730
      %v4087 = vunpack.c.l.b16 %v3731
      %v4088 = vunpack.c.h.b16 %v3731
      %v4089 = vunpack.c.l.b16 %v3732
      %v4090 = vunpack.c.h.b16 %v3732
      %v4091 = vunpack.c.l.b16 %v3733
      %v4092 = vunpack.c.h.b16 %v3733
      %v4093 = vunpack.c.l.b16 %v3734
      %v4094 = vunpack.c.h.b16 %v3734
      %v4095 = vunpack.c.l.b16 %v3735
      %v4096 = vunpack.c.h.b16 %v3735
      %v4097 = vunpack.c.l.b16 %v3736
      %v4098 = vunpack.c.h.b16 %v3736
      %v4099 = vunpack.c.l.b16 %v3737
      %v4100 = vunpack.c.h.b16 %v3737
      %v4101 = vunpack.c.l.b16 %v3738
      %v4102 = vunpack.c.h.b16 %v3738
      %v4103 = vunpack.c.l.b16 %v3739
      %v4104 = vunpack.c.h.b16 %v3739
      %v4105 = vunpack.c.l.b16 %v3740
      %v4106 = vunpack.c.h.b16 %v3740
      %v4107 = vunpack.c.l.b16 %v3741
      %v4108 = vunpack.c.h.b16 %v3741
      %v4109 = vunpack.c.l.b16 %v3742
      %v4110 = vunpack.c.h.b16 %v3742
      %v4111 = vunpack.c.l.b16 %v3743
      %v4112 = vunpack.c.h.b16 %v3743
      %v4113 = vunpack.c.l.b16 %v3744
      %v4114 = vunpack.c.h.b16 %v3744
      %v4115 = vunpack.c.l.b16 %v3745
      %v4116 = vunpack.c.h.b16 %v3745
      %v4117 = vunpack.c.l.b16 %v3746
      %v4118 = vunpack.c.h.b16 %v3746
      %v4119 = vunpack.c.l.b16 %v3747
      %v4120 = vunpack.c.h.b16 %v3747
      %v4121 = vunpack.c.l.b16 %v3748
      %v4122 = vunpack.c.h.b16 %v3748
      %v4123 = vunpack.c.l.b16 %v3749
      %v4124 = vunpack.c.h.b16 %v3749
      %v4125 = vunpack.c.l.b16 %v3750
      %v4126 = vunpack.c.h.b16 %v3750
      %v4127 = vunpack.c.l.b16 %v3751
      %v4128 = vunpack.c.h.b16 %v3751
      %v4129 = vunpack.c.l.b16 %v3752
      %v4130 = vunpack.c.h.b16 %v3752
      %v4131 = vunpack.c.l.b16 %v3753
      %v4132 = vunpack.c.h.b16 %v3753
      %v4133 = vunpack.c.l.b16 %v3754
      %v4134 = vunpack.c.h.b16 %v3754
      %v4135 = vunpack.c.l.b16 %v3755
      %v4136 = vunpack.c.h.b16 %v3755
      %v4137 = vunpack.c.l.b16 %v3756
      %v4138 = vunpack.c.h.b16 %v3756
      %v4139 = vunpack.c.l.b16 %v3757
      %v4140 = vunpack.c.h.b16 %v3757
      %v4141 = vunpack.c.l.b16 %v3758
      %v4142 = vunpack.c.h.b16 %v3758
      %v4143 = vunpack.c.l.b16 %v3759
      %v4144 = vunpack.c.h.b16 %v3759
      %v4145 = vunpack.c.l.b16 %v3760
      %v4146 = vunpack.c.h.b16 %v3760
      %v4147 = vunpack.c.l.b16 %v3761
      %v4148 = vunpack.c.h.b16 %v3761
      %v4149 = vunpack.c.l.b16 %v3762
      %v4150 = vunpack.c.h.b16 %v3762
      %v4151 = vunpack.c.l.b16 %v3763
      %v4152 = vunpack.c.h.b16 %v3763
      %v4153 = vunpack.c.l.b16 %v3764
      %v4154 = vunpack.c.h.b16 %v3764
      %v4155 = vunpack.c.l.b16 %v3765
      %v4156 = vunpack.c.h.b16 %v3765
      %v4157 = vunpack.c.l.b16 %v3766
      %v4158 = vunpack.c.h.b16 %v3766
      %v4159 = vunpack.c.l.b16 %v3767
      %v4160 = vunpack.c.h.b16 %v3767
      %v4161 = vunpack.c.l.b16 %v3768
      %v4162 = vunpack.c.h.b16 %v3768
      %v4163 = vunpack.c.l.b16 %v3769
      %v4164 = vunpack.c.h.b16 %v3769
      %v4165 = vunpack.c.l.b16 %v3770
      %v4166 = vunpack.c.h.b16 %v3770
      %v4167 = vunpack.c.l.b16 %v3771
      %v4168 = vunpack.c.h.b16 %v3771
      %v4169 = vunpack.c.l.b16 %v3772
      %v4170 = vunpack.c.h.b16 %v3772
      %v4171 = vunpack.c.l.b16 %v3773
      %v4172 = vunpack.c.h.b16 %v3773
      %v4173 = vunpack.c.l.b16 %v3774
      %v4174 = vunpack.c.h.b16 %v3774
      %v4175 = vunpack.c.l.b16 %v3775
      %v4176 = vunpack.c.h.b16 %v3775
      %v4177 = vunpack.c.l.b16 %v3776
      %v4178 = vunpack.c.h.b16 %v3776
      %v4179 = vunpack.c.l.b16 %v3777
      %v4180 = vunpack.c.h.b16 %v3777
      %v4181 = vunpack.c.l.b16 %v3778
      %v4182 = vunpack.c.h.b16 %v3778
      %v4183 = vunpack.c.l.b16 %v3779
      %v4184 = vunpack.c.h.b16 %v3779
      %v4185 = vunpack.c.l.b16 %v3780
      %v4186 = vunpack.c.h.b16 %v3780
      %v4187 = vpack.c.b16 %v3935, %v3931
      %v4188 = vpack.c.b16 %v3936, %v3932
      %v4189 = vpack.c.b16 %v3937, %v3933
      %v4190 = vpack.c.b16 %v3938, %v3934
      %v4191 = vpack.c.b16 %v3943, %v3939
      %v4192 = vpack.c.b16 %v3944, %v3940
      %v4193 = vpack.c.b16 %v3945, %v3941
      %v4194 = vpack.c.b16 %v3946, %v3942
      %v4195 = vpack.c.b16 %v3951, %v3947
      %v4196 = vpack.c.b16 %v3952, %v3948
      %v4197 = vpack.c.b16 %v3953, %v3949
      %v4198 = vpack.c.b16 %v3954, %v3950
      %v4199 = vpack.c.b16 %v3959, %v3955
      %v4200 = vpack.c.b16 %v3960, %v3956
      %v4201 = vpack.c.b16 %v3961, %v3957
      %v4202 = vpack.c.b16 %v3962, %v3958
      %v4203 = vpack.c.b16 %v3967, %v3963
      %v4204 = vpack.c.b16 %v3968, %v3964
      %v4205 = vpack.c.b16 %v3969, %v3965
      %v4206 = vpack.c.b16 %v3970, %v3966
      %v4207 = vpack.c.b16 %v3975, %v3971
      %v4208 = vpack.c.b16 %v3976, %v3972
      %v4209 = vpack.c.b16 %v3977, %v3973
      %v4210 = vpack.c.b16 %v3978, %v3974
      %v4211 = vpack.c.b16 %v3983, %v3979
      %v4212 = vpack.c.b16 %v3984, %v3980
      %v4213 = vpack.c.b16 %v3985, %v3981
      %v4214 = vpack.c.b16 %v3986, %v3982
      %v4215 = vpack.c.b16 %v3991, %v3987
      %v4216 = vpack.c.b16 %v3992, %v3988
      %v4217 = vpack.c.b16 %v3993, %v3989
      %v4218 = vpack.c.b16 %v3994, %v3990
      %v4219 = vpack.c.b16 %v3999, %v3995
      %v4220 = vpack.c.b16 %v4000, %v3996
      %v4221 = vpack.c.b16 %v4001, %v3997
      %v4222 = vpack.c.b16 %v4002, %v3998
      %v4223 = vpack.c.b16 %v4007, %v4003
      %v4224 = vpack.c.b16 %v4008, %v4004
      %v4225 = vpack.c.b16 %v4009, %v4005
      %v4226 = vpack.c.b16 %v4010, %v4006
      %v4227 = vpack.c.b16 %v4015, %v4011
      %v4228 = vpack.c.b16 %v4016, %v4012
      %v4229 = vpack.c.b16 %v4017, %v4013
      %v4230 = vpack.c.b16 %v4018, %v4014
      %v4231 = vpack.c.b16 %v4023, %v4019
      %v4232 = vpack.c.b16 %v4024, %v4020
      %v4233 = vpack.c.b16 %v4025, %v4021
      %v4234 = vpack.c.b16 %v4026, %v4022
      %v4235 = vpack.c.b16 %v4031, %v4027
      %v4236 = vpack.c.b16 %v4032, %v4028
      %v4237 = vpack.c.b16 %v4033, %v4029
      %v4238 = vpack.c.b16 %v4034, %v4030
      %v4239 = vpack.c.b16 %v4039, %v4035
      %v4240 = vpack.c.b16 %v4040, %v4036
      %v4241 = vpack.c.b16 %v4041, %v4037
      %v4242 = vpack.c.b16 %v4042, %v4038
      %v4243 = vpack.c.b16 %v4047, %v4043
      %v4244 = vpack.c.b16 %v4048, %v4044
      %v4245 = vpack.c.b16 %v4049, %v4045
      %v4246 = vpack.c.b16 %v4050, %v4046
      %v4247 = vpack.c.b16 %v4055, %v4051
      %v4248 = vpack.c.b16 %v4056, %v4052
      %v4249 = vpack.c.b16 %v4057, %v4053
      %v4250 = vpack.c.b16 %v4058, %v4054
      %v4251 = vpack.c.b16 %v4063, %v4059
      %v4252 = vpack.c.b16 %v4064, %v4060
      %v4253 = vpack.c.b16 %v4065, %v4061
      %v4254 = vpack.c.b16 %v4066, %v4062
      %v4255 = vpack.c.b16 %v4071, %v4067
      %v4256 = vpack.c.b16 %v4072, %v4068
      %v4257 = vpack.c.b16 %v4073, %v4069
      %v4258 = vpack.c.b16 %v4074, %v4070
      %v4259 = vpack.c.b16 %v4079, %v4075
      %v4260 = vpack.c.b16 %v4080, %v4076
      %v4261 = vpack.c.b16 %v4081, %v4077
      %v4262 = vpack.c.b16 %v4082, %v4078
      %v4263 = vpack.c.b16 %v4087, %v4083
      %v4264 = vpack.c.b16 %v4088, %v4084
      %v4265 = vpack.c.b16 %v4089, %v4085
      %v4266 = vpack.c.b16 %v4090, %v4086
      %v4267 = vpack.c.b16 %v4095, %v4091
      %v4268 = vpack.c.b16 %v4096, %v4092
      %v4269 = vpack.c.b16 %v4097, %v4093
      %v4270 = vpack.c.b16 %v4098, %v4094
      %v4271 = vpack.c.b16 %v4103, %v4099
      %v4272 = vpack.c.b16 %v4104, %v4100
      %v4273 = vpack.c.b16 %v4105, %v4101
      %v4274 = vpack.c.b16 %v4106, %v4102
      %v4275 = vpack.c.b16 %v4111, %v4107
      %v4276 = vpack.c.b16 %v4112, %v4108
      %v4277 = vpack.c.b16 %v4113, %v4109
      %v4278 = vpack.c.b16 %v4114, %v4110
      %v4279 = vpack.c.b16 %v4119, %v4115
      %v4280 = vpack.c.b16 %v4120, %v4116
      %v4281 = vpack.c.b16 %v4121, %v4117
      %v4282 = vpack.c.b16 %v4122, %v4118
      %v4283 = vpack.c.b16 %v4127, %v4123
      %v4284 = vpack.c.b16 %v4128, %v4124
      %v4285 = vpack.c.b16 %v4129, %v4125
      %v4286 = vpack.c.b16 %v4130, %v4126
      %v4287 = vpack.c.b16 %v4135, %v4131
      %v4288 = vpack.c.b16 %v4136, %v4132
      %v4289 = vpack.c.b16 %v4137, %v4133
      %v4290 = vpack.c.b16 %v4138, %v4134
      %v4291 = vpack.c.b16 %v4143, %v4139
      %v4292 = vpack.c.b16 %v4144, %v4140
      %v4293 = vpack.c.b16 %v4145, %v4141
      %v4294 = vpack.c.b16 %v4146, %v4142
      %v4295 = vpack.c.b16 %v4151, %v4147
      %v4296 = vpack.c.b16 %v4152, %v4148
      %v4297 = vpack.c.b16 %v4153, %v4149
      %v4298 = vpack.c.b16 %v4154, %v4150
      %v4299 = vpack.c.b16 %v4159, %v4155
      %v4300 = vpack.c.b16 %v4160, %v4156
      %v4301 = vpack.c.b16 %v4161, %v4157
      %v4302 = vpack.c.b16 %v4162, %v4158
      %v4303 = vpack.c.b16 %v4167, %v4163
      %v4304 = vpack.c.b16 %v4168, %v4164
      %v4305 = vpack.c.b16 %v4169, %v4165
      %v4306 = vpack.c.b16 %v4170, %v4166
      %v4307 = vpack.c.b16 %v4175, %v4171
      %v4308 = vpack.c.b16 %v4176, %v4172
      %v4309 = vpack.c.b16 %v4177, %v4173
      %v4310 = vpack.c.b16 %v4178, %v4174
      %v4311 = vpack.c.b16 %v4183, %v4179
      %v4312 = vpack.c.b16 %v4184, %v4180
      %v4313 = vpack.c.b16 %v4185, %v4181
      %v4314 = vpack.c.b16 %v4186, %v4182
      %4443 = vmatprep.subr.bf16.mxu0 %v4216
      %4444 = vmatpush1.bf16.msra.mxu0 %v4215
      %4445 = vmatprep.subr.bf16.mxu0 %v4212
      %4446 = vmatpush1.bf16.msra.mxu0 %v4211
      %4447 = vmatprep.subr.bf16.mxu0 %v4208
      %4448 = vmatpush1.bf16.msra.mxu0 %v4207
      %4449 = vmatprep.subr.bf16.mxu0 %v4204
      %4450 = vmatpush1.bf16.msra.mxu0 %v4203
      %4451 = vmatprep.subr.bf16.mxu0 %v4200
      %4452 = vmatpush1.bf16.msra.mxu0 %v4199
      %4453 = vmatprep.subr.bf16.mxu0 %v4196
      %4454 = vmatpush1.bf16.msra.mxu0 %v4195
      %4455 = vmatprep.subr.bf16.mxu0 %v4192
      %4456 = vmatpush1.bf16.msra.mxu0 %v4191
      %4457 = vmatprep.subr.bf16.mxu0 %v4188
      %4458 = vmatpush1.bf16.msra.mxu0 %v4187
      %4459 = vmatprep.subr.bf16.mxu0 %v4248
      %4460 = vmatpush2.bf16.msra.mxu0 %v4247
      %4461 = vmatprep.subr.bf16.mxu0 %v4244
      %4462 = vmatpush2.bf16.msra.mxu0 %v4243
      %4463 = vmatprep.subr.bf16.mxu0 %v4240
      %4464 = vmatpush2.bf16.msra.mxu0 %v4239
      %4465 = vmatprep.subr.bf16.mxu0 %v4236
      %4466 = vmatpush2.bf16.msra.mxu0 %v4235
      %4467 = vmatprep.subr.bf16.mxu0 %v4232
      %4468 = vmatpush2.bf16.msra.mxu0 %v4231
      %4469 = vmatprep.subr.bf16.mxu0 %v4228
      %4470 = vmatpush2.bf16.msra.mxu0 %v4227
      %4471 = vmatprep.subr.bf16.mxu0 %v4224
      %4472 = vmatpush2.bf16.msra.mxu0 %v4223
      %4473 = vmatprep.subr.bf16.mxu0 %v4220
      %4474 = vmatpush2.bf16.msra.mxu0 %v4219
      %4475 = vmatprep.mubr.bf16.mxu0 %v3582
      %4476 = vmatmul.mubr.bf16.gmra.mxu0 %v3581
      %v4477 = vpop.f32.mrf.mxu0
      %v4478 = vadd.f32 %v3786, %v4477
      %v4479 = vpop.f32.mrf.mxu0
      %v4480 = vadd.f32 %v3790, %v4479
      %v4481 = vpop.f32.mrf.mxu0
      %v4482 = vadd.f32 %v3786, %v4481
      %v4483 = vpop.f32.mrf.mxu0
      %v4484 = vadd.f32 %v3790, %v4483
      %4485 = vmatprep.mubr.bf16.mxu0 %v3586
      %4486 = vmatmul.mubr.bf16.gmra.mxu0 %v3585
      %v4487 = vpop.f32.mrf.mxu0
      %v4488 = vadd.f32 %v3786, %v4487
      %v4489 = vpop.f32.mrf.mxu0
      %v4490 = vadd.f32 %v3790, %v4489
      %v4491 = vpop.f32.mrf.mxu0
      %v4492 = vadd.f32 %v3786, %v4491
      %v4493 = vpop.f32.mrf.mxu0
      %v4494 = vadd.f32 %v3790, %v4493
      %4495 = vmatprep.mubr.bf16.mxu0 %v3590
      %4496 = vmatmul.mubr.bf16.gmra.mxu0 %v3589
      %v4497 = vpop.f32.mrf.mxu0
      %v4498 = vadd.f32 %v3786, %v4497
      %v4499 = vpop.f32.mrf.mxu0
      %v4500 = vadd.f32 %v3790, %v4499
      %v4501 = vpop.f32.mrf.mxu0
      %v4502 = vadd.f32 %v3786, %v4501
      %v4503 = vpop.f32.mrf.mxu0
      %v4504 = vadd.f32 %v3790, %v4503
      %4505 = vmatprep.mubr.bf16.mxu0 %v3594
      %4506 = vmatmul.mubr.bf16.gmra.mxu0 %v3593
      %v4507 = vpop.f32.mrf.mxu0
      %v4508 = vadd.f32 %v3786, %v4507
      %v4509 = vpop.f32.mrf.mxu0
      %v4510 = vadd.f32 %v3790, %v4509
      %v4511 = vpop.f32.mrf.mxu0
      %v4512 = vadd.f32 %v3786, %v4511
      %v4513 = vpop.f32.mrf.mxu0
      %v4514 = vadd.f32 %v3790, %v4513
      %4515 = vmatprep.mubr.bf16.mxu0 %v3598
      %4516 = vmatmul.mubr.bf16.gmra.mxu0 %v3597
      %v4517 = vpop.f32.mrf.mxu0
      %v4518 = vadd.f32 %v3786, %v4517
      %v4519 = vpop.f32.mrf.mxu0
      %v4520 = vadd.f32 %v3790, %v4519
      %v4521 = vpop.f32.mrf.mxu0
      %v4522 = vadd.f32 %v3786, %v4521
      %v4523 = vpop.f32.mrf.mxu0
      %v4524 = vadd.f32 %v3790, %v4523
      %4525 = vmatprep.mubr.bf16.mxu0 %v3602
      %4526 = vmatmul.mubr.bf16.gmra.mxu0 %v3601
      %v4527 = vpop.f32.mrf.mxu0
      %v4528 = vadd.f32 %v3786, %v4527
      %v4529 = vpop.f32.mrf.mxu0
      %v4530 = vadd.f32 %v3790, %v4529
      %v4531 = vpop.f32.mrf.mxu0
      %v4532 = vadd.f32 %v3786, %v4531
      %v4533 = vpop.f32.mrf.mxu0
      %v4534 = vadd.f32 %v3790, %v4533
      %4535 = vmatprep.mubr.bf16.mxu0 %v3606
      %4536 = vmatmul.mubr.bf16.gmra.mxu0 %v3605
      %v4537 = vpop.f32.mrf.mxu0
      %v4538 = vadd.f32 %v3786, %v4537
      %v4539 = vpop.f32.mrf.mxu0
      %v4540 = vadd.f32 %v3790, %v4539
      %v4541 = vpop.f32.mrf.mxu0
      %v4542 = vadd.f32 %v3786, %v4541
      %v4543 = vpop.f32.mrf.mxu0
      %v4544 = vadd.f32 %v3790, %v4543
      %4545 = vmatprep.mubr.bf16.mxu0 %v3610
      %4546 = vmatmul.mubr.bf16.gmra.mxu0 %v3609
      %v4547 = vpop.f32.mrf.mxu0
      %v4548 = vadd.f32 %v3786, %v4547
      %v4549 = vpop.f32.mrf.mxu0
      %v4550 = vadd.f32 %v3790, %v4549
      %v4551 = vpop.f32.mrf.mxu0
      %v4552 = vadd.f32 %v3786, %v4551
      %v4553 = vpop.f32.mrf.mxu0
      %v4554 = vadd.f32 %v3790, %v4553
      %4555 = vmatprep.mubr.bf16.mxu0 %v3614
      %4556 = vmatmul.mubr.bf16.gmra.mxu0 %v3613
      %v4557 = vpop.f32.mrf.mxu0
      %v4558 = vadd.f32 %v3786, %v4557
      %v4559 = vpop.f32.mrf.mxu0
      %v4560 = vadd.f32 %v3790, %v4559
      %v4561 = vpop.f32.mrf.mxu0
      %v4562 = vadd.f32 %v3786, %v4561
      %v4563 = vpop.f32.mrf.mxu0
      %v4564 = vadd.f32 %v3790, %v4563
      %4565 = vmatprep.mubr.bf16.mxu0 %v3618
      %4566 = vmatmul.mubr.bf16.gmra.mxu0 %v3617
      %v4567 = vpop.f32.mrf.mxu0
      %v4568 = vadd.f32 %v3786, %v4567
      %v4569 = vpop.f32.mrf.mxu0
      %v4570 = vadd.f32 %v3790, %v4569
      %v4571 = vpop.f32.mrf.mxu0
      %v4572 = vadd.f32 %v3786, %v4571
      %v4573 = vpop.f32.mrf.mxu0
      %v4574 = vadd.f32 %v3790, %v4573
      %4575 = vmatprep.mubr.bf16.mxu0 %v3622
      %4576 = vmatmul.mubr.bf16.gmra.mxu0 %v3621
      %v4577 = vpop.f32.mrf.mxu0
      %v4578 = vadd.f32 %v3786, %v4577
      %v4579 = vpop.f32.mrf.mxu0
      %v4580 = vadd.f32 %v3790, %v4579
      %v4581 = vpop.f32.mrf.mxu0
      %v4582 = vadd.f32 %v3786, %v4581
      %v4583 = vpop.f32.mrf.mxu0
      %v4584 = vadd.f32 %v3790, %v4583
      %4585 = vmatprep.mubr.bf16.mxu0 %v3626
      %4586 = vmatmul.mubr.bf16.gmra.mxu0 %v3625
      %v4587 = vpop.f32.mrf.mxu0
      %v4588 = vadd.f32 %v3786, %v4587
      %v4589 = vpop.f32.mrf.mxu0
      %v4590 = vadd.f32 %v3790, %v4589
      %v4591 = vpop.f32.mrf.mxu0
      %v4592 = vadd.f32 %v3786, %v4591
      %v4593 = vpop.f32.mrf.mxu0
      %v4594 = vadd.f32 %v3790, %v4593
      %4595 = vmatprep.mubr.bf16.mxu0 %v3630
      %4596 = vmatmul.mubr.bf16.gmra.mxu0 %v3629
      %v4597 = vpop.f32.mrf.mxu0
      %v4598 = vadd.f32 %v3786, %v4597
      %v4599 = vpop.f32.mrf.mxu0
      %v4600 = vadd.f32 %v3790, %v4599
      %v4601 = vpop.f32.mrf.mxu0
      %v4602 = vadd.f32 %v3786, %v4601
      %v4603 = vpop.f32.mrf.mxu0
      %v4604 = vadd.f32 %v3790, %v4603
      %4605 = vmatprep.mubr.bf16.mxu0 %v3634
      %4606 = vmatmul.mubr.bf16.gmra.mxu0 %v3633
      %v4607 = vpop.f32.mrf.mxu0
      %v4608 = vadd.f32 %v3786, %v4607
      %v4609 = vpop.f32.mrf.mxu0
      %v4610 = vadd.f32 %v3790, %v4609
      %v4611 = vpop.f32.mrf.mxu0
      %v4612 = vadd.f32 %v3786, %v4611
      %v4613 = vpop.f32.mrf.mxu0
      %v4614 = vadd.f32 %v3790, %v4613
      %4615 = vmatprep.mubr.bf16.mxu0 %v3638
      %4616 = vmatmul.mubr.bf16.gmra.mxu0 %v3637
      %v4617 = vpop.f32.mrf.mxu0
      %v4618 = vadd.f32 %v3786, %v4617
      %v4619 = vpop.f32.mrf.mxu0
      %v4620 = vadd.f32 %v3790, %v4619
      %v4621 = vpop.f32.mrf.mxu0
      %v4622 = vadd.f32 %v3786, %v4621
      %v4623 = vpop.f32.mrf.mxu0
      %v4624 = vadd.f32 %v3790, %v4623
      %4625 = vmatprep.mubr.bf16.mxu0 %v3642
      %4626 = vmatmul.mubr.bf16.gmra.mxu0 %v3641
      %v4627 = vpop.f32.mrf.mxu0
      %v4628 = vadd.f32 %v3786, %v4627
      %v4629 = vpop.f32.mrf.mxu0
      %v4630 = vadd.f32 %v3790, %v4629
      %v4631 = vpop.f32.mrf.mxu0
      %v4632 = vadd.f32 %v3786, %v4631
      %v4633 = vpop.f32.mrf.mxu0
      %v4634 = vadd.f32 %v3790, %v4633
      %4635 = vmatprep.mubr.bf16.mxu0 %v3646
      %4636 = vmatmul.mubr.bf16.gmra.mxu0 %v3645
      %v4637 = vpop.f32.mrf.mxu0
      %v4638 = vadd.f32 %v3786, %v4637
      %v4639 = vpop.f32.mrf.mxu0
      %v4640 = vadd.f32 %v3790, %v4639
      %v4641 = vpop.f32.mrf.mxu0
      %v4642 = vadd.f32 %v3786, %v4641
      %v4643 = vpop.f32.mrf.mxu0
      %v4644 = vadd.f32 %v3790, %v4643
      %4645 = vmatprep.mubr.bf16.mxu0 %v3650
      %4646 = vmatmul.mubr.bf16.gmra.mxu0 %v3649
      %v4647 = vpop.f32.mrf.mxu0
      %v4648 = vadd.f32 %v3786, %v4647
      %v4649 = vpop.f32.mrf.mxu0
      %v4650 = vadd.f32 %v3790, %v4649
      %v4651 = vpop.f32.mrf.mxu0
      %v4652 = vadd.f32 %v3786, %v4651
      %v4653 = vpop.f32.mrf.mxu0
      %v4654 = vadd.f32 %v3790, %v4653
      %4655 = vdwg.mxu0
      %4656 = vmatprep.subr.bf16.mxu0 %v4280
      %4657 = vmatpush1.bf16.msra.mxu0 %v4279
      %4658 = vmatprep.subr.bf16.mxu0 %v4276
      %4659 = vmatpush1.bf16.msra.mxu0 %v4275
      %4660 = vmatprep.subr.bf16.mxu0 %v4272
      %4661 = vmatpush1.bf16.msra.mxu0 %v4271
      %4662 = vmatprep.subr.bf16.mxu0 %v4268
      %4663 = vmatpush1.bf16.msra.mxu0 %v4267
      %4664 = vmatprep.subr.bf16.mxu0 %v4264
      %4665 = vmatpush1.bf16.msra.mxu0 %v4263
      %4666 = vmatprep.subr.bf16.mxu0 %v4260
      %4667 = vmatpush1.bf16.msra.mxu0 %v4259
      %4668 = vmatprep.subr.bf16.mxu0 %v4256
      %4669 = vmatpush1.bf16.msra.mxu0 %v4255
      %4670 = vmatprep.subr.bf16.mxu0 %v4252
      %4671 = vmatpush1.bf16.msra.mxu0 %v4251
      %4672 = vmatprep.subr.bf16.mxu0 %v4312
      %4673 = vmatpush2.bf16.msra.mxu0 %v4311
      %4674 = vmatprep.subr.bf16.mxu0 %v4308
      %4675 = vmatpush2.bf16.msra.mxu0 %v4307
      %4676 = vmatprep.subr.bf16.mxu0 %v4304
      %4677 = vmatpush2.bf16.msra.mxu0 %v4303
      %4678 = vmatprep.subr.bf16.mxu0 %v4300
      %4679 = vmatpush2.bf16.msra.mxu0 %v4299
      %4680 = vmatprep.subr.bf16.mxu0 %v4296
      %4681 = vmatpush2.bf16.msra.mxu0 %v4295
      %4682 = vmatprep.subr.bf16.mxu0 %v4292
      %4683 = vmatpush2.bf16.msra.mxu0 %v4291
      %4684 = vmatprep.subr.bf16.mxu0 %v4288
      %4685 = vmatpush2.bf16.msra.mxu0 %v4287
      %4686 = vmatprep.subr.bf16.mxu0 %v4284
      %4687 = vmatpush2.bf16.msra.mxu0 %v4283
      %4688 = vmatprep.mubr.bf16.mxu0 %v3584
      %4689 = vmatmul.mubr.bf16.gmra.mxu0 %v3583
      %v4690 = vpop.f32.mrf.mxu0
      %v4691 = vadd.f32 %v4478, %v4690
      %v4692 = vpop.f32.mrf.mxu0
      %v4693 = vadd.f32 %v4480, %v4692
      %v4694 = vpop.f32.mrf.mxu0
      %v4695 = vadd.f32 %v4482, %v4694
      %v4696 = vpop.f32.mrf.mxu0
      %v4697 = vadd.f32 %v4484, %v4696
      %4698 = vmatprep.mubr.bf16.mxu0 %v3588
      %4699 = vmatmul.mubr.bf16.gmra.mxu0 %v3587
      %v4700 = vpop.f32.mrf.mxu0
      %v4701 = vadd.f32 %v4488, %v4700
      %v4702 = vpop.f32.mrf.mxu0
      %v4703 = vadd.f32 %v4490, %v4702
      %v4704 = vpop.f32.mrf.mxu0
      %v4705 = vadd.f32 %v4492, %v4704
      %v4706 = vpop.f32.mrf.mxu0
      %v4707 = vadd.f32 %v4494, %v4706
      %4708 = vmatprep.mubr.bf16.mxu0 %v3592
      %4709 = vmatmul.mubr.bf16.gmra.mxu0 %v3591
      %v4710 = vpop.f32.mrf.mxu0
      %v4711 = vadd.f32 %v4498, %v4710
      %v4712 = vpop.f32.mrf.mxu0
      %v4713 = vadd.f32 %v4500, %v4712
      %v4714 = vpop.f32.mrf.mxu0
      %v4715 = vadd.f32 %v4502, %v4714
      %v4716 = vpop.f32.mrf.mxu0
      %v4717 = vadd.f32 %v4504, %v4716
      %4718 = vmatprep.mubr.bf16.mxu0 %v3596
      %4719 = vmatmul.mubr.bf16.gmra.mxu0 %v3595
      %v4720 = vpop.f32.mrf.mxu0
      %v4721 = vadd.f32 %v4508, %v4720
      %v4722 = vpop.f32.mrf.mxu0
      %v4723 = vadd.f32 %v4510, %v4722
      %v4724 = vpop.f32.mrf.mxu0
      %v4725 = vadd.f32 %v4512, %v4724
      %v4726 = vpop.f32.mrf.mxu0
      %v4727 = vadd.f32 %v4514, %v4726
      %4728 = vmatprep.mubr.bf16.mxu0 %v3600
      %4729 = vmatmul.mubr.bf16.gmra.mxu0 %v3599
      %v4730 = vpop.f32.mrf.mxu0
      %v4731 = vadd.f32 %v4518, %v4730
      %v4732 = vpop.f32.mrf.mxu0
      %v4733 = vadd.f32 %v4520, %v4732
      %v4734 = vpop.f32.mrf.mxu0
      %v4735 = vadd.f32 %v4522, %v4734
      %v4736 = vpop.f32.mrf.mxu0
      %v4737 = vadd.f32 %v4524, %v4736
      %4738 = vmatprep.mubr.bf16.mxu0 %v3604
      %4739 = vmatmul.mubr.bf16.gmra.mxu0 %v3603
      %v4740 = vpop.f32.mrf.mxu0
      %v4741 = vadd.f32 %v4528, %v4740
      %v4742 = vpop.f32.mrf.mxu0
      %v4743 = vadd.f32 %v4530, %v4742
      %v4744 = vpop.f32.mrf.mxu0
      %v4745 = vadd.f32 %v4532, %v4744
      %v4746 = vpop.f32.mrf.mxu0
      %v4747 = vadd.f32 %v4534, %v4746
      %4748 = vmatprep.mubr.bf16.mxu0 %v3608
      %4749 = vmatmul.mubr.bf16.gmra.mxu0 %v3607
      %v4750 = vpop.f32.mrf.mxu0
      %v4751 = vadd.f32 %v4538, %v4750
      %v4752 = vpop.f32.mrf.mxu0
      %v4753 = vadd.f32 %v4540, %v4752
      %v4754 = vpop.f32.mrf.mxu0
      %v4755 = vadd.f32 %v4542, %v4754
      %v4756 = vpop.f32.mrf.mxu0
      %v4757 = vadd.f32 %v4544, %v4756
      %4758 = vmatprep.mubr.bf16.mxu0 %v3612
      %4759 = vmatmul.mubr.bf16.gmra.mxu0 %v3611
      %v4760 = vpop.f32.mrf.mxu0
      %v4761 = vadd.f32 %v4548, %v4760
      %v4762 = vpop.f32.mrf.mxu0
      %v4763 = vadd.f32 %v4550, %v4762
      %v4764 = vpop.f32.mrf.mxu0
      %v4765 = vadd.f32 %v4552, %v4764
      %v4766 = vpop.f32.mrf.mxu0
      %v4767 = vadd.f32 %v4554, %v4766
      %4768 = vmatprep.mubr.bf16.mxu0 %v3616
      %4769 = vmatmul.mubr.bf16.gmra.mxu0 %v3615
      %v4770 = vpop.f32.mrf.mxu0
      %v4771 = vadd.f32 %v4558, %v4770
      %v4772 = vpop.f32.mrf.mxu0
      %v4773 = vadd.f32 %v4560, %v4772
      %v4774 = vpop.f32.mrf.mxu0
      %v4775 = vadd.f32 %v4562, %v4774
      %v4776 = vpop.f32.mrf.mxu0
      %v4777 = vadd.f32 %v4564, %v4776
      %4778 = vmatprep.mubr.bf16.mxu0 %v3620
      %4779 = vmatmul.mubr.bf16.gmra.mxu0 %v3619
      %v4780 = vpop.f32.mrf.mxu0
      %v4781 = vadd.f32 %v4568, %v4780
      %v4782 = vpop.f32.mrf.mxu0
      %v4783 = vadd.f32 %v4570, %v4782
      %v4784 = vpop.f32.mrf.mxu0
      %v4785 = vadd.f32 %v4572, %v4784
      %v4786 = vpop.f32.mrf.mxu0
      %v4787 = vadd.f32 %v4574, %v4786
      %4788 = vmatprep.mubr.bf16.mxu0 %v3624
      %4789 = vmatmul.mubr.bf16.gmra.mxu0 %v3623
      %v4790 = vpop.f32.mrf.mxu0
      %v4791 = vadd.f32 %v4578, %v4790
      %v4792 = vpop.f32.mrf.mxu0
      %v4793 = vadd.f32 %v4580, %v4792
      %v4794 = vpop.f32.mrf.mxu0
      %v4795 = vadd.f32 %v4582, %v4794
      %v4796 = vpop.f32.mrf.mxu0
      %v4797 = vadd.f32 %v4584, %v4796
      %4798 = vmatprep.mubr.bf16.mxu0 %v3628
      %4799 = vmatmul.mubr.bf16.gmra.mxu0 %v3627
      %v4800 = vpop.f32.mrf.mxu0
      %v4801 = vadd.f32 %v4588, %v4800
      %v4802 = vpop.f32.mrf.mxu0
      %v4803 = vadd.f32 %v4590, %v4802
      %v4804 = vpop.f32.mrf.mxu0
      %v4805 = vadd.f32 %v4592, %v4804
      %v4806 = vpop.f32.mrf.mxu0
      %v4807 = vadd.f32 %v4594, %v4806
      %4808 = vmatprep.mubr.bf16.mxu0 %v3632
      %4809 = vmatmul.mubr.bf16.gmra.mxu0 %v3631
      %v4810 = vpop.f32.mrf.mxu0
      %v4811 = vadd.f32 %v4598, %v4810
      %v4812 = vpop.f32.mrf.mxu0
      %v4813 = vadd.f32 %v4600, %v4812
      %v4814 = vpop.f32.mrf.mxu0
      %v4815 = vadd.f32 %v4602, %v4814
      %v4816 = vpop.f32.mrf.mxu0
      %v4817 = vadd.f32 %v4604, %v4816
      %4818 = vmatprep.mubr.bf16.mxu0 %v3636
      %4819 = vmatmul.mubr.bf16.gmra.mxu0 %v3635
      %v4820 = vpop.f32.mrf.mxu0
      %v4821 = vadd.f32 %v4608, %v4820
      %v4822 = vpop.f32.mrf.mxu0
      %v4823 = vadd.f32 %v4610, %v4822
      %v4824 = vpop.f32.mrf.mxu0
      %v4825 = vadd.f32 %v4612, %v4824
      %v4826 = vpop.f32.mrf.mxu0
      %v4827 = vadd.f32 %v4614, %v4826
      %4828 = vmatprep.mubr.bf16.mxu0 %v3640
      %4829 = vmatmul.mubr.bf16.gmra.mxu0 %v3639
      %v4830 = vpop.f32.mrf.mxu0
      %v4831 = vadd.f32 %v4618, %v4830
      %v4832 = vpop.f32.mrf.mxu0
      %v4833 = vadd.f32 %v4620, %v4832
      %v4834 = vpop.f32.mrf.mxu0
      %v4835 = vadd.f32 %v4622, %v4834
      %v4836 = vpop.f32.mrf.mxu0
      %v4837 = vadd.f32 %v4624, %v4836
      %4838 = vmatprep.mubr.bf16.mxu0 %v3644
      %4839 = vmatmul.mubr.bf16.gmra.mxu0 %v3643
      %v4840 = vpop.f32.mrf.mxu0
      %v4841 = vadd.f32 %v4628, %v4840
      %v4842 = vpop.f32.mrf.mxu0
      %v4843 = vadd.f32 %v4630, %v4842
      %v4844 = vpop.f32.mrf.mxu0
      %v4845 = vadd.f32 %v4632, %v4844
      %v4846 = vpop.f32.mrf.mxu0
      %v4847 = vadd.f32 %v4634, %v4846
      %4848 = vmatprep.mubr.bf16.mxu0 %v3648
      %4849 = vmatmul.mubr.bf16.gmra.mxu0 %v3647
      %v4850 = vpop.f32.mrf.mxu0
      %v4851 = vadd.f32 %v4638, %v4850
      %v4852 = vpop.f32.mrf.mxu0
      %v4853 = vadd.f32 %v4640, %v4852
      %v4854 = vpop.f32.mrf.mxu0
      %v4855 = vadd.f32 %v4642, %v4854
      %v4856 = vpop.f32.mrf.mxu0
      %v4857 = vadd.f32 %v4644, %v4856
      %4858 = vmatprep.mubr.bf16.mxu0 %v3652
      %4859 = vmatmul.mubr.bf16.gmra.mxu0 %v3651
      %v4860 = vpop.f32.mrf.mxu0
      %v4861 = vadd.f32 %v4648, %v4860
      %v4862 = vpop.f32.mrf.mxu0
      %v4863 = vadd.f32 %v4650, %v4862
      %v4864 = vpop.f32.mrf.mxu0
      %v4865 = vadd.f32 %v4652, %v4864
      %v4866 = vpop.f32.mrf.mxu0
      %v4867 = vadd.f32 %v4654, %v4866
      %4868 = vdwg.mxu0
      %4869 = vmatprep.subr.bf16.mxu0 %v4218
      %4870 = vmatpush1.bf16.msra.mxu0 %v4217
      %4871 = vmatprep.subr.bf16.mxu0 %v4214
      %4872 = vmatpush1.bf16.msra.mxu0 %v4213
      %4873 = vmatprep.subr.bf16.mxu0 %v4210
      %4874 = vmatpush1.bf16.msra.mxu0 %v4209
      %4875 = vmatprep.subr.bf16.mxu0 %v4206
      %4876 = vmatpush1.bf16.msra.mxu0 %v4205
      %4877 = vmatprep.subr.bf16.mxu0 %v4202
      %4878 = vmatpush1.bf16.msra.mxu0 %v4201
      %4879 = vmatprep.subr.bf16.mxu0 %v4198
      %4880 = vmatpush1.bf16.msra.mxu0 %v4197
      %4881 = vmatprep.subr.bf16.mxu0 %v4194
      %4882 = vmatpush1.bf16.msra.mxu0 %v4193
      %4883 = vmatprep.subr.bf16.mxu0 %v4190
      %4884 = vmatpush1.bf16.msra.mxu0 %v4189
      %4885 = vmatprep.subr.bf16.mxu0 %v4250
      %4886 = vmatpush2.bf16.msra.mxu0 %v4249
      %4887 = vmatprep.subr.bf16.mxu0 %v4246
      %4888 = vmatpush2.bf16.msra.mxu0 %v4245
      %4889 = vmatprep.subr.bf16.mxu0 %v4242
      %4890 = vmatpush2.bf16.msra.mxu0 %v4241
      %4891 = vmatprep.subr.bf16.mxu0 %v4238
      %4892 = vmatpush2.bf16.msra.mxu0 %v4237
      %4893 = vmatprep.subr.bf16.mxu0 %v4234
      %4894 = vmatpush2.bf16.msra.mxu0 %v4233
      %4895 = vmatprep.subr.bf16.mxu0 %v4230
      %4896 = vmatpush2.bf16.msra.mxu0 %v4229
      %4897 = vmatprep.subr.bf16.mxu0 %v4226
      %4898 = vmatpush2.bf16.msra.mxu0 %v4225
      %4899 = vmatprep.subr.bf16.mxu0 %v4222
      %4900 = vmatpush2.bf16.msra.mxu0 %v4221
      %4901 = vmatprep.mubr.bf16.mxu0 %v3582
      %4902 = vmatmul.mubr.bf16.gmra.mxu0 %v3581
      %v4903 = vpop.f32.mrf.mxu0
      %v4904 = vadd.f32 %v3794, %v4903
      %v4905 = vpop.f32.mrf.mxu0
      %v4906 = vadd.f32 %v3798, %v4905
      %v4907 = vpop.f32.mrf.mxu0
      %v4908 = vadd.f32 %v3794, %v4907
      %v4909 = vpop.f32.mrf.mxu0
      %v4910 = vadd.f32 %v3798, %v4909
      %4911 = vmatprep.mubr.bf16.mxu0 %v3586
      %4912 = vmatmul.mubr.bf16.gmra.mxu0 %v3585
      %v4913 = vpop.f32.mrf.mxu0
      %v4914 = vadd.f32 %v3794, %v4913
      %v4915 = vpop.f32.mrf.mxu0
      %v4916 = vadd.f32 %v3798, %v4915
      %v4917 = vpop.f32.mrf.mxu0
      %v4918 = vadd.f32 %v3794, %v4917
      %v4919 = vpop.f32.mrf.mxu0
      %v4920 = vadd.f32 %v3798, %v4919
      %4921 = vmatprep.mubr.bf16.mxu0 %v3590
      %4922 = vmatmul.mubr.bf16.gmra.mxu0 %v3589
      %v4923 = vpop.f32.mrf.mxu0
      %v4924 = vadd.f32 %v3794, %v4923
      %v4925 = vpop.f32.mrf.mxu0
      %v4926 = vadd.f32 %v3798, %v4925
      %v4927 = vpop.f32.mrf.mxu0
      %v4928 = vadd.f32 %v3794, %v4927
      %v4929 = vpop.f32.mrf.mxu0
      %v4930 = vadd.f32 %v3798, %v4929
      %4931 = vmatprep.mubr.bf16.mxu0 %v3594
      %4932 = vmatmul.mubr.bf16.gmra.mxu0 %v3593
      %v4933 = vpop.f32.mrf.mxu0
      %v4934 = vadd.f32 %v3794, %v4933
      %v4935 = vpop.f32.mrf.mxu0
      %v4936 = vadd.f32 %v3798, %v4935
      %v4937 = vpop.f32.mrf.mxu0
      %v4938 = vadd.f32 %v3794, %v4937
      %v4939 = vpop.f32.mrf.mxu0
      %v4940 = vadd.f32 %v3798, %v4939
      %4941 = vmatprep.mubr.bf16.mxu0 %v3598
      %4942 = vmatmul.mubr.bf16.gmra.mxu0 %v3597
      %v4943 = vpop.f32.mrf.mxu0
      %v4944 = vadd.f32 %v3794, %v4943
      %v4945 = vpop.f32.mrf.mxu0
      %v4946 = vadd.f32 %v3798, %v4945
      %v4947 = vpop.f32.mrf.mxu0
      %v4948 = vadd.f32 %v3794, %v4947
      %v4949 = vpop.f32.mrf.mxu0
      %v4950 = vadd.f32 %v3798, %v4949
      %4951 = vmatprep.mubr.bf16.mxu0 %v3602
      %4952 = vmatmul.mubr.bf16.gmra.mxu0 %v3601
      %v4953 = vpop.f32.mrf.mxu0
      %v4954 = vadd.f32 %v3794, %v4953
      %v4955 = vpop.f32.mrf.mxu0
      %v4956 = vadd.f32 %v3798, %v4955
      %v4957 = vpop.f32.mrf.mxu0
      %v4958 = vadd.f32 %v3794, %v4957
      %v4959 = vpop.f32.mrf.mxu0
      %v4960 = vadd.f32 %v3798, %v4959
      %4961 = vmatprep.mubr.bf16.mxu0 %v3606
      %4962 = vmatmul.mubr.bf16.gmra.mxu0 %v3605
      %v4963 = vpop.f32.mrf.mxu0
      %v4964 = vadd.f32 %v3794, %v4963
      %v4965 = vpop.f32.mrf.mxu0
      %v4966 = vadd.f32 %v3798, %v4965
      %v4967 = vpop.f32.mrf.mxu0
      %v4968 = vadd.f32 %v3794, %v4967
      %v4969 = vpop.f32.mrf.mxu0
      %v4970 = vadd.f32 %v3798, %v4969
      %4971 = vmatprep.mubr.bf16.mxu0 %v3610
      %4972 = vmatmul.mubr.bf16.gmra.mxu0 %v3609
      %v4973 = vpop.f32.mrf.mxu0
      %v4974 = vadd.f32 %v3794, %v4973
      %v4975 = vpop.f32.mrf.mxu0
      %v4976 = vadd.f32 %v3798, %v4975
      %v4977 = vpop.f32.mrf.mxu0
      %v4978 = vadd.f32 %v3794, %v4977
      %v4979 = vpop.f32.mrf.mxu0
      %v4980 = vadd.f32 %v3798, %v4979
      %4981 = vmatprep.mubr.bf16.mxu0 %v3614
      %4982 = vmatmul.mubr.bf16.gmra.mxu0 %v3613
      %v4983 = vpop.f32.mrf.mxu0
      %v4984 = vadd.f32 %v3794, %v4983
      %v4985 = vpop.f32.mrf.mxu0
      %v4986 = vadd.f32 %v3798, %v4985
      %v4987 = vpop.f32.mrf.mxu0
      %v4988 = vadd.f32 %v3794, %v4987
      %v4989 = vpop.f32.mrf.mxu0
      %v4990 = vadd.f32 %v3798, %v4989
      %4991 = vmatprep.mubr.bf16.mxu0 %v3618
      %4992 = vmatmul.mubr.bf16.gmra.mxu0 %v3617
      %v4993 = vpop.f32.mrf.mxu0
      %v4994 = vadd.f32 %v3794, %v4993
      %v4995 = vpop.f32.mrf.mxu0
      %v4996 = vadd.f32 %v3798, %v4995
      %v4997 = vpop.f32.mrf.mxu0
      %v4998 = vadd.f32 %v3794, %v4997
      %v4999 = vpop.f32.mrf.mxu0
      %v5000 = vadd.f32 %v3798, %v4999
      %5001 = vmatprep.mubr.bf16.mxu0 %v3622
      %5002 = vmatmul.mubr.bf16.gmra.mxu0 %v3621
      %v5003 = vpop.f32.mrf.mxu0
      %v5004 = vadd.f32 %v3794, %v5003
      %v5005 = vpop.f32.mrf.mxu0
      %v5006 = vadd.f32 %v3798, %v5005
      %v5007 = vpop.f32.mrf.mxu0
      %v5008 = vadd.f32 %v3794, %v5007
      %v5009 = vpop.f32.mrf.mxu0
      %v5010 = vadd.f32 %v3798, %v5009
      %5011 = vmatprep.mubr.bf16.mxu0 %v3626
      %5012 = vmatmul.mubr.bf16.gmra.mxu0 %v3625
      %v5013 = vpop.f32.mrf.mxu0
      %v5014 = vadd.f32 %v3794, %v5013
      %v5015 = vpop.f32.mrf.mxu0
      %v5016 = vadd.f32 %v3798, %v5015
      %v5017 = vpop.f32.mrf.mxu0
      %v5018 = vadd.f32 %v3794, %v5017
      %v5019 = vpop.f32.mrf.mxu0
      %v5020 = vadd.f32 %v3798, %v5019
      %5021 = vmatprep.mubr.bf16.mxu0 %v3630
      %5022 = vmatmul.mubr.bf16.gmra.mxu0 %v3629
      %v5023 = vpop.f32.mrf.mxu0
      %v5024 = vadd.f32 %v3794, %v5023
      %v5025 = vpop.f32.mrf.mxu0
      %v5026 = vadd.f32 %v3798, %v5025
      %v5027 = vpop.f32.mrf.mxu0
      %v5028 = vadd.f32 %v3794, %v5027
      %v5029 = vpop.f32.mrf.mxu0
      %v5030 = vadd.f32 %v3798, %v5029
      %5031 = vmatprep.mubr.bf16.mxu0 %v3634
      %5032 = vmatmul.mubr.bf16.gmra.mxu0 %v3633
      %v5033 = vpop.f32.mrf.mxu0
      %v5034 = vadd.f32 %v3794, %v5033
      %v5035 = vpop.f32.mrf.mxu0
      %v5036 = vadd.f32 %v3798, %v5035
      %v5037 = vpop.f32.mrf.mxu0
      %v5038 = vadd.f32 %v3794, %v5037
      %v5039 = vpop.f32.mrf.mxu0
      %v5040 = vadd.f32 %v3798, %v5039
      %5041 = vmatprep.mubr.bf16.mxu0 %v3638
      %5042 = vmatmul.mubr.bf16.gmra.mxu0 %v3637
      %v5043 = vpop.f32.mrf.mxu0
      %v5044 = vadd.f32 %v3794, %v5043
      %v5045 = vpop.f32.mrf.mxu0
      %v5046 = vadd.f32 %v3798, %v5045
      %v5047 = vpop.f32.mrf.mxu0
      %v5048 = vadd.f32 %v3794, %v5047
      %v5049 = vpop.f32.mrf.mxu0
      %v5050 = vadd.f32 %v3798, %v5049
      %5051 = vmatprep.mubr.bf16.mxu0 %v3642
      %5052 = vmatmul.mubr.bf16.gmra.mxu0 %v3641
      %v5053 = vpop.f32.mrf.mxu0
      %v5054 = vadd.f32 %v3794, %v5053
      %v5055 = vpop.f32.mrf.mxu0
      %v5056 = vadd.f32 %v3798, %v5055
      %v5057 = vpop.f32.mrf.mxu0
      %v5058 = vadd.f32 %v3794, %v5057
      %v5059 = vpop.f32.mrf.mxu0
      %v5060 = vadd.f32 %v3798, %v5059
      %5061 = vmatprep.mubr.bf16.mxu0 %v3646
      %5062 = vmatmul.mubr.bf16.gmra.mxu0 %v3645
      %v5063 = vpop.f32.mrf.mxu0
      %v5064 = vadd.f32 %v3794, %v5063
      %v5065 = vpop.f32.mrf.mxu0
      %v5066 = vadd.f32 %v3798, %v5065
      %v5067 = vpop.f32.mrf.mxu0
      %v5068 = vadd.f32 %v3794, %v5067
      %v5069 = vpop.f32.mrf.mxu0
      %v5070 = vadd.f32 %v3798, %v5069
      %5071 = vmatprep.mubr.bf16.mxu0 %v3650
      %5072 = vmatmul.mubr.bf16.gmra.mxu0 %v3649
      %v5073 = vpop.f32.mrf.mxu0
      %v5074 = vadd.f32 %v3794, %v5073
      %v5075 = vpop.f32.mrf.mxu0
      %v5076 = vadd.f32 %v3798, %v5075
      %v5077 = vpop.f32.mrf.mxu0
      %v5078 = vadd.f32 %v3794, %v5077
      %v5079 = vpop.f32.mrf.mxu0
      %v5080 = vadd.f32 %v3798, %v5079
      %5081 = vdwg.mxu0
      %5082 = vmatprep.subr.bf16.mxu0 %v4282
      %5083 = vmatpush1.bf16.msra.mxu0 %v4281
      %5084 = vmatprep.subr.bf16.mxu0 %v4278
      %5085 = vmatpush1.bf16.msra.mxu0 %v4277
      %5086 = vmatprep.subr.bf16.mxu0 %v4274
      %5087 = vmatpush1.bf16.msra.mxu0 %v4273
      %5088 = vmatprep.subr.bf16.mxu0 %v4270
      %5089 = vmatpush1.bf16.msra.mxu0 %v4269
      %5090 = vmatprep.subr.bf16.mxu0 %v4266
      %5091 = vmatpush1.bf16.msra.mxu0 %v4265
      %5092 = vmatprep.subr.bf16.mxu0 %v4262
      %5093 = vmatpush1.bf16.msra.mxu0 %v4261
      %5094 = vmatprep.subr.bf16.mxu0 %v4258
      %5095 = vmatpush1.bf16.msra.mxu0 %v4257
      %5096 = vmatprep.subr.bf16.mxu0 %v4254
      %5097 = vmatpush1.bf16.msra.mxu0 %v4253
      %5098 = vmatprep.subr.bf16.mxu0 %v4314
      %5099 = vmatpush2.bf16.msra.mxu0 %v4313
      %5100 = vmatprep.subr.bf16.mxu0 %v4310
      %5101 = vmatpush2.bf16.msra.mxu0 %v4309
      %5102 = vmatprep.subr.bf16.mxu0 %v4306
      %5103 = vmatpush2.bf16.msra.mxu0 %v4305
      %5104 = vmatprep.subr.bf16.mxu0 %v4302
      %5105 = vmatpush2.bf16.msra.mxu0 %v4301
      %5106 = vmatprep.subr.bf16.mxu0 %v4298
      %5107 = vmatpush2.bf16.msra.mxu0 %v4297
      %5108 = vmatprep.subr.bf16.mxu0 %v4294
      %5109 = vmatpush2.bf16.msra.mxu0 %v4293
      %5110 = vmatprep.subr.bf16.mxu0 %v4290
      %5111 = vmatpush2.bf16.msra.mxu0 %v4289
      %5112 = vmatprep.subr.bf16.mxu0 %v4286
      %5113 = vmatpush2.bf16.msra.mxu0 %v4285
      %5114 = vmatprep.mubr.bf16.mxu0 %v3584
      %5115 = vmatmul.mubr.bf16.gmra.mxu0 %v3583
      %v5116 = vpop.f32.mrf.mxu0
      %v5117 = vadd.f32 %v4904, %v5116
      %v5118 = vpop.f32.mrf.mxu0
      %v5119 = vadd.f32 %v4906, %v5118
      %v5120 = vpop.f32.mrf.mxu0
      %v5121 = vadd.f32 %v4908, %v5120
      %v5122 = vpop.f32.mrf.mxu0
      %v5123 = vadd.f32 %v4910, %v5122
      %5124 = vmatprep.mubr.bf16.mxu0 %v3588
      %5125 = vmatmul.mubr.bf16.gmra.mxu0 %v3587
      %v5126 = vpop.f32.mrf.mxu0
      %v5127 = vadd.f32 %v4914, %v5126
      %v5128 = vpop.f32.mrf.mxu0
      %v5129 = vadd.f32 %v4916, %v5128
      %v5130 = vpop.f32.mrf.mxu0
      %v5131 = vadd.f32 %v4918, %v5130
      %v5132 = vpop.f32.mrf.mxu0
      %v5133 = vadd.f32 %v4920, %v5132
      %5134 = vmatprep.mubr.bf16.mxu0 %v3592
      %5135 = vmatmul.mubr.bf16.gmra.mxu0 %v3591
      %v5136 = vpop.f32.mrf.mxu0
      %v5137 = vadd.f32 %v4924, %v5136
      %v5138 = vpop.f32.mrf.mxu0
      %v5139 = vadd.f32 %v4926, %v5138
      %v5140 = vpop.f32.mrf.mxu0
      %v5141 = vadd.f32 %v4928, %v5140
      %v5142 = vpop.f32.mrf.mxu0
      %v5143 = vadd.f32 %v4930, %v5142
      %5144 = vmatprep.mubr.bf16.mxu0 %v3596
      %5145 = vmatmul.mubr.bf16.gmra.mxu0 %v3595
      %v5146 = vpop.f32.mrf.mxu0
      %v5147 = vadd.f32 %v4934, %v5146
      %v5148 = vpop.f32.mrf.mxu0
      %v5149 = vadd.f32 %v4936, %v5148
      %v5150 = vpop.f32.mrf.mxu0
      %v5151 = vadd.f32 %v4938, %v5150
      %v5152 = vpop.f32.mrf.mxu0
      %v5153 = vadd.f32 %v4940, %v5152
      %5154 = vmatprep.mubr.bf16.mxu0 %v3600
      %5155 = vmatmul.mubr.bf16.gmra.mxu0 %v3599
      %v5156 = vpop.f32.mrf.mxu0
      %v5157 = vadd.f32 %v4944, %v5156
      %v5158 = vpop.f32.mrf.mxu0
      %v5159 = vadd.f32 %v4946, %v5158
      %v5160 = vpop.f32.mrf.mxu0
      %v5161 = vadd.f32 %v4948, %v5160
      %v5162 = vpop.f32.mrf.mxu0
      %v5163 = vadd.f32 %v4950, %v5162
      %5164 = vmatprep.mubr.bf16.mxu0 %v3604
      %5165 = vmatmul.mubr.bf16.gmra.mxu0 %v3603
      %v5166 = vpop.f32.mrf.mxu0
      %v5167 = vadd.f32 %v4954, %v5166
      %v5168 = vpop.f32.mrf.mxu0
      %v5169 = vadd.f32 %v4956, %v5168
      %v5170 = vpop.f32.mrf.mxu0
      %v5171 = vadd.f32 %v4958, %v5170
      %v5172 = vpop.f32.mrf.mxu0
      %v5173 = vadd.f32 %v4960, %v5172
      %5174 = vmatprep.mubr.bf16.mxu0 %v3608
      %5175 = vmatmul.mubr.bf16.gmra.mxu0 %v3607
      %v5176 = vpop.f32.mrf.mxu0
      %v5177 = vadd.f32 %v4964, %v5176
      %v5178 = vpop.f32.mrf.mxu0
      %v5179 = vadd.f32 %v4966, %v5178
      %v5180 = vpop.f32.mrf.mxu0
      %v5181 = vadd.f32 %v4968, %v5180
      %v5182 = vpop.f32.mrf.mxu0
      %v5183 = vadd.f32 %v4970, %v5182
      %5184 = vmatprep.mubr.bf16.mxu0 %v3612
      %5185 = vmatmul.mubr.bf16.gmra.mxu0 %v3611
      %v5186 = vpop.f32.mrf.mxu0
      %v5187 = vadd.f32 %v4974, %v5186
      %v5188 = vpop.f32.mrf.mxu0
      %v5189 = vadd.f32 %v4976, %v5188
      %v5190 = vpop.f32.mrf.mxu0
      %v5191 = vadd.f32 %v4978, %v5190
      %v5192 = vpop.f32.mrf.mxu0
      %v5193 = vadd.f32 %v4980, %v5192
      %5194 = vmatprep.mubr.bf16.mxu0 %v3616
      %5195 = vmatmul.mubr.bf16.gmra.mxu0 %v3615
      %v5196 = vpop.f32.mrf.mxu0
      %v5197 = vadd.f32 %v4984, %v5196
      %v5198 = vpop.f32.mrf.mxu0
      %v5199 = vadd.f32 %v4986, %v5198
      %v5200 = vpop.f32.mrf.mxu0
      %v5201 = vadd.f32 %v4988, %v5200
      %v5202 = vpop.f32.mrf.mxu0
      %v5203 = vadd.f32 %v4990, %v5202
      %5204 = vmatprep.mubr.bf16.mxu0 %v3620
      %5205 = vmatmul.mubr.bf16.gmra.mxu0 %v3619
      %v5206 = vpop.f32.mrf.mxu0
      %v5207 = vadd.f32 %v4994, %v5206
      %v5208 = vpop.f32.mrf.mxu0
      %v5209 = vadd.f32 %v4996, %v5208
      %v5210 = vpop.f32.mrf.mxu0
      %v5211 = vadd.f32 %v4998, %v5210
      %v5212 = vpop.f32.mrf.mxu0
      %v5213 = vadd.f32 %v5000, %v5212
      %5214 = vmatprep.mubr.bf16.mxu0 %v3624
      %5215 = vmatmul.mubr.bf16.gmra.mxu0 %v3623
      %v5216 = vpop.f32.mrf.mxu0
      %v5217 = vadd.f32 %v5004, %v5216
      %v5218 = vpop.f32.mrf.mxu0
      %v5219 = vadd.f32 %v5006, %v5218
      %v5220 = vpop.f32.mrf.mxu0
      %v5221 = vadd.f32 %v5008, %v5220
      %v5222 = vpop.f32.mrf.mxu0
      %v5223 = vadd.f32 %v5010, %v5222
      %5224 = vmatprep.mubr.bf16.mxu0 %v3628
      %5225 = vmatmul.mubr.bf16.gmra.mxu0 %v3627
      %v5226 = vpop.f32.mrf.mxu0
      %v5227 = vadd.f32 %v5014, %v5226
      %v5228 = vpop.f32.mrf.mxu0
      %v5229 = vadd.f32 %v5016, %v5228
      %v5230 = vpop.f32.mrf.mxu0
      %v5231 = vadd.f32 %v5018, %v5230
      %v5232 = vpop.f32.mrf.mxu0
      %v5233 = vadd.f32 %v5020, %v5232
      %5234 = vmatprep.mubr.bf16.mxu0 %v3632
      %5235 = vmatmul.mubr.bf16.gmra.mxu0 %v3631
      %v5236 = vpop.f32.mrf.mxu0
      %v5237 = vadd.f32 %v5024, %v5236
      %v5238 = vpop.f32.mrf.mxu0
      %v5239 = vadd.f32 %v5026, %v5238
      %v5240 = vpop.f32.mrf.mxu0
      %v5241 = vadd.f32 %v5028, %v5240
      %v5242 = vpop.f32.mrf.mxu0
      %v5243 = vadd.f32 %v5030, %v5242
      %5244 = vmatprep.mubr.bf16.mxu0 %v3636
      %5245 = vmatmul.mubr.bf16.gmra.mxu0 %v3635
      %v5246 = vpop.f32.mrf.mxu0
      %v5247 = vadd.f32 %v5034, %v5246
      %v5248 = vpop.f32.mrf.mxu0
      %v5249 = vadd.f32 %v5036, %v5248
      %v5250 = vpop.f32.mrf.mxu0
      %v5251 = vadd.f32 %v5038, %v5250
      %v5252 = vpop.f32.mrf.mxu0
      %v5253 = vadd.f32 %v5040, %v5252
      %5254 = vmatprep.mubr.bf16.mxu0 %v3640
      %5255 = vmatmul.mubr.bf16.gmra.mxu0 %v3639
      %v5256 = vpop.f32.mrf.mxu0
      %v5257 = vadd.f32 %v5044, %v5256
      %v5258 = vpop.f32.mrf.mxu0
      %v5259 = vadd.f32 %v5046, %v5258
      %v5260 = vpop.f32.mrf.mxu0
      %v5261 = vadd.f32 %v5048, %v5260
      %v5262 = vpop.f32.mrf.mxu0
      %v5263 = vadd.f32 %v5050, %v5262
      %5264 = vmatprep.mubr.bf16.mxu0 %v3644
      %5265 = vmatmul.mubr.bf16.gmra.mxu0 %v3643
      %v5266 = vpop.f32.mrf.mxu0
      %v5267 = vadd.f32 %v5054, %v5266
      %v5268 = vpop.f32.mrf.mxu0
      %v5269 = vadd.f32 %v5056, %v5268
      %v5270 = vpop.f32.mrf.mxu0
      %v5271 = vadd.f32 %v5058, %v5270
      %v5272 = vpop.f32.mrf.mxu0
      %v5273 = vadd.f32 %v5060, %v5272
      %5274 = vmatprep.mubr.bf16.mxu0 %v3648
      %5275 = vmatmul.mubr.bf16.gmra.mxu0 %v3647
      %v5276 = vpop.f32.mrf.mxu0
      %v5277 = vadd.f32 %v5064, %v5276
      %v5278 = vpop.f32.mrf.mxu0
      %v5279 = vadd.f32 %v5066, %v5278
      %v5280 = vpop.f32.mrf.mxu0
      %v5281 = vadd.f32 %v5068, %v5280
      %v5282 = vpop.f32.mrf.mxu0
      %v5283 = vadd.f32 %v5070, %v5282
      %5284 = vmatprep.mubr.bf16.mxu0 %v3652
      %5285 = vmatmul.mubr.bf16.gmra.mxu0 %v3651
      %v5286 = vpop.f32.mrf.mxu0
      %v5287 = vadd.f32 %v5074, %v5286
      %v5288 = vpop.f32.mrf.mxu0
      %v5289 = vadd.f32 %v5076, %v5288
      %v5290 = vpop.f32.mrf.mxu0
      %v5291 = vadd.f32 %v5078, %v5290
      %v5292 = vpop.f32.mrf.mxu0
      %v5293 = vadd.f32 %v5080, %v5292
      %5294 = vdwg.mxu0
      %v5295 = vmax.f32 %v4691, 0.0
      %v5296 = vmax.f32 %v4693, 0.0
      %v5297 = vmax.f32 %v5117, 0.0
      %v5298 = vmax.f32 %v5119, 0.0
      %v5299 = vmax.f32 %v4695, 0.0
      %v5300 = vmax.f32 %v4697, 0.0
      %v5301 = vmax.f32 %v5121, 0.0
      %v5302 = vmax.f32 %v5123, 0.0
      %v5303 = vmax.f32 %v4701, 0.0
      %v5304 = vmax.f32 %v4703, 0.0
      %v5305 = vmax.f32 %v5127, 0.0
      %v5306 = vmax.f32 %v5129, 0.0
      %v5307 = vmax.f32 %v4705, 0.0
      %v5308 = vmax.f32 %v4707, 0.0
      %v5309 = vmax.f32 %v5131, 0.0
      %v5310 = vmax.f32 %v5133, 0.0
      %v5311 = vmax.f32 %v4711, 0.0
      %v5312 = vmax.f32 %v4713, 0.0
      %v5313 = vmax.f32 %v5137, 0.0
      %v5314 = vmax.f32 %v5139, 0.0
      %v5315 = vmax.f32 %v4715, 0.0
      %v5316 = vmax.f32 %v4717, 0.0
      %v5317 = vmax.f32 %v5141, 0.0
      %v5318 = vmax.f32 %v5143, 0.0
      %v5319 = vmax.f32 %v4721, 0.0
      %v5320 = vmax.f32 %v4723, 0.0
      %v5321 = vmax.f32 %v5147, 0.0
      %v5322 = vmax.f32 %v5149, 0.0
      %v5323 = vmax.f32 %v4725, 0.0
      %v5324 = vmax.f32 %v4727, 0.0
      %v5325 = vmax.f32 %v5151, 0.0
      %v5326 = vmax.f32 %v5153, 0.0
      %v5327 = vmax.f32 %v4731, 0.0
      %v5328 = vmax.f32 %v4733, 0.0
      %v5329 = vmax.f32 %v5157, 0.0
      %v5330 = vmax.f32 %v5159, 0.0
      %v5331 = vmax.f32 %v4735, 0.0
      %v5332 = vmax.f32 %v4737, 0.0
      %v5333 = vmax.f32 %v5161, 0.0
      %v5334 = vmax.f32 %v5163, 0.0
      %v5335 = vmax.f32 %v4741, 0.0
      %v5336 = vmax.f32 %v4743, 0.0
      %v5337 = vmax.f32 %v5167, 0.0
      %v5338 = vmax.f32 %v5169, 0.0
      %v5339 = vmax.f32 %v4745, 0.0
      %v5340 = vmax.f32 %v4747, 0.0
      %v5341 = vmax.f32 %v5171, 0.0
      %v5342 = vmax.f32 %v5173, 0.0
      %v5343 = vmax.f32 %v4751, 0.0
      %v5344 = vmax.f32 %v4753, 0.0
      %v5345 = vmax.f32 %v5177, 0.0
      %v5346 = vmax.f32 %v5179, 0.0
      %v5347 = vmax.f32 %v4755, 0.0
      %v5348 = vmax.f32 %v4757, 0.0
      %v5349 = vmax.f32 %v5181, 0.0
      %v5350 = vmax.f32 %v5183, 0.0
      %v5351 = vmax.f32 %v4761, 0.0
      %v5352 = vmax.f32 %v4763, 0.0
      %v5353 = vmax.f32 %v5187, 0.0
      %v5354 = vmax.f32 %v5189, 0.0
      %v5355 = vmax.f32 %v4765, 0.0
      %v5356 = vmax.f32 %v4767, 0.0
      %v5357 = vmax.f32 %v5191, 0.0
      %v5358 = vmax.f32 %v5193, 0.0
      %v5359 = vmax.f32 %v4771, 0.0
      %v5360 = vmax.f32 %v4773, 0.0
      %v5361 = vmax.f32 %v5197, 0.0
      %v5362 = vmax.f32 %v5199, 0.0
      %v5363 = vmax.f32 %v4775, 0.0
      %v5364 = vmax.f32 %v4777, 0.0
      %v5365 = vmax.f32 %v5201, 0.0
      %v5366 = vmax.f32 %v5203, 0.0
      %v5367 = vmax.f32 %v4781, 0.0
      %v5368 = vmax.f32 %v4783, 0.0
      %v5369 = vmax.f32 %v5207, 0.0
      %v5370 = vmax.f32 %v5209, 0.0
      %v5371 = vmax.f32 %v4785, 0.0
      %v5372 = vmax.f32 %v4787, 0.0
      %v5373 = vmax.f32 %v5211, 0.0
      %v5374 = vmax.f32 %v5213, 0.0
      %v5375 = vmax.f32 %v4791, 0.0
      %v5376 = vmax.f32 %v4793, 0.0
      %v5377 = vmax.f32 %v5217, 0.0
      %v5378 = vmax.f32 %v5219, 0.0
      %v5379 = vmax.f32 %v4795, 0.0
      %v5380 = vmax.f32 %v4797, 0.0
      %v5381 = vmax.f32 %v5221, 0.0
      %v5382 = vmax.f32 %v5223, 0.0
      %v5383 = vmax.f32 %v4801, 0.0
      %v5384 = vmax.f32 %v4803, 0.0
      %v5385 = vmax.f32 %v5227, 0.0
      %v5386 = vmax.f32 %v5229, 0.0
      %v5387 = vmax.f32 %v4805, 0.0
      %v5388 = vmax.f32 %v4807, 0.0
      %v5389 = vmax.f32 %v5231, 0.0
      %v5390 = vmax.f32 %v5233, 0.0
      %v5391 = vmax.f32 %v4811, 0.0
      %v5392 = vmax.f32 %v4813, 0.0
      %v5393 = vmax.f32 %v5237, 0.0
      %v5394 = vmax.f32 %v5239, 0.0
      %v5395 = vmax.f32 %v4815, 0.0
      %v5396 = vmax.f32 %v4817, 0.0
      %v5397 = vmax.f32 %v5241, 0.0
      %v5398 = vmax.f32 %v5243, 0.0
      %v5399 = vmax.f32 %v4821, 0.0
      %v5400 = vmax.f32 %v4823, 0.0
      %v5401 = vmax.f32 %v5247, 0.0
      %v5402 = vmax.f32 %v5249, 0.0
      %v5403 = vmax.f32 %v4825, 0.0
      %v5404 = vmax.f32 %v4827, 0.0
      %v5405 = vmax.f32 %v5251, 0.0
      %v5406 = vmax.f32 %v5253, 0.0
      %v5407 = vmax.f32 %v4831, 0.0
      %v5408 = vmax.f32 %v4833, 0.0
      %v5409 = vmax.f32 %v5257, 0.0
      %v5410 = vmax.f32 %v5259, 0.0
      %v5411 = vmax.f32 %v4835, 0.0
      %v5412 = vmax.f32 %v4837, 0.0
      %v5413 = vmax.f32 %v5261, 0.0
      %v5414 = vmax.f32 %v5263, 0.0
      %v5415 = vmax.f32 %v4841, 0.0
      %v5416 = vmax.f32 %v4843, 0.0
      %v5417 = vmax.f32 %v5267, 0.0
      %v5418 = vmax.f32 %v5269, 0.0
      %v5419 = vmax.f32 %v4845, 0.0
      %v5420 = vmax.f32 %v4847, 0.0
      %v5421 = vmax.f32 %v5271, 0.0
      %v5422 = vmax.f32 %v5273, 0.0
      %v5423 = vmax.f32 %v4851, 0.0
      %v5424 = vmax.f32 %v4853, 0.0
      %v5425 = vmax.f32 %v5277, 0.0
      %v5426 = vmax.f32 %v5279, 0.0
      %v5427 = vmax.f32 %v4855, 0.0
      %v5428 = vmax.f32 %v4857, 0.0
      %v5429 = vmax.f32 %v5281, 0.0
      %v5430 = vmax.f32 %v5283, 0.0
      %v5431 = vmax.f32 %v4861, 0.0
      %v5432 = vmax.f32 %v4863, 0.0
      %v5433 = vmax.f32 %v5287, 0.0
      %v5434 = vmax.f32 %v5289, 0.0
      %v5435 = vmax.f32 %v4865, 0.0
      %v5436 = vmax.f32 %v4867, 0.0
      %v5437 = vmax.f32 %v5291, 0.0
      %v5438 = vmax.f32 %v5293, 0.0
      %5439 = vst [vmem:[#allocation4] sm:$0xff] 1065369472
      %5440 = vst [vmem:[#allocation4 + $0x8] sm:$0xff] 1065369472
      %5441 = vst [vmem:[#allocation4 + $0x10] sm:$0xff] 1065369472
      %5442 = vst [vmem:[#allocation4 + $0x18] sm:$0xff] 1065369472
      %5443 = vst [vmem:[#allocation4 + $0x20] sm:$0xff] 1065369472
      %5444 = vst [vmem:[#allocation4 + $0x28] sm:$0xff] 1065369472
      %5445 = vst [vmem:[#allocation4 + $0x30] sm:$0xff] 1065369472
      %5446 = vst [vmem:[#allocation4 + $0x38] sm:$0xff] 1065369472
      %5447 = vst [vmem:[#allocation4 + $0x280] sm:$0xff] 1065369472
      %5448 = vst [vmem:[#allocation4 + $0x288] sm:$0xff] 1065369472
      %5449 = vst [vmem:[#allocation4 + $0x290] sm:$0xff] 1065369472
      %5450 = vst [vmem:[#allocation4 + $0x298] sm:$0xff] 1065369472
      %5451 = vst [vmem:[#allocation4 + $0x2a0] sm:$0xff] 1065369472
      %5452 = vst [vmem:[#allocation4 + $0x2a8] sm:$0xff] 1065369472
      %5453 = vst [vmem:[#allocation4 + $0x2b0] sm:$0xff] 1065369472
      %5454 = vst [vmem:[#allocation4 + $0x2b8] sm:$0xff] 1065369472
      %v5455 = vld [vmem:[%s2] sm:$0xff]
      %v5456 = vld [vmem:[%s2 + $0x8] sm:$0xff]
      %v5457 = vld [vmem:[%s2 + $0x10] sm:$0xff]
      %v5458 = vld [vmem:[%s2 + $0x18] sm:$0xff]
      %v5459 = vld [vmem:[%s2 + $0x20] sm:$0xff]
      %v5460 = vld [vmem:[%s2 + $0x28] sm:$0xff]
      %v5461 = vld [vmem:[%s2 + $0x30] sm:$0xff]
      %v5462 = vld [vmem:[%s2 + $0x38] sm:$0xff]
      %v5463 = vld [vmem:[%s2 + $0x40] sm:$0xff]
      %v5464 = vld [vmem:[%s2 + $0x48] sm:$0xff]
      %v5465 = vld [vmem:[%s2 + $0x50] sm:$0xff]
      %v5466 = vld [vmem:[%s2 + $0x58] sm:$0xff]
      %v5467 = vld [vmem:[%s2 + $0x60] sm:$0xff]
      %v5468 = vld [vmem:[%s2 + $0x68] sm:$0xff]
      %v5469 = vld [vmem:[%s2 + $0x70] sm:$0xff]
      %v5470 = vld [vmem:[%s2 + $0x78] sm:$0xff]
      %v5471 = vld [vmem:[%s2 + $0x80] sm:$0xff]
      %v5472 = vld [vmem:[%s2 + $0x88] sm:$0xff]
      %v5473 = vld [vmem:[%s2 + $0x90] sm:$0xff]
      %v5474 = vld [vmem:[%s2 + $0x98] sm:$0xff]
      %v5475 = vld [vmem:[%s2 + $0xa0] sm:$0xff]
      %v5476 = vld [vmem:[%s2 + $0xa8] sm:$0xff]
      %v5477 = vld [vmem:[%s2 + $0xb0] sm:$0xff]
      %v5478 = vld [vmem:[%s2 + $0xb8] sm:$0xff]
      %v5479 = vld [vmem:[%s2 + $0xc0] sm:$0xff]
      %v5480 = vld [vmem:[%s2 + $0xc8] sm:$0xff]
      %v5481 = vld [vmem:[%s2 + $0xd0] sm:$0xff]
      %v5482 = vld [vmem:[%s2 + $0xd8] sm:$0xff]
      %v5483 = vld [vmem:[%s2 + $0xe0] sm:$0xff]
      %v5484 = vld [vmem:[%s2 + $0xe8] sm:$0xff]
      %v5485 = vld [vmem:[%s2 + $0xf0] sm:$0xff]
      %v5486 = vld [vmem:[%s2 + $0xf8] sm:$0xff]
      %v5487 = vld [vmem:[%s2 + $0x100] sm:$0xff]
      %v5488 = vld [vmem:[%s2 + $0x108] sm:$0xff]
      %v5489 = vld [vmem:[%s2 + $0x110] sm:$0xff]
      %v5490 = vld [vmem:[%s2 + $0x118] sm:$0xff]
      %vm5491 = vcmp.gt.f32.partialorder %v5455, 0.5
      %vm5492 = vcmp.gt.f32.partialorder %v5456, 0.5
      %vm5493 = vcmp.gt.f32.partialorder %v5457, 0.5
      %vm5494 = vcmp.gt.f32.partialorder %v5458, 0.5
      %vm5495 = vcmp.gt.f32.partialorder %v5459, 0.5
      %vm5496 = vcmp.gt.f32.partialorder %v5460, 0.5
      %vm5497 = vcmp.gt.f32.partialorder %v5461, 0.5
      %vm5498 = vcmp.gt.f32.partialorder %v5462, 0.5
      %vm5499 = vcmp.gt.f32.partialorder %v5463, 0.5
      %vm5500 = vcmp.gt.f32.partialorder %v5464, 0.5
      %vm5501 = vcmp.gt.f32.partialorder %v5465, 0.5
      %vm5502 = vcmp.gt.f32.partialorder %v5466, 0.5
      %vm5503 = vcmp.gt.f32.partialorder %v5467, 0.5
      %vm5504 = vcmp.gt.f32.partialorder %v5468, 0.5
      %vm5505 = vcmp.gt.f32.partialorder %v5469, 0.5
      %vm5506 = vcmp.gt.f32.partialorder %v5470, 0.5
      %vm5507 = vcmp.gt.f32.partialorder %v5471, 0.5
      %vm5508 = vcmp.gt.f32.partialorder %v5472, 0.5
      %vm5509 = vcmp.gt.f32.partialorder %v5473, 0.5
      %vm5510 = vcmp.gt.f32.partialorder %v5474, 0.5
      %vm5511 = vcmp.gt.f32.partialorder %v5475, 0.5
      %vm5512 = vcmp.gt.f32.partialorder %v5476, 0.5
      %vm5513 = vcmp.gt.f32.partialorder %v5477, 0.5
      %vm5514 = vcmp.gt.f32.partialorder %v5478, 0.5
      %vm5515 = vcmp.gt.f32.partialorder %v5479, 0.5
      %vm5516 = vcmp.gt.f32.partialorder %v5480, 0.5
      %vm5517 = vcmp.gt.f32.partialorder %v5481, 0.5
      %vm5518 = vcmp.gt.f32.partialorder %v5482, 0.5
      %vm5519 = vcmp.gt.f32.partialorder %v5483, 0.5
      %vm5520 = vcmp.gt.f32.partialorder %v5484, 0.5
      %vm5521 = vcmp.gt.f32.partialorder %v5485, 0.5
      %vm5522 = vcmp.gt.f32.partialorder %v5486, 0.5
      %vm5523 = vcmp.gt.f32.partialorder %v5487, 0.5
      %vm5524 = vcmp.gt.f32.partialorder %v5488, 0.5
      %vm5525 = vcmp.gt.f32.partialorder %v5489, 0.5
      %vm5526 = vcmp.gt.f32.partialorder %v5490, 0.5
      %v5527 = vsel %vm5491, 1, 0
      %v5528 = vsel %vm5492, 1, 0
      %v5529 = vsel %vm5493, 1, 0
      %v5530 = vsel %vm5494, 1, 0
      %v5531 = vsel %vm5495, 1, 0
      %v5532 = vsel %vm5496, 1, 0
      %v5533 = vsel %vm5497, 1, 0
      %v5534 = vsel %vm5498, 1, 0
      %v5535 = vsel %vm5499, 1, 0
      %v5536 = vsel %vm5500, 1, 0
      %v5537 = vsel %vm5501, 1, 0
      %v5538 = vsel %vm5502, 1, 0
      %v5539 = vsel %vm5503, 1, 0
      %v5540 = vsel %vm5504, 1, 0
      %v5541 = vsel %vm5505, 1, 0
      %v5542 = vsel %vm5506, 1, 0
      %v5543 = vsel %vm5507, 1, 0
      %v5544 = vsel %vm5508, 1, 0
      %v5545 = vsel %vm5509, 1, 0
      %v5546 = vsel %vm5510, 1, 0
      %v5547 = vsel %vm5511, 1, 0
      %v5548 = vsel %vm5512, 1, 0
      %v5549 = vsel %vm5513, 1, 0
      %v5550 = vsel %vm5514, 1, 0
      %v5551 = vsel %vm5515, 1, 0
      %v5552 = vsel %vm5516, 1, 0
      %v5553 = vsel %vm5517, 1, 0
      %v5554 = vsel %vm5518, 1, 0
      %v5555 = vsel %vm5519, 1, 0
      %v5556 = vsel %vm5520, 1, 0
      %v5557 = vsel %vm5521, 1, 0
      %v5558 = vsel %vm5522, 1, 0
      %v5559 = vsel %vm5523, 1, 0
      %v5560 = vsel %vm5524, 1, 0
      %v5561 = vsel %vm5525, 1, 0
      %v5562 = vsel %vm5526, 1, 0
      %5563 = vset.pattern.permute.xlu0 0
      %5564 = vperm.xlu0 %5563, %v5527
      %v5565 = vpop.permute.xlu0 %5564
      %5566 = vset.pattern.permute.xlu0 0
      %5567 = vperm.xlu0 %5566, %v5528
      %v5568 = vpop.permute.xlu0 %5567
      %5569 = vset.pattern.permute.xlu0 0
      %5570 = vperm.xlu0 %5569, %v5529
      %v5571 = vpop.permute.xlu0 %5570
      %5572 = vset.pattern.permute.xlu0 0
      %5573 = vperm.xlu0 %5572, %v5530
      %v5574 = vpop.permute.xlu0 %5573
      %5575 = vset.pattern.permute.xlu0 0
      %5576 = vperm.xlu0 %5575, %v5531
      %v5577 = vpop.permute.xlu0 %5576
      %5578 = vset.pattern.permute.xlu0 0
      %5579 = vperm.xlu0 %5578, %v5532
      %v5580 = vpop.permute.xlu0 %5579
      %5581 = vset.pattern.permute.xlu0 0
      %5582 = vperm.xlu0 %5581, %v5533
      %v5583 = vpop.permute.xlu0 %5582
      %5584 = vset.pattern.permute.xlu0 0
      %5585 = vperm.xlu0 %5584, %v5534
      %v5586 = vpop.permute.xlu0 %5585
      %5587 = vset.pattern.permute.xlu0 0
      %5588 = vperm.xlu0 %5587, %v5535
      %v5589 = vpop.permute.xlu0 %5588
      %5590 = vset.pattern.permute.xlu0 0
      %5591 = vperm.xlu0 %5590, %v5536
      %v5592 = vpop.permute.xlu0 %5591
      %5593 = vset.pattern.permute.xlu0 0
      %5594 = vperm.xlu0 %5593, %v5537
      %v5595 = vpop.permute.xlu0 %5594
      %5596 = vset.pattern.permute.xlu0 0
      %5597 = vperm.xlu0 %5596, %v5538
      %v5598 = vpop.permute.xlu0 %5597
      %5599 = vset.pattern.permute.xlu0 0
      %5600 = vperm.xlu0 %5599, %v5539
      %v5601 = vpop.permute.xlu0 %5600
      %5602 = vset.pattern.permute.xlu0 0
      %5603 = vperm.xlu0 %5602, %v5540
      %v5604 = vpop.permute.xlu0 %5603
      %5605 = vset.pattern.permute.xlu0 0
      %5606 = vperm.xlu0 %5605, %v5541
      %v5607 = vpop.permute.xlu0 %5606
      %5608 = vset.pattern.permute.xlu0 0
      %5609 = vperm.xlu0 %5608, %v5542
      %v5610 = vpop.permute.xlu0 %5609
      %5611 = vset.pattern.permute.xlu0 0
      %5612 = vperm.xlu0 %5611, %v5543
      %v5613 = vpop.permute.xlu0 %5612
      %5614 = vset.pattern.permute.xlu0 0
      %5615 = vperm.xlu0 %5614, %v5544
      %v5616 = vpop.permute.xlu0 %5615
      %5617 = vset.pattern.permute.xlu0 0
      %5618 = vperm.xlu0 %5617, %v5545
      %v5619 = vpop.permute.xlu0 %5618
      %5620 = vset.pattern.permute.xlu0 0
      %5621 = vperm.xlu0 %5620, %v5546
      %v5622 = vpop.permute.xlu0 %5621
      %5623 = vset.pattern.permute.xlu0 0
      %5624 = vperm.xlu0 %5623, %v5547
      %v5625 = vpop.permute.xlu0 %5624
      %5626 = vset.pattern.permute.xlu0 0
      %5627 = vperm.xlu0 %5626, %v5548
      %v5628 = vpop.permute.xlu0 %5627
      %5629 = vset.pattern.permute.xlu0 0
      %5630 = vperm.xlu0 %5629, %v5549
      %v5631 = vpop.permute.xlu0 %5630
      %5632 = vset.pattern.permute.xlu0 0
      %5633 = vperm.xlu0 %5632, %v5550
      %v5634 = vpop.permute.xlu0 %5633
      %5635 = vset.pattern.permute.xlu0 0
      %5636 = vperm.xlu0 %5635, %v5551
      %v5637 = vpop.permute.xlu0 %5636
      %5638 = vset.pattern.permute.xlu0 0
      %5639 = vperm.xlu0 %5638, %v5552
      %v5640 = vpop.permute.xlu0 %5639
      %5641 = vset.pattern.permute.xlu0 0
      %5642 = vperm.xlu0 %5641, %v5553
      %v5643 = vpop.permute.xlu0 %5642
      %5644 = vset.pattern.permute.xlu0 0
      %5645 = vperm.xlu0 %5644, %v5554
      %v5646 = vpop.permute.xlu0 %5645
      %5647 = vset.pattern.permute.xlu0 0
      %5648 = vperm.xlu0 %5647, %v5555
      %v5649 = vpop.permute.xlu0 %5648
      %5650 = vset.pattern.permute.xlu0 0
      %5651 = vperm.xlu0 %5650, %v5556
      %v5652 = vpop.permute.xlu0 %5651
      %5653 = vset.pattern.permute.xlu0 0
      %5654 = vperm.xlu0 %5653, %v5557
      %v5655 = vpop.permute.xlu0 %5654
      %5656 = vset.pattern.permute.xlu0 0
      %5657 = vperm.xlu0 %5656, %v5558
      %v5658 = vpop.permute.xlu0 %5657
      %5659 = vset.pattern.permute.xlu0 0
      %5660 = vperm.xlu0 %5659, %v5559
      %v5661 = vpop.permute.xlu0 %5660
      %5662 = vset.pattern.permute.xlu0 0
      %5663 = vperm.xlu0 %5662, %v5560
      %v5664 = vpop.permute.xlu0 %5663
      %5665 = vset.pattern.permute.xlu0 0
      %5666 = vperm.xlu0 %5665, %v5561
      %v5667 = vpop.permute.xlu0 %5666
      %5668 = vset.pattern.permute.xlu0 0
      %5669 = vperm.xlu0 %5668, %v5562
      %v5670 = vpop.permute.xlu0 %5669
      %vm5671 = vcmp.eq.s32.totalorder %v5565, 1
      %vm5672 = vcmp.eq.s32.totalorder %v5568, 1
      %vm5673 = vcmp.eq.s32.totalorder %v5571, 1
      %vm5674 = vcmp.eq.s32.totalorder %v5574, 1
      %vm5675 = vcmp.eq.s32.totalorder %v5577, 1
      %vm5676 = vcmp.eq.s32.totalorder %v5580, 1
      %vm5677 = vcmp.eq.s32.totalorder %v5583, 1
      %vm5678 = vcmp.eq.s32.totalorder %v5586, 1
      %vm5679 = vcmp.eq.s32.totalorder %v5589, 1
      %vm5680 = vcmp.eq.s32.totalorder %v5592, 1
      %vm5681 = vcmp.eq.s32.totalorder %v5595, 1
      %vm5682 = vcmp.eq.s32.totalorder %v5598, 1
      %vm5683 = vcmp.eq.s32.totalorder %v5601, 1
      %vm5684 = vcmp.eq.s32.totalorder %v5604, 1
      %vm5685 = vcmp.eq.s32.totalorder %v5607, 1
      %vm5686 = vcmp.eq.s32.totalorder %v5610, 1
      %vm5687 = vcmp.eq.s32.totalorder %v5613, 1
      %vm5688 = vcmp.eq.s32.totalorder %v5616, 1
      %vm5689 = vcmp.eq.s32.totalorder %v5619, 1
      %vm5690 = vcmp.eq.s32.totalorder %v5622, 1
      %vm5691 = vcmp.eq.s32.totalorder %v5625, 1
      %vm5692 = vcmp.eq.s32.totalorder %v5628, 1
      %vm5693 = vcmp.eq.s32.totalorder %v5631, 1
      %vm5694 = vcmp.eq.s32.totalorder %v5634, 1
      %vm5695 = vcmp.eq.s32.totalorder %v5637, 1
      %vm5696 = vcmp.eq.s32.totalorder %v5640, 1
      %vm5697 = vcmp.eq.s32.totalorder %v5643, 1
      %vm5698 = vcmp.eq.s32.totalorder %v5646, 1
      %vm5699 = vcmp.eq.s32.totalorder %v5649, 1
      %vm5700 = vcmp.eq.s32.totalorder %v5652, 1
      %vm5701 = vcmp.eq.s32.totalorder %v5655, 1
      %vm5702 = vcmp.eq.s32.totalorder %v5658, 1
      %vm5703 = vcmp.eq.s32.totalorder %v5661, 1
      %vm5704 = vcmp.eq.s32.totalorder %v5664, 1
      %vm5705 = vcmp.eq.s32.totalorder %v5667, 1
      %vm5706 = vcmp.eq.s32.totalorder %v5670, 1
      %v5707 = vsel %vm5671, %v5295, 1.0
      %v5708 = vsel %vm5671, %v5296, 1.0
      %v5709 = vsel %vm5671, %v5297, 1.0
      %v5710 = vsel %vm5671, %v5298, 1.0
      %v5711 = vsel %vm5672, %v5299, 1.0
      %v5712 = vsel %vm5672, %v5300, 1.0
      %v5713 = vsel %vm5672, %v5301, 1.0
      %v5714 = vsel %vm5672, %v5302, 1.0
      %v5715 = vsel %vm5673, %v5303, 1.0
      %v5716 = vsel %vm5673, %v5304, 1.0
      %v5717 = vsel %vm5673, %v5305, 1.0
      %v5718 = vsel %vm5673, %v5306, 1.0
      %v5719 = vsel %vm5674, %v5307, 1.0
      %v5720 = vsel %vm5674, %v5308, 1.0
      %v5721 = vsel %vm5674, %v5309, 1.0
      %v5722 = vsel %vm5674, %v5310, 1.0
      %v5723 = vsel %vm5675, %v5311, 1.0
      %v5724 = vsel %vm5675, %v5312, 1.0
      %v5725 = vsel %vm5675, %v5313, 1.0
      %v5726 = vsel %vm5675, %v5314, 1.0
      %v5727 = vsel %vm5676, %v5315, 1.0
      %v5728 = vsel %vm5676, %v5316, 1.0
      %v5729 = vsel %vm5676, %v5317, 1.0
      %v5730 = vsel %vm5676, %v5318, 1.0
      %v5731 = vsel %vm5677, %v5319, 1.0
      %v5732 = vsel %vm5677, %v5320, 1.0
      %v5733 = vsel %vm5677, %v5321, 1.0
      %v5734 = vsel %vm5677, %v5322, 1.0
      %v5735 = vsel %vm5678, %v5323, 1.0
      %v5736 = vsel %vm5678, %v5324, 1.0
      %v5737 = vsel %vm5678, %v5325, 1.0
      %v5738 = vsel %vm5678, %v5326, 1.0
      %v5739 = vsel %vm5679, %v5327, 1.0
      %v5740 = vsel %vm5679, %v5328, 1.0
      %v5741 = vsel %vm5679, %v5329, 1.0
      %v5742 = vsel %vm5679, %v5330, 1.0
      %v5743 = vsel %vm5680, %v5331, 1.0
      %v5744 = vsel %vm5680, %v5332, 1.0
      %v5745 = vsel %vm5680, %v5333, 1.0
      %v5746 = vsel %vm5680, %v5334, 1.0
      %v5747 = vsel %vm5681, %v5335, 1.0
      %v5748 = vsel %vm5681, %v5336, 1.0
      %v5749 = vsel %vm5681, %v5337, 1.0
      %v5750 = vsel %vm5681, %v5338, 1.0
      %v5751 = vsel %vm5682, %v5339, 1.0
      %v5752 = vsel %vm5682, %v5340, 1.0
      %v5753 = vsel %vm5682, %v5341, 1.0
      %v5754 = vsel %vm5682, %v5342, 1.0
      %v5755 = vsel %vm5683, %v5343, 1.0
      %v5756 = vsel %vm5683, %v5344, 1.0
      %v5757 = vsel %vm5683, %v5345, 1.0
      %v5758 = vsel %vm5683, %v5346, 1.0
      %v5759 = vsel %vm5684, %v5347, 1.0
      %v5760 = vsel %vm5684, %v5348, 1.0
      %v5761 = vsel %vm5684, %v5349, 1.0
      %v5762 = vsel %vm5684, %v5350, 1.0
      %v5763 = vsel %vm5685, %v5351, 1.0
      %v5764 = vsel %vm5685, %v5352, 1.0
      %v5765 = vsel %vm5685, %v5353, 1.0
      %v5766 = vsel %vm5685, %v5354, 1.0
      %v5767 = vsel %vm5686, %v5355, 1.0
      %v5768 = vsel %vm5686, %v5356, 1.0
      %v5769 = vsel %vm5686, %v5357, 1.0
      %v5770 = vsel %vm5686, %v5358, 1.0
      %v5771 = vsel %vm5687, %v5359, 1.0
      %v5772 = vsel %vm5687, %v5360, 1.0
      %v5773 = vsel %vm5687, %v5361, 1.0
      %v5774 = vsel %vm5687, %v5362, 1.0
      %v5775 = vsel %vm5688, %v5363, 1.0
      %v5776 = vsel %vm5688, %v5364, 1.0
      %v5777 = vsel %vm5688, %v5365, 1.0
      %v5778 = vsel %vm5688, %v5366, 1.0
      %v5779 = vsel %vm5689, %v5367, 1.0
      %v5780 = vsel %vm5689, %v5368, 1.0
      %v5781 = vsel %vm5689, %v5369, 1.0
      %v5782 = vsel %vm5689, %v5370, 1.0
      %v5783 = vsel %vm5690, %v5371, 1.0
      %v5784 = vsel %vm5690, %v5372, 1.0
      %v5785 = vsel %vm5690, %v5373, 1.0
      %v5786 = vsel %vm5690, %v5374, 1.0
      %v5787 = vsel %vm5691, %v5375, 1.0
      %v5788 = vsel %vm5691, %v5376, 1.0
      %v5789 = vsel %vm5691, %v5377, 1.0
      %v5790 = vsel %vm5691, %v5378, 1.0
      %v5791 = vsel %vm5692, %v5379, 1.0
      %v5792 = vsel %vm5692, %v5380, 1.0
      %v5793 = vsel %vm5692, %v5381, 1.0
      %v5794 = vsel %vm5692, %v5382, 1.0
      %v5795 = vsel %vm5693, %v5383, 1.0
      %v5796 = vsel %vm5693, %v5384, 1.0
      %v5797 = vsel %vm5693, %v5385, 1.0
      %v5798 = vsel %vm5693, %v5386, 1.0
      %v5799 = vsel %vm5694, %v5387, 1.0
      %v5800 = vsel %vm5694, %v5388, 1.0
      %v5801 = vsel %vm5694, %v5389, 1.0
      %v5802 = vsel %vm5694, %v5390, 1.0
      %v5803 = vsel %vm5695, %v5391, 1.0
      %v5804 = vsel %vm5695, %v5392, 1.0
      %v5805 = vsel %vm5695, %v5393, 1.0
      %v5806 = vsel %vm5695, %v5394, 1.0
      %v5807 = vsel %vm5696, %v5395, 1.0
      %v5808 = vsel %vm5696, %v5396, 1.0
      %v5809 = vsel %vm5696, %v5397, 1.0
      %v5810 = vsel %vm5696, %v5398, 1.0
      %v5811 = vsel %vm5697, %v5399, 1.0
      %v5812 = vsel %vm5697, %v5400, 1.0
      %v5813 = vsel %vm5697, %v5401, 1.0
      %v5814 = vsel %vm5697, %v5402, 1.0
      %v5815 = vsel %vm5698, %v5403, 1.0
      %v5816 = vsel %vm5698, %v5404, 1.0
      %v5817 = vsel %vm5698, %v5405, 1.0
      %v5818 = vsel %vm5698, %v5406, 1.0
      %v5819 = vsel %vm5699, %v5407, 1.0
      %v5820 = vsel %vm5699, %v5408, 1.0
      %v5821 = vsel %vm5699, %v5409, 1.0
      %v5822 = vsel %vm5699, %v5410, 1.0
      %v5823 = vsel %vm5700, %v5411, 1.0
      %v5824 = vsel %vm5700, %v5412, 1.0
      %v5825 = vsel %vm5700, %v5413, 1.0
      %v5826 = vsel %vm5700, %v5414, 1.0
      %v5827 = vsel %vm5701, %v5415, 1.0
      %v5828 = vsel %vm5701, %v5416, 1.0
      %v5829 = vsel %vm5701, %v5417, 1.0
      %v5830 = vsel %vm5701, %v5418, 1.0
      %v5831 = vsel %vm5702, %v5419, 1.0
      %v5832 = vsel %vm5702, %v5420, 1.0
      %v5833 = vsel %vm5702, %v5421, 1.0
      %v5834 = vsel %vm5702, %v5422, 1.0
      %v5835 = vsel %vm5703, %v5423, 1.0
      %v5836 = vsel %vm5703, %v5424, 1.0
      %v5837 = vsel %vm5703, %v5425, 1.0
      %v5838 = vsel %vm5703, %v5426, 1.0
      %v5839 = vsel %vm5704, %v5427, 1.0
      %v5840 = vsel %vm5704, %v5428, 1.0
      %v5841 = vsel %vm5704, %v5429, 1.0
      %v5842 = vsel %vm5704, %v5430, 1.0
      %v5843 = vsel %vm5705, %v5431, 1.0
      %v5844 = vsel %vm5705, %v5432, 1.0
      %v5845 = vsel %vm5705, %v5433, 1.0
      %v5846 = vsel %vm5705, %v5434, 1.0
      %v5847 = vsel %vm5706, %v5435, 1.0
      %v5848 = vsel %vm5706, %v5436, 1.0
      %v5849 = vsel %vm5706, %v5437, 1.0
      %v5850 = vsel %vm5706, %v5438, 1.0
      %v5851 = vpack.c.bf16 %v5711, %v5707
      %v5852 = vpack.c.bf16 %v5712, %v5708
      %v5853 = vpack.c.bf16 %v5713, %v5709
      %v5854 = vpack.c.bf16 %v5714, %v5710
      %v5855 = vpack.c.bf16 %v5719, %v5715
      %v5856 = vpack.c.bf16 %v5720, %v5716
      %v5857 = vpack.c.bf16 %v5721, %v5717
      %v5858 = vpack.c.bf16 %v5722, %v5718
      %v5859 = vpack.c.bf16 %v5727, %v5723
      %v5860 = vpack.c.bf16 %v5728, %v5724
      %v5861 = vpack.c.bf16 %v5729, %v5725
      %v5862 = vpack.c.bf16 %v5730, %v5726
      %v5863 = vpack.c.bf16 %v5735, %v5731
      %v5864 = vpack.c.bf16 %v5736, %v5732
      %v5865 = vpack.c.bf16 %v5737, %v5733
      %v5866 = vpack.c.bf16 %v5738, %v5734
      %v5867 = vpack.c.bf16 %v5743, %v5739
      %v5868 = vpack.c.bf16 %v5744, %v5740
      %v5869 = vpack.c.bf16 %v5745, %v5741
      %v5870 = vpack.c.bf16 %v5746, %v5742
      %v5871 = vpack.c.bf16 %v5751, %v5747
      %v5872 = vpack.c.bf16 %v5752, %v5748
      %v5873 = vpack.c.bf16 %v5753, %v5749
      %v5874 = vpack.c.bf16 %v5754, %v5750
      %v5875 = vpack.c.bf16 %v5759, %v5755
      %v5876 = vpack.c.bf16 %v5760, %v5756
      %v5877 = vpack.c.bf16 %v5761, %v5757
      %v5878 = vpack.c.bf16 %v5762, %v5758
      %v5879 = vpack.c.bf16 %v5767, %v5763
      %v5880 = vpack.c.bf16 %v5768, %v5764
      %v5881 = vpack.c.bf16 %v5769, %v5765
      %v5882 = vpack.c.bf16 %v5770, %v5766
      %v5883 = vpack.c.bf16 %v5775, %v5771
      %v5884 = vpack.c.bf16 %v5776, %v5772
      %v5885 = vpack.c.bf16 %v5777, %v5773
      %v5886 = vpack.c.bf16 %v5778, %v5774
      %v5887 = vpack.c.bf16 %v5783, %v5779
      %v5888 = vpack.c.bf16 %v5784, %v5780
      %v5889 = vpack.c.bf16 %v5785, %v5781
      %v5890 = vpack.c.bf16 %v5786, %v5782
      %v5891 = vpack.c.bf16 %v5791, %v5787
      %v5892 = vpack.c.bf16 %v5792, %v5788
      %v5893 = vpack.c.bf16 %v5793, %v5789
      %v5894 = vpack.c.bf16 %v5794, %v5790
      %v5895 = vpack.c.bf16 %v5799, %v5795
      %v5896 = vpack.c.bf16 %v5800, %v5796
      %v5897 = vpack.c.bf16 %v5801, %v5797
      %v5898 = vpack.c.bf16 %v5802, %v5798
      %v5899 = vpack.c.bf16 %v5807, %v5803
      %v5900 = vpack.c.bf16 %v5808, %v5804
      %v5901 = vpack.c.bf16 %v5809, %v5805
      %v5902 = vpack.c.bf16 %v5810, %v5806
      %v5903 = vpack.c.bf16 %v5815, %v5811
      %v5904 = vpack.c.bf16 %v5816, %v5812
      %v5905 = vpack.c.bf16 %v5817, %v5813
      %v5906 = vpack.c.bf16 %v5818, %v5814
      %v5907 = vpack.c.bf16 %v5823, %v5819
      %v5908 = vpack.c.bf16 %v5824, %v5820
      %v5909 = vpack.c.bf16 %v5825, %v5821
      %v5910 = vpack.c.bf16 %v5826, %v5822
      %v5911 = vpack.c.bf16 %v5831, %v5827
      %v5912 = vpack.c.bf16 %v5832, %v5828
      %v5913 = vpack.c.bf16 %v5833, %v5829
      %v5914 = vpack.c.bf16 %v5834, %v5830
      %v5915 = vpack.c.bf16 %v5839, %v5835
      %v5916 = vpack.c.bf16 %v5840, %v5836
      %v5917 = vpack.c.bf16 %v5841, %v5837
      %v5918 = vpack.c.bf16 %v5842, %v5838
      %v5919 = vpack.c.bf16 %v5847, %v5843
      %v5920 = vpack.c.bf16 %v5848, %v5844
      %v5921 = vpack.c.bf16 %v5849, %v5845
      %v5922 = vpack.c.bf16 %v5850, %v5846
      %v5995 = vunpack.c.l.b16 %v5851
      %v5996 = vunpack.c.l.b16 %v5852
      %v5997 = vunpack.c.l.b16 %v5853
      %v5998 = vunpack.c.l.b16 %v5854
      %v5999 = vunpack.c.h.b16 %v5851
      %v6000 = vunpack.c.h.b16 %v5852
      %v6001 = vunpack.c.h.b16 %v5853
      %v6002 = vunpack.c.h.b16 %v5854
      %v6003 = vunpack.c.l.b16 %v5855
      %v6004 = vunpack.c.l.b16 %v5856
      %v6005 = vunpack.c.l.b16 %v5857
      %v6006 = vunpack.c.l.b16 %v5858
      %v6007 = vunpack.c.h.b16 %v5855
      %v6008 = vunpack.c.h.b16 %v5856
      %v6009 = vunpack.c.h.b16 %v5857
      %v6010 = vunpack.c.h.b16 %v5858
      %v6011 = vunpack.c.l.b16 %v5859
      %v6012 = vunpack.c.l.b16 %v5860
      %v6013 = vunpack.c.l.b16 %v5861
      %v6014 = vunpack.c.l.b16 %v5862
      %v6015 = vunpack.c.h.b16 %v5859
      %v6016 = vunpack.c.h.b16 %v5860
      %v6017 = vunpack.c.h.b16 %v5861
      %v6018 = vunpack.c.h.b16 %v5862
      %v6019 = vunpack.c.l.b16 %v5863
      %v6020 = vunpack.c.l.b16 %v5864
      %v6021 = vunpack.c.l.b16 %v5865
      %v6022 = vunpack.c.l.b16 %v5866
      %v6023 = vunpack.c.h.b16 %v5863
      %v6024 = vunpack.c.h.b16 %v5864
      %v6025 = vunpack.c.h.b16 %v5865
      %v6026 = vunpack.c.h.b16 %v5866
      %v6027 = vunpack.c.l.b16 %v5867
      %v6028 = vunpack.c.l.b16 %v5868
      %v6029 = vunpack.c.l.b16 %v5869
      %v6030 = vunpack.c.l.b16 %v5870
      %v6031 = vunpack.c.h.b16 %v5867
      %v6032 = vunpack.c.h.b16 %v5868
      %v6033 = vunpack.c.h.b16 %v5869
      %v6034 = vunpack.c.h.b16 %v5870
      %v6035 = vunpack.c.l.b16 %v5871
      %v6036 = vunpack.c.l.b16 %v5872
      %v6037 = vunpack.c.l.b16 %v5873
      %v6038 = vunpack.c.l.b16 %v5874
      %v6039 = vunpack.c.h.b16 %v5871
      %v6040 = vunpack.c.h.b16 %v5872
      %v6041 = vunpack.c.h.b16 %v5873
      %v6042 = vunpack.c.h.b16 %v5874
      %v6043 = vunpack.c.l.b16 %v5875
      %v6044 = vunpack.c.l.b16 %v5876
      %v6045 = vunpack.c.l.b16 %v5877
      %v6046 = vunpack.c.l.b16 %v5878
      %v6047 = vunpack.c.h.b16 %v5875
      %v6048 = vunpack.c.h.b16 %v5876
      %v6049 = vunpack.c.h.b16 %v5877
      %v6050 = vunpack.c.h.b16 %v5878
      %v6051 = vunpack.c.l.b16 %v5879
      %v6052 = vunpack.c.l.b16 %v5880
      %v6053 = vunpack.c.l.b16 %v5881
      %v6054 = vunpack.c.l.b16 %v5882
      %v6055 = vunpack.c.h.b16 %v5879
      %v6056 = vunpack.c.h.b16 %v5880
      %v6057 = vunpack.c.h.b16 %v5881
      %v6058 = vunpack.c.h.b16 %v5882
      %v6059 = vunpack.c.l.b16 %v5883
      %v6060 = vunpack.c.l.b16 %v5884
      %v6061 = vunpack.c.l.b16 %v5885
      %v6062 = vunpack.c.l.b16 %v5886
      %v6063 = vunpack.c.h.b16 %v5883
      %v6064 = vunpack.c.h.b16 %v5884
      %v6065 = vunpack.c.h.b16 %v5885
      %v6066 = vunpack.c.h.b16 %v5886
      %v6067 = vunpack.c.l.b16 %v5887
      %v6068 = vunpack.c.l.b16 %v5888
      %v6069 = vunpack.c.l.b16 %v5889
      %v6070 = vunpack.c.l.b16 %v5890
      %v6071 = vunpack.c.h.b16 %v5887
      %v6072 = vunpack.c.h.b16 %v5888
      %v6073 = vunpack.c.h.b16 %v5889
      %v6074 = vunpack.c.h.b16 %v5890
      %v6075 = vunpack.c.l.b16 %v5891
      %v6076 = vunpack.c.l.b16 %v5892
      %v6077 = vunpack.c.l.b16 %v5893
      %v6078 = vunpack.c.l.b16 %v5894
      %v6079 = vunpack.c.h.b16 %v5891
      %v6080 = vunpack.c.h.b16 %v5892
      %v6081 = vunpack.c.h.b16 %v5893
      %v6082 = vunpack.c.h.b16 %v5894
      %v6083 = vunpack.c.l.b16 %v5895
      %v6084 = vunpack.c.l.b16 %v5896
      %v6085 = vunpack.c.l.b16 %v5897
      %v6086 = vunpack.c.l.b16 %v5898
      %v6087 = vunpack.c.h.b16 %v5895
      %v6088 = vunpack.c.h.b16 %v5896
      %v6089 = vunpack.c.h.b16 %v5897
      %v6090 = vunpack.c.h.b16 %v5898
      %v6091 = vunpack.c.l.b16 %v5899
      %v6092 = vunpack.c.l.b16 %v5900
      %v6093 = vunpack.c.l.b16 %v5901
      %v6094 = vunpack.c.l.b16 %v5902
      %v6095 = vunpack.c.h.b16 %v5899
      %v6096 = vunpack.c.h.b16 %v5900
      %v6097 = vunpack.c.h.b16 %v5901
      %v6098 = vunpack.c.h.b16 %v5902
      %v6099 = vunpack.c.l.b16 %v5903
      %v6100 = vunpack.c.l.b16 %v5904
      %v6101 = vunpack.c.l.b16 %v5905
      %v6102 = vunpack.c.l.b16 %v5906
      %v6103 = vunpack.c.h.b16 %v5903
      %v6104 = vunpack.c.h.b16 %v5904
      %v6105 = vunpack.c.h.b16 %v5905
      %v6106 = vunpack.c.h.b16 %v5906
      %v6107 = vunpack.c.l.b16 %v5907
      %v6108 = vunpack.c.l.b16 %v5908
      %v6109 = vunpack.c.l.b16 %v5909
      %v6110 = vunpack.c.l.b16 %v5910
      %v6111 = vunpack.c.h.b16 %v5907
      %v6112 = vunpack.c.h.b16 %v5908
      %v6113 = vunpack.c.h.b16 %v5909
      %v6114 = vunpack.c.h.b16 %v5910
      %v6115 = vunpack.c.l.b16 %v5911
      %v6116 = vunpack.c.l.b16 %v5912
      %v6117 = vunpack.c.l.b16 %v5913
      %v6118 = vunpack.c.l.b16 %v5914
      %v6119 = vunpack.c.h.b16 %v5911
      %v6120 = vunpack.c.h.b16 %v5912
      %v6121 = vunpack.c.h.b16 %v5913
      %v6122 = vunpack.c.h.b16 %v5914
      %v6123 = vunpack.c.l.b16 %v5915
      %v6124 = vunpack.c.l.b16 %v5916
      %v6125 = vunpack.c.l.b16 %v5917
      %v6126 = vunpack.c.l.b16 %v5918
      %v6127 = vunpack.c.h.b16 %v5915
      %v6128 = vunpack.c.h.b16 %v5916
      %v6129 = vunpack.c.h.b16 %v5917
      %v6130 = vunpack.c.h.b16 %v5918
      %v6131 = vunpack.c.l.b16 %v5919
      %v6132 = vunpack.c.l.b16 %v5920
      %v6133 = vunpack.c.l.b16 %v5921
      %v6134 = vunpack.c.l.b16 %v5922
      %v6135 = vunpack.c.h.b16 %v5919
      %v6136 = vunpack.c.h.b16 %v5920
      %v6137 = vunpack.c.h.b16 %v5921
      %v6138 = vunpack.c.h.b16 %v5922
      %v6139 = vpack.c.b16 %v5996, %v5995
      %v6140 = vpack.c.b16 %v5998, %v5997
      %v6141 = vpack.c.b16 %v6000, %v5999
      %v6142 = vpack.c.b16 %v6002, %v6001
      %v6143 = vpack.c.b16 %v6004, %v6003
      %v6144 = vpack.c.b16 %v6006, %v6005
      %v6145 = vpack.c.b16 %v6008, %v6007
      %v6146 = vpack.c.b16 %v6010, %v6009
      %v6147 = vpack.c.b16 %v6012, %v6011
      %v6148 = vpack.c.b16 %v6014, %v6013
      %v6149 = vpack.c.b16 %v6016, %v6015
      %v6150 = vpack.c.b16 %v6018, %v6017
      %v6151 = vpack.c.b16 %v6020, %v6019
      %v6152 = vpack.c.b16 %v6022, %v6021
      %v6153 = vpack.c.b16 %v6024, %v6023
      %v6154 = vpack.c.b16 %v6026, %v6025
      %v6155 = vpack.c.b16 %v6028, %v6027
      %v6156 = vpack.c.b16 %v6030, %v6029
      %v6157 = vpack.c.b16 %v6032, %v6031
      %v6158 = vpack.c.b16 %v6034, %v6033
      %v6159 = vpack.c.b16 %v6036, %v6035
      %v6160 = vpack.c.b16 %v6038, %v6037
      %v6161 = vpack.c.b16 %v6040, %v6039
      %v6162 = vpack.c.b16 %v6042, %v6041
      %v6163 = vpack.c.b16 %v6044, %v6043
      %v6164 = vpack.c.b16 %v6046, %v6045
      %v6165 = vpack.c.b16 %v6048, %v6047
      %v6166 = vpack.c.b16 %v6050, %v6049
      %v6167 = vpack.c.b16 %v6052, %v6051
      %v6168 = vpack.c.b16 %v6054, %v6053
      %v6169 = vpack.c.b16 %v6056, %v6055
      %v6170 = vpack.c.b16 %v6058, %v6057
      %v6171 = vpack.c.b16 %v6060, %v6059
      %v6172 = vpack.c.b16 %v6062, %v6061
      %v6173 = vpack.c.b16 %v6064, %v6063
      %v6174 = vpack.c.b16 %v6066, %v6065
      %v6175 = vpack.c.b16 %v6068, %v6067
      %v6176 = vpack.c.b16 %v6070, %v6069
      %v6177 = vpack.c.b16 %v6072, %v6071
      %v6178 = vpack.c.b16 %v6074, %v6073
      %v6179 = vpack.c.b16 %v6076, %v6075
      %v6180 = vpack.c.b16 %v6078, %v6077
      %v6181 = vpack.c.b16 %v6080, %v6079
      %v6182 = vpack.c.b16 %v6082, %v6081
      %v6183 = vpack.c.b16 %v6084, %v6083
      %v6184 = vpack.c.b16 %v6086, %v6085
      %v6185 = vpack.c.b16 %v6088, %v6087
      %v6186 = vpack.c.b16 %v6090, %v6089
      %v6187 = vpack.c.b16 %v6092, %v6091
      %v6188 = vpack.c.b16 %v6094, %v6093
      %v6189 = vpack.c.b16 %v6096, %v6095
      %v6190 = vpack.c.b16 %v6098, %v6097
      %v6191 = vpack.c.b16 %v6100, %v6099
      %v6192 = vpack.c.b16 %v6102, %v6101
      %v6193 = vpack.c.b16 %v6104, %v6103
      %v6194 = vpack.c.b16 %v6106, %v6105
      %v6195 = vpack.c.b16 %v6108, %v6107
      %v6196 = vpack.c.b16 %v6110, %v6109
      %v6197 = vpack.c.b16 %v6112, %v6111
      %v6198 = vpack.c.b16 %v6114, %v6113
      %v6199 = vpack.c.b16 %v6116, %v6115
      %v6200 = vpack.c.b16 %v6118, %v6117
      %v6201 = vpack.c.b16 %v6120, %v6119
      %v6202 = vpack.c.b16 %v6122, %v6121
      %v6203 = vpack.c.b16 %v6124, %v6123
      %v6204 = vpack.c.b16 %v6126, %v6125
      %v6205 = vpack.c.b16 %v6128, %v6127
      %v6206 = vpack.c.b16 %v6130, %v6129
      %v6207 = vpack.c.b16 %v6132, %v6131
      %v6208 = vpack.c.b16 %v6134, %v6133
      %v6209 = vpack.c.b16 %v6136, %v6135
      %v6210 = vpack.c.b16 %v6138, %v6137
      %6283 = vst [vmem:[#allocation4 + $0x40] sm:$0xff] %v6139
      %6284 = vst [vmem:[#allocation4 + $0x48] sm:$0xff] %v6140
      %6285 = vst [vmem:[#allocation4 + $0x50] sm:$0xff] %v6141
      %6286 = vst [vmem:[#allocation4 + $0x58] sm:$0xff] %v6142
      %6287 = vst [vmem:[#allocation4 + $0x60] sm:$0xff] %v6143
      %6288 = vst [vmem:[#allocation4 + $0x68] sm:$0xff] %v6144
      %6289 = vst [vmem:[#allocation4 + $0x70] sm:$0xff] %v6145
      %6290 = vst [vmem:[#allocation4 + $0x78] sm:$0xff] %v6146
      %6291 = vst [vmem:[#allocation4 + $0x80] sm:$0xff] %v6147
      %6292 = vst [vmem:[#allocation4 + $0x88] sm:$0xff] %v6148
      %6293 = vst [vmem:[#allocation4 + $0x90] sm:$0xff] %v6149
      %6294 = vst [vmem:[#allocation4 + $0x98] sm:$0xff] %v6150
      %6295 = vst [vmem:[#allocation4 + $0xa0] sm:$0xff] %v6151
      %6296 = vst [vmem:[#allocation4 + $0xa8] sm:$0xff] %v6152
      %6297 = vst [vmem:[#allocation4 + $0xb0] sm:$0xff] %v6153
      %6298 = vst [vmem:[#allocation4 + $0xb8] sm:$0xff] %v6154
      %6299 = vst [vmem:[#allocation4 + $0xc0] sm:$0xff] %v6155
      %6300 = vst [vmem:[#allocation4 + $0xc8] sm:$0xff] %v6156
      %6301 = vst [vmem:[#allocation4 + $0xd0] sm:$0xff] %v6157
      %6302 = vst [vmem:[#allocation4 + $0xd8] sm:$0xff] %v6158
      %6303 = vst [vmem:[#allocation4 + $0xe0] sm:$0xff] %v6159
      %6304 = vst [vmem:[#allocation4 + $0xe8] sm:$0xff] %v6160
      %6305 = vst [vmem:[#allocation4 + $0xf0] sm:$0xff] %v6161
      %6306 = vst [vmem:[#allocation4 + $0xf8] sm:$0xff] %v6162
      %6307 = vst [vmem:[#allocation4 + $0x100] sm:$0xff] %v6163
      %6308 = vst [vmem:[#allocation4 + $0x108] sm:$0xff] %v6164
      %6309 = vst [vmem:[#allocation4 + $0x110] sm:$0xff] %v6165
      %6310 = vst [vmem:[#allocation4 + $0x118] sm:$0xff] %v6166
      %6311 = vst [vmem:[#allocation4 + $0x120] sm:$0xff] %v6167
      %6312 = vst [vmem:[#allocation4 + $0x128] sm:$0xff] %v6168
      %6313 = vst [vmem:[#allocation4 + $0x130] sm:$0xff] %v6169
      %6314 = vst [vmem:[#allocation4 + $0x138] sm:$0xff] %v6170
      %6315 = vst [vmem:[#allocation4 + $0x140] sm:$0xff] %v6171
      %6316 = vst [vmem:[#allocation4 + $0x148] sm:$0xff] %v6172
      %6317 = vst [vmem:[#allocation4 + $0x150] sm:$0xff] %v6173
      %6318 = vst [vmem:[#allocation4 + $0x158] sm:$0xff] %v6174
      %6319 = vst [vmem:[#allocation4 + $0x160] sm:$0xff] %v6175
      %6320 = vst [vmem:[#allocation4 + $0x168] sm:$0xff] %v6176
      %6321 = vst [vmem:[#allocation4 + $0x170] sm:$0xff] %v6177
      %6322 = vst [vmem:[#allocation4 + $0x178] sm:$0xff] %v6178
      %6323 = vst [vmem:[#allocation4 + $0x180] sm:$0xff] %v6179
      %6324 = vst [vmem:[#allocation4 + $0x188] sm:$0xff] %v6180
      %6325 = vst [vmem:[#allocation4 + $0x190] sm:$0xff] %v6181
      %6326 = vst [vmem:[#allocation4 + $0x198] sm:$0xff] %v6182
      %6327 = vst [vmem:[#allocation4 + $0x1a0] sm:$0xff] %v6183
      %6328 = vst [vmem:[#allocation4 + $0x1a8] sm:$0xff] %v6184
      %6329 = vst [vmem:[#allocation4 + $0x1b0] sm:$0xff] %v6185
      %6330 = vst [vmem:[#allocation4 + $0x1b8] sm:$0xff] %v6186
      %6331 = vst [vmem:[#allocation4 + $0x1c0] sm:$0xff] %v6187
      %6332 = vst [vmem:[#allocation4 + $0x1c8] sm:$0xff] %v6188
      %6333 = vst [vmem:[#allocation4 + $0x1d0] sm:$0xff] %v6189
      %6334 = vst [vmem:[#allocation4 + $0x1d8] sm:$0xff] %v6190
      %6335 = vst [vmem:[#allocation4 + $0x1e0] sm:$0xff] %v6191
      %6336 = vst [vmem:[#allocation4 + $0x1e8] sm:$0xff] %v6192
      %6337 = vst [vmem:[#allocation4 + $0x1f0] sm:$0xff] %v6193
      %6338 = vst [vmem:[#allocation4 + $0x1f8] sm:$0xff] %v6194
      %6339 = vst [vmem:[#allocation4 + $0x200] sm:$0xff] %v6195
      %6340 = vst [vmem:[#allocation4 + $0x208] sm:$0xff] %v6196
      %6341 = vst [vmem:[#allocation4 + $0x210] sm:$0xff] %v6197
      %6342 = vst [vmem:[#allocation4 + $0x218] sm:$0xff] %v6198
      %6343 = vst [vmem:[#allocation4 + $0x220] sm:$0xff] %v6199
      %6344 = vst [vmem:[#allocation4 + $0x228] sm:$0xff] %v6200
      %6345 = vst [vmem:[#allocation4 + $0x230] sm:$0xff] %v6201
      %6346 = vst [vmem:[#allocation4 + $0x238] sm:$0xff] %v6202
      %6347 = vst [vmem:[#allocation4 + $0x240] sm:$0xff] %v6203
      %6348 = vst [vmem:[#allocation4 + $0x248] sm:$0xff] %v6204
      %6349 = vst [vmem:[#allocation4 + $0x250] sm:$0xff] %v6205
      %6350 = vst [vmem:[#allocation4 + $0x258] sm:$0xff] %v6206
      %6351 = vst [vmem:[#allocation4 + $0x260] sm:$0xff] %v6207
      %6352 = vst [vmem:[#allocation4 + $0x268] sm:$0xff] %v6208
      %6353 = vst [vmem:[#allocation4 + $0x270] sm:$0xff] %v6209
      %6354 = vst [vmem:[#allocation4 + $0x278] sm:$0xff] %v6210
      %v6355 = vld [vmem:[#allocation4] sm:$0xff]
      %v6356 = vld [vmem:[#allocation4 + $0x8] sm:$0xff]
      %v6357 = vld [vmem:[#allocation4 + $0x10] sm:$0xff]
      %v6358 = vld [vmem:[#allocation4 + $0x18] sm:$0xff]
      %v6359 = vld [vmem:[#allocation4 + $0x20] sm:$0xff]
      %v6360 = vld [vmem:[#allocation4 + $0x28] sm:$0xff]
      %v6361 = vld [vmem:[#allocation4 + $0x30] sm:$0xff]
      %v6362 = vld [vmem:[#allocation4 + $0x38] sm:$0xff]
      %v6363 = vld [vmem:[#allocation4 + $0x40] sm:$0xff]
      %v6364 = vld [vmem:[#allocation4 + $0x48] sm:$0xff]
      %v6365 = vld [vmem:[#allocation4 + $0x50] sm:$0xff]
      %v6366 = vld [vmem:[#allocation4 + $0x58] sm:$0xff]
      %v6367 = vld [vmem:[#allocation4 + $0x60] sm:$0xff]
      %v6368 = vld [vmem:[#allocation4 + $0x68] sm:$0xff]
      %v6369 = vld [vmem:[#allocation4 + $0x70] sm:$0xff]
      %v6370 = vld [vmem:[#allocation4 + $0x78] sm:$0xff]
      %v6371 = vld [vmem:[#allocation4 + $0x80] sm:$0xff]
      %v6372 = vld [vmem:[#allocation4 + $0x88] sm:$0xff]
      %v6373 = vld [vmem:[#allocation4 + $0x90] sm:$0xff]
      %v6374 = vld [vmem:[#allocation4 + $0x98] sm:$0xff]
      %v6375 = vld [vmem:[#allocation4 + $0xa0] sm:$0xff]
      %v6376 = vld [vmem:[#allocation4 + $0xa8] sm:$0xff]
      %v6377 = vld [vmem:[#allocation4 + $0xb0] sm:$0xff]
      %v6378 = vld [vmem:[#allocation4 + $0xb8] sm:$0xff]
      %v6379 = vld [vmem:[#allocation4 + $0xc0] sm:$0xff]
      %v6380 = vld [vmem:[#allocation4 + $0xc8] sm:$0xff]
      %v6381 = vld [vmem:[#allocation4 + $0xd0] sm:$0xff]
      %v6382 = vld [vmem:[#allocation4 + $0xd8] sm:$0xff]
      %v6383 = vld [vmem:[#allocation4 + $0xe0] sm:$0xff]
      %v6384 = vld [vmem:[#allocation4 + $0xe8] sm:$0xff]
      %v6385 = vld [vmem:[#allocation4 + $0xf0] sm:$0xff]
      %v6386 = vld [vmem:[#allocation4 + $0xf8] sm:$0xff]
      %v6387 = vld [vmem:[#allocation4 + $0x100] sm:$0xff]
      %v6388 = vld [vmem:[#allocation4 + $0x108] sm:$0xff]
      %v6389 = vld [vmem:[#allocation4 + $0x110] sm:$0xff]
      %v6390 = vld [vmem:[#allocation4 + $0x118] sm:$0xff]
      %v6391 = vld [vmem:[#allocation4 + $0x120] sm:$0xff]
      %v6392 = vld [vmem:[#allocation4 + $0x128] sm:$0xff]
      %v6393 = vld [vmem:[#allocation4 + $0x130] sm:$0xff]
      %v6394 = vld [vmem:[#allocation4 + $0x138] sm:$0xff]
      %v6395 = vld [vmem:[#allocation4 + $0x140] sm:$0xff]
      %v6396 = vld [vmem:[#allocation4 + $0x148] sm:$0xff]
      %v6397 = vld [vmem:[#allocation4 + $0x150] sm:$0xff]
      %v6398 = vld [vmem:[#allocation4 + $0x158] sm:$0xff]
      %v6399 = vld [vmem:[#allocation4 + $0x160] sm:$0xff]
      %v6400 = vld [vmem:[#allocation4 + $0x168] sm:$0xff]
      %v6401 = vld [vmem:[#allocation4 + $0x170] sm:$0xff]
      %v6402 = vld [vmem:[#allocation4 + $0x178] sm:$0xff]
      %v6403 = vld [vmem:[#allocation4 + $0x180] sm:$0xff]
      %v6404 = vld [vmem:[#allocation4 + $0x188] sm:$0xff]
      %v6405 = vld [vmem:[#allocation4 + $0x190] sm:$0xff]
      %v6406 = vld [vmem:[#allocation4 + $0x198] sm:$0xff]
      %v6407 = vld [vmem:[#allocation4 + $0x1a0] sm:$0xff]
      %v6408 = vld [vmem:[#allocation4 + $0x1a8] sm:$0xff]
      %v6409 = vld [vmem:[#allocation4 + $0x1b0] sm:$0xff]
      %v6410 = vld [vmem:[#allocation4 + $0x1b8] sm:$0xff]
      %v6411 = vld [vmem:[#allocation4 + $0x1c0] sm:$0xff]
      %v6412 = vld [vmem:[#allocation4 + $0x1c8] sm:$0xff]
      %v6413 = vld [vmem:[#allocation4 + $0x1d0] sm:$0xff]
      %v6414 = vld [vmem:[#allocation4 + $0x1d8] sm:$0xff]
      %v6415 = vld [vmem:[#allocation4 + $0x1e0] sm:$0xff]
      %v6416 = vld [vmem:[#allocation4 + $0x1e8] sm:$0xff]
      %v6417 = vld [vmem:[#allocation4 + $0x1f0] sm:$0xff]
      %v6418 = vld [vmem:[#allocation4 + $0x1f8] sm:$0xff]
      %v6419 = vld [vmem:[#allocation4 + $0x200] sm:$0xff]
      %v6420 = vld [vmem:[#allocation4 + $0x208] sm:$0xff]
      %v6421 = vld [vmem:[#allocation4 + $0x210] sm:$0xff]
      %v6422 = vld [vmem:[#allocation4 + $0x218] sm:$0xff]
      %v6423 = vld [vmem:[#allocation4 + $0x220] sm:$0xff]
      %v6424 = vld [vmem:[#allocation4 + $0x228] sm:$0xff]
      %v6425 = vld [vmem:[#allocation4 + $0x230] sm:$0xff]
      %v6426 = vld [vmem:[#allocation4 + $0x238] sm:$0xff]
      %v6427 = vld [vmem:[#allocation4 + $0x240] sm:$0xff]
      %v6428 = vld [vmem:[#allocation4 + $0x248] sm:$0xff]
      %v6429 = vld [vmem:[#allocation4 + $0x250] sm:$0xff]
      %v6430 = vld [vmem:[#allocation4 + $0x258] sm:$0xff]
      %v6431 = vld [vmem:[#allocation4 + $0x260] sm:$0xff]
      %v6432 = vld [vmem:[#allocation4 + $0x268] sm:$0xff]
      %v6433 = vld [vmem:[#allocation4 + $0x270] sm:$0xff]
      %v6434 = vld [vmem:[#allocation4 + $0x278] sm:$0xff]
      %v6435 = vld [vmem:[#allocation4 + $0x280] sm:$0xff]
      %v6436 = vld [vmem:[#allocation4 + $0x288] sm:$0xff]
      %v6437 = vld [vmem:[#allocation4 + $0x290] sm:$0xff]
      %v6438 = vld [vmem:[#allocation4 + $0x298] sm:$0xff]
      %v6439 = vld [vmem:[#allocation4 + $0x2a0] sm:$0xff]
      %v6440 = vld [vmem:[#allocation4 + $0x2a8] sm:$0xff]
      %v6441 = vld [vmem:[#allocation4 + $0x2b0] sm:$0xff]
      %v6442 = vld [vmem:[#allocation4 + $0x2b8] sm:$0xff]
      %v6443 = vld [vmem:[%s9] sm:$0xf]
      %v6444 = vld [vmem:[%s9 + $0x4] sm:$0xf]
      %v6445 = vld [vmem:[%s9 + $0x8] sm:$0xf]
      %v6446 = vld [vmem:[%s9 + $0xc] sm:$0xf]
      %v6447 = vld [vmem:[%s9 + $0x10] sm:$0xf]
      %v6448 = vld [vmem:[%s9 + $0x14] sm:$0xf]
      %v6449 = vld [vmem:[%s9 + $0x18] sm:$0xf]
      %v6450 = vld [vmem:[%s9 + $0x1c] sm:$0xf]
      %v6451 = vld [vmem:[%s9 + $0x20] sm:$0xf]
      %v6452 = vld [vmem:[%s9 + $0x24] sm:$0xf]
      %v6453 = vld [vmem:[%s9 + $0x28] sm:$0xf]
      %v6454 = vld [vmem:[%s9 + $0x2c] sm:$0xf]
      %v6455 = vld [vmem:[%s9 + $0x30] sm:$0xf]
      %v6456 = vld [vmem:[%s9 + $0x34] sm:$0xf]
      %v6457 = vld [vmem:[%s9 + $0x38] sm:$0xf]
      %v6458 = vld [vmem:[%s9 + $0x3c] sm:$0xf]
      %v6459 = vld [vmem:[%s9 + $0x40] sm:$0xf]
      %v6460 = vld [vmem:[%s9 + $0x44] sm:$0xf]
      %v6461 = vld [vmem:[%s9 + $0x48] sm:$0xf]
      %v6462 = vld [vmem:[%s9 + $0x4c] sm:$0xf]
      %v6463 = vld [vmem:[%s9 + $0x50] sm:$0xf]
      %v6464 = vld [vmem:[%s9 + $0x54] sm:$0xf]
      %v6465 = vld [vmem:[%s9 + $0x58] sm:$0xf]
      %v6466 = vld [vmem:[%s9 + $0x5c] sm:$0xf]
      %v6467 = vld [vmem:[%s9 + $0x60] sm:$0xf]
      %v6468 = vld [vmem:[%s9 + $0x64] sm:$0xf]
      %v6469 = vld [vmem:[%s9 + $0x68] sm:$0xf]
      %v6470 = vld [vmem:[%s9 + $0x6c] sm:$0xf]
      %v6471 = vld [vmem:[%s9 + $0x70] sm:$0xf]
      %v6472 = vld [vmem:[%s9 + $0x74] sm:$0xf]
      %v6473 = vld [vmem:[%s9 + $0x78] sm:$0xf]
      %v6474 = vld [vmem:[%s9 + $0x7c] sm:$0xf]
      %v6475 = vld [vmem:[%s9 + $0x80] sm:$0xf]
      %v6476 = vld [vmem:[%s9 + $0x84] sm:$0xf]
      %v6477 = vld [vmem:[%s9 + $0x88] sm:$0xf]
      %v6478 = vld [vmem:[%s9 + $0x8c] sm:$0xf]
      %v6479 = vld [vmem:[%s9 + $0x90] sm:$0xf]
      %v6480 = vld [vmem:[%s9 + $0x94] sm:$0xf]
      %v6481 = vld [vmem:[%s9 + $0x98] sm:$0xf]
      %v6482 = vld [vmem:[%s9 + $0x9c] sm:$0xf]
      %v6483 = vld [vmem:[%s9 + $0xa0] sm:$0xf]
      %v6484 = vld [vmem:[%s9 + $0xa4] sm:$0xf]
      %v6485 = vld [vmem:[%s9 + $0xa8] sm:$0xf]
      %v6486 = vld [vmem:[%s9 + $0xac] sm:$0xf]
      %v6487 = vld [vmem:[%s9 + $0xb0] sm:$0xf]
      %v6488 = vld [vmem:[%s9 + $0xb4] sm:$0xf]
      %v6489 = vld [vmem:[%s9 + $0xb8] sm:$0xf]
      %v6490 = vld [vmem:[%s9 + $0xbc] sm:$0xf]
      %v6491 = vld [vmem:[%s9 + $0xc0] sm:$0xf]
      %v6492 = vld [vmem:[%s9 + $0xc4] sm:$0xf]
      %v6493 = vld [vmem:[%s9 + $0xc8] sm:$0xf]
      %v6494 = vld [vmem:[%s9 + $0xcc] sm:$0xf]
      %v6495 = vld [vmem:[%s9 + $0xd0] sm:$0xf]
      %v6496 = vld [vmem:[%s9 + $0xd4] sm:$0xf]
      %v6497 = vld [vmem:[%s9 + $0xd8] sm:$0xf]
      %v6498 = vld [vmem:[%s9 + $0xdc] sm:$0xf]
      %v6499 = vld [vmem:[%s9 + $0xe0] sm:$0xf]
      %v6500 = vld [vmem:[%s9 + $0xe4] sm:$0xf]
      %v6501 = vld [vmem:[%s9 + $0xe8] sm:$0xf]
      %v6502 = vld [vmem:[%s9 + $0xec] sm:$0xf]
      %v6503 = vld [vmem:[%s9 + $0xf0] sm:$0xf]
      %v6504 = vld [vmem:[%s9 + $0xf4] sm:$0xf]
      %v6505 = vld [vmem:[%s9 + $0xf8] sm:$0xf]
      %v6506 = vld [vmem:[%s9 + $0xfc] sm:$0xf]
      %v6595 = vunpack.c.l.b16 %v6355
      %v6596 = vunpack.c.h.b16 %v6355
      %v6597 = vunpack.c.l.b16 %v6356
      %v6598 = vunpack.c.h.b16 %v6356
      %v6599 = vunpack.c.l.b16 %v6357
      %v6600 = vunpack.c.h.b16 %v6357
      %v6601 = vunpack.c.l.b16 %v6358
      %v6602 = vunpack.c.h.b16 %v6358
      %v6603 = vunpack.c.l.b16 %v6359
      %v6604 = vunpack.c.h.b16 %v6359
      %v6605 = vunpack.c.l.b16 %v6360
      %v6606 = vunpack.c.h.b16 %v6360
      %v6607 = vunpack.c.l.b16 %v6361
      %v6608 = vunpack.c.h.b16 %v6361
      %v6609 = vunpack.c.l.b16 %v6362
      %v6610 = vunpack.c.h.b16 %v6362
      %v6611 = vunpack.c.l.b16 %v6363
      %v6612 = vunpack.c.h.b16 %v6363
      %v6613 = vunpack.c.l.b16 %v6364
      %v6614 = vunpack.c.h.b16 %v6364
      %v6615 = vunpack.c.l.b16 %v6365
      %v6616 = vunpack.c.h.b16 %v6365
      %v6617 = vunpack.c.l.b16 %v6366
      %v6618 = vunpack.c.h.b16 %v6366
      %v6619 = vunpack.c.l.b16 %v6367
      %v6620 = vunpack.c.h.b16 %v6367
      %v6621 = vunpack.c.l.b16 %v6368
      %v6622 = vunpack.c.h.b16 %v6368
      %v6623 = vunpack.c.l.b16 %v6369
      %v6624 = vunpack.c.h.b16 %v6369
      %v6625 = vunpack.c.l.b16 %v6370
      %v6626 = vunpack.c.h.b16 %v6370
      %v6627 = vunpack.c.l.b16 %v6371
      %v6628 = vunpack.c.h.b16 %v6371
      %v6629 = vunpack.c.l.b16 %v6372
      %v6630 = vunpack.c.h.b16 %v6372
      %v6631 = vunpack.c.l.b16 %v6373
      %v6632 = vunpack.c.h.b16 %v6373
      %v6633 = vunpack.c.l.b16 %v6374
      %v6634 = vunpack.c.h.b16 %v6374
      %v6635 = vunpack.c.l.b16 %v6375
      %v6636 = vunpack.c.h.b16 %v6375
      %v6637 = vunpack.c.l.b16 %v6376
      %v6638 = vunpack.c.h.b16 %v6376
      %v6639 = vunpack.c.l.b16 %v6377
      %v6640 = vunpack.c.h.b16 %v6377
      %v6641 = vunpack.c.l.b16 %v6378
      %v6642 = vunpack.c.h.b16 %v6378
      %v6643 = vunpack.c.l.b16 %v6379
      %v6644 = vunpack.c.h.b16 %v6379
      %v6645 = vunpack.c.l.b16 %v6380
      %v6646 = vunpack.c.h.b16 %v6380
      %v6647 = vunpack.c.l.b16 %v6381
      %v6648 = vunpack.c.h.b16 %v6381
      %v6649 = vunpack.c.l.b16 %v6382
      %v6650 = vunpack.c.h.b16 %v6382
      %v6651 = vunpack.c.l.b16 %v6383
      %v6652 = vunpack.c.h.b16 %v6383
      %v6653 = vunpack.c.l.b16 %v6384
      %v6654 = vunpack.c.h.b16 %v6384
      %v6655 = vunpack.c.l.b16 %v6385
      %v6656 = vunpack.c.h.b16 %v6385
      %v6657 = vunpack.c.l.b16 %v6386
      %v6658 = vunpack.c.h.b16 %v6386
      %v6659 = vunpack.c.l.b16 %v6387
      %v6660 = vunpack.c.h.b16 %v6387
      %v6661 = vunpack.c.l.b16 %v6388
      %v6662 = vunpack.c.h.b16 %v6388
      %v6663 = vunpack.c.l.b16 %v6389
      %v6664 = vunpack.c.h.b16 %v6389
      %v6665 = vunpack.c.l.b16 %v6390
      %v6666 = vunpack.c.h.b16 %v6390
      %v6667 = vunpack.c.l.b16 %v6391
      %v6668 = vunpack.c.h.b16 %v6391
      %v6669 = vunpack.c.l.b16 %v6392
      %v6670 = vunpack.c.h.b16 %v6392
      %v6671 = vunpack.c.l.b16 %v6393
      %v6672 = vunpack.c.h.b16 %v6393
      %v6673 = vunpack.c.l.b16 %v6394
      %v6674 = vunpack.c.h.b16 %v6394
      %v6675 = vunpack.c.l.b16 %v6395
      %v6676 = vunpack.c.h.b16 %v6395
      %v6677 = vunpack.c.l.b16 %v6396
      %v6678 = vunpack.c.h.b16 %v6396
      %v6679 = vunpack.c.l.b16 %v6397
      %v6680 = vunpack.c.h.b16 %v6397
      %v6681 = vunpack.c.l.b16 %v6398
      %v6682 = vunpack.c.h.b16 %v6398
      %v6683 = vunpack.c.l.b16 %v6399
      %v6684 = vunpack.c.h.b16 %v6399
      %v6685 = vunpack.c.l.b16 %v6400
      %v6686 = vunpack.c.h.b16 %v6400
      %v6687 = vunpack.c.l.b16 %v6401
      %v6688 = vunpack.c.h.b16 %v6401
      %v6689 = vunpack.c.l.b16 %v6402
      %v6690 = vunpack.c.h.b16 %v6402
      %v6691 = vunpack.c.l.b16 %v6403
      %v6692 = vunpack.c.h.b16 %v6403
      %v6693 = vunpack.c.l.b16 %v6404
      %v6694 = vunpack.c.h.b16 %v6404
      %v6695 = vunpack.c.l.b16 %v6405
      %v6696 = vunpack.c.h.b16 %v6405
      %v6697 = vunpack.c.l.b16 %v6406
      %v6698 = vunpack.c.h.b16 %v6406
      %v6699 = vunpack.c.l.b16 %v6407
      %v6700 = vunpack.c.h.b16 %v6407
      %v6701 = vunpack.c.l.b16 %v6408
      %v6702 = vunpack.c.h.b16 %v6408
      %v6703 = vunpack.c.l.b16 %v6409
      %v6704 = vunpack.c.h.b16 %v6409
      %v6705 = vunpack.c.l.b16 %v6410
      %v6706 = vunpack.c.h.b16 %v6410
      %v6707 = vunpack.c.l.b16 %v6411
      %v6708 = vunpack.c.h.b16 %v6411
      %v6709 = vunpack.c.l.b16 %v6412
      %v6710 = vunpack.c.h.b16 %v6412
      %v6711 = vunpack.c.l.b16 %v6413
      %v6712 = vunpack.c.h.b16 %v6413
      %v6713 = vunpack.c.l.b16 %v6414
      %v6714 = vunpack.c.h.b16 %v6414
      %v6715 = vunpack.c.l.b16 %v6415
      %v6716 = vunpack.c.h.b16 %v6415
      %v6717 = vunpack.c.l.b16 %v6416
      %v6718 = vunpack.c.h.b16 %v6416
      %v6719 = vunpack.c.l.b16 %v6417
      %v6720 = vunpack.c.h.b16 %v6417
      %v6721 = vunpack.c.l.b16 %v6418
      %v6722 = vunpack.c.h.b16 %v6418
      %v6723 = vunpack.c.l.b16 %v6419
      %v6724 = vunpack.c.h.b16 %v6419
      %v6725 = vunpack.c.l.b16 %v6420
      %v6726 = vunpack.c.h.b16 %v6420
      %v6727 = vunpack.c.l.b16 %v6421
      %v6728 = vunpack.c.h.b16 %v6421
      %v6729 = vunpack.c.l.b16 %v6422
      %v6730 = vunpack.c.h.b16 %v6422
      %v6731 = vunpack.c.l.b16 %v6423
      %v6732 = vunpack.c.h.b16 %v6423
      %v6733 = vunpack.c.l.b16 %v6424
      %v6734 = vunpack.c.h.b16 %v6424
      %v6735 = vunpack.c.l.b16 %v6425
      %v6736 = vunpack.c.h.b16 %v6425
      %v6737 = vunpack.c.l.b16 %v6426
      %v6738 = vunpack.c.h.b16 %v6426
      %v6739 = vunpack.c.l.b16 %v6427
      %v6740 = vunpack.c.h.b16 %v6427
      %v6741 = vunpack.c.l.b16 %v6428
      %v6742 = vunpack.c.h.b16 %v6428
      %v6743 = vunpack.c.l.b16 %v6429
      %v6744 = vunpack.c.h.b16 %v6429
      %v6745 = vunpack.c.l.b16 %v6430
      %v6746 = vunpack.c.h.b16 %v6430
      %v6747 = vunpack.c.l.b16 %v6431
      %v6748 = vunpack.c.h.b16 %v6431
      %v6749 = vunpack.c.l.b16 %v6432
      %v6750 = vunpack.c.h.b16 %v6432
      %v6751 = vunpack.c.l.b16 %v6433
      %v6752 = vunpack.c.h.b16 %v6433
      %v6753 = vunpack.c.l.b16 %v6434
      %v6754 = vunpack.c.h.b16 %v6434
      %v6755 = vunpack.c.l.b16 %v6435
      %v6756 = vunpack.c.h.b16 %v6435
      %v6757 = vunpack.c.l.b16 %v6436
      %v6758 = vunpack.c.h.b16 %v6436
      %v6759 = vunpack.c.l.b16 %v6437
      %v6760 = vunpack.c.h.b16 %v6437
      %v6761 = vunpack.c.l.b16 %v6438
      %v6762 = vunpack.c.h.b16 %v6438
      %v6763 = vunpack.c.l.b16 %v6439
      %v6764 = vunpack.c.h.b16 %v6439
      %v6765 = vunpack.c.l.b16 %v6440
      %v6766 = vunpack.c.h.b16 %v6440
      %v6767 = vunpack.c.l.b16 %v6441
      %v6768 = vunpack.c.h.b16 %v6441
      %v6769 = vunpack.c.l.b16 %v6442
      %v6770 = vunpack.c.h.b16 %v6442
      %v6771 = vpack.c.b16 %v6599, %v6595
      %v6772 = vpack.c.b16 %v6600, %v6596
      %v6773 = vpack.c.b16 %v6601, %v6597
      %v6774 = vpack.c.b16 %v6602, %v6598
      %v6775 = vpack.c.b16 %v6607, %v6603
      %v6776 = vpack.c.b16 %v6608, %v6604
      %v6777 = vpack.c.b16 %v6609, %v6605
      %v6778 = vpack.c.b16 %v6610, %v6606
      %v6779 = vpack.c.b16 %v6615, %v6611
      %v6780 = vpack.c.b16 %v6616, %v6612
      %v6781 = vpack.c.b16 %v6617, %v6613
      %v6782 = vpack.c.b16 %v6618, %v6614
      %v6783 = vpack.c.b16 %v6623, %v6619
      %v6784 = vpack.c.b16 %v6624, %v6620
      %v6785 = vpack.c.b16 %v6625, %v6621
      %v6786 = vpack.c.b16 %v6626, %v6622
      %v6787 = vpack.c.b16 %v6631, %v6627
      %v6788 = vpack.c.b16 %v6632, %v6628
      %v6789 = vpack.c.b16 %v6633, %v6629
      %v6790 = vpack.c.b16 %v6634, %v6630
      %v6791 = vpack.c.b16 %v6639, %v6635
      %v6792 = vpack.c.b16 %v6640, %v6636
      %v6793 = vpack.c.b16 %v6641, %v6637
      %v6794 = vpack.c.b16 %v6642, %v6638
      %v6795 = vpack.c.b16 %v6647, %v6643
      %v6796 = vpack.c.b16 %v6648, %v6644
      %v6797 = vpack.c.b16 %v6649, %v6645
      %v6798 = vpack.c.b16 %v6650, %v6646
      %v6799 = vpack.c.b16 %v6655, %v6651
      %v6800 = vpack.c.b16 %v6656, %v6652
      %v6801 = vpack.c.b16 %v6657, %v6653
      %v6802 = vpack.c.b16 %v6658, %v6654
      %v6803 = vpack.c.b16 %v6663, %v6659
      %v6804 = vpack.c.b16 %v6664, %v6660
      %v6805 = vpack.c.b16 %v6665, %v6661
      %v6806 = vpack.c.b16 %v6666, %v6662
      %v6807 = vpack.c.b16 %v6671, %v6667
      %v6808 = vpack.c.b16 %v6672, %v6668
      %v6809 = vpack.c.b16 %v6673, %v6669
      %v6810 = vpack.c.b16 %v6674, %v6670
      %v6811 = vpack.c.b16 %v6679, %v6675
      %v6812 = vpack.c.b16 %v6680, %v6676
      %v6813 = vpack.c.b16 %v6681, %v6677
      %v6814 = vpack.c.b16 %v6682, %v6678
      %v6815 = vpack.c.b16 %v6687, %v6683
      %v6816 = vpack.c.b16 %v6688, %v6684
      %v6817 = vpack.c.b16 %v6689, %v6685
      %v6818 = vpack.c.b16 %v6690, %v6686
      %v6819 = vpack.c.b16 %v6695, %v6691
      %v6820 = vpack.c.b16 %v6696, %v6692
      %v6821 = vpack.c.b16 %v6697, %v6693
      %v6822 = vpack.c.b16 %v6698, %v6694
      %v6823 = vpack.c.b16 %v6703, %v6699
      %v6824 = vpack.c.b16 %v6704, %v6700
      %v6825 = vpack.c.b16 %v6705, %v6701
      %v6826 = vpack.c.b16 %v6706, %v6702
      %v6827 = vpack.c.b16 %v6711, %v6707
      %v6828 = vpack.c.b16 %v6712, %v6708
      %v6829 = vpack.c.b16 %v6713, %v6709
      %v6830 = vpack.c.b16 %v6714, %v6710
      %v6831 = vpack.c.b16 %v6719, %v6715
      %v6832 = vpack.c.b16 %v6720, %v6716
      %v6833 = vpack.c.b16 %v6721, %v6717
      %v6834 = vpack.c.b16 %v6722, %v6718
      %v6835 = vpack.c.b16 %v6727, %v6723
      %v6836 = vpack.c.b16 %v6728, %v6724
      %v6837 = vpack.c.b16 %v6729, %v6725
      %v6838 = vpack.c.b16 %v6730, %v6726
      %v6839 = vpack.c.b16 %v6735, %v6731
      %v6840 = vpack.c.b16 %v6736, %v6732
      %v6841 = vpack.c.b16 %v6737, %v6733
      %v6842 = vpack.c.b16 %v6738, %v6734
      %v6843 = vpack.c.b16 %v6743, %v6739
      %v6844 = vpack.c.b16 %v6744, %v6740
      %v6845 = vpack.c.b16 %v6745, %v6741
      %v6846 = vpack.c.b16 %v6746, %v6742
      %v6847 = vpack.c.b16 %v6751, %v6747
      %v6848 = vpack.c.b16 %v6752, %v6748
      %v6849 = vpack.c.b16 %v6753, %v6749
      %v6850 = vpack.c.b16 %v6754, %v6750
      %v6851 = vpack.c.b16 %v6759, %v6755
      %v6852 = vpack.c.b16 %v6760, %v6756
      %v6853 = vpack.c.b16 %v6761, %v6757
      %v6854 = vpack.c.b16 %v6762, %v6758
      %v6855 = vpack.c.b16 %v6767, %v6763
      %v6856 = vpack.c.b16 %v6768, %v6764
      %v6857 = vpack.c.b16 %v6769, %v6765
      %v6858 = vpack.c.b16 %v6770, %v6766
      %v7011 = vunpack.c.l.b16 %v6443
      %v7012 = vunpack.c.l.b16 %v6444
      %v7013 = vunpack.c.l.b16 %v6445
      %v7014 = vunpack.c.l.b16 %v6446
      %v7015 = vunpack.c.l.b16 %v6447
      %v7016 = vunpack.c.l.b16 %v6448
      %v7017 = vunpack.c.l.b16 %v6449
      %v7018 = vunpack.c.l.b16 %v6450
      %v7019 = vunpack.c.l.b16 %v6451
      %v7020 = vunpack.c.l.b16 %v6452
      %v7021 = vunpack.c.l.b16 %v6453
      %v7022 = vunpack.c.l.b16 %v6454
      %v7023 = vunpack.c.l.b16 %v6455
      %v7024 = vunpack.c.l.b16 %v6456
      %v7025 = vunpack.c.l.b16 %v6457
      %v7026 = vunpack.c.l.b16 %v6458
      %v7027 = vunpack.c.l.b16 %v6459
      %v7028 = vunpack.c.l.b16 %v6460
      %v7029 = vunpack.c.l.b16 %v6461
      %v7030 = vunpack.c.l.b16 %v6462
      %v7031 = vunpack.c.l.b16 %v6463
      %v7032 = vunpack.c.l.b16 %v6464
      %v7033 = vunpack.c.l.b16 %v6465
      %v7034 = vunpack.c.l.b16 %v6466
      %v7035 = vunpack.c.l.b16 %v6467
      %v7036 = vunpack.c.l.b16 %v6468
      %v7037 = vunpack.c.l.b16 %v6469
      %v7038 = vunpack.c.l.b16 %v6470
      %v7039 = vunpack.c.l.b16 %v6471
      %v7040 = vunpack.c.l.b16 %v6472
      %v7041 = vunpack.c.l.b16 %v6473
      %v7042 = vunpack.c.l.b16 %v6474
      %v7043 = vunpack.c.l.b16 %v6475
      %v7044 = vunpack.c.l.b16 %v6476
      %v7045 = vunpack.c.l.b16 %v6477
      %v7046 = vunpack.c.l.b16 %v6478
      %v7047 = vunpack.c.l.b16 %v6479
      %v7048 = vunpack.c.l.b16 %v6480
      %v7049 = vunpack.c.l.b16 %v6481
      %v7050 = vunpack.c.l.b16 %v6482
      %v7051 = vunpack.c.l.b16 %v6483
      %v7052 = vunpack.c.l.b16 %v6484
      %v7053 = vunpack.c.l.b16 %v6485
      %v7054 = vunpack.c.l.b16 %v6486
      %v7055 = vunpack.c.l.b16 %v6487
      %v7056 = vunpack.c.l.b16 %v6488
      %v7057 = vunpack.c.l.b16 %v6489
      %v7058 = vunpack.c.l.b16 %v6490
      %v7059 = vunpack.c.l.b16 %v6491
      %v7060 = vunpack.c.l.b16 %v6492
      %v7061 = vunpack.c.l.b16 %v6493
      %v7062 = vunpack.c.l.b16 %v6494
      %v7063 = vunpack.c.l.b16 %v6495
      %v7064 = vunpack.c.l.b16 %v6496
      %v7065 = vunpack.c.l.b16 %v6497
      %v7066 = vunpack.c.l.b16 %v6498
      %v7067 = vunpack.c.l.b16 %v6499
      %v7068 = vunpack.c.l.b16 %v6500
      %v7069 = vunpack.c.l.b16 %v6501
      %v7070 = vunpack.c.l.b16 %v6502
      %v7071 = vunpack.c.l.b16 %v6503
      %v7072 = vunpack.c.l.b16 %v6504
      %v7073 = vunpack.c.l.b16 %v6505
      %v7074 = vunpack.c.l.b16 %v6506
      %v7075 = vpack.c.b16 %v7012, %v7011
      %v7076 = vpack.c.b16 %v7014, %v7013
      %v7077 = vpack.c.b16 %v7016, %v7015
      %v7078 = vpack.c.b16 %v7018, %v7017
      %v7079 = vpack.c.b16 %v7020, %v7019
      %v7080 = vpack.c.b16 %v7022, %v7021
      %v7081 = vpack.c.b16 %v7024, %v7023
      %v7082 = vpack.c.b16 %v7026, %v7025
      %v7083 = vpack.c.b16 %v7028, %v7027
      %v7084 = vpack.c.b16 %v7030, %v7029
      %v7085 = vpack.c.b16 %v7032, %v7031
      %v7086 = vpack.c.b16 %v7034, %v7033
      %v7087 = vpack.c.b16 %v7036, %v7035
      %v7088 = vpack.c.b16 %v7038, %v7037
      %v7089 = vpack.c.b16 %v7040, %v7039
      %v7090 = vpack.c.b16 %v7042, %v7041
      %v7091 = vpack.c.b16 %v7044, %v7043
      %v7092 = vpack.c.b16 %v7046, %v7045
      %v7093 = vpack.c.b16 %v7048, %v7047
      %v7094 = vpack.c.b16 %v7050, %v7049
      %v7095 = vpack.c.b16 %v7052, %v7051
      %v7096 = vpack.c.b16 %v7054, %v7053
      %v7097 = vpack.c.b16 %v7056, %v7055
      %v7098 = vpack.c.b16 %v7058, %v7057
      %v7099 = vpack.c.b16 %v7060, %v7059
      %v7100 = vpack.c.b16 %v7062, %v7061
      %v7101 = vpack.c.b16 %v7064, %v7063
      %v7102 = vpack.c.b16 %v7066, %v7065
      %v7103 = vpack.c.b16 %v7068, %v7067
      %v7104 = vpack.c.b16 %v7070, %v7069
      %v7105 = vpack.c.b16 %v7072, %v7071
      %v7106 = vpack.c.b16 %v7074, %v7073
      %7139 = vmatprep.subr.bf16.mxu0 0
      %7140 = vmatpush1.bf16.msra.mxu0 %v7082
      %7141 = vmatprep.subr.bf16.mxu0 0
      %7142 = vmatpush1.bf16.msra.mxu0 %v7081
      %7143 = vmatprep.subr.bf16.mxu0 0
      %7144 = vmatpush1.bf16.msra.mxu0 %v7080
      %7145 = vmatprep.subr.bf16.mxu0 0
      %7146 = vmatpush1.bf16.msra.mxu0 %v7079
      %7147 = vmatprep.subr.bf16.mxu0 0
      %7148 = vmatpush1.bf16.msra.mxu0 %v7078
      %7149 = vmatprep.subr.bf16.mxu0 0
      %7150 = vmatpush1.bf16.msra.mxu0 %v7077
      %7151 = vmatprep.subr.bf16.mxu0 0
      %7152 = vmatpush1.bf16.msra.mxu0 %v7076
      %7153 = vmatprep.subr.bf16.mxu0 0
      %7154 = vmatpush1.bf16.msra.mxu0 %v7075
      %7155 = vmatprep.subr.bf16.mxu0 0
      %7156 = vmatpush2.bf16.msra.mxu0 %v7090
      %7157 = vmatprep.subr.bf16.mxu0 0
      %7158 = vmatpush2.bf16.msra.mxu0 %v7089
      %7159 = vmatprep.subr.bf16.mxu0 0
      %7160 = vmatpush2.bf16.msra.mxu0 %v7088
      %7161 = vmatprep.subr.bf16.mxu0 0
      %7162 = vmatpush2.bf16.msra.mxu0 %v7087
      %7163 = vmatprep.subr.bf16.mxu0 0
      %7164 = vmatpush2.bf16.msra.mxu0 %v7086
      %7165 = vmatprep.subr.bf16.mxu0 0
      %7166 = vmatpush2.bf16.msra.mxu0 %v7085
      %7167 = vmatprep.subr.bf16.mxu0 0
      %7168 = vmatpush2.bf16.msra.mxu0 %v7084
      %7169 = vmatprep.subr.bf16.mxu0 0
      %7170 = vmatpush2.bf16.msra.mxu0 %v7083
      %7171 = vmatprep.mubr.bf16.mxu0 %v6772
      %7172 = vmatmul.mubr.bf16.gmra.mxu0 %v6771
      %v7173 = vpop.f32.mrf.mxu0
      %v7174 = vadd.f32 0.0, %v7173
      %v7175 = vpop.f32.mrf.mxu0
      %v7176 = vpop.f32.mrf.mxu0
      %v7177 = vadd.f32 0.0, %v7176
      %v7178 = vpop.f32.mrf.mxu0
      %7179 = vmatprep.mubr.bf16.mxu0 %v6776
      %7180 = vmatmul.mubr.bf16.gmra.mxu0 %v6775
      %v7181 = vpop.f32.mrf.mxu0
      %v7182 = vadd.f32 0.0, %v7181
      %v7183 = vpop.f32.mrf.mxu0
      %v7184 = vpop.f32.mrf.mxu0
      %v7185 = vadd.f32 0.0, %v7184
      %v7186 = vpop.f32.mrf.mxu0
      %7187 = vmatprep.mubr.bf16.mxu0 %v6780
      %7188 = vmatmul.mubr.bf16.gmra.mxu0 %v6779
      %v7189 = vpop.f32.mrf.mxu0
      %v7190 = vadd.f32 0.0, %v7189
      %v7191 = vpop.f32.mrf.mxu0
      %v7192 = vpop.f32.mrf.mxu0
      %v7193 = vadd.f32 0.0, %v7192
      %v7194 = vpop.f32.mrf.mxu0
      %7195 = vmatprep.mubr.bf16.mxu0 %v6784
      %7196 = vmatmul.mubr.bf16.gmra.mxu0 %v6783
      %v7197 = vpop.f32.mrf.mxu0
      %v7198 = vadd.f32 0.0, %v7197
      %v7199 = vpop.f32.mrf.mxu0
      %v7200 = vpop.f32.mrf.mxu0
      %v7201 = vadd.f32 0.0, %v7200
      %v7202 = vpop.f32.mrf.mxu0
      %7203 = vmatprep.mubr.bf16.mxu0 %v6788
      %7204 = vmatmul.mubr.bf16.gmra.mxu0 %v6787
      %v7205 = vpop.f32.mrf.mxu0
      %v7206 = vadd.f32 0.0, %v7205
      %v7207 = vpop.f32.mrf.mxu0
      %v7208 = vpop.f32.mrf.mxu0
      %v7209 = vadd.f32 0.0, %v7208
      %v7210 = vpop.f32.mrf.mxu0
      %7211 = vmatprep.mubr.bf16.mxu0 %v6792
      %7212 = vmatmul.mubr.bf16.gmra.mxu0 %v6791
      %v7213 = vpop.f32.mrf.mxu0
      %v7214 = vadd.f32 0.0, %v7213
      %v7215 = vpop.f32.mrf.mxu0
      %v7216 = vpop.f32.mrf.mxu0
      %v7217 = vadd.f32 0.0, %v7216
      %v7218 = vpop.f32.mrf.mxu0
      %7219 = vmatprep.mubr.bf16.mxu0 %v6796
      %7220 = vmatmul.mubr.bf16.gmra.mxu0 %v6795
      %v7221 = vpop.f32.mrf.mxu0
      %v7222 = vadd.f32 0.0, %v7221
      %v7223 = vpop.f32.mrf.mxu0
      %v7224 = vpop.f32.mrf.mxu0
      %v7225 = vadd.f32 0.0, %v7224
      %v7226 = vpop.f32.mrf.mxu0
      %7227 = vmatprep.mubr.bf16.mxu0 %v6800
      %7228 = vmatmul.mubr.bf16.gmra.mxu0 %v6799
      %v7229 = vpop.f32.mrf.mxu0
      %v7230 = vadd.f32 0.0, %v7229
      %v7231 = vpop.f32.mrf.mxu0
      %v7232 = vpop.f32.mrf.mxu0
      %v7233 = vadd.f32 0.0, %v7232
      %v7234 = vpop.f32.mrf.mxu0
      %7235 = vmatprep.mubr.bf16.mxu0 %v6804
      %7236 = vmatmul.mubr.bf16.gmra.mxu0 %v6803
      %v7237 = vpop.f32.mrf.mxu0
      %v7238 = vadd.f32 0.0, %v7237
      %v7239 = vpop.f32.mrf.mxu0
      %v7240 = vpop.f32.mrf.mxu0
      %v7241 = vadd.f32 0.0, %v7240
      %v7242 = vpop.f32.mrf.mxu0
      %7243 = vmatprep.mubr.bf16.mxu0 %v6808
      %7244 = vmatmul.mubr.bf16.gmra.mxu0 %v6807
      %v7245 = vpop.f32.mrf.mxu0
      %v7246 = vadd.f32 0.0, %v7245
      %v7247 = vpop.f32.mrf.mxu0
      %v7248 = vpop.f32.mrf.mxu0
      %v7249 = vadd.f32 0.0, %v7248
      %v7250 = vpop.f32.mrf.mxu0
      %7251 = vmatprep.mubr.bf16.mxu0 %v6812
      %7252 = vmatmul.mubr.bf16.gmra.mxu0 %v6811
      %v7253 = vpop.f32.mrf.mxu0
      %v7254 = vadd.f32 0.0, %v7253
      %v7255 = vpop.f32.mrf.mxu0
      %v7256 = vpop.f32.mrf.mxu0
      %v7257 = vadd.f32 0.0, %v7256
      %v7258 = vpop.f32.mrf.mxu0
      %7259 = vmatprep.mubr.bf16.mxu0 %v6816
      %7260 = vmatmul.mubr.bf16.gmra.mxu0 %v6815
      %v7261 = vpop.f32.mrf.mxu0
      %v7262 = vadd.f32 0.0, %v7261
      %v7263 = vpop.f32.mrf.mxu0
      %v7264 = vpop.f32.mrf.mxu0
      %v7265 = vadd.f32 0.0, %v7264
      %v7266 = vpop.f32.mrf.mxu0
      %7267 = vmatprep.mubr.bf16.mxu0 %v6820
      %7268 = vmatmul.mubr.bf16.gmra.mxu0 %v6819
      %v7269 = vpop.f32.mrf.mxu0
      %v7270 = vadd.f32 0.0, %v7269
      %v7271 = vpop.f32.mrf.mxu0
      %v7272 = vpop.f32.mrf.mxu0
      %v7273 = vadd.f32 0.0, %v7272
      %v7274 = vpop.f32.mrf.mxu0
      %7275 = vmatprep.mubr.bf16.mxu0 %v6824
      %7276 = vmatmul.mubr.bf16.gmra.mxu0 %v6823
      %v7277 = vpop.f32.mrf.mxu0
      %v7278 = vadd.f32 0.0, %v7277
      %v7279 = vpop.f32.mrf.mxu0
      %v7280 = vpop.f32.mrf.mxu0
      %v7281 = vadd.f32 0.0, %v7280
      %v7282 = vpop.f32.mrf.mxu0
      %7283 = vmatprep.mubr.bf16.mxu0 %v6828
      %7284 = vmatmul.mubr.bf16.gmra.mxu0 %v6827
      %v7285 = vpop.f32.mrf.mxu0
      %v7286 = vadd.f32 0.0, %v7285
      %v7287 = vpop.f32.mrf.mxu0
      %v7288 = vpop.f32.mrf.mxu0
      %v7289 = vadd.f32 0.0, %v7288
      %v7290 = vpop.f32.mrf.mxu0
      %7291 = vmatprep.mubr.bf16.mxu0 %v6832
      %7292 = vmatmul.mubr.bf16.gmra.mxu0 %v6831
      %v7293 = vpop.f32.mrf.mxu0
      %v7294 = vadd.f32 0.0, %v7293
      %v7295 = vpop.f32.mrf.mxu0
      %v7296 = vpop.f32.mrf.mxu0
      %v7297 = vadd.f32 0.0, %v7296
      %v7298 = vpop.f32.mrf.mxu0
      %7299 = vmatprep.mubr.bf16.mxu0 %v6836
      %7300 = vmatmul.mubr.bf16.gmra.mxu0 %v6835
      %v7301 = vpop.f32.mrf.mxu0
      %v7302 = vadd.f32 0.0, %v7301
      %v7303 = vpop.f32.mrf.mxu0
      %v7304 = vpop.f32.mrf.mxu0
      %v7305 = vadd.f32 0.0, %v7304
      %v7306 = vpop.f32.mrf.mxu0
      %7307 = vmatprep.mubr.bf16.mxu0 %v6840
      %7308 = vmatmul.mubr.bf16.gmra.mxu0 %v6839
      %v7309 = vpop.f32.mrf.mxu0
      %v7310 = vadd.f32 0.0, %v7309
      %v7311 = vpop.f32.mrf.mxu0
      %v7312 = vpop.f32.mrf.mxu0
      %v7313 = vadd.f32 0.0, %v7312
      %v7314 = vpop.f32.mrf.mxu0
      %7315 = vmatprep.mubr.bf16.mxu0 %v6844
      %7316 = vmatmul.mubr.bf16.gmra.mxu0 %v6843
      %v7317 = vpop.f32.mrf.mxu0
      %v7318 = vadd.f32 0.0, %v7317
      %v7319 = vpop.f32.mrf.mxu0
      %v7320 = vpop.f32.mrf.mxu0
      %v7321 = vadd.f32 0.0, %v7320
      %v7322 = vpop.f32.mrf.mxu0
      %7323 = vmatprep.mubr.bf16.mxu0 %v6848
      %7324 = vmatmul.mubr.bf16.gmra.mxu0 %v6847
      %v7325 = vpop.f32.mrf.mxu0
      %v7326 = vadd.f32 0.0, %v7325
      %v7327 = vpop.f32.mrf.mxu0
      %v7328 = vpop.f32.mrf.mxu0
      %v7329 = vadd.f32 0.0, %v7328
      %v7330 = vpop.f32.mrf.mxu0
      %7331 = vmatprep.mubr.bf16.mxu0 %v6852
      %7332 = vmatmul.mubr.bf16.gmra.mxu0 %v6851
      %v7333 = vpop.f32.mrf.mxu0
      %v7334 = vadd.f32 0.0, %v7333
      %v7335 = vpop.f32.mrf.mxu0
      %v7336 = vpop.f32.mrf.mxu0
      %v7337 = vadd.f32 0.0, %v7336
      %v7338 = vpop.f32.mrf.mxu0
      %7339 = vmatprep.mubr.bf16.mxu0 %v6856
      %7340 = vmatmul.mubr.bf16.gmra.mxu0 %v6855
      %v7341 = vpop.f32.mrf.mxu0
      %v7342 = vadd.f32 0.0, %v7341
      %v7343 = vpop.f32.mrf.mxu0
      %v7344 = vpop.f32.mrf.mxu0
      %v7345 = vadd.f32 0.0, %v7344
      %v7346 = vpop.f32.mrf.mxu0
      %7347 = vdwg.mxu0
      %7348 = vmatprep.subr.bf16.mxu0 0
      %7349 = vmatpush1.bf16.msra.mxu0 %v7098
      %7350 = vmatprep.subr.bf16.mxu0 0
      %7351 = vmatpush1.bf16.msra.mxu0 %v7097
      %7352 = vmatprep.subr.bf16.mxu0 0
      %7353 = vmatpush1.bf16.msra.mxu0 %v7096
      %7354 = vmatprep.subr.bf16.mxu0 0
      %7355 = vmatpush1.bf16.msra.mxu0 %v7095
      %7356 = vmatprep.subr.bf16.mxu0 0
      %7357 = vmatpush1.bf16.msra.mxu0 %v7094
      %7358 = vmatprep.subr.bf16.mxu0 0
      %7359 = vmatpush1.bf16.msra.mxu0 %v7093
      %7360 = vmatprep.subr.bf16.mxu0 0
      %7361 = vmatpush1.bf16.msra.mxu0 %v7092
      %7362 = vmatprep.subr.bf16.mxu0 0
      %7363 = vmatpush1.bf16.msra.mxu0 %v7091
      %7364 = vmatprep.subr.bf16.mxu0 0
      %7365 = vmatpush2.bf16.msra.mxu0 %v7106
      %7366 = vmatprep.subr.bf16.mxu0 0
      %7367 = vmatpush2.bf16.msra.mxu0 %v7105
      %7368 = vmatprep.subr.bf16.mxu0 0
      %7369 = vmatpush2.bf16.msra.mxu0 %v7104
      %7370 = vmatprep.subr.bf16.mxu0 0
      %7371 = vmatpush2.bf16.msra.mxu0 %v7103
      %7372 = vmatprep.subr.bf16.mxu0 0
      %7373 = vmatpush2.bf16.msra.mxu0 %v7102
      %7374 = vmatprep.subr.bf16.mxu0 0
      %7375 = vmatpush2.bf16.msra.mxu0 %v7101
      %7376 = vmatprep.subr.bf16.mxu0 0
      %7377 = vmatpush2.bf16.msra.mxu0 %v7100
      %7378 = vmatprep.subr.bf16.mxu0 0
      %7379 = vmatpush2.bf16.msra.mxu0 %v7099
      %7380 = vmatprep.mubr.bf16.mxu0 %v6774
      %7381 = vmatmul.mubr.bf16.gmra.mxu0 %v6773
      %v7382 = vpop.f32.mrf.mxu0
      %v7383 = vadd.f32 %v7174, %v7382
      %v7384 = vpop.f32.mrf.mxu0
      %v7385 = vpop.f32.mrf.mxu0
      %v7386 = vadd.f32 %v7177, %v7385
      %v7387 = vpop.f32.mrf.mxu0
      %7388 = vmatprep.mubr.bf16.mxu0 %v6778
      %7389 = vmatmul.mubr.bf16.gmra.mxu0 %v6777
      %v7390 = vpop.f32.mrf.mxu0
      %v7391 = vadd.f32 %v7182, %v7390
      %v7392 = vpop.f32.mrf.mxu0
      %v7393 = vpop.f32.mrf.mxu0
      %v7394 = vadd.f32 %v7185, %v7393
      %v7395 = vpop.f32.mrf.mxu0
      %7396 = vmatprep.mubr.bf16.mxu0 %v6782
      %7397 = vmatmul.mubr.bf16.gmra.mxu0 %v6781
      %v7398 = vpop.f32.mrf.mxu0
      %v7399 = vadd.f32 %v7190, %v7398
      %v7400 = vpop.f32.mrf.mxu0
      %v7401 = vpop.f32.mrf.mxu0
      %v7402 = vadd.f32 %v7193, %v7401
      %v7403 = vpop.f32.mrf.mxu0
      %7404 = vmatprep.mubr.bf16.mxu0 %v6786
      %7405 = vmatmul.mubr.bf16.gmra.mxu0 %v6785
      %v7406 = vpop.f32.mrf.mxu0
      %v7407 = vadd.f32 %v7198, %v7406
      %v7408 = vpop.f32.mrf.mxu0
      %v7409 = vpop.f32.mrf.mxu0
      %v7410 = vadd.f32 %v7201, %v7409
      %v7411 = vpop.f32.mrf.mxu0
      %7412 = vmatprep.mubr.bf16.mxu0 %v6790
      %7413 = vmatmul.mubr.bf16.gmra.mxu0 %v6789
      %v7414 = vpop.f32.mrf.mxu0
      %v7415 = vadd.f32 %v7206, %v7414
      %v7416 = vpop.f32.mrf.mxu0
      %v7417 = vpop.f32.mrf.mxu0
      %v7418 = vadd.f32 %v7209, %v7417
      %v7419 = vpop.f32.mrf.mxu0
      %7420 = vmatprep.mubr.bf16.mxu0 %v6794
      %7421 = vmatmul.mubr.bf16.gmra.mxu0 %v6793
      %v7422 = vpop.f32.mrf.mxu0
      %v7423 = vadd.f32 %v7214, %v7422
      %v7424 = vpop.f32.mrf.mxu0
      %v7425 = vpop.f32.mrf.mxu0
      %v7426 = vadd.f32 %v7217, %v7425
      %v7427 = vpop.f32.mrf.mxu0
      %7428 = vmatprep.mubr.bf16.mxu0 %v6798
      %7429 = vmatmul.mubr.bf16.gmra.mxu0 %v6797
      %v7430 = vpop.f32.mrf.mxu0
      %v7431 = vadd.f32 %v7222, %v7430
      %v7432 = vpop.f32.mrf.mxu0
      %v7433 = vpop.f32.mrf.mxu0
      %v7434 = vadd.f32 %v7225, %v7433
      %v7435 = vpop.f32.mrf.mxu0
      %7436 = vmatprep.mubr.bf16.mxu0 %v6802
      %7437 = vmatmul.mubr.bf16.gmra.mxu0 %v6801
      %v7438 = vpop.f32.mrf.mxu0
      %v7439 = vadd.f32 %v7230, %v7438
      %v7440 = vpop.f32.mrf.mxu0
      %v7441 = vpop.f32.mrf.mxu0
      %v7442 = vadd.f32 %v7233, %v7441
      %v7443 = vpop.f32.mrf.mxu0
      %7444 = vmatprep.mubr.bf16.mxu0 %v6806
      %7445 = vmatmul.mubr.bf16.gmra.mxu0 %v6805
      %v7446 = vpop.f32.mrf.mxu0
      %v7447 = vadd.f32 %v7238, %v7446
      %v7448 = vpop.f32.mrf.mxu0
      %v7449 = vpop.f32.mrf.mxu0
      %v7450 = vadd.f32 %v7241, %v7449
      %v7451 = vpop.f32.mrf.mxu0
      %7452 = vmatprep.mubr.bf16.mxu0 %v6810
      %7453 = vmatmul.mubr.bf16.gmra.mxu0 %v6809
      %v7454 = vpop.f32.mrf.mxu0
      %v7455 = vadd.f32 %v7246, %v7454
      %v7456 = vpop.f32.mrf.mxu0
      %v7457 = vpop.f32.mrf.mxu0
      %v7458 = vadd.f32 %v7249, %v7457
      %v7459 = vpop.f32.mrf.mxu0
      %7460 = vmatprep.mubr.bf16.mxu0 %v6814
      %7461 = vmatmul.mubr.bf16.gmra.mxu0 %v6813
      %v7462 = vpop.f32.mrf.mxu0
      %v7463 = vadd.f32 %v7254, %v7462
      %v7464 = vpop.f32.mrf.mxu0
      %v7465 = vpop.f32.mrf.mxu0
      %v7466 = vadd.f32 %v7257, %v7465
      %v7467 = vpop.f32.mrf.mxu0
      %7468 = vmatprep.mubr.bf16.mxu0 %v6818
      %7469 = vmatmul.mubr.bf16.gmra.mxu0 %v6817
      %v7470 = vpop.f32.mrf.mxu0
      %v7471 = vadd.f32 %v7262, %v7470
      %v7472 = vpop.f32.mrf.mxu0
      %v7473 = vpop.f32.mrf.mxu0
      %v7474 = vadd.f32 %v7265, %v7473
      %v7475 = vpop.f32.mrf.mxu0
      %7476 = vmatprep.mubr.bf16.mxu0 %v6822
      %7477 = vmatmul.mubr.bf16.gmra.mxu0 %v6821
      %v7478 = vpop.f32.mrf.mxu0
      %v7479 = vadd.f32 %v7270, %v7478
      %v7480 = vpop.f32.mrf.mxu0
      %v7481 = vpop.f32.mrf.mxu0
      %v7482 = vadd.f32 %v7273, %v7481
      %v7483 = vpop.f32.mrf.mxu0
      %7484 = vmatprep.mubr.bf16.mxu0 %v6826
      %7485 = vmatmul.mubr.bf16.gmra.mxu0 %v6825
      %v7486 = vpop.f32.mrf.mxu0
      %v7487 = vadd.f32 %v7278, %v7486
      %v7488 = vpop.f32.mrf.mxu0
      %v7489 = vpop.f32.mrf.mxu0
      %v7490 = vadd.f32 %v7281, %v7489
      %v7491 = vpop.f32.mrf.mxu0
      %7492 = vmatprep.mubr.bf16.mxu0 %v6830
      %7493 = vmatmul.mubr.bf16.gmra.mxu0 %v6829
      %v7494 = vpop.f32.mrf.mxu0
      %v7495 = vadd.f32 %v7286, %v7494
      %v7496 = vpop.f32.mrf.mxu0
      %v7497 = vpop.f32.mrf.mxu0
      %v7498 = vadd.f32 %v7289, %v7497
      %v7499 = vpop.f32.mrf.mxu0
      %7500 = vmatprep.mubr.bf16.mxu0 %v6834
      %7501 = vmatmul.mubr.bf16.gmra.mxu0 %v6833
      %v7502 = vpop.f32.mrf.mxu0
      %v7503 = vadd.f32 %v7294, %v7502
      %v7504 = vpop.f32.mrf.mxu0
      %v7505 = vpop.f32.mrf.mxu0
      %v7506 = vadd.f32 %v7297, %v7505
      %v7507 = vpop.f32.mrf.mxu0
      %7508 = vmatprep.mubr.bf16.mxu0 %v6838
      %7509 = vmatmul.mubr.bf16.gmra.mxu0 %v6837
      %v7510 = vpop.f32.mrf.mxu0
      %v7511 = vadd.f32 %v7302, %v7510
      %v7512 = vpop.f32.mrf.mxu0
      %v7513 = vpop.f32.mrf.mxu0
      %v7514 = vadd.f32 %v7305, %v7513
      %v7515 = vpop.f32.mrf.mxu0
      %7516 = vmatprep.mubr.bf16.mxu0 %v6842
      %7517 = vmatmul.mubr.bf16.gmra.mxu0 %v6841
      %v7518 = vpop.f32.mrf.mxu0
      %v7519 = vadd.f32 %v7310, %v7518
      %v7520 = vpop.f32.mrf.mxu0
      %v7521 = vpop.f32.mrf.mxu0
      %v7522 = vadd.f32 %v7313, %v7521
      %v7523 = vpop.f32.mrf.mxu0
      %7524 = vmatprep.mubr.bf16.mxu0 %v6846
      %7525 = vmatmul.mubr.bf16.gmra.mxu0 %v6845
      %v7526 = vpop.f32.mrf.mxu0
      %v7527 = vadd.f32 %v7318, %v7526
      %v7528 = vpop.f32.mrf.mxu0
      %v7529 = vpop.f32.mrf.mxu0
      %v7530 = vadd.f32 %v7321, %v7529
      %v7531 = vpop.f32.mrf.mxu0
      %7532 = vmatprep.mubr.bf16.mxu0 %v6850
      %7533 = vmatmul.mubr.bf16.gmra.mxu0 %v6849
      %v7534 = vpop.f32.mrf.mxu0
      %v7535 = vadd.f32 %v7326, %v7534
      %v7536 = vpop.f32.mrf.mxu0
      %v7537 = vpop.f32.mrf.mxu0
      %v7538 = vadd.f32 %v7329, %v7537
      %v7539 = vpop.f32.mrf.mxu0
      %7540 = vmatprep.mubr.bf16.mxu0 %v6854
      %7541 = vmatmul.mubr.bf16.gmra.mxu0 %v6853
      %v7542 = vpop.f32.mrf.mxu0
      %v7543 = vadd.f32 %v7334, %v7542
      %v7544 = vpop.f32.mrf.mxu0
      %v7545 = vpop.f32.mrf.mxu0
      %v7546 = vadd.f32 %v7337, %v7545
      %v7547 = vpop.f32.mrf.mxu0
      %7548 = vmatprep.mubr.bf16.mxu0 %v6858
      %7549 = vmatmul.mubr.bf16.gmra.mxu0 %v6857
      %v7550 = vpop.f32.mrf.mxu0
      %v7551 = vadd.f32 %v7342, %v7550
      %v7552 = vpop.f32.mrf.mxu0
      %v7553 = vpop.f32.mrf.mxu0
      %v7554 = vadd.f32 %v7345, %v7553
      %v7555 = vpop.f32.mrf.mxu0
      %7556 = vdwg.mxu0
      %vm7557 = vcmask 293888
      %7558 = vst.msk [vmem:[#allocation5] sm:$0xff] %vm7557, %v7383
      %7559 = vst.msk [vmem:[#allocation5 + $0x8] sm:$0xff] %vm7557, %v7386
      %7560 = vst.msk [vmem:[#allocation5 + $0x10] sm:$0xff] %vm7557, %v7391
      %7561 = vst.msk [vmem:[#allocation5 + $0x18] sm:$0xff] %vm7557, %v7394
      %7562 = vst.msk [vmem:[#allocation5 + $0x20] sm:$0xff] %vm7557, %v7399
      %7563 = vst.msk [vmem:[#allocation5 + $0x28] sm:$0xff] %vm7557, %v7402
      %7564 = vst.msk [vmem:[#allocation5 + $0x30] sm:$0xff] %vm7557, %v7407
      %7565 = vst.msk [vmem:[#allocation5 + $0x38] sm:$0xff] %vm7557, %v7410
      %7566 = vst.msk [vmem:[#allocation5 + $0x40] sm:$0xff] %vm7557, %v7415
      %7567 = vst.msk [vmem:[#allocation5 + $0x48] sm:$0xff] %vm7557, %v7418
      %7568 = vst.msk [vmem:[#allocation5 + $0x50] sm:$0xff] %vm7557, %v7423
      %7569 = vst.msk [vmem:[#allocation5 + $0x58] sm:$0xff] %vm7557, %v7426
      %7570 = vst.msk [vmem:[#allocation5 + $0x60] sm:$0xff] %vm7557, %v7431
      %7571 = vst.msk [vmem:[#allocation5 + $0x68] sm:$0xff] %vm7557, %v7434
      %7572 = vst.msk [vmem:[#allocation5 + $0x70] sm:$0xff] %vm7557, %v7439
      %7573 = vst.msk [vmem:[#allocation5 + $0x78] sm:$0xff] %vm7557, %v7442
      %7574 = vst.msk [vmem:[#allocation5 + $0x80] sm:$0xff] %vm7557, %v7447
      %7575 = vst.msk [vmem:[#allocation5 + $0x88] sm:$0xff] %vm7557, %v7450
      %7576 = vst.msk [vmem:[#allocation5 + $0x90] sm:$0xff] %vm7557, %v7455
      %7577 = vst.msk [vmem:[#allocation5 + $0x98] sm:$0xff] %vm7557, %v7458
      %7578 = vst.msk [vmem:[#allocation5 + $0xa0] sm:$0xff] %vm7557, %v7463
      %7579 = vst.msk [vmem:[#allocation5 + $0xa8] sm:$0xff] %vm7557, %v7466
      %7580 = vst.msk [vmem:[#allocation5 + $0xb0] sm:$0xff] %vm7557, %v7471
      %7581 = vst.msk [vmem:[#allocation5 + $0xb8] sm:$0xff] %vm7557, %v7474
      %7582 = vst.msk [vmem:[#allocation5 + $0xc0] sm:$0xff] %vm7557, %v7479
      %7583 = vst.msk [vmem:[#allocation5 + $0xc8] sm:$0xff] %vm7557, %v7482
      %7584 = vst.msk [vmem:[#allocation5 + $0xd0] sm:$0xff] %vm7557, %v7487
      %7585 = vst.msk [vmem:[#allocation5 + $0xd8] sm:$0xff] %vm7557, %v7490
      %7586 = vst.msk [vmem:[#allocation5 + $0xe0] sm:$0xff] %vm7557, %v7495
      %7587 = vst.msk [vmem:[#allocation5 + $0xe8] sm:$0xff] %vm7557, %v7498
      %7588 = vst.msk [vmem:[#allocation5 + $0xf0] sm:$0xff] %vm7557, %v7503
      %7589 = vst.msk [vmem:[#allocation5 + $0xf8] sm:$0xff] %vm7557, %v7506
      %7590 = vst.msk [vmem:[#allocation5 + $0x100] sm:$0xff] %vm7557, %v7511
      %7591 = vst.msk [vmem:[#allocation5 + $0x108] sm:$0xff] %vm7557, %v7514
      %7592 = vst.msk [vmem:[#allocation5 + $0x110] sm:$0xff] %vm7557, %v7519
      %7593 = vst.msk [vmem:[#allocation5 + $0x118] sm:$0xff] %vm7557, %v7522
      %7594 = vst.msk [vmem:[#allocation5 + $0x120] sm:$0xff] %vm7557, %v7527
      %7595 = vst.msk [vmem:[#allocation5 + $0x128] sm:$0xff] %vm7557, %v7530
      %7596 = vst.msk [vmem:[#allocation5 + $0x130] sm:$0xff] %vm7557, %v7535
      %7597 = vst.msk [vmem:[#allocation5 + $0x138] sm:$0xff] %vm7557, %v7538
      %7598 = vst.msk [vmem:[#allocation5 + $0x140] sm:$0xff] %vm7557, %v7543
      %7599 = vst.msk [vmem:[#allocation5 + $0x148] sm:$0xff] %vm7557, %v7546
      %7600 = vst.msk [vmem:[#allocation5 + $0x150] sm:$0xff] %vm7557, %v7551
      %7601 = vst.msk [vmem:[#allocation5 + $0x158] sm:$0xff] %vm7557, %v7554
      %v7602 = vld [vmem:[#allocation5 + $0xd] sm:$0xff]
      %v7603 = vld [vmem:[#allocation5 + $0x15] sm:$0xff]
      %v7604 = vld [vmem:[#allocation5 + $0x1d] sm:$0xff]
      %v7605 = vld [vmem:[#allocation5 + $0x25] sm:$0xff]
      %v7606 = vld [vmem:[#allocation5 + $0x2d] sm:$0xff]
      %v7607 = vld [vmem:[#allocation5 + $0x35] sm:$0xff]
      %v7608 = vld [vmem:[#allocation5 + $0x3d] sm:$0xff]
      %v7609 = vld [vmem:[#allocation5 + $0x45] sm:$0xff]
      %v7610 = vld [vmem:[#allocation5 + $0x4d] sm:$0xff]
      %v7611 = vld [vmem:[#allocation5 + $0x55] sm:$0xff]
      %v7612 = vld [vmem:[#allocation5 + $0x5d] sm:$0xff]
      %v7613 = vld [vmem:[#allocation5 + $0x65] sm:$0xff]
      %v7614 = vld [vmem:[#allocation5 + $0x6d] sm:$0xff]
      %v7615 = vld [vmem:[#allocation5 + $0x75] sm:$0xff]
      %v7616 = vld [vmem:[#allocation5 + $0x7d] sm:$0xff]
      %v7617 = vld [vmem:[#allocation5 + $0x85] sm:$0xff]
      %v7618 = vld [vmem:[#allocation5 + $0x8d] sm:$0xff]
      %v7619 = vld [vmem:[#allocation5 + $0x95] sm:$0xff]
      %v7620 = vld [vmem:[#allocation5 + $0x9d] sm:$0xff]
      %v7621 = vld [vmem:[#allocation5 + $0xa5] sm:$0xff]
      %v7622 = vld [vmem:[#allocation5 + $0xad] sm:$0xff]
      %v7623 = vld [vmem:[#allocation5 + $0xb5] sm:$0xff]
      %v7624 = vld [vmem:[#allocation5 + $0xbd] sm:$0xff]
      %v7625 = vld [vmem:[#allocation5 + $0xc5] sm:$0xff]
      %v7626 = vld [vmem:[#allocation5 + $0xcd] sm:$0xff]
      %v7627 = vld [vmem:[#allocation5 + $0xd5] sm:$0xff]
      %v7628 = vld [vmem:[#allocation5 + $0xdd] sm:$0xff]
      %v7629 = vld [vmem:[#allocation5 + $0xe5] sm:$0xff]
      %v7630 = vld [vmem:[#allocation5 + $0xed] sm:$0xff]
      %v7631 = vld [vmem:[#allocation5 + $0xf5] sm:$0xff]
      %v7632 = vld [vmem:[#allocation5 + $0xfd] sm:$0xff]
      %v7633 = vld [vmem:[#allocation5 + $0x105] sm:$0xff]
      %v7634 = vld [vmem:[#allocation5 + $0x10d] sm:$0xff]
      %v7635 = vld [vmem:[#allocation5 + $0x115] sm:$0xff]
      %v7636 = vld [vmem:[#allocation5 + $0x11d] sm:$0xff]
      %v7637 = vld [vmem:[#allocation5 + $0x125] sm:$0xff]
      %v7638 = vld [vmem:[#allocation5 + $0xe] sm:$0xff]
      %v7639 = vld [vmem:[#allocation5 + $0x16] sm:$0xff]
      %v7640 = vld [vmem:[#allocation5 + $0x1e] sm:$0xff]
      %v7641 = vld [vmem:[#allocation5 + $0x26] sm:$0xff]
      %v7642 = vld [vmem:[#allocation5 + $0x2e] sm:$0xff]
      %v7643 = vld [vmem:[#allocation5 + $0x36] sm:$0xff]
      %v7644 = vld [vmem:[#allocation5 + $0x3e] sm:$0xff]
      %v7645 = vld [vmem:[#allocation5 + $0x46] sm:$0xff]
      %v7646 = vld [vmem:[#allocation5 + $0x4e] sm:$0xff]
      %v7647 = vld [vmem:[#allocation5 + $0x56] sm:$0xff]
      %v7648 = vld [vmem:[#allocation5 + $0x5e] sm:$0xff]
      %v7649 = vld [vmem:[#allocation5 + $0x66] sm:$0xff]
      %v7650 = vld [vmem:[#allocation5 + $0x6e] sm:$0xff]
      %v7651 = vld [vmem:[#allocation5 + $0x76] sm:$0xff]
      %v7652 = vld [vmem:[#allocation5 + $0x7e] sm:$0xff]
      %v7653 = vld [vmem:[#allocation5 + $0x86] sm:$0xff]
      %v7654 = vld [vmem:[#allocation5 + $0x8e] sm:$0xff]
      %v7655 = vld [vmem:[#allocation5 + $0x96] sm:$0xff]
      %v7656 = vld [vmem:[#allocation5 + $0x9e] sm:$0xff]
      %v7657 = vld [vmem:[#allocation5 + $0xa6] sm:$0xff]
      %v7658 = vld [vmem:[#allocation5 + $0xae] sm:$0xff]
      %v7659 = vld [vmem:[#allocation5 + $0xb6] sm:$0xff]
      %v7660 = vld [vmem:[#allocation5 + $0xbe] sm:$0xff]
      %v7661 = vld [vmem:[#allocation5 + $0xc6] sm:$0xff]
      %v7662 = vld [vmem:[#allocation5 + $0xce] sm:$0xff]
      %v7663 = vld [vmem:[#allocation5 + $0xd6] sm:$0xff]
      %v7664 = vld [vmem:[#allocation5 + $0xde] sm:$0xff]
      %v7665 = vld [vmem:[#allocation5 + $0xe6] sm:$0xff]
      %v7666 = vld [vmem:[#allocation5 + $0xee] sm:$0xff]
      %v7667 = vld [vmem:[#allocation5 + $0xf6] sm:$0xff]
      %v7668 = vld [vmem:[#allocation5 + $0xfe] sm:$0xff]
      %v7669 = vld [vmem:[#allocation5 + $0x106] sm:$0xff]
      %v7670 = vld [vmem:[#allocation5 + $0x10e] sm:$0xff]
      %v7671 = vld [vmem:[#allocation5 + $0x116] sm:$0xff]
      %v7672 = vld [vmem:[#allocation5 + $0x11e] sm:$0xff]
      %v7673 = vld [vmem:[#allocation5 + $0x126] sm:$0xff]
      %7710 = vrot.lane.b32.xlu0 %v7638, 124
      %v7711 = vpop.permute.xlu0 %7710
      %7712 = vrot.lane.b32.xlu0 %v7639, 124
      %v7713 = vpop.permute.xlu0 %7712
      %7714 = vrot.lane.b32.xlu0 %v7640, 124
      %v7715 = vpop.permute.xlu0 %7714
      %7716 = vrot.lane.b32.xlu0 %v7641, 124
      %v7717 = vpop.permute.xlu0 %7716
      %7718 = vrot.lane.b32.xlu0 %v7642, 124
      %v7719 = vpop.permute.xlu0 %7718
      %7720 = vrot.lane.b32.xlu0 %v7643, 124
      %v7721 = vpop.permute.xlu0 %7720
      %7722 = vrot.lane.b32.xlu0 %v7644, 124
      %v7723 = vpop.permute.xlu0 %7722
      %7724 = vrot.lane.b32.xlu0 %v7645, 124
      %v7725 = vpop.permute.xlu0 %7724
      %7726 = vrot.lane.b32.xlu0 %v7646, 124
      %v7727 = vpop.permute.xlu0 %7726
      %7728 = vrot.lane.b32.xlu0 %v7647, 124
      %v7729 = vpop.permute.xlu0 %7728
      %7730 = vrot.lane.b32.xlu0 %v7648, 124
      %v7731 = vpop.permute.xlu0 %7730
      %7732 = vrot.lane.b32.xlu0 %v7649, 124
      %v7733 = vpop.permute.xlu0 %7732
      %7734 = vrot.lane.b32.xlu0 %v7650, 124
      %v7735 = vpop.permute.xlu0 %7734
      %7736 = vrot.lane.b32.xlu0 %v7651, 124
      %v7737 = vpop.permute.xlu0 %7736
      %7738 = vrot.lane.b32.xlu0 %v7652, 124
      %v7739 = vpop.permute.xlu0 %7738
      %7740 = vrot.lane.b32.xlu0 %v7653, 124
      %v7741 = vpop.permute.xlu0 %7740
      %7742 = vrot.lane.b32.xlu0 %v7654, 124
      %v7743 = vpop.permute.xlu0 %7742
      %7744 = vrot.lane.b32.xlu0 %v7655, 124
      %v7745 = vpop.permute.xlu0 %7744
      %7746 = vrot.lane.b32.xlu0 %v7656, 124
      %v7747 = vpop.permute.xlu0 %7746
      %7748 = vrot.lane.b32.xlu0 %v7657, 124
      %v7749 = vpop.permute.xlu0 %7748
      %7750 = vrot.lane.b32.xlu0 %v7658, 124
      %v7751 = vpop.permute.xlu0 %7750
      %7752 = vrot.lane.b32.xlu0 %v7659, 124
      %v7753 = vpop.permute.xlu0 %7752
      %7754 = vrot.lane.b32.xlu0 %v7660, 124
      %v7755 = vpop.permute.xlu0 %7754
      %7756 = vrot.lane.b32.xlu0 %v7661, 124
      %v7757 = vpop.permute.xlu0 %7756
      %7758 = vrot.lane.b32.xlu0 %v7662, 124
      %v7759 = vpop.permute.xlu0 %7758
      %7760 = vrot.lane.b32.xlu0 %v7663, 124
      %v7761 = vpop.permute.xlu0 %7760
      %7762 = vrot.lane.b32.xlu0 %v7664, 124
      %v7763 = vpop.permute.xlu0 %7762
      %7764 = vrot.lane.b32.xlu0 %v7665, 124
      %v7765 = vpop.permute.xlu0 %7764
      %7766 = vrot.lane.b32.xlu0 %v7666, 124
      %v7767 = vpop.permute.xlu0 %7766
      %7768 = vrot.lane.b32.xlu0 %v7667, 124
      %v7769 = vpop.permute.xlu0 %7768
      %7770 = vrot.lane.b32.xlu0 %v7668, 124
      %v7771 = vpop.permute.xlu0 %7770
      %7772 = vrot.lane.b32.xlu0 %v7669, 124
      %v7773 = vpop.permute.xlu0 %7772
      %7774 = vrot.lane.b32.xlu0 %v7670, 124
      %v7775 = vpop.permute.xlu0 %7774
      %7776 = vrot.lane.b32.xlu0 %v7671, 124
      %v7777 = vpop.permute.xlu0 %7776
      %7778 = vrot.lane.b32.xlu0 %v7672, 124
      %v7779 = vpop.permute.xlu0 %7778
      %7780 = vrot.lane.b32.xlu0 %v7673, 124
      %v7781 = vpop.permute.xlu0 %7780
      %v7818 = vadd.f32 %v7602, %v7711
      %v7819 = vadd.f32 %v7603, %v7713
      %v7820 = vadd.f32 %v7604, %v7715
      %v7821 = vadd.f32 %v7605, %v7717
      %v7822 = vadd.f32 %v7606, %v7719
      %v7823 = vadd.f32 %v7607, %v7721
      %v7824 = vadd.f32 %v7608, %v7723
      %v7825 = vadd.f32 %v7609, %v7725
      %v7826 = vadd.f32 %v7610, %v7727
      %v7827 = vadd.f32 %v7611, %v7729
      %v7828 = vadd.f32 %v7612, %v7731
      %v7829 = vadd.f32 %v7613, %v7733
      %v7830 = vadd.f32 %v7614, %v7735
      %v7831 = vadd.f32 %v7615, %v7737
      %v7832 = vadd.f32 %v7616, %v7739
      %v7833 = vadd.f32 %v7617, %v7741
      %v7834 = vadd.f32 %v7618, %v7743
      %v7835 = vadd.f32 %v7619, %v7745
      %v7836 = vadd.f32 %v7620, %v7747
      %v7837 = vadd.f32 %v7621, %v7749
      %v7838 = vadd.f32 %v7622, %v7751
      %v7839 = vadd.f32 %v7623, %v7753
      %v7840 = vadd.f32 %v7624, %v7755
      %v7841 = vadd.f32 %v7625, %v7757
      %v7842 = vadd.f32 %v7626, %v7759
      %v7843 = vadd.f32 %v7627, %v7761
      %v7844 = vadd.f32 %v7628, %v7763
      %v7845 = vadd.f32 %v7629, %v7765
      %v7846 = vadd.f32 %v7630, %v7767
      %v7847 = vadd.f32 %v7631, %v7769
      %v7848 = vadd.f32 %v7632, %v7771
      %v7849 = vadd.f32 %v7633, %v7773
      %v7850 = vadd.f32 %v7634, %v7775
      %v7851 = vadd.f32 %v7635, %v7777
      %v7852 = vadd.f32 %v7636, %v7779
      %v7853 = vadd.f32 %v7637, %v7781
      %v7854 = vld [vmem:[#allocation5 + $0xf] sm:$0xff]
      %v7855 = vld [vmem:[#allocation5 + $0x17] sm:$0xff]
      %v7856 = vld [vmem:[#allocation5 + $0x1f] sm:$0xff]
      %v7857 = vld [vmem:[#allocation5 + $0x27] sm:$0xff]
      %v7858 = vld [vmem:[#allocation5 + $0x2f] sm:$0xff]
      %v7859 = vld [vmem:[#allocation5 + $0x37] sm:$0xff]
      %v7860 = vld [vmem:[#allocation5 + $0x3f] sm:$0xff]
      %v7861 = vld [vmem:[#allocation5 + $0x47] sm:$0xff]
      %v7862 = vld [vmem:[#allocation5 + $0x4f] sm:$0xff]
      %v7863 = vld [vmem:[#allocation5 + $0x57] sm:$0xff]
      %v7864 = vld [vmem:[#allocation5 + $0x5f] sm:$0xff]
      %v7865 = vld [vmem:[#allocation5 + $0x67] sm:$0xff]
      %v7866 = vld [vmem:[#allocation5 + $0x6f] sm:$0xff]
      %v7867 = vld [vmem:[#allocation5 + $0x77] sm:$0xff]
      %v7868 = vld [vmem:[#allocation5 + $0x7f] sm:$0xff]
      %v7869 = vld [vmem:[#allocation5 + $0x87] sm:$0xff]
      %v7870 = vld [vmem:[#allocation5 + $0x8f] sm:$0xff]
      %v7871 = vld [vmem:[#allocation5 + $0x97] sm:$0xff]
      %v7872 = vld [vmem:[#allocation5 + $0x9f] sm:$0xff]
      %v7873 = vld [vmem:[#allocation5 + $0xa7] sm:$0xff]
      %v7874 = vld [vmem:[#allocation5 + $0xaf] sm:$0xff]
      %v7875 = vld [vmem:[#allocation5 + $0xb7] sm:$0xff]
      %v7876 = vld [vmem:[#allocation5 + $0xbf] sm:$0xff]
      %v7877 = vld [vmem:[#allocation5 + $0xc7] sm:$0xff]
      %v7878 = vld [vmem:[#allocation5 + $0xcf] sm:$0xff]
      %v7879 = vld [vmem:[#allocation5 + $0xd7] sm:$0xff]
      %v7880 = vld [vmem:[#allocation5 + $0xdf] sm:$0xff]
      %v7881 = vld [vmem:[#allocation5 + $0xe7] sm:$0xff]
      %v7882 = vld [vmem:[#allocation5 + $0xef] sm:$0xff]
      %v7883 = vld [vmem:[#allocation5 + $0xf7] sm:$0xff]
      %v7884 = vld [vmem:[#allocation5 + $0xff] sm:$0xff]
      %v7885 = vld [vmem:[#allocation5 + $0x107] sm:$0xff]
      %v7886 = vld [vmem:[#allocation5 + $0x10f] sm:$0xff]
      %v7887 = vld [vmem:[#allocation5 + $0x117] sm:$0xff]
      %v7888 = vld [vmem:[#allocation5 + $0x11f] sm:$0xff]
      %v7889 = vld [vmem:[#allocation5 + $0x127] sm:$0xff]
      %7926 = vrot.lane.b32.xlu0 %v7854, 120
      %v7927 = vpop.permute.xlu0 %7926
      %7928 = vrot.lane.b32.xlu0 %v7855, 120
      %v7929 = vpop.permute.xlu0 %7928
      %7930 = vrot.lane.b32.xlu0 %v7856, 120
      %v7931 = vpop.permute.xlu0 %7930
      %7932 = vrot.lane.b32.xlu0 %v7857, 120
      %v7933 = vpop.permute.xlu0 %7932
      %7934 = vrot.lane.b32.xlu0 %v7858, 120
      %v7935 = vpop.permute.xlu0 %7934
      %7936 = vrot.lane.b32.xlu0 %v7859, 120
      %v7937 = vpop.permute.xlu0 %7936
      %7938 = vrot.lane.b32.xlu0 %v7860, 120
      %v7939 = vpop.permute.xlu0 %7938
      %7940 = vrot.lane.b32.xlu0 %v7861, 120
      %v7941 = vpop.permute.xlu0 %7940
      %7942 = vrot.lane.b32.xlu0 %v7862, 120
      %v7943 = vpop.permute.xlu0 %7942
      %7944 = vrot.lane.b32.xlu0 %v7863, 120
      %v7945 = vpop.permute.xlu0 %7944
      %7946 = vrot.lane.b32.xlu0 %v7864, 120
      %v7947 = vpop.permute.xlu0 %7946
      %7948 = vrot.lane.b32.xlu0 %v7865, 120
      %v7949 = vpop.permute.xlu0 %7948
      %7950 = vrot.lane.b32.xlu0 %v7866, 120
      %v7951 = vpop.permute.xlu0 %7950
      %7952 = vrot.lane.b32.xlu0 %v7867, 120
      %v7953 = vpop.permute.xlu0 %7952
      %7954 = vrot.lane.b32.xlu0 %v7868, 120
      %v7955 = vpop.permute.xlu0 %7954
      %7956 = vrot.lane.b32.xlu0 %v7869, 120
      %v7957 = vpop.permute.xlu0 %7956
      %7958 = vrot.lane.b32.xlu0 %v7870, 120
      %v7959 = vpop.permute.xlu0 %7958
      %7960 = vrot.lane.b32.xlu0 %v7871, 120
      %v7961 = vpop.permute.xlu0 %7960
      %7962 = vrot.lane.b32.xlu0 %v7872, 120
      %v7963 = vpop.permute.xlu0 %7962
      %7964 = vrot.lane.b32.xlu0 %v7873, 120
      %v7965 = vpop.permute.xlu0 %7964
      %7966 = vrot.lane.b32.xlu0 %v7874, 120
      %v7967 = vpop.permute.xlu0 %7966
      %7968 = vrot.lane.b32.xlu0 %v7875, 120
      %v7969 = vpop.permute.xlu0 %7968
      %7970 = vrot.lane.b32.xlu0 %v7876, 120
      %v7971 = vpop.permute.xlu0 %7970
      %7972 = vrot.lane.b32.xlu0 %v7877, 120
      %v7973 = vpop.permute.xlu0 %7972
      %7974 = vrot.lane.b32.xlu0 %v7878, 120
      %v7975 = vpop.permute.xlu0 %7974
      %7976 = vrot.lane.b32.xlu0 %v7879, 120
      %v7977 = vpop.permute.xlu0 %7976
      %7978 = vrot.lane.b32.xlu0 %v7880, 120
      %v7979 = vpop.permute.xlu0 %7978
      %7980 = vrot.lane.b32.xlu0 %v7881, 120
      %v7981 = vpop.permute.xlu0 %7980
      %7982 = vrot.lane.b32.xlu0 %v7882, 120
      %v7983 = vpop.permute.xlu0 %7982
      %7984 = vrot.lane.b32.xlu0 %v7883, 120
      %v7985 = vpop.permute.xlu0 %7984
      %7986 = vrot.lane.b32.xlu0 %v7884, 120
      %v7987 = vpop.permute.xlu0 %7986
      %7988 = vrot.lane.b32.xlu0 %v7885, 120
      %v7989 = vpop.permute.xlu0 %7988
      %7990 = vrot.lane.b32.xlu0 %v7886, 120
      %v7991 = vpop.permute.xlu0 %7990
      %7992 = vrot.lane.b32.xlu0 %v7887, 120
      %v7993 = vpop.permute.xlu0 %7992
      %7994 = vrot.lane.b32.xlu0 %v7888, 120
      %v7995 = vpop.permute.xlu0 %7994
      %7996 = vrot.lane.b32.xlu0 %v7889, 120
      %v7997 = vpop.permute.xlu0 %7996
      %v8034 = vadd.f32 %v7818, %v7927
      %v8035 = vadd.f32 %v7819, %v7929
      %v8036 = vadd.f32 %v7820, %v7931
      %v8037 = vadd.f32 %v7821, %v7933
      %v8038 = vadd.f32 %v7822, %v7935
      %v8039 = vadd.f32 %v7823, %v7937
      %v8040 = vadd.f32 %v7824, %v7939
      %v8041 = vadd.f32 %v7825, %v7941
      %v8042 = vadd.f32 %v7826, %v7943
      %v8043 = vadd.f32 %v7827, %v7945
      %v8044 = vadd.f32 %v7828, %v7947
      %v8045 = vadd.f32 %v7829, %v7949
      %v8046 = vadd.f32 %v7830, %v7951
      %v8047 = vadd.f32 %v7831, %v7953
      %v8048 = vadd.f32 %v7832, %v7955
      %v8049 = vadd.f32 %v7833, %v7957
      %v8050 = vadd.f32 %v7834, %v7959
      %v8051 = vadd.f32 %v7835, %v7961
      %v8052 = vadd.f32 %v7836, %v7963
      %v8053 = vadd.f32 %v7837, %v7965
      %v8054 = vadd.f32 %v7838, %v7967
      %v8055 = vadd.f32 %v7839, %v7969
      %v8056 = vadd.f32 %v7840, %v7971
      %v8057 = vadd.f32 %v7841, %v7973
      %v8058 = vadd.f32 %v7842, %v7975
      %v8059 = vadd.f32 %v7843, %v7977
      %v8060 = vadd.f32 %v7844, %v7979
      %v8061 = vadd.f32 %v7845, %v7981
      %v8062 = vadd.f32 %v7846, %v7983
      %v8063 = vadd.f32 %v7847, %v7985
      %v8064 = vadd.f32 %v7848, %v7987
      %v8065 = vadd.f32 %v7849, %v7989
      %v8066 = vadd.f32 %v7850, %v7991
      %v8067 = vadd.f32 %v7851, %v7993
      %v8068 = vadd.f32 %v7852, %v7995
      %v8069 = vadd.f32 %v7853, %v7997
      %v8070 = vld [vmem:[#allocation5 + $0x12f] sm:$0xff]
      %v8071 = vld [vmem:[#allocation5 + $0x137] sm:$0xff]
      %8074 = vrot.lane.b32.xlu0 %v7856, 116
      %v8075 = vpop.permute.xlu0 %8074
      %8076 = vrot.lane.b32.xlu0 %v7857, 116
      %v8077 = vpop.permute.xlu0 %8076
      %8078 = vrot.lane.b32.xlu0 %v7858, 116
      %v8079 = vpop.permute.xlu0 %8078
      %8080 = vrot.lane.b32.xlu0 %v7859, 116
      %v8081 = vpop.permute.xlu0 %8080
      %8082 = vrot.lane.b32.xlu0 %v7860, 116
      %v8083 = vpop.permute.xlu0 %8082
      %8084 = vrot.lane.b32.xlu0 %v7861, 116
      %v8085 = vpop.permute.xlu0 %8084
      %8086 = vrot.lane.b32.xlu0 %v7862, 116
      %v8087 = vpop.permute.xlu0 %8086
      %8088 = vrot.lane.b32.xlu0 %v7863, 116
      %v8089 = vpop.permute.xlu0 %8088
      %8090 = vrot.lane.b32.xlu0 %v7864, 116
      %v8091 = vpop.permute.xlu0 %8090
      %8092 = vrot.lane.b32.xlu0 %v7865, 116
      %v8093 = vpop.permute.xlu0 %8092
      %8094 = vrot.lane.b32.xlu0 %v7866, 116
      %v8095 = vpop.permute.xlu0 %8094
      %8096 = vrot.lane.b32.xlu0 %v7867, 116
      %v8097 = vpop.permute.xlu0 %8096
      %8098 = vrot.lane.b32.xlu0 %v7868, 116
      %v8099 = vpop.permute.xlu0 %8098
      %8100 = vrot.lane.b32.xlu0 %v7869, 116
      %v8101 = vpop.permute.xlu0 %8100
      %8102 = vrot.lane.b32.xlu0 %v7870, 116
      %v8103 = vpop.permute.xlu0 %8102
      %8104 = vrot.lane.b32.xlu0 %v7871, 116
      %v8105 = vpop.permute.xlu0 %8104
      %8106 = vrot.lane.b32.xlu0 %v7872, 116
      %v8107 = vpop.permute.xlu0 %8106
      %8108 = vrot.lane.b32.xlu0 %v7873, 116
      %v8109 = vpop.permute.xlu0 %8108
      %8110 = vrot.lane.b32.xlu0 %v7874, 116
      %v8111 = vpop.permute.xlu0 %8110
      %8112 = vrot.lane.b32.xlu0 %v7875, 116
      %v8113 = vpop.permute.xlu0 %8112
      %8114 = vrot.lane.b32.xlu0 %v7876, 116
      %v8115 = vpop.permute.xlu0 %8114
      %8116 = vrot.lane.b32.xlu0 %v7877, 116
      %v8117 = vpop.permute.xlu0 %8116
      %8118 = vrot.lane.b32.xlu0 %v7878, 116
      %v8119 = vpop.permute.xlu0 %8118
      %8120 = vrot.lane.b32.xlu0 %v7879, 116
      %v8121 = vpop.permute.xlu0 %8120
      %8122 = vrot.lane.b32.xlu0 %v7880, 116
      %v8123 = vpop.permute.xlu0 %8122
      %8124 = vrot.lane.b32.xlu0 %v7881, 116
      %v8125 = vpop.permute.xlu0 %8124
      %8126 = vrot.lane.b32.xlu0 %v7882, 116
      %v8127 = vpop.permute.xlu0 %8126
      %8128 = vrot.lane.b32.xlu0 %v7883, 116
      %v8129 = vpop.permute.xlu0 %8128
      %8130 = vrot.lane.b32.xlu0 %v7884, 116
      %v8131 = vpop.permute.xlu0 %8130
      %8132 = vrot.lane.b32.xlu0 %v7885, 116
      %v8133 = vpop.permute.xlu0 %8132
      %8134 = vrot.lane.b32.xlu0 %v7886, 116
      %v8135 = vpop.permute.xlu0 %8134
      %8136 = vrot.lane.b32.xlu0 %v7887, 116
      %v8137 = vpop.permute.xlu0 %8136
      %8138 = vrot.lane.b32.xlu0 %v7888, 116
      %v8139 = vpop.permute.xlu0 %8138
      %8140 = vrot.lane.b32.xlu0 %v7889, 116
      %v8141 = vpop.permute.xlu0 %8140
      %8142 = vrot.lane.b32.xlu0 %v8070, 116
      %v8143 = vpop.permute.xlu0 %8142
      %8144 = vrot.lane.b32.xlu0 %v8071, 116
      %v8145 = vpop.permute.xlu0 %8144
      %v8182 = vadd.f32 %v8034, %v8075
      %v8183 = vadd.f32 %v8035, %v8077
      %v8184 = vadd.f32 %v8036, %v8079
      %v8185 = vadd.f32 %v8037, %v8081
      %v8186 = vadd.f32 %v8038, %v8083
      %v8187 = vadd.f32 %v8039, %v8085
      %v8188 = vadd.f32 %v8040, %v8087
      %v8189 = vadd.f32 %v8041, %v8089
      %v8190 = vadd.f32 %v8042, %v8091
      %v8191 = vadd.f32 %v8043, %v8093
      %v8192 = vadd.f32 %v8044, %v8095
      %v8193 = vadd.f32 %v8045, %v8097
      %v8194 = vadd.f32 %v8046, %v8099
      %v8195 = vadd.f32 %v8047, %v8101
      %v8196 = vadd.f32 %v8048, %v8103
      %v8197 = vadd.f32 %v8049, %v8105
      %v8198 = vadd.f32 %v8050, %v8107
      %v8199 = vadd.f32 %v8051, %v8109
      %v8200 = vadd.f32 %v8052, %v8111
      %v8201 = vadd.f32 %v8053, %v8113
      %v8202 = vadd.f32 %v8054, %v8115
      %v8203 = vadd.f32 %v8055, %v8117
      %v8204 = vadd.f32 %v8056, %v8119
      %v8205 = vadd.f32 %v8057, %v8121
      %v8206 = vadd.f32 %v8058, %v8123
      %v8207 = vadd.f32 %v8059, %v8125
      %v8208 = vadd.f32 %v8060, %v8127
      %v8209 = vadd.f32 %v8061, %v8129
      %v8210 = vadd.f32 %v8062, %v8131
      %v8211 = vadd.f32 %v8063, %v8133
      %v8212 = vadd.f32 %v8064, %v8135
      %v8213 = vadd.f32 %v8065, %v8137
      %v8214 = vadd.f32 %v8066, %v8139
      %v8215 = vadd.f32 %v8067, %v8141
      %v8216 = vadd.f32 %v8068, %v8143
      %v8217 = vadd.f32 %v8069, %v8145
      %v8218 = vld [vmem:[#allocation5 + $0x20] sm:$0xff]
      %v8219 = vld [vmem:[#allocation5 + $0x28] sm:$0xff]
      %v8220 = vld [vmem:[#allocation5 + $0x30] sm:$0xff]
      %v8221 = vld [vmem:[#allocation5 + $0x38] sm:$0xff]
      %v8222 = vld [vmem:[#allocation5 + $0x40] sm:$0xff]
      %v8223 = vld [vmem:[#allocation5 + $0x48] sm:$0xff]
      %v8224 = vld [vmem:[#allocation5 + $0x50] sm:$0xff]
      %v8225 = vld [vmem:[#allocation5 + $0x58] sm:$0xff]
      %v8226 = vld [vmem:[#allocation5 + $0x60] sm:$0xff]
      %v8227 = vld [vmem:[#allocation5 + $0x68] sm:$0xff]
      %v8228 = vld [vmem:[#allocation5 + $0x70] sm:$0xff]
      %v8229 = vld [vmem:[#allocation5 + $0x78] sm:$0xff]
      %v8230 = vld [vmem:[#allocation5 + $0x80] sm:$0xff]
      %v8231 = vld [vmem:[#allocation5 + $0x88] sm:$0xff]
      %v8232 = vld [vmem:[#allocation5 + $0x90] sm:$0xff]
      %v8233 = vld [vmem:[#allocation5 + $0x98] sm:$0xff]
      %v8234 = vld [vmem:[#allocation5 + $0xa0] sm:$0xff]
      %v8235 = vld [vmem:[#allocation5 + $0xa8] sm:$0xff]
      %v8236 = vld [vmem:[#allocation5 + $0xb0] sm:$0xff]
      %v8237 = vld [vmem:[#allocation5 + $0xb8] sm:$0xff]
      %v8238 = vld [vmem:[#allocation5 + $0xc0] sm:$0xff]
      %v8239 = vld [vmem:[#allocation5 + $0xc8] sm:$0xff]
      %v8240 = vld [vmem:[#allocation5 + $0xd0] sm:$0xff]
      %v8241 = vld [vmem:[#allocation5 + $0xd8] sm:$0xff]
      %v8242 = vld [vmem:[#allocation5 + $0xe0] sm:$0xff]
      %v8243 = vld [vmem:[#allocation5 + $0xe8] sm:$0xff]
      %v8244 = vld [vmem:[#allocation5 + $0xf0] sm:$0xff]
      %v8245 = vld [vmem:[#allocation5 + $0xf8] sm:$0xff]
      %v8246 = vld [vmem:[#allocation5 + $0x100] sm:$0xff]
      %v8247 = vld [vmem:[#allocation5 + $0x108] sm:$0xff]
      %v8248 = vld [vmem:[#allocation5 + $0x110] sm:$0xff]
      %v8249 = vld [vmem:[#allocation5 + $0x118] sm:$0xff]
      %v8250 = vld [vmem:[#allocation5 + $0x120] sm:$0xff]
      %v8251 = vld [vmem:[#allocation5 + $0x128] sm:$0xff]
      %v8252 = vld [vmem:[#allocation5 + $0x130] sm:$0xff]
      %v8253 = vld [vmem:[#allocation5 + $0x138] sm:$0xff]
      %8290 = vrot.lane.b32.xlu0 %v8218, 112
      %v8291 = vpop.permute.xlu0 %8290
      %8292 = vrot.lane.b32.xlu0 %v8219, 112
      %v8293 = vpop.permute.xlu0 %8292
      %8294 = vrot.lane.b32.xlu0 %v8220, 112
      %v8295 = vpop.permute.xlu0 %8294
      %8296 = vrot.lane.b32.xlu0 %v8221, 112
      %v8297 = vpop.permute.xlu0 %8296
      %8298 = vrot.lane.b32.xlu0 %v8222, 112
      %v8299 = vpop.permute.xlu0 %8298
      %8300 = vrot.lane.b32.xlu0 %v8223, 112
      %v8301 = vpop.permute.xlu0 %8300
      %8302 = vrot.lane.b32.xlu0 %v8224, 112
      %v8303 = vpop.permute.xlu0 %8302
      %8304 = vrot.lane.b32.xlu0 %v8225, 112
      %v8305 = vpop.permute.xlu0 %8304
      %8306 = vrot.lane.b32.xlu0 %v8226, 112
      %v8307 = vpop.permute.xlu0 %8306
      %8308 = vrot.lane.b32.xlu0 %v8227, 112
      %v8309 = vpop.permute.xlu0 %8308
      %8310 = vrot.lane.b32.xlu0 %v8228, 112
      %v8311 = vpop.permute.xlu0 %8310
      %8312 = vrot.lane.b32.xlu0 %v8229, 112
      %v8313 = vpop.permute.xlu0 %8312
      %8314 = vrot.lane.b32.xlu0 %v8230, 112
      %v8315 = vpop.permute.xlu0 %8314
      %8316 = vrot.lane.b32.xlu0 %v8231, 112
      %v8317 = vpop.permute.xlu0 %8316
      %8318 = vrot.lane.b32.xlu0 %v8232, 112
      %v8319 = vpop.permute.xlu0 %8318
      %8320 = vrot.lane.b32.xlu0 %v8233, 112
      %v8321 = vpop.permute.xlu0 %8320
      %8322 = vrot.lane.b32.xlu0 %v8234, 112
      %v8323 = vpop.permute.xlu0 %8322
      %8324 = vrot.lane.b32.xlu0 %v8235, 112
      %v8325 = vpop.permute.xlu0 %8324
      %8326 = vrot.lane.b32.xlu0 %v8236, 112
      %v8327 = vpop.permute.xlu0 %8326
      %8328 = vrot.lane.b32.xlu0 %v8237, 112
      %v8329 = vpop.permute.xlu0 %8328
      %8330 = vrot.lane.b32.xlu0 %v8238, 112
      %v8331 = vpop.permute.xlu0 %8330
      %8332 = vrot.lane.b32.xlu0 %v8239, 112
      %v8333 = vpop.permute.xlu0 %8332
      %8334 = vrot.lane.b32.xlu0 %v8240, 112
      %v8335 = vpop.permute.xlu0 %8334
      %8336 = vrot.lane.b32.xlu0 %v8241, 112
      %v8337 = vpop.permute.xlu0 %8336
      %8338 = vrot.lane.b32.xlu0 %v8242, 112
      %v8339 = vpop.permute.xlu0 %8338
      %8340 = vrot.lane.b32.xlu0 %v8243, 112
      %v8341 = vpop.permute.xlu0 %8340
      %8342 = vrot.lane.b32.xlu0 %v8244, 112
      %v8343 = vpop.permute.xlu0 %8342
      %8344 = vrot.lane.b32.xlu0 %v8245, 112
      %v8345 = vpop.permute.xlu0 %8344
      %8346 = vrot.lane.b32.xlu0 %v8246, 112
      %v8347 = vpop.permute.xlu0 %8346
      %8348 = vrot.lane.b32.xlu0 %v8247, 112
      %v8349 = vpop.permute.xlu0 %8348
      %8350 = vrot.lane.b32.xlu0 %v8248, 112
      %v8351 = vpop.permute.xlu0 %8350
      %8352 = vrot.lane.b32.xlu0 %v8249, 112
      %v8353 = vpop.permute.xlu0 %8352
      %8354 = vrot.lane.b32.xlu0 %v8250, 112
      %v8355 = vpop.permute.xlu0 %8354
      %8356 = vrot.lane.b32.xlu0 %v8251, 112
      %v8357 = vpop.permute.xlu0 %8356
      %8358 = vrot.lane.b32.xlu0 %v8252, 112
      %v8359 = vpop.permute.xlu0 %8358
      %8360 = vrot.lane.b32.xlu0 %v8253, 112
      %v8361 = vpop.permute.xlu0 %8360
      %v8398 = vadd.f32 %v8182, %v8291
      %v8399 = vadd.f32 %v8183, %v8293
      %v8400 = vadd.f32 %v8184, %v8295
      %v8401 = vadd.f32 %v8185, %v8297
      %v8402 = vadd.f32 %v8186, %v8299
      %v8403 = vadd.f32 %v8187, %v8301
      %v8404 = vadd.f32 %v8188, %v8303
      %v8405 = vadd.f32 %v8189, %v8305
      %v8406 = vadd.f32 %v8190, %v8307
      %v8407 = vadd.f32 %v8191, %v8309
      %v8408 = vadd.f32 %v8192, %v8311
      %v8409 = vadd.f32 %v8193, %v8313
      %v8410 = vadd.f32 %v8194, %v8315
      %v8411 = vadd.f32 %v8195, %v8317
      %v8412 = vadd.f32 %v8196, %v8319
      %v8413 = vadd.f32 %v8197, %v8321
      %v8414 = vadd.f32 %v8198, %v8323
      %v8415 = vadd.f32 %v8199, %v8325
      %v8416 = vadd.f32 %v8200, %v8327
      %v8417 = vadd.f32 %v8201, %v8329
      %v8418 = vadd.f32 %v8202, %v8331
      %v8419 = vadd.f32 %v8203, %v8333
      %v8420 = vadd.f32 %v8204, %v8335
      %v8421 = vadd.f32 %v8205, %v8337
      %v8422 = vadd.f32 %v8206, %v8339
      %v8423 = vadd.f32 %v8207, %v8341
      %v8424 = vadd.f32 %v8208, %v8343
      %v8425 = vadd.f32 %v8209, %v8345
      %v8426 = vadd.f32 %v8210, %v8347
      %v8427 = vadd.f32 %v8211, %v8349
      %v8428 = vadd.f32 %v8212, %v8351
      %v8429 = vadd.f32 %v8213, %v8353
      %v8430 = vadd.f32 %v8214, %v8355
      %v8431 = vadd.f32 %v8215, %v8357
      %v8432 = vadd.f32 %v8216, %v8359
      %v8433 = vadd.f32 %v8217, %v8361
      %v8434 = vld [vmem:[#allocation5 + $0x21] sm:$0xff]
      %v8435 = vld [vmem:[#allocation5 + $0x29] sm:$0xff]
      %v8436 = vld [vmem:[#allocation5 + $0x31] sm:$0xff]
      %v8437 = vld [vmem:[#allocation5 + $0x39] sm:$0xff]
      %v8438 = vld [vmem:[#allocation5 + $0x41] sm:$0xff]
      %v8439 = vld [vmem:[#allocation5 + $0x49] sm:$0xff]
      %v8440 = vld [vmem:[#allocation5 + $0x51] sm:$0xff]
      %v8441 = vld [vmem:[#allocation5 + $0x59] sm:$0xff]
      %v8442 = vld [vmem:[#allocation5 + $0x61] sm:$0xff]
      %v8443 = vld [vmem:[#allocation5 + $0x69] sm:$0xff]
      %v8444 = vld [vmem:[#allocation5 + $0x71] sm:$0xff]
      %v8445 = vld [vmem:[#allocation5 + $0x79] sm:$0xff]
      %v8446 = vld [vmem:[#allocation5 + $0x81] sm:$0xff]
      %v8447 = vld [vmem:[#allocation5 + $0x89] sm:$0xff]
      %v8448 = vld [vmem:[#allocation5 + $0x91] sm:$0xff]
      %v8449 = vld [vmem:[#allocation5 + $0x99] sm:$0xff]
      %v8450 = vld [vmem:[#allocation5 + $0xa1] sm:$0xff]
      %v8451 = vld [vmem:[#allocation5 + $0xa9] sm:$0xff]
      %v8452 = vld [vmem:[#allocation5 + $0xb1] sm:$0xff]
      %v8453 = vld [vmem:[#allocation5 + $0xb9] sm:$0xff]
      %v8454 = vld [vmem:[#allocation5 + $0xc1] sm:$0xff]
      %v8455 = vld [vmem:[#allocation5 + $0xc9] sm:$0xff]
      %v8456 = vld [vmem:[#allocation5 + $0xd1] sm:$0xff]
      %v8457 = vld [vmem:[#allocation5 + $0xd9] sm:$0xff]
      %v8458 = vld [vmem:[#allocation5 + $0xe1] sm:$0xff]
      %v8459 = vld [vmem:[#allocation5 + $0xe9] sm:$0xff]
      %v8460 = vld [vmem:[#allocation5 + $0xf1] sm:$0xff]
      %v8461 = vld [vmem:[#allocation5 + $0xf9] sm:$0xff]
      %v8462 = vld [vmem:[#allocation5 + $0x101] sm:$0xff]
      %v8463 = vld [vmem:[#allocation5 + $0x109] sm:$0xff]
      %v8464 = vld [vmem:[#allocation5 + $0x111] sm:$0xff]
      %v8465 = vld [vmem:[#allocation5 + $0x119] sm:$0xff]
      %v8466 = vld [vmem:[#allocation5 + $0x121] sm:$0xff]
      %v8467 = vld [vmem:[#allocation5 + $0x129] sm:$0xff]
      %v8468 = vld [vmem:[#allocation5 + $0x131] sm:$0xff]
      %v8469 = vld [vmem:[#allocation5 + $0x139] sm:$0xff]
      %8506 = vrot.lane.b32.xlu0 %v8434, 108
      %v8507 = vpop.permute.xlu0 %8506
      %8508 = vrot.lane.b32.xlu0 %v8435, 108
      %v8509 = vpop.permute.xlu0 %8508
      %8510 = vrot.lane.b32.xlu0 %v8436, 108
      %v8511 = vpop.permute.xlu0 %8510
      %8512 = vrot.lane.b32.xlu0 %v8437, 108
      %v8513 = vpop.permute.xlu0 %8512
      %8514 = vrot.lane.b32.xlu0 %v8438, 108
      %v8515 = vpop.permute.xlu0 %8514
      %8516 = vrot.lane.b32.xlu0 %v8439, 108
      %v8517 = vpop.permute.xlu0 %8516
      %8518 = vrot.lane.b32.xlu0 %v8440, 108
      %v8519 = vpop.permute.xlu0 %8518
      %8520 = vrot.lane.b32.xlu0 %v8441, 108
      %v8521 = vpop.permute.xlu0 %8520
      %8522 = vrot.lane.b32.xlu0 %v8442, 108
      %v8523 = vpop.permute.xlu0 %8522
      %8524 = vrot.lane.b32.xlu0 %v8443, 108
      %v8525 = vpop.permute.xlu0 %8524
      %8526 = vrot.lane.b32.xlu0 %v8444, 108
      %v8527 = vpop.permute.xlu0 %8526
      %8528 = vrot.lane.b32.xlu0 %v8445, 108
      %v8529 = vpop.permute.xlu0 %8528
      %8530 = vrot.lane.b32.xlu0 %v8446, 108
      %v8531 = vpop.permute.xlu0 %8530
      %8532 = vrot.lane.b32.xlu0 %v8447, 108
      %v8533 = vpop.permute.xlu0 %8532
      %8534 = vrot.lane.b32.xlu0 %v8448, 108
      %v8535 = vpop.permute.xlu0 %8534
      %8536 = vrot.lane.b32.xlu0 %v8449, 108
      %v8537 = vpop.permute.xlu0 %8536
      %8538 = vrot.lane.b32.xlu0 %v8450, 108
      %v8539 = vpop.permute.xlu0 %8538
      %8540 = vrot.lane.b32.xlu0 %v8451, 108
      %v8541 = vpop.permute.xlu0 %8540
      %8542 = vrot.lane.b32.xlu0 %v8452, 108
      %v8543 = vpop.permute.xlu0 %8542
      %8544 = vrot.lane.b32.xlu0 %v8453, 108
      %v8545 = vpop.permute.xlu0 %8544
      %8546 = vrot.lane.b32.xlu0 %v8454, 108
      %v8547 = vpop.permute.xlu0 %8546
      %8548 = vrot.lane.b32.xlu0 %v8455, 108
      %v8549 = vpop.permute.xlu0 %8548
      %8550 = vrot.lane.b32.xlu0 %v8456, 108
      %v8551 = vpop.permute.xlu0 %8550
      %8552 = vrot.lane.b32.xlu0 %v8457, 108
      %v8553 = vpop.permute.xlu0 %8552
      %8554 = vrot.lane.b32.xlu0 %v8458, 108
      %v8555 = vpop.permute.xlu0 %8554
      %8556 = vrot.lane.b32.xlu0 %v8459, 108
      %v8557 = vpop.permute.xlu0 %8556
      %8558 = vrot.lane.b32.xlu0 %v8460, 108
      %v8559 = vpop.permute.xlu0 %8558
      %8560 = vrot.lane.b32.xlu0 %v8461, 108
      %v8561 = vpop.permute.xlu0 %8560
      %8562 = vrot.lane.b32.xlu0 %v8462, 108
      %v8563 = vpop.permute.xlu0 %8562
      %8564 = vrot.lane.b32.xlu0 %v8463, 108
      %v8565 = vpop.permute.xlu0 %8564
      %8566 = vrot.lane.b32.xlu0 %v8464, 108
      %v8567 = vpop.permute.xlu0 %8566
      %8568 = vrot.lane.b32.xlu0 %v8465, 108
      %v8569 = vpop.permute.xlu0 %8568
      %8570 = vrot.lane.b32.xlu0 %v8466, 108
      %v8571 = vpop.permute.xlu0 %8570
      %8572 = vrot.lane.b32.xlu0 %v8467, 108
      %v8573 = vpop.permute.xlu0 %8572
      %8574 = vrot.lane.b32.xlu0 %v8468, 108
      %v8575 = vpop.permute.xlu0 %8574
      %8576 = vrot.lane.b32.xlu0 %v8469, 108
      %v8577 = vpop.permute.xlu0 %8576
      %v8614 = vadd.f32 %v8398, %v8507
      %v8615 = vadd.f32 %v8399, %v8509
      %v8616 = vadd.f32 %v8400, %v8511
      %v8617 = vadd.f32 %v8401, %v8513
      %v8618 = vadd.f32 %v8402, %v8515
      %v8619 = vadd.f32 %v8403, %v8517
      %v8620 = vadd.f32 %v8404, %v8519
      %v8621 = vadd.f32 %v8405, %v8521
      %v8622 = vadd.f32 %v8406, %v8523
      %v8623 = vadd.f32 %v8407, %v8525
      %v8624 = vadd.f32 %v8408, %v8527
      %v8625 = vadd.f32 %v8409, %v8529
      %v8626 = vadd.f32 %v8410, %v8531
      %v8627 = vadd.f32 %v8411, %v8533
      %v8628 = vadd.f32 %v8412, %v8535
      %v8629 = vadd.f32 %v8413, %v8537
      %v8630 = vadd.f32 %v8414, %v8539
      %v8631 = vadd.f32 %v8415, %v8541
      %v8632 = vadd.f32 %v8416, %v8543
      %v8633 = vadd.f32 %v8417, %v8545
      %v8634 = vadd.f32 %v8418, %v8547
      %v8635 = vadd.f32 %v8419, %v8549
      %v8636 = vadd.f32 %v8420, %v8551
      %v8637 = vadd.f32 %v8421, %v8553
      %v8638 = vadd.f32 %v8422, %v8555
      %v8639 = vadd.f32 %v8423, %v8557
      %v8640 = vadd.f32 %v8424, %v8559
      %v8641 = vadd.f32 %v8425, %v8561
      %v8642 = vadd.f32 %v8426, %v8563
      %v8643 = vadd.f32 %v8427, %v8565
      %v8644 = vadd.f32 %v8428, %v8567
      %v8645 = vadd.f32 %v8429, %v8569
      %v8646 = vadd.f32 %v8430, %v8571
      %v8647 = vadd.f32 %v8431, %v8573
      %v8648 = vadd.f32 %v8432, %v8575
      %v8649 = vadd.f32 %v8433, %v8577
      %v8650 = vld [vmem:[#allocation5 + $0x141] sm:$0xff]
      %v8651 = vld [vmem:[#allocation5 + $0x149] sm:$0xff]
      %8654 = vrot.lane.b32.xlu0 %v8436, 104
      %v8655 = vpop.permute.xlu0 %8654
      %8656 = vrot.lane.b32.xlu0 %v8437, 104
      %v8657 = vpop.permute.xlu0 %8656
      %8658 = vrot.lane.b32.xlu0 %v8438, 104
      %v8659 = vpop.permute.xlu0 %8658
      %8660 = vrot.lane.b32.xlu0 %v8439, 104
      %v8661 = vpop.permute.xlu0 %8660
      %8662 = vrot.lane.b32.xlu0 %v8440, 104
      %v8663 = vpop.permute.xlu0 %8662
      %8664 = vrot.lane.b32.xlu0 %v8441, 104
      %v8665 = vpop.permute.xlu0 %8664
      %8666 = vrot.lane.b32.xlu0 %v8442, 104
      %v8667 = vpop.permute.xlu0 %8666
      %8668 = vrot.lane.b32.xlu0 %v8443, 104
      %v8669 = vpop.permute.xlu0 %8668
      %8670 = vrot.lane.b32.xlu0 %v8444, 104
      %v8671 = vpop.permute.xlu0 %8670
      %8672 = vrot.lane.b32.xlu0 %v8445, 104
      %v8673 = vpop.permute.xlu0 %8672
      %8674 = vrot.lane.b32.xlu0 %v8446, 104
      %v8675 = vpop.permute.xlu0 %8674
      %8676 = vrot.lane.b32.xlu0 %v8447, 104
      %v8677 = vpop.permute.xlu0 %8676
      %8678 = vrot.lane.b32.xlu0 %v8448, 104
      %v8679 = vpop.permute.xlu0 %8678
      %8680 = vrot.lane.b32.xlu0 %v8449, 104
      %v8681 = vpop.permute.xlu0 %8680
      %8682 = vrot.lane.b32.xlu0 %v8450, 104
      %v8683 = vpop.permute.xlu0 %8682
      %8684 = vrot.lane.b32.xlu0 %v8451, 104
      %v8685 = vpop.permute.xlu0 %8684
      %8686 = vrot.lane.b32.xlu0 %v8452, 104
      %v8687 = vpop.permute.xlu0 %8686
      %8688 = vrot.lane.b32.xlu0 %v8453, 104
      %v8689 = vpop.permute.xlu0 %8688
      %8690 = vrot.lane.b32.xlu0 %v8454, 104
      %v8691 = vpop.permute.xlu0 %8690
      %8692 = vrot.lane.b32.xlu0 %v8455, 104
      %v8693 = vpop.permute.xlu0 %8692
      %8694 = vrot.lane.b32.xlu0 %v8456, 104
      %v8695 = vpop.permute.xlu0 %8694
      %8696 = vrot.lane.b32.xlu0 %v8457, 104
      %v8697 = vpop.permute.xlu0 %8696
      %8698 = vrot.lane.b32.xlu0 %v8458, 104
      %v8699 = vpop.permute.xlu0 %8698
      %8700 = vrot.lane.b32.xlu0 %v8459, 104
      %v8701 = vpop.permute.xlu0 %8700
      %8702 = vrot.lane.b32.xlu0 %v8460, 104
      %v8703 = vpop.permute.xlu0 %8702
      %8704 = vrot.lane.b32.xlu0 %v8461, 104
      %v8705 = vpop.permute.xlu0 %8704
      %8706 = vrot.lane.b32.xlu0 %v8462, 104
      %v8707 = vpop.permute.xlu0 %8706
      %8708 = vrot.lane.b32.xlu0 %v8463, 104
      %v8709 = vpop.permute.xlu0 %8708
      %8710 = vrot.lane.b32.xlu0 %v8464, 104
      %v8711 = vpop.permute.xlu0 %8710
      %8712 = vrot.lane.b32.xlu0 %v8465, 104
      %v8713 = vpop.permute.xlu0 %8712
      %8714 = vrot.lane.b32.xlu0 %v8466, 104
      %v8715 = vpop.permute.xlu0 %8714
      %8716 = vrot.lane.b32.xlu0 %v8467, 104
      %v8717 = vpop.permute.xlu0 %8716
      %8718 = vrot.lane.b32.xlu0 %v8468, 104
      %v8719 = vpop.permute.xlu0 %8718
      %8720 = vrot.lane.b32.xlu0 %v8469, 104
      %v8721 = vpop.permute.xlu0 %8720
      %8722 = vrot.lane.b32.xlu0 %v8650, 104
      %v8723 = vpop.permute.xlu0 %8722
      %8724 = vrot.lane.b32.xlu0 %v8651, 104
      %v8725 = vpop.permute.xlu0 %8724
      %v8762 = vadd.f32 %v8614, %v8655
      %v8763 = vadd.f32 %v8615, %v8657
      %v8764 = vadd.f32 %v8616, %v8659
      %v8765 = vadd.f32 %v8617, %v8661
      %v8766 = vadd.f32 %v8618, %v8663
      %v8767 = vadd.f32 %v8619, %v8665
      %v8768 = vadd.f32 %v8620, %v8667
      %v8769 = vadd.f32 %v8621, %v8669
      %v8770 = vadd.f32 %v8622, %v8671
      %v8771 = vadd.f32 %v8623, %v8673
      %v8772 = vadd.f32 %v8624, %v8675
      %v8773 = vadd.f32 %v8625, %v8677
      %v8774 = vadd.f32 %v8626, %v8679
      %v8775 = vadd.f32 %v8627, %v8681
      %v8776 = vadd.f32 %v8628, %v8683
      %v8777 = vadd.f32 %v8629, %v8685
      %v8778 = vadd.f32 %v8630, %v8687
      %v8779 = vadd.f32 %v8631, %v8689
      %v8780 = vadd.f32 %v8632, %v8691
      %v8781 = vadd.f32 %v8633, %v8693
      %v8782 = vadd.f32 %v8634, %v8695
      %v8783 = vadd.f32 %v8635, %v8697
      %v8784 = vadd.f32 %v8636, %v8699
      %v8785 = vadd.f32 %v8637, %v8701
      %v8786 = vadd.f32 %v8638, %v8703
      %v8787 = vadd.f32 %v8639, %v8705
      %v8788 = vadd.f32 %v8640, %v8707
      %v8789 = vadd.f32 %v8641, %v8709
      %v8790 = vadd.f32 %v8642, %v8711
      %v8791 = vadd.f32 %v8643, %v8713
      %v8792 = vadd.f32 %v8644, %v8715
      %v8793 = vadd.f32 %v8645, %v8717
      %v8794 = vadd.f32 %v8646, %v8719
      %v8795 = vadd.f32 %v8647, %v8721
      %v8796 = vadd.f32 %v8648, %v8723
      %v8797 = vadd.f32 %v8649, %v8725
      %v8798 = vld [vmem:[#allocation5 + $0x32] sm:$0xff]
      %v8799 = vld [vmem:[#allocation5 + $0x3a] sm:$0xff]
      %v8800 = vld [vmem:[#allocation5 + $0x42] sm:$0xff]
      %v8801 = vld [vmem:[#allocation5 + $0x4a] sm:$0xff]
      %v8802 = vld [vmem:[#allocation5 + $0x52] sm:$0xff]
      %v8803 = vld [vmem:[#allocation5 + $0x5a] sm:$0xff]
      %v8804 = vld [vmem:[#allocation5 + $0x62] sm:$0xff]
      %v8805 = vld [vmem:[#allocation5 + $0x6a] sm:$0xff]
      %v8806 = vld [vmem:[#allocation5 + $0x72] sm:$0xff]
      %v8807 = vld [vmem:[#allocation5 + $0x7a] sm:$0xff]
      %v8808 = vld [vmem:[#allocation5 + $0x82] sm:$0xff]
      %v8809 = vld [vmem:[#allocation5 + $0x8a] sm:$0xff]
      %v8810 = vld [vmem:[#allocation5 + $0x92] sm:$0xff]
      %v8811 = vld [vmem:[#allocation5 + $0x9a] sm:$0xff]
      %v8812 = vld [vmem:[#allocation5 + $0xa2] sm:$0xff]
      %v8813 = vld [vmem:[#allocation5 + $0xaa] sm:$0xff]
      %v8814 = vld [vmem:[#allocation5 + $0xb2] sm:$0xff]
      %v8815 = vld [vmem:[#allocation5 + $0xba] sm:$0xff]
      %v8816 = vld [vmem:[#allocation5 + $0xc2] sm:$0xff]
      %v8817 = vld [vmem:[#allocation5 + $0xca] sm:$0xff]
      %v8818 = vld [vmem:[#allocation5 + $0xd2] sm:$0xff]
      %v8819 = vld [vmem:[#allocation5 + $0xda] sm:$0xff]
      %v8820 = vld [vmem:[#allocation5 + $0xe2] sm:$0xff]
      %v8821 = vld [vmem:[#allocation5 + $0xea] sm:$0xff]
      %v8822 = vld [vmem:[#allocation5 + $0xf2] sm:$0xff]
      %v8823 = vld [vmem:[#allocation5 + $0xfa] sm:$0xff]
      %v8824 = vld [vmem:[#allocation5 + $0x102] sm:$0xff]
      %v8825 = vld [vmem:[#allocation5 + $0x10a] sm:$0xff]
      %v8826 = vld [vmem:[#allocation5 + $0x112] sm:$0xff]
      %v8827 = vld [vmem:[#allocation5 + $0x11a] sm:$0xff]
      %v8828 = vld [vmem:[#allocation5 + $0x122] sm:$0xff]
      %v8829 = vld [vmem:[#allocation5 + $0x12a] sm:$0xff]
      %v8830 = vld [vmem:[#allocation5 + $0x132] sm:$0xff]
      %v8831 = vld [vmem:[#allocation5 + $0x13a] sm:$0xff]
      %v8832 = vld [vmem:[#allocation5 + $0x142] sm:$0xff]
      %v8833 = vld [vmem:[#allocation5 + $0x14a] sm:$0xff]
      %8870 = vrot.lane.b32.xlu0 %v8798, 100
      %v8871 = vpop.permute.xlu0 %8870
      %8872 = vrot.lane.b32.xlu0 %v8799, 100
      %v8873 = vpop.permute.xlu0 %8872
      %8874 = vrot.lane.b32.xlu0 %v8800, 100
      %v8875 = vpop.permute.xlu0 %8874
      %8876 = vrot.lane.b32.xlu0 %v8801, 100
      %v8877 = vpop.permute.xlu0 %8876
      %8878 = vrot.lane.b32.xlu0 %v8802, 100
      %v8879 = vpop.permute.xlu0 %8878
      %8880 = vrot.lane.b32.xlu0 %v8803, 100
      %v8881 = vpop.permute.xlu0 %8880
      %8882 = vrot.lane.b32.xlu0 %v8804, 100
      %v8883 = vpop.permute.xlu0 %8882
      %8884 = vrot.lane.b32.xlu0 %v8805, 100
      %v8885 = vpop.permute.xlu0 %8884
      %8886 = vrot.lane.b32.xlu0 %v8806, 100
      %v8887 = vpop.permute.xlu0 %8886
      %8888 = vrot.lane.b32.xlu0 %v8807, 100
      %v8889 = vpop.permute.xlu0 %8888
      %8890 = vrot.lane.b32.xlu0 %v8808, 100
      %v8891 = vpop.permute.xlu0 %8890
      %8892 = vrot.lane.b32.xlu0 %v8809, 100
      %v8893 = vpop.permute.xlu0 %8892
      %8894 = vrot.lane.b32.xlu0 %v8810, 100
      %v8895 = vpop.permute.xlu0 %8894
      %8896 = vrot.lane.b32.xlu0 %v8811, 100
      %v8897 = vpop.permute.xlu0 %8896
      %8898 = vrot.lane.b32.xlu0 %v8812, 100
      %v8899 = vpop.permute.xlu0 %8898
      %8900 = vrot.lane.b32.xlu0 %v8813, 100
      %v8901 = vpop.permute.xlu0 %8900
      %8902 = vrot.lane.b32.xlu0 %v8814, 100
      %v8903 = vpop.permute.xlu0 %8902
      %8904 = vrot.lane.b32.xlu0 %v8815, 100
      %v8905 = vpop.permute.xlu0 %8904
      %8906 = vrot.lane.b32.xlu0 %v8816, 100
      %v8907 = vpop.permute.xlu0 %8906
      %8908 = vrot.lane.b32.xlu0 %v8817, 100
      %v8909 = vpop.permute.xlu0 %8908
      %8910 = vrot.lane.b32.xlu0 %v8818, 100
      %v8911 = vpop.permute.xlu0 %8910
      %8912 = vrot.lane.b32.xlu0 %v8819, 100
      %v8913 = vpop.permute.xlu0 %8912
      %8914 = vrot.lane.b32.xlu0 %v8820, 100
      %v8915 = vpop.permute.xlu0 %8914
      %8916 = vrot.lane.b32.xlu0 %v8821, 100
      %v8917 = vpop.permute.xlu0 %8916
      %8918 = vrot.lane.b32.xlu0 %v8822, 100
      %v8919 = vpop.permute.xlu0 %8918
      %8920 = vrot.lane.b32.xlu0 %v8823, 100
      %v8921 = vpop.permute.xlu0 %8920
      %8922 = vrot.lane.b32.xlu0 %v8824, 100
      %v8923 = vpop.permute.xlu0 %8922
      %8924 = vrot.lane.b32.xlu0 %v8825, 100
      %v8925 = vpop.permute.xlu0 %8924
      %8926 = vrot.lane.b32.xlu0 %v8826, 100
      %v8927 = vpop.permute.xlu0 %8926
      %8928 = vrot.lane.b32.xlu0 %v8827, 100
      %v8929 = vpop.permute.xlu0 %8928
      %8930 = vrot.lane.b32.xlu0 %v8828, 100
      %v8931 = vpop.permute.xlu0 %8930
      %8932 = vrot.lane.b32.xlu0 %v8829, 100
      %v8933 = vpop.permute.xlu0 %8932
      %8934 = vrot.lane.b32.xlu0 %v8830, 100
      %v8935 = vpop.permute.xlu0 %8934
      %8936 = vrot.lane.b32.xlu0 %v8831, 100
      %v8937 = vpop.permute.xlu0 %8936
      %8938 = vrot.lane.b32.xlu0 %v8832, 100
      %v8939 = vpop.permute.xlu0 %8938
      %8940 = vrot.lane.b32.xlu0 %v8833, 100
      %v8941 = vpop.permute.xlu0 %8940
      %v8978 = vadd.f32 %v8762, %v8871
      %v8979 = vadd.f32 %v8763, %v8873
      %v8980 = vadd.f32 %v8764, %v8875
      %v8981 = vadd.f32 %v8765, %v8877
      %v8982 = vadd.f32 %v8766, %v8879
      %v8983 = vadd.f32 %v8767, %v8881
      %v8984 = vadd.f32 %v8768, %v8883
      %v8985 = vadd.f32 %v8769, %v8885
      %v8986 = vadd.f32 %v8770, %v8887
      %v8987 = vadd.f32 %v8771, %v8889
      %v8988 = vadd.f32 %v8772, %v8891
      %v8989 = vadd.f32 %v8773, %v8893
      %v8990 = vadd.f32 %v8774, %v8895
      %v8991 = vadd.f32 %v8775, %v8897
      %v8992 = vadd.f32 %v8776, %v8899
      %v8993 = vadd.f32 %v8777, %v8901
      %v8994 = vadd.f32 %v8778, %v8903
      %v8995 = vadd.f32 %v8779, %v8905
      %v8996 = vadd.f32 %v8780, %v8907
      %v8997 = vadd.f32 %v8781, %v8909
      %v8998 = vadd.f32 %v8782, %v8911
      %v8999 = vadd.f32 %v8783, %v8913
      %v9000 = vadd.f32 %v8784, %v8915
      %v9001 = vadd.f32 %v8785, %v8917
      %v9002 = vadd.f32 %v8786, %v8919
      %v9003 = vadd.f32 %v8787, %v8921
      %v9004 = vadd.f32 %v8788, %v8923
      %v9005 = vadd.f32 %v8789, %v8925
      %v9006 = vadd.f32 %v8790, %v8927
      %v9007 = vadd.f32 %v8791, %v8929
      %v9008 = vadd.f32 %v8792, %v8931
      %v9009 = vadd.f32 %v8793, %v8933
      %v9010 = vadd.f32 %v8794, %v8935
      %v9011 = vadd.f32 %v8795, %v8937
      %v9012 = vadd.f32 %v8796, %v8939
      %v9013 = vadd.f32 %v8797, %v8941
      %v9014 = vld [vmem:[#allocation5 + $0x33] sm:$0xff]
      %v9015 = vld [vmem:[#allocation5 + $0x3b] sm:$0xff]
      %v9016 = vld [vmem:[#allocation5 + $0x43] sm:$0xff]
      %v9017 = vld [vmem:[#allocation5 + $0x4b] sm:$0xff]
      %v9018 = vld [vmem:[#allocation5 + $0x53] sm:$0xff]
      %v9019 = vld [vmem:[#allocation5 + $0x5b] sm:$0xff]
      %v9020 = vld [vmem:[#allocation5 + $0x63] sm:$0xff]
      %v9021 = vld [vmem:[#allocation5 + $0x6b] sm:$0xff]
      %v9022 = vld [vmem:[#allocation5 + $0x73] sm:$0xff]
      %v9023 = vld [vmem:[#allocation5 + $0x7b] sm:$0xff]
      %v9024 = vld [vmem:[#allocation5 + $0x83] sm:$0xff]
      %v9025 = vld [vmem:[#allocation5 + $0x8b] sm:$0xff]
      %v9026 = vld [vmem:[#allocation5 + $0x93] sm:$0xff]
      %v9027 = vld [vmem:[#allocation5 + $0x9b] sm:$0xff]
      %v9028 = vld [vmem:[#allocation5 + $0xa3] sm:$0xff]
      %v9029 = vld [vmem:[#allocation5 + $0xab] sm:$0xff]
      %v9030 = vld [vmem:[#allocation5 + $0xb3] sm:$0xff]
      %v9031 = vld [vmem:[#allocation5 + $0xbb] sm:$0xff]
      %v9032 = vld [vmem:[#allocation5 + $0xc3] sm:$0xff]
      %v9033 = vld [vmem:[#allocation5 + $0xcb] sm:$0xff]
      %v9034 = vld [vmem:[#allocation5 + $0xd3] sm:$0xff]
      %v9035 = vld [vmem:[#allocation5 + $0xdb] sm:$0xff]
      %v9036 = vld [vmem:[#allocation5 + $0xe3] sm:$0xff]
      %v9037 = vld [vmem:[#allocation5 + $0xeb] sm:$0xff]
      %v9038 = vld [vmem:[#allocation5 + $0xf3] sm:$0xff]
      %v9039 = vld [vmem:[#allocation5 + $0xfb] sm:$0xff]
      %v9040 = vld [vmem:[#allocation5 + $0x103] sm:$0xff]
      %v9041 = vld [vmem:[#allocation5 + $0x10b] sm:$0xff]
      %v9042 = vld [vmem:[#allocation5 + $0x113] sm:$0xff]
      %v9043 = vld [vmem:[#allocation5 + $0x11b] sm:$0xff]
      %v9044 = vld [vmem:[#allocation5 + $0x123] sm:$0xff]
      %v9045 = vld [vmem:[#allocation5 + $0x12b] sm:$0xff]
      %v9046 = vld [vmem:[#allocation5 + $0x133] sm:$0xff]
      %v9047 = vld [vmem:[#allocation5 + $0x13b] sm:$0xff]
      %v9048 = vld [vmem:[#allocation5 + $0x143] sm:$0xff]
      %v9049 = vld [vmem:[#allocation5 + $0x14b] sm:$0xff]
      %9086 = vrot.lane.b32.xlu0 %v9014, 96
      %v9087 = vpop.permute.xlu0 %9086
      %9088 = vrot.lane.b32.xlu0 %v9015, 96
      %v9089 = vpop.permute.xlu0 %9088
      %9090 = vrot.lane.b32.xlu0 %v9016, 96
      %v9091 = vpop.permute.xlu0 %9090
      %9092 = vrot.lane.b32.xlu0 %v9017, 96
      %v9093 = vpop.permute.xlu0 %9092
      %9094 = vrot.lane.b32.xlu0 %v9018, 96
      %v9095 = vpop.permute.xlu0 %9094
      %9096 = vrot.lane.b32.xlu0 %v9019, 96
      %v9097 = vpop.permute.xlu0 %9096
      %9098 = vrot.lane.b32.xlu0 %v9020, 96
      %v9099 = vpop.permute.xlu0 %9098
      %9100 = vrot.lane.b32.xlu0 %v9021, 96
      %v9101 = vpop.permute.xlu0 %9100
      %9102 = vrot.lane.b32.xlu0 %v9022, 96
      %v9103 = vpop.permute.xlu0 %9102
      %9104 = vrot.lane.b32.xlu0 %v9023, 96
      %v9105 = vpop.permute.xlu0 %9104
      %9106 = vrot.lane.b32.xlu0 %v9024, 96
      %v9107 = vpop.permute.xlu0 %9106
      %9108 = vrot.lane.b32.xlu0 %v9025, 96
      %v9109 = vpop.permute.xlu0 %9108
      %9110 = vrot.lane.b32.xlu0 %v9026, 96
      %v9111 = vpop.permute.xlu0 %9110
      %9112 = vrot.lane.b32.xlu0 %v9027, 96
      %v9113 = vpop.permute.xlu0 %9112
      %9114 = vrot.lane.b32.xlu0 %v9028, 96
      %v9115 = vpop.permute.xlu0 %9114
      %9116 = vrot.lane.b32.xlu0 %v9029, 96
      %v9117 = vpop.permute.xlu0 %9116
      %9118 = vrot.lane.b32.xlu0 %v9030, 96
      %v9119 = vpop.permute.xlu0 %9118
      %9120 = vrot.lane.b32.xlu0 %v9031, 96
      %v9121 = vpop.permute.xlu0 %9120
      %9122 = vrot.lane.b32.xlu0 %v9032, 96
      %v9123 = vpop.permute.xlu0 %9122
      %9124 = vrot.lane.b32.xlu0 %v9033, 96
      %v9125 = vpop.permute.xlu0 %9124
      %9126 = vrot.lane.b32.xlu0 %v9034, 96
      %v9127 = vpop.permute.xlu0 %9126
      %9128 = vrot.lane.b32.xlu0 %v9035, 96
      %v9129 = vpop.permute.xlu0 %9128
      %9130 = vrot.lane.b32.xlu0 %v9036, 96
      %v9131 = vpop.permute.xlu0 %9130
      %9132 = vrot.lane.b32.xlu0 %v9037, 96
      %v9133 = vpop.permute.xlu0 %9132
      %9134 = vrot.lane.b32.xlu0 %v9038, 96
      %v9135 = vpop.permute.xlu0 %9134
      %9136 = vrot.lane.b32.xlu0 %v9039, 96
      %v9137 = vpop.permute.xlu0 %9136
      %9138 = vrot.lane.b32.xlu0 %v9040, 96
      %v9139 = vpop.permute.xlu0 %9138
      %9140 = vrot.lane.b32.xlu0 %v9041, 96
      %v9141 = vpop.permute.xlu0 %9140
      %9142 = vrot.lane.b32.xlu0 %v9042, 96
      %v9143 = vpop.permute.xlu0 %9142
      %9144 = vrot.lane.b32.xlu0 %v9043, 96
      %v9145 = vpop.permute.xlu0 %9144
      %9146 = vrot.lane.b32.xlu0 %v9044, 96
      %v9147 = vpop.permute.xlu0 %9146
      %9148 = vrot.lane.b32.xlu0 %v9045, 96
      %v9149 = vpop.permute.xlu0 %9148
      %9150 = vrot.lane.b32.xlu0 %v9046, 96
      %v9151 = vpop.permute.xlu0 %9150
      %9152 = vrot.lane.b32.xlu0 %v9047, 96
      %v9153 = vpop.permute.xlu0 %9152
      %9154 = vrot.lane.b32.xlu0 %v9048, 96
      %v9155 = vpop.permute.xlu0 %9154
      %9156 = vrot.lane.b32.xlu0 %v9049, 96
      %v9157 = vpop.permute.xlu0 %9156
      %v9194 = vadd.f32 %v8978, %v9087
      %v9195 = vadd.f32 %v8979, %v9089
      %v9196 = vadd.f32 %v8980, %v9091
      %v9197 = vadd.f32 %v8981, %v9093
      %v9198 = vadd.f32 %v8982, %v9095
      %v9199 = vadd.f32 %v8983, %v9097
      %v9200 = vadd.f32 %v8984, %v9099
      %v9201 = vadd.f32 %v8985, %v9101
      %v9202 = vadd.f32 %v8986, %v9103
      %v9203 = vadd.f32 %v8987, %v9105
      %v9204 = vadd.f32 %v8988, %v9107
      %v9205 = vadd.f32 %v8989, %v9109
      %v9206 = vadd.f32 %v8990, %v9111
      %v9207 = vadd.f32 %v8991, %v9113
      %v9208 = vadd.f32 %v8992, %v9115
      %v9209 = vadd.f32 %v8993, %v9117
      %v9210 = vadd.f32 %v8994, %v9119
      %v9211 = vadd.f32 %v8995, %v9121
      %v9212 = vadd.f32 %v8996, %v9123
      %v9213 = vadd.f32 %v8997, %v9125
      %v9214 = vadd.f32 %v8998, %v9127
      %v9215 = vadd.f32 %v8999, %v9129
      %v9216 = vadd.f32 %v9000, %v9131
      %v9217 = vadd.f32 %v9001, %v9133
      %v9218 = vadd.f32 %v9002, %v9135
      %v9219 = vadd.f32 %v9003, %v9137
      %v9220 = vadd.f32 %v9004, %v9139
      %v9221 = vadd.f32 %v9005, %v9141
      %v9222 = vadd.f32 %v9006, %v9143
      %v9223 = vadd.f32 %v9007, %v9145
      %v9224 = vadd.f32 %v9008, %v9147
      %v9225 = vadd.f32 %v9009, %v9149
      %v9226 = vadd.f32 %v9010, %v9151
      %v9227 = vadd.f32 %v9011, %v9153
      %v9228 = vadd.f32 %v9012, %v9155
      %v9229 = vadd.f32 %v9013, %v9157
      %v9230 = vld [vmem:[%s10] sm:$0x1]
      %v9232 = vlaneseq
      %v9233 = vshrl.u32 %v9232, 7
      %v9234 = vsub.s32 0, %v9233
      %v9235 = vrot.slane %v9230, %v9234
      %v9237 = vadd.f32 %v9194, %v9235
      %v9238 = vadd.f32 %v9195, %v9235
      %v9239 = vadd.f32 %v9196, %v9235
      %v9240 = vadd.f32 %v9197, %v9235
      %v9241 = vadd.f32 %v9198, %v9235
      %v9242 = vadd.f32 %v9199, %v9235
      %v9243 = vadd.f32 %v9200, %v9235
      %v9244 = vadd.f32 %v9201, %v9235
      %v9245 = vadd.f32 %v9202, %v9235
      %v9246 = vadd.f32 %v9203, %v9235
      %v9247 = vadd.f32 %v9204, %v9235
      %v9248 = vadd.f32 %v9205, %v9235
      %v9249 = vadd.f32 %v9206, %v9235
      %v9250 = vadd.f32 %v9207, %v9235
      %v9251 = vadd.f32 %v9208, %v9235
      %v9252 = vadd.f32 %v9209, %v9235
      %v9253 = vadd.f32 %v9210, %v9235
      %v9254 = vadd.f32 %v9211, %v9235
      %v9255 = vadd.f32 %v9212, %v9235
      %v9256 = vadd.f32 %v9213, %v9235
      %v9257 = vadd.f32 %v9214, %v9235
      %v9258 = vadd.f32 %v9215, %v9235
      %v9259 = vadd.f32 %v9216, %v9235
      %v9260 = vadd.f32 %v9217, %v9235
      %v9261 = vadd.f32 %v9218, %v9235
      %v9262 = vadd.f32 %v9219, %v9235
      %v9263 = vadd.f32 %v9220, %v9235
      %v9264 = vadd.f32 %v9221, %v9235
      %v9265 = vadd.f32 %v9222, %v9235
      %v9266 = vadd.f32 %v9223, %v9235
      %v9267 = vadd.f32 %v9224, %v9235
      %v9268 = vadd.f32 %v9225, %v9235
      %v9269 = vadd.f32 %v9226, %v9235
      %v9270 = vadd.f32 %v9227, %v9235
      %v9271 = vadd.f32 %v9228, %v9235
      %v9272 = vadd.f32 %v9229, %v9235
      %v9273 = vld [vmem:[%s11] sm:$0x1]
      %v9275 = vlaneseq
      %v9276 = vshrl.u32 %v9275, 7
      %v9277 = vsub.s32 0, %v9276
      %v9278 = vrot.slane %v9273, %v9277
      %v9280 = vmul.f32 %v9237, %v9278
      %v9281 = vmul.f32 %v9238, %v9278
      %v9282 = vmul.f32 %v9239, %v9278
      %v9283 = vmul.f32 %v9240, %v9278
      %v9284 = vmul.f32 %v9241, %v9278
      %v9285 = vmul.f32 %v9242, %v9278
      %v9286 = vmul.f32 %v9243, %v9278
      %v9287 = vmul.f32 %v9244, %v9278
      %v9288 = vmul.f32 %v9245, %v9278
      %v9289 = vmul.f32 %v9246, %v9278
      %v9290 = vmul.f32 %v9247, %v9278
      %v9291 = vmul.f32 %v9248, %v9278
      %v9292 = vmul.f32 %v9249, %v9278
      %v9293 = vmul.f32 %v9250, %v9278
      %v9294 = vmul.f32 %v9251, %v9278
      %v9295 = vmul.f32 %v9252, %v9278
      %v9296 = vmul.f32 %v9253, %v9278
      %v9297 = vmul.f32 %v9254, %v9278
      %v9298 = vmul.f32 %v9255, %v9278
      %v9299 = vmul.f32 %v9256, %v9278
      %v9300 = vmul.f32 %v9257, %v9278
      %v9301 = vmul.f32 %v9258, %v9278
      %v9302 = vmul.f32 %v9259, %v9278
      %v9303 = vmul.f32 %v9260, %v9278
      %v9304 = vmul.f32 %v9261, %v9278
      %v9305 = vmul.f32 %v9262, %v9278
      %v9306 = vmul.f32 %v9263, %v9278
      %v9307 = vmul.f32 %v9264, %v9278
      %v9308 = vmul.f32 %v9265, %v9278
      %v9309 = vmul.f32 %v9266, %v9278
      %v9310 = vmul.f32 %v9267, %v9278
      %v9311 = vmul.f32 %v9268, %v9278
      %v9312 = vmul.f32 %v9269, %v9278
      %v9313 = vmul.f32 %v9270, %v9278
      %v9314 = vmul.f32 %v9271, %v9278
      %v9315 = vmul.f32 %v9272, %v9278
      %v9316 = vld [vmem:[#allocation2 + $0x13] sm:$0xff]
      %v9317 = vld [vmem:[#allocation2 + $0x1b] sm:$0xff]
      %v9318 = vld [vmem:[#allocation2 + $0x23] sm:$0xff]
      %v9319 = vld [vmem:[#allocation2 + $0x2b] sm:$0xff]
      %v9320 = vld [vmem:[#allocation2 + $0x33] sm:$0xff]
      %v9321 = vld [vmem:[#allocation2 + $0x3b] sm:$0xff]
      %v9322 = vld [vmem:[#allocation2 + $0x43] sm:$0xff]
      %v9323 = vld [vmem:[#allocation2 + $0x4b] sm:$0xff]
      %v9324 = vld [vmem:[#allocation2 + $0x53] sm:$0xff]
      %v9325 = vld [vmem:[#allocation2 + $0x5b] sm:$0xff]
      %v9326 = vld [vmem:[#allocation2 + $0x63] sm:$0xff]
      %v9327 = vld [vmem:[#allocation2 + $0x6b] sm:$0xff]
      %v9328 = vld [vmem:[#allocation2 + $0x73] sm:$0xff]
      %v9329 = vld [vmem:[#allocation2 + $0x7b] sm:$0xff]
      %v9330 = vld [vmem:[#allocation2 + $0x83] sm:$0xff]
      %v9331 = vld [vmem:[#allocation2 + $0x8b] sm:$0xff]
      %v9332 = vld [vmem:[#allocation2 + $0x93] sm:$0xff]
      %v9333 = vld [vmem:[#allocation2 + $0x9b] sm:$0xff]
      %v9334 = vld [vmem:[#allocation2 + $0xa3] sm:$0xff]
      %v9335 = vld [vmem:[#allocation2 + $0xab] sm:$0xff]
      %v9336 = vld [vmem:[#allocation2 + $0xb3] sm:$0xff]
      %v9337 = vld [vmem:[#allocation2 + $0xbb] sm:$0xff]
      %v9338 = vld [vmem:[#allocation2 + $0xc3] sm:$0xff]
      %v9339 = vld [vmem:[#allocation2 + $0xcb] sm:$0xff]
      %v9340 = vld [vmem:[#allocation2 + $0xd3] sm:$0xff]
      %v9341 = vld [vmem:[#allocation2 + $0xdb] sm:$0xff]
      %v9342 = vld [vmem:[#allocation2 + $0xe3] sm:$0xff]
      %v9343 = vld [vmem:[#allocation2 + $0xeb] sm:$0xff]
      %v9344 = vld [vmem:[#allocation2 + $0xf3] sm:$0xff]
      %v9345 = vld [vmem:[#allocation2 + $0xfb] sm:$0xff]
      %v9346 = vld [vmem:[#allocation2 + $0x103] sm:$0xff]
      %v9347 = vld [vmem:[#allocation2 + $0x10b] sm:$0xff]
      %v9348 = vld [vmem:[#allocation2 + $0x113] sm:$0xff]
      %v9349 = vld [vmem:[#allocation2 + $0x11b] sm:$0xff]
      %v9350 = vld [vmem:[#allocation2 + $0x123] sm:$0xff]
      %v9351 = vld [vmem:[#allocation2 + $0x12b] sm:$0xff]
      %v9352 = vadd.f32 %v9280, 2.0
      %v9353 = vadd.f32 %v9281, 2.0
      %v9354 = vadd.f32 %v9282, 2.0
      %v9355 = vadd.f32 %v9283, 2.0
      %v9356 = vadd.f32 %v9284, 2.0
      %v9357 = vadd.f32 %v9285, 2.0
      %v9358 = vadd.f32 %v9286, 2.0
      %v9359 = vadd.f32 %v9287, 2.0
      %v9360 = vadd.f32 %v9288, 2.0
      %v9361 = vadd.f32 %v9289, 2.0
      %v9362 = vadd.f32 %v9290, 2.0
      %v9363 = vadd.f32 %v9291, 2.0
      %v9364 = vadd.f32 %v9292, 2.0
      %v9365 = vadd.f32 %v9293, 2.0
      %v9366 = vadd.f32 %v9294, 2.0
      %v9367 = vadd.f32 %v9295, 2.0
      %v9368 = vadd.f32 %v9296, 2.0
      %v9369 = vadd.f32 %v9297, 2.0
      %v9370 = vadd.f32 %v9298, 2.0
      %v9371 = vadd.f32 %v9299, 2.0
      %v9372 = vadd.f32 %v9300, 2.0
      %v9373 = vadd.f32 %v9301, 2.0
      %v9374 = vadd.f32 %v9302, 2.0
      %v9375 = vadd.f32 %v9303, 2.0
      %v9376 = vadd.f32 %v9304, 2.0
      %v9377 = vadd.f32 %v9305, 2.0
      %v9378 = vadd.f32 %v9306, 2.0
      %v9379 = vadd.f32 %v9307, 2.0
      %v9380 = vadd.f32 %v9308, 2.0
      %v9381 = vadd.f32 %v9309, 2.0
      %v9382 = vadd.f32 %v9310, 2.0
      %v9383 = vadd.f32 %v9311, 2.0
      %v9384 = vadd.f32 %v9312, 2.0
      %v9385 = vadd.f32 %v9313, 2.0
      %v9386 = vadd.f32 %v9314, 2.0
      %v9387 = vadd.f32 %v9315, 2.0
      %v9388 = vxor.u32 %v9352, 2147483648
      %v9389 = vxor.u32 %v9353, 2147483648
      %v9390 = vxor.u32 %v9354, 2147483648
      %v9391 = vxor.u32 %v9355, 2147483648
      %v9392 = vxor.u32 %v9356, 2147483648
      %v9393 = vxor.u32 %v9357, 2147483648
      %v9394 = vxor.u32 %v9358, 2147483648
      %v9395 = vxor.u32 %v9359, 2147483648
      %v9396 = vxor.u32 %v9360, 2147483648
      %v9397 = vxor.u32 %v9361, 2147483648
      %v9398 = vxor.u32 %v9362, 2147483648
      %v9399 = vxor.u32 %v9363, 2147483648
      %v9400 = vxor.u32 %v9364, 2147483648
      %v9401 = vxor.u32 %v9365, 2147483648
      %v9402 = vxor.u32 %v9366, 2147483648
      %v9403 = vxor.u32 %v9367, 2147483648
      %v9404 = vxor.u32 %v9368, 2147483648
      %v9405 = vxor.u32 %v9369, 2147483648
      %v9406 = vxor.u32 %v9370, 2147483648
      %v9407 = vxor.u32 %v9371, 2147483648
      %v9408 = vxor.u32 %v9372, 2147483648
      %v9409 = vxor.u32 %v9373, 2147483648
      %v9410 = vxor.u32 %v9374, 2147483648
      %v9411 = vxor.u32 %v9375, 2147483648
      %v9412 = vxor.u32 %v9376, 2147483648
      %v9413 = vxor.u32 %v9377, 2147483648
      %v9414 = vxor.u32 %v9378, 2147483648
      %v9415 = vxor.u32 %v9379, 2147483648
      %v9416 = vxor.u32 %v9380, 2147483648
      %v9417 = vxor.u32 %v9381, 2147483648
      %v9418 = vxor.u32 %v9382, 2147483648
      %v9419 = vxor.u32 %v9383, 2147483648
      %v9420 = vxor.u32 %v9384, 2147483648
      %v9421 = vxor.u32 %v9385, 2147483648
      %v9422 = vxor.u32 %v9386, 2147483648
      %v9423 = vxor.u32 %v9387, 2147483648
      %v9424 = vmul.f32 %v9388, 1.442695
      %v9425 = vpow.pop %v9424
      %v9426 = vmul.f32 %v9389, 1.442695
      %v9427 = vpow.pop %v9426
      %v9428 = vmul.f32 %v9390, 1.442695
      %v9429 = vpow.pop %v9428
      %v9430 = vmul.f32 %v9391, 1.442695
      %v9431 = vpow.pop %v9430
      %v9432 = vmul.f32 %v9392, 1.442695
      %v9433 = vpow.pop %v9432
      %v9434 = vmul.f32 %v9393, 1.442695
      %v9435 = vpow.pop %v9434
      %v9436 = vmul.f32 %v9394, 1.442695
      %v9437 = vpow.pop %v9436
      %v9438 = vmul.f32 %v9395, 1.442695
      %v9439 = vpow.pop %v9438
      %v9440 = vmul.f32 %v9396, 1.442695
      %v9441 = vpow.pop %v9440
      %v9442 = vmul.f32 %v9397, 1.442695
      %v9443 = vpow.pop %v9442
      %v9444 = vmul.f32 %v9398, 1.442695
      %v9445 = vpow.pop %v9444
      %v9446 = vmul.f32 %v9399, 1.442695
      %v9447 = vpow.pop %v9446
      %v9448 = vmul.f32 %v9400, 1.442695
      %v9449 = vpow.pop %v9448
      %v9450 = vmul.f32 %v9401, 1.442695
      %v9451 = vpow.pop %v9450
      %v9452 = vmul.f32 %v9402, 1.442695
      %v9453 = vpow.pop %v9452
      %v9454 = vmul.f32 %v9403, 1.442695
      %v9455 = vpow.pop %v9454
      %v9456 = vmul.f32 %v9404, 1.442695
      %v9457 = vpow.pop %v9456
      %v9458 = vmul.f32 %v9405, 1.442695
      %v9459 = vpow.pop %v9458
      %v9460 = vmul.f32 %v9406, 1.442695
      %v9461 = vpow.pop %v9460
      %v9462 = vmul.f32 %v9407, 1.442695
      %v9463 = vpow.pop %v9462
      %v9464 = vmul.f32 %v9408, 1.442695
      %v9465 = vpow.pop %v9464
      %v9466 = vmul.f32 %v9409, 1.442695
      %v9467 = vpow.pop %v9466
      %v9468 = vmul.f32 %v9410, 1.442695
      %v9469 = vpow.pop %v9468
      %v9470 = vmul.f32 %v9411, 1.442695
      %v9471 = vpow.pop %v9470
      %v9472 = vmul.f32 %v9412, 1.442695
      %v9473 = vpow.pop %v9472
      %v9474 = vmul.f32 %v9413, 1.442695
      %v9475 = vpow.pop %v9474
      %v9476 = vmul.f32 %v9414, 1.442695
      %v9477 = vpow.pop %v9476
      %v9478 = vmul.f32 %v9415, 1.442695
      %v9479 = vpow.pop %v9478
      %v9480 = vmul.f32 %v9416, 1.442695
      %v9481 = vpow.pop %v9480
      %v9482 = vmul.f32 %v9417, 1.442695
      %v9483 = vpow.pop %v9482
      %v9484 = vmul.f32 %v9418, 1.442695
      %v9485 = vpow.pop %v9484
      %v9486 = vmul.f32 %v9419, 1.442695
      %v9487 = vpow.pop %v9486
      %v9488 = vmul.f32 %v9420, 1.442695
      %v9489 = vpow.pop %v9488
      %v9490 = vmul.f32 %v9421, 1.442695
      %v9491 = vpow.pop %v9490
      %v9492 = vmul.f32 %v9422, 1.442695
      %v9493 = vpow.pop %v9492
      %v9494 = vmul.f32 %v9423, 1.442695
      %v9495 = vpow.pop %v9494
      %v9496 = vadd.f32 %v9425, 1.0
      %v9497 = vadd.f32 %v9427, 1.0
      %v9498 = vadd.f32 %v9429, 1.0
      %v9499 = vadd.f32 %v9431, 1.0
      %v9500 = vadd.f32 %v9433, 1.0
      %v9501 = vadd.f32 %v9435, 1.0
      %v9502 = vadd.f32 %v9437, 1.0
      %v9503 = vadd.f32 %v9439, 1.0
      %v9504 = vadd.f32 %v9441, 1.0
      %v9505 = vadd.f32 %v9443, 1.0
      %v9506 = vadd.f32 %v9445, 1.0
      %v9507 = vadd.f32 %v9447, 1.0
      %v9508 = vadd.f32 %v9449, 1.0
      %v9509 = vadd.f32 %v9451, 1.0
      %v9510 = vadd.f32 %v9453, 1.0
      %v9511 = vadd.f32 %v9455, 1.0
      %v9512 = vadd.f32 %v9457, 1.0
      %v9513 = vadd.f32 %v9459, 1.0
      %v9514 = vadd.f32 %v9461, 1.0
      %v9515 = vadd.f32 %v9463, 1.0
      %v9516 = vadd.f32 %v9465, 1.0
      %v9517 = vadd.f32 %v9467, 1.0
      %v9518 = vadd.f32 %v9469, 1.0
      %v9519 = vadd.f32 %v9471, 1.0
      %v9520 = vadd.f32 %v9473, 1.0
      %v9521 = vadd.f32 %v9475, 1.0
      %v9522 = vadd.f32 %v9477, 1.0
      %v9523 = vadd.f32 %v9479, 1.0
      %v9524 = vadd.f32 %v9481, 1.0
      %v9525 = vadd.f32 %v9483, 1.0
      %v9526 = vadd.f32 %v9485, 1.0
      %v9527 = vadd.f32 %v9487, 1.0
      %v9528 = vadd.f32 %v9489, 1.0
      %v9529 = vadd.f32 %v9491, 1.0
      %v9530 = vadd.f32 %v9493, 1.0
      %v9531 = vadd.f32 %v9495, 1.0
      %v9532 = vrcp.pop %v9496
      %v9533 = vmul.f32 1.0, %v9532
      %v9534 = vrcp.pop %v9497
      %v9535 = vmul.f32 1.0, %v9534
      %v9536 = vrcp.pop %v9498
      %v9537 = vmul.f32 1.0, %v9536
      %v9538 = vrcp.pop %v9499
      %v9539 = vmul.f32 1.0, %v9538
      %v9540 = vrcp.pop %v9500
      %v9541 = vmul.f32 1.0, %v9540
      %v9542 = vrcp.pop %v9501
      %v9543 = vmul.f32 1.0, %v9542
      %v9544 = vrcp.pop %v9502
      %v9545 = vmul.f32 1.0, %v9544
      %v9546 = vrcp.pop %v9503
      %v9547 = vmul.f32 1.0, %v9546
      %v9548 = vrcp.pop %v9504
      %v9549 = vmul.f32 1.0, %v9548
      %v9550 = vrcp.pop %v9505
      %v9551 = vmul.f32 1.0, %v9550
      %v9552 = vrcp.pop %v9506
      %v9553 = vmul.f32 1.0, %v9552
      %v9554 = vrcp.pop %v9507
      %v9555 = vmul.f32 1.0, %v9554
      %v9556 = vrcp.pop %v9508
      %v9557 = vmul.f32 1.0, %v9556
      %v9558 = vrcp.pop %v9509
      %v9559 = vmul.f32 1.0, %v9558
      %v9560 = vrcp.pop %v9510
      %v9561 = vmul.f32 1.0, %v9560
      %v9562 = vrcp.pop %v9511
      %v9563 = vmul.f32 1.0, %v9562
      %v9564 = vrcp.pop %v9512
      %v9565 = vmul.f32 1.0, %v9564
      %v9566 = vrcp.pop %v9513
      %v9567 = vmul.f32 1.0, %v9566
      %v9568 = vrcp.pop %v9514
      %v9569 = vmul.f32 1.0, %v9568
      %v9570 = vrcp.pop %v9515
      %v9571 = vmul.f32 1.0, %v9570
      %v9572 = vrcp.pop %v9516
      %v9573 = vmul.f32 1.0, %v9572
      %v9574 = vrcp.pop %v9517
      %v9575 = vmul.f32 1.0, %v9574
      %v9576 = vrcp.pop %v9518
      %v9577 = vmul.f32 1.0, %v9576
      %v9578 = vrcp.pop %v9519
      %v9579 = vmul.f32 1.0, %v9578
      %v9580 = vrcp.pop %v9520
      %v9581 = vmul.f32 1.0, %v9580
      %v9582 = vrcp.pop %v9521
      %v9583 = vmul.f32 1.0, %v9582
      %v9584 = vrcp.pop %v9522
      %v9585 = vmul.f32 1.0, %v9584
      %v9586 = vrcp.pop %v9523
      %v9587 = vmul.f32 1.0, %v9586
      %v9588 = vrcp.pop %v9524
      %v9589 = vmul.f32 1.0, %v9588
      %v9590 = vrcp.pop %v9525
      %v9591 = vmul.f32 1.0, %v9590
      %v9592 = vrcp.pop %v9526
      %v9593 = vmul.f32 1.0, %v9592
      %v9594 = vrcp.pop %v9527
      %v9595 = vmul.f32 1.0, %v9594
      %v9596 = vrcp.pop %v9528
      %v9597 = vmul.f32 1.0, %v9596
      %v9598 = vrcp.pop %v9529
      %v9599 = vmul.f32 1.0, %v9598
      %v9600 = vrcp.pop %v9530
      %v9601 = vmul.f32 1.0, %v9600
      %v9602 = vrcp.pop %v9531
      %v9603 = vmul.f32 1.0, %v9602
      %v9604 = vadd.f32 %v9316, %v9280
      %v9605 = vadd.f32 %v9317, %v9281
      %v9606 = vadd.f32 %v9318, %v9282
      %v9607 = vadd.f32 %v9319, %v9283
      %v9608 = vadd.f32 %v9320, %v9284
      %v9609 = vadd.f32 %v9321, %v9285
      %v9610 = vadd.f32 %v9322, %v9286
      %v9611 = vadd.f32 %v9323, %v9287
      %v9612 = vadd.f32 %v9324, %v9288
      %v9613 = vadd.f32 %v9325, %v9289
      %v9614 = vadd.f32 %v9326, %v9290
      %v9615 = vadd.f32 %v9327, %v9291
      %v9616 = vadd.f32 %v9328, %v9292
      %v9617 = vadd.f32 %v9329, %v9293
      %v9618 = vadd.f32 %v9330, %v9294
      %v9619 = vadd.f32 %v9331, %v9295
      %v9620 = vadd.f32 %v9332, %v9296
      %v9621 = vadd.f32 %v9333, %v9297
      %v9622 = vadd.f32 %v9334, %v9298
      %v9623 = vadd.f32 %v9335, %v9299
      %v9624 = vadd.f32 %v9336, %v9300
      %v9625 = vadd.f32 %v9337, %v9301
      %v9626 = vadd.f32 %v9338, %v9302
      %v9627 = vadd.f32 %v9339, %v9303
      %v9628 = vadd.f32 %v9340, %v9304
      %v9629 = vadd.f32 %v9341, %v9305
      %v9630 = vadd.f32 %v9342, %v9306
      %v9631 = vadd.f32 %v9343, %v9307
      %v9632 = vadd.f32 %v9344, %v9308
      %v9633 = vadd.f32 %v9345, %v9309
      %v9634 = vadd.f32 %v9346, %v9310
      %v9635 = vadd.f32 %v9347, %v9311
      %v9636 = vadd.f32 %v9348, %v9312
      %v9637 = vadd.f32 %v9349, %v9313
      %v9638 = vadd.f32 %v9350, %v9314
      %v9639 = vadd.f32 %v9351, %v9315
      %9676 = vrot.lane.b32.xlu0 %v9533, 2
      %v9677 = vpop.permute.xlu0 %9676
      %9678 = vrot.lane.b32.xlu0 %v9535, 2
      %v9679 = vpop.permute.xlu0 %9678
      %9680 = vrot.lane.b32.xlu0 %v9537, 2
      %v9681 = vpop.permute.xlu0 %9680
      %9682 = vrot.lane.b32.xlu0 %v9539, 2
      %v9683 = vpop.permute.xlu0 %9682
      %9684 = vrot.lane.b32.xlu0 %v9541, 2
      %v9685 = vpop.permute.xlu0 %9684
      %9686 = vrot.lane.b32.xlu0 %v9543, 2
      %v9687 = vpop.permute.xlu0 %9686
      %9688 = vrot.lane.b32.xlu0 %v9545, 2
      %v9689 = vpop.permute.xlu0 %9688
      %9690 = vrot.lane.b32.xlu0 %v9547, 2
      %v9691 = vpop.permute.xlu0 %9690
      %9692 = vrot.lane.b32.xlu0 %v9549, 2
      %v9693 = vpop.permute.xlu0 %9692
      %9694 = vrot.lane.b32.xlu0 %v9551, 2
      %v9695 = vpop.permute.xlu0 %9694
      %9696 = vrot.lane.b32.xlu0 %v9553, 2
      %v9697 = vpop.permute.xlu0 %9696
      %9698 = vrot.lane.b32.xlu0 %v9555, 2
      %v9699 = vpop.permute.xlu0 %9698
      %9700 = vrot.lane.b32.xlu0 %v9557, 2
      %v9701 = vpop.permute.xlu0 %9700
      %9702 = vrot.lane.b32.xlu0 %v9559, 2
      %v9703 = vpop.permute.xlu0 %9702
      %9704 = vrot.lane.b32.xlu0 %v9561, 2
      %v9705 = vpop.permute.xlu0 %9704
      %9706 = vrot.lane.b32.xlu0 %v9563, 2
      %v9707 = vpop.permute.xlu0 %9706
      %9708 = vrot.lane.b32.xlu0 %v9565, 2
      %v9709 = vpop.permute.xlu0 %9708
      %9710 = vrot.lane.b32.xlu0 %v9567, 2
      %v9711 = vpop.permute.xlu0 %9710
      %9712 = vrot.lane.b32.xlu0 %v9569, 2
      %v9713 = vpop.permute.xlu0 %9712
      %9714 = vrot.lane.b32.xlu0 %v9571, 2
      %v9715 = vpop.permute.xlu0 %9714
      %9716 = vrot.lane.b32.xlu0 %v9573, 2
      %v9717 = vpop.permute.xlu0 %9716
      %9718 = vrot.lane.b32.xlu0 %v9575, 2
      %v9719 = vpop.permute.xlu0 %9718
      %9720 = vrot.lane.b32.xlu0 %v9577, 2
      %v9721 = vpop.permute.xlu0 %9720
      %9722 = vrot.lane.b32.xlu0 %v9579, 2
      %v9723 = vpop.permute.xlu0 %9722
      %9724 = vrot.lane.b32.xlu0 %v9581, 2
      %v9725 = vpop.permute.xlu0 %9724
      %9726 = vrot.lane.b32.xlu0 %v9583, 2
      %v9727 = vpop.permute.xlu0 %9726
      %9728 = vrot.lane.b32.xlu0 %v9585, 2
      %v9729 = vpop.permute.xlu0 %9728
      %9730 = vrot.lane.b32.xlu0 %v9587, 2
      %v9731 = vpop.permute.xlu0 %9730
      %9732 = vrot.lane.b32.xlu0 %v9589, 2
      %v9733 = vpop.permute.xlu0 %9732
      %9734 = vrot.lane.b32.xlu0 %v9591, 2
      %v9735 = vpop.permute.xlu0 %9734
      %9736 = vrot.lane.b32.xlu0 %v9593, 2
      %v9737 = vpop.permute.xlu0 %9736
      %9738 = vrot.lane.b32.xlu0 %v9595, 2
      %v9739 = vpop.permute.xlu0 %9738
      %9740 = vrot.lane.b32.xlu0 %v9597, 2
      %v9741 = vpop.permute.xlu0 %9740
      %9742 = vrot.lane.b32.xlu0 %v9599, 2
      %v9743 = vpop.permute.xlu0 %9742
      %9744 = vrot.lane.b32.xlu0 %v9601, 2
      %v9745 = vpop.permute.xlu0 %9744
      %9746 = vrot.lane.b32.xlu0 %v9603, 2
      %v9747 = vpop.permute.xlu0 %9746
      %v9784 = vmul.f32 %v9604, %v9677
      %v9785 = vmul.f32 %v9605, %v9679
      %v9786 = vmul.f32 %v9606, %v9681
      %v9787 = vmul.f32 %v9607, %v9683
      %v9788 = vmul.f32 %v9608, %v9685
      %v9789 = vmul.f32 %v9609, %v9687
      %v9790 = vmul.f32 %v9610, %v9689
      %v9791 = vmul.f32 %v9611, %v9691
      %v9792 = vmul.f32 %v9612, %v9693
      %v9793 = vmul.f32 %v9613, %v9695
      %v9794 = vmul.f32 %v9614, %v9697
      %v9795 = vmul.f32 %v9615, %v9699
      %v9796 = vmul.f32 %v9616, %v9701
      %v9797 = vmul.f32 %v9617, %v9703
      %v9798 = vmul.f32 %v9618, %v9705
      %v9799 = vmul.f32 %v9619, %v9707
      %v9800 = vmul.f32 %v9620, %v9709
      %v9801 = vmul.f32 %v9621, %v9711
      %v9802 = vmul.f32 %v9622, %v9713
      %v9803 = vmul.f32 %v9623, %v9715
      %v9804 = vmul.f32 %v9624, %v9717
      %v9805 = vmul.f32 %v9625, %v9719
      %v9806 = vmul.f32 %v9626, %v9721
      %v9807 = vmul.f32 %v9627, %v9723
      %v9808 = vmul.f32 %v9628, %v9725
      %v9809 = vmul.f32 %v9629, %v9727
      %v9810 = vmul.f32 %v9630, %v9729
      %v9811 = vmul.f32 %v9631, %v9731
      %v9812 = vmul.f32 %v9632, %v9733
      %v9813 = vmul.f32 %v9633, %v9735
      %v9814 = vmul.f32 %v9634, %v9737
      %v9815 = vmul.f32 %v9635, %v9739
      %v9816 = vmul.f32 %v9636, %v9741
      %v9817 = vmul.f32 %v9637, %v9743
      %v9818 = vmul.f32 %v9638, %v9745
      %v9819 = vmul.f32 %v9639, %v9747
      %v9820 = vsel %vm1191, %v9316, %v9784
      %v9821 = vsel %vm1191, %v9317, %v9785
      %v9822 = vsel %vm1191, %v9318, %v9786
      %v9823 = vsel %vm1191, %v9319, %v9787
      %v9824 = vsel %vm1191, %v9320, %v9788
      %v9825 = vsel %vm1191, %v9321, %v9789
      %v9826 = vsel %vm1191, %v9322, %v9790
      %v9827 = vsel %vm1191, %v9323, %v9791
      %v9828 = vsel %vm1191, %v9324, %v9792
      %v9829 = vsel %vm1191, %v9325, %v9793
      %v9830 = vsel %vm1191, %v9326, %v9794
      %v9831 = vsel %vm1191, %v9327, %v9795
      %v9832 = vsel %vm1191, %v9328, %v9796
      %v9833 = vsel %vm1191, %v9329, %v9797
      %v9834 = vsel %vm1191, %v9330, %v9798
      %v9835 = vsel %vm1191, %v9331, %v9799
      %v9836 = vsel %vm1191, %v9332, %v9800
      %v9837 = vsel %vm1191, %v9333, %v9801
      %v9838 = vsel %vm1191, %v9334, %v9802
      %v9839 = vsel %vm1191, %v9335, %v9803
      %v9840 = vsel %vm1191, %v9336, %v9804
      %v9841 = vsel %vm1191, %v9337, %v9805
      %v9842 = vsel %vm1191, %v9338, %v9806
      %v9843 = vsel %vm1191, %v9339, %v9807
      %v9844 = vsel %vm1191, %v9340, %v9808
      %v9845 = vsel %vm1191, %v9341, %v9809
      %v9846 = vsel %vm1191, %v9342, %v9810
      %v9847 = vsel %vm1191, %v9343, %v9811
      %v9848 = vsel %vm1191, %v9344, %v9812
      %v9849 = vsel %vm1191, %v9345, %v9813
      %v9850 = vsel %vm1191, %v9346, %v9814
      %v9851 = vsel %vm1191, %v9347, %v9815
      %v9852 = vsel %vm1191, %v9348, %v9816
      %v9853 = vsel %vm1191, %v9349, %v9817
      %v9854 = vsel %vm1191, %v9350, %v9818
      %v9855 = vsel %vm1191, %v9351, %v9819
      %9856 = vxpose.xlu0.b32.start [1/16] %v9820, 128
      %9857 = vxpose.xlu0.b32.cont [2/16] %v9821, 128
      %9858 = vxpose.xlu0.b32.cont [3/16] %v9822, 128
      %9859 = vxpose.xlu0.b32.cont [4/16] %v9823, 128
      %9860 = vxpose.xlu0.b32.cont [5/16] %v9824, 128
      %9861 = vxpose.xlu0.b32.cont [6/16] %v9825, 128
      %9862 = vxpose.xlu0.b32.cont [7/16] %v9826, 128
      %9863 = vxpose.xlu0.b32.cont [8/16] %v9827, 128
      %9864 = vxpose.xlu0.b32.cont [9/16] %v9828, 128
      %9865 = vxpose.xlu0.b32.cont [10/16] %v9829, 128
      %9866 = vxpose.xlu0.b32.cont [11/16] %v9830, 128
      %9867 = vxpose.xlu0.b32.cont [12/16] %v9831, 128
      %9868 = vxpose.xlu0.b32.cont [13/16] %v9832, 128
      %9869 = vxpose.xlu0.b32.cont [14/16] %v9833, 128
      %9870 = vxpose.xlu0.b32.cont [15/16] %v9834, 128
      %9871 = vxpose.xlu0.b32.end [16/16] %v9835, 128
      %v9872 = vpop.trf.xlu0
      %v9873 = vpop.trf.xlu0
      %v9874 = vpop.trf.xlu0
      %v9875 = vpop.trf.xlu0
      %v9876 = vpop.trf.xlu0
      %v9877 = vpop.trf.xlu0
      %v9878 = vpop.trf.xlu0
      %v9879 = vpop.trf.xlu0
      %v9880 = vpop.trf.xlu0
      %v9881 = vpop.trf.xlu0
      %v9882 = vpop.trf.xlu0
      %v9883 = vpop.trf.xlu0
      %v9884 = vpop.trf.xlu0
      %v9885 = vpop.trf.xlu0
      %v9886 = vpop.trf.xlu0
      %v9887 = vpop.trf.xlu0
      %9888 = vxpose.xlu0.b32.start [1/16] %v9836, 128
      %9889 = vxpose.xlu0.b32.cont [2/16] %v9837, 128
      %9890 = vxpose.xlu0.b32.cont [3/16] %v9838, 128
      %9891 = vxpose.xlu0.b32.cont [4/16] %v9839, 128
      %9892 = vxpose.xlu0.b32.cont [5/16] %v9840, 128
      %9893 = vxpose.xlu0.b32.cont [6/16] %v9841, 128
      %9894 = vxpose.xlu0.b32.cont [7/16] %v9842, 128
      %9895 = vxpose.xlu0.b32.cont [8/16] %v9843, 128
      %9896 = vxpose.xlu0.b32.cont [9/16] %v9844, 128
      %9897 = vxpose.xlu0.b32.cont [10/16] %v9845, 128
      %9898 = vxpose.xlu0.b32.cont [11/16] %v9846, 128
      %9899 = vxpose.xlu0.b32.cont [12/16] %v9847, 128
      %9900 = vxpose.xlu0.b32.cont [13/16] %v9848, 128
      %9901 = vxpose.xlu0.b32.cont [14/16] %v9849, 128
      %9902 = vxpose.xlu0.b32.cont [15/16] %v9850, 128
      %9903 = vxpose.xlu0.b32.end [16/16] %v9851, 128
      %v9904 = vpop.trf.xlu0
      %v9905 = vpop.trf.xlu0
      %v9906 = vpop.trf.xlu0
      %v9907 = vpop.trf.xlu0
      %v9908 = vpop.trf.xlu0
      %v9909 = vpop.trf.xlu0
      %v9910 = vpop.trf.xlu0
      %v9911 = vpop.trf.xlu0
      %v9912 = vpop.trf.xlu0
      %v9913 = vpop.trf.xlu0
      %v9914 = vpop.trf.xlu0
      %v9915 = vpop.trf.xlu0
      %v9916 = vpop.trf.xlu0
      %v9917 = vpop.trf.xlu0
      %v9918 = vpop.trf.xlu0
      %v9919 = vpop.trf.xlu0
      %9920 = vxpose.xlu0.b32.start [1/16] %v9852, 128
      %9921 = vxpose.xlu0.b32.cont [2/16] %v9853, 128
      %9922 = vxpose.xlu0.b32.cont [3/16] %v9854, 128
      %9923 = vxpose.xlu0.b32.cont [4/16] %v9855, 128
      %9924 = vxpose.xlu0.b32.cont [5/16] 0.0, 128
      %9925 = vxpose.xlu0.b32.cont [6/16] 0.0, 128
      %9926 = vxpose.xlu0.b32.cont [7/16] 0.0, 128
      %9927 = vxpose.xlu0.b32.cont [8/16] 0.0, 128
      %9928 = vxpose.xlu0.b32.cont [9/16] 0.0, 128
      %9929 = vxpose.xlu0.b32.cont [10/16] 0.0, 128
      %9930 = vxpose.xlu0.b32.cont [11/16] 0.0, 128
      %9931 = vxpose.xlu0.b32.cont [12/16] 0.0, 128
      %9932 = vxpose.xlu0.b32.cont [13/16] 0.0, 128
      %9933 = vxpose.xlu0.b32.cont [14/16] 0.0, 128
      %9934 = vxpose.xlu0.b32.cont [15/16] 0.0, 128
      %9935 = vxpose.xlu0.b32.end [16/16] 0.0, 128
      %v9936 = vpop.trf.xlu0
      %v9937 = vpop.trf.xlu0
      %v9938 = vpop.trf.xlu0
      %v9939 = vpop.trf.xlu0
      %v9940 = vpop.trf.xlu0
      %v9941 = vpop.trf.xlu0
      %v9942 = vpop.trf.xlu0
      %v9943 = vpop.trf.xlu0
      %v9944 = vpop.trf.xlu0
      %v9945 = vpop.trf.xlu0
      %v9946 = vpop.trf.xlu0
      %v9947 = vpop.trf.xlu0
      %v9948 = vpop.trf.xlu0
      %v9949 = vpop.trf.xlu0
      %v9950 = vpop.trf.xlu0
      %v9951 = vpop.trf.xlu0
      %v9954 = vcombine.low %v9872, %v9904
      %9956 = vst [vmem:[%s413] sm:$0xff] %v9954
      %vm9957 = vcmask 257024
      %9958 = vst.msk [vmem:[%s413 + $0x8] sm:$0xf] %vm9957, %v9936
      %p9959 = scmp.lt.s32.totalorder %s23, 1
      %s9960 = scalar_select %p9959, %s23, 1
      %s9961 = smul.addr %s9960, 3
      %s9962 = smul.addr %s9961, 4
      %s9963 = scalar_lea.vmem %s12, %s9962
      // Predicated region
      $region69: #{flow_forward.1} parent=67 // pred_check
        %p9964 = pneg %p298
      $region70: #{flow_forward.1} parent=67 // pred_check_branch
        %9966 = sbr.rel (%p9964) target = $region72
      $region71: #{flow_forward.1} parent=67 // pred_region
        _
      $region72: #{flow_forward.1} parent=67 // pred_fallthru
        _
    $region68: #{flow_forward.1} parent=5 // pred_fallthru
      _
    %p9967 = scmp.le.s32.totalorder 2, %s18
    // Predicated region
    $region73: #{flow_forward.1} parent=5 // pred_check
      %p9968 = pneg %p9967
    $region74: #{flow_forward.1} parent=5 // pred_check_branch
      %9970 = sbr.rel (%p9968) target = $region76
    $region75: #{flow_forward.1} parent=5 // pred_region
      %s9971 = ssub.s32 %s18, 2
      // Predicated region
      $region77: #{flow_forward.1} parent=75 // pred_check
        %p9972 = pneg %p304
      $region78: #{flow_forward.1} parent=75 // pred_check_branch
        %9974 = sbr.rel (%p9972) target = $region80
      $region79: #{flow_forward.1} parent=75 // pred_region
        %p9975 = scmp.lt.s32.totalorder %s24, 1
        %s9976 = scalar_select %p9975, %s24, 1
        %s9977 = smul.addr %s9976, 3
        %s9978 = smul.addr %s9977, 4
        %s9979 = scalar_lea.vmem %s12, %s9978
      $region80: #{flow_forward.1} parent=75 // pred_fallthru
        _
    $region76: #{flow_forward.1} parent=5 // pred_fallthru
      _
  $region6: #{flow_forward.1} parent=0 // loop_footer
    %s22 = sadd.s32 1, %s18
  $region7: #{flow_forward.1} parent=0 // loop_footer_branch
    %17 = sbr.rel target = $region3
  $region8: #{flow_forward.1} parent=0 // loop_exit
    _

</llo_original>
